<compile_context>
chip_gen: v6e
topology: v6e:2x2x1
jax: 0.10.0
libtpu: 0.0.40
codegen_flags: <defaults>
</compile_context>

<pallas_src>
import functools
import math

import jax
import jax.numpy as jnp
from jax.experimental import pallas as pl
from jax.experimental.pallas import tpu as pltpu

GROWTHS = 30       # fixed by ResidualDenseBlock(channels, 30) in DisNet
GROWTHS_PAD = 32   # growths padded so dense-concat chunk offsets are 32-lane aligned
CIN_PAD = 8        # input colors padded to a sublane-aligned K for conv1


def _leaky(v):
    # LeakyReLU(0.2): identical to where(v>0, v, 0.2v) for slope < 1.
    return jnp.maximum(v, 0.2 * v)


def _bf16(v):
    return v.astype(jnp.bfloat16)


# ---------------------------------------------------------------------------
# Fused Pallas kernel
# ---------------------------------------------------------------------------
def _disnet_fused_kernel(x_ref, w_ref, b_ref, o_ref, dbuf,
                         *, depth, C, Gp, slots):
    """conv1 -> depth x RDB -> conv2+res -> up,up -> conv3 -> conv4 (fused).

    Weights live in one packed f32 slab and are sliced lazily (bf16 cast just
    before each dot).  Each RDB conv is a single concatenated-K dot against
    the dense scratch buffer `dbuf` (bf16, K = C + 4*Gp)."""

    def wmat(i):
        off, k = slots[i]                      # static python ints
        return _bf16(w_ref[off:off + k, :])

    def bias(i):
        return b_ref[i:i + 1, :]               # (1, C) f32

    def dot(a, bb):
        return jnp.dot(a, bb, preferred_element_type=jnp.float32)

    li = 0

    # conv1 (no activation); x is channel-padded to the slot's K.
    x = _bf16(x_ref[...])
    feat0 = dot(x, wmat(li)) + bias(li)
    li += 1

    # trunk: `depth` ResidualDenseBlocks
    feat = feat0
    for _ in range(depth):
        dbuf[:, 0:C] = _bf16(feat)
        for j in range(4):                     # RDB conv1..conv4 (+ leaky)
            k = C + j * Gp
            o = _leaky(dot(dbuf[:, 0:k], wmat(li)) + bias(li))
            dbuf[:, k:k + Gp] = _bf16(o)
            li += 1
        # RDB conv5 (0.2 residual scale pre-folded into weights/bias) + residual
        feat = (dot(dbuf[...], wmat(li)) + bias(li)) + feat
        li += 1

    # conv2 + residual with conv1 output
    out = feat0 + (dot(_bf16(feat), wmat(li)) + bias(li))
    li += 1

    # upsampling conv (shared weights, applied twice).  The two nearest x2
    # upsamples commute with 1x1 convs and are applied after the kernel.
    w_up = wmat(li)
    b_up = bias(li)
    li += 1
    out = _leaky(dot(_bf16(out), w_up) + b_up)
    out = _leaky(dot(_bf16(out), w_up) + b_up)

    # conv3 (+leaky), conv4 (output columns zero-padded to C; real = colors)
    out = _leaky(dot(_bf16(out), wmat(li)) + bias(li))
    li += 1
    out = dot(_bf16(out), wmat(li)) + bias(li)
    li += 1

    o_ref[...] = out.astype(o_ref.dtype)


# ---------------------------------------------------------------------------
# pallas_call wrapper
# ---------------------------------------------------------------------------
def _pick_tiling(m):
    """Pick (tile_rows, padded_M).  Prefer the largest divisor tile with an
    even grid of >= 2 steps (amortizes per-step overhead, splits evenly across
    v7x's two TensorCores); then any divisor with >= 2 steps; else pad."""
    for prefer_even in (True, False):
        for tm in (2048, 1024, 512, 256, 128):
            if m % tm == 0:
                g = m // tm
                if g >= 2 and (g % 2 == 0 or not prefer_even):
                    return tm, m
    tm = 1024
    while tm > 128 and -(-m // tm) < 2:
        tm //= 2
    return tm, -(-m // tm) * tm


def disnet_fused(x2d, wslab, bslab, *, slots, C, Gp, depth):
    M, cin_p = x2d.shape
    TM, Mp = _pick_tiling(M)
    if Mp != M:
        x2d = jnp.pad(x2d, ((0, Mp - M), (0, 0)))
    grid = (Mp // TM,)

    kernel = functools.partial(_disnet_fused_kernel,
                               depth=depth, C=C, Gp=Gp, slots=slots)
    out = pl.pallas_call(
        kernel,
        out_shape=jax.ShapeDtypeStruct((Mp, C), jnp.float32),
        grid_spec=pltpu.PrefetchScalarGridSpec(
            num_scalar_prefetch=0,
            grid=grid,
            in_specs=[
                pl.BlockSpec((TM, cin_p), lambda i: (i, 0)),
                # packed, grid-invariant weight / bias slabs (loaded once)
                pl.BlockSpec(wslab.shape, lambda i: (0, 0)),
                pl.BlockSpec(bslab.shape, lambda i: (0, 0)),
            ],
            out_specs=pl.BlockSpec((TM, C), lambda i: (i, 0)),
            scratch_shapes=[pltpu.VMEM((TM, C + 4 * Gp), jnp.bfloat16)],
        ),
        compiler_params=pltpu.CompilerParams(
            dimension_semantics=("parallel",),
            vmem_limit_bytes=32 * 1024 * 1024),
    )(x2d, wslab, bslab)
    return out[:M] if Mp != M else out


# ---------------------------------------------------------------------------
# Parameters (kaiming-normal, zero bias) and prep-time packing
# ---------------------------------------------------------------------------
def make_conv(key, cin, cout):
    std = math.sqrt(2.0 / cin)
    w = jax.random.normal(key, (cin, cout), jnp.float32) * std
    b = jnp.zeros((cout,), jnp.float32)
    return w, b


def make_rdb(key, C, G):
    ks = jax.random.split(key, 5)
    return [make_conv(ks[0], C, G),
            make_conv(ks[1], C + G, G),
            make_conv(ks[2], C + 2 * G, G),
            make_conv(ks[3], C + 3 * G, G),
            make_conv(ks[4], C + 4 * G, C)]


def init_params(key, args):
    C, colors, depth = args["channels"], args["colors"], args["Module2_depth"]
    keys = jax.random.split(key, 5 + depth)
    return {
        "conv1": make_conv(keys[0], colors, C),
        "trunk": [make_rdb(keys[1 + i], C, GROWTHS) for i in range(depth)],
        "conv2": make_conv(keys[1 + depth], C, C),
        "up": make_conv(keys[2 + depth], C, C),   # shared across both up stages
        "conv3": make_conv(keys[3 + depth], C, C),
        "conv4": make_conv(keys[4 + depth], C, colors),
    }


def _pad_dense_rows(w, C, G, Gp, n_prev):
    """Re-index a dense-concat weight's rows from [C | n_prev*G] chunks onto
    [C | n_prev*Gp] chunk offsets (zero rows for the G->Gp channel pad)."""
    chunks = [w[:C]]
    for j in range(n_prev):
        chunk = w[C + j * G: C + (j + 1) * G]
        chunks.append(jnp.pad(chunk, ((0, Gp - G), (0, 0))))
    return jnp.concatenate(chunks, axis=0)


def pack_params(params, *, C, G, Gp, colors, cin_pad):
    """Pack all conv weights (rows re-indexed to 32-aligned dense-concat
    chunks, cols zero-padded to C) into one f32 weight slab + one bias slab.
    The RDB 0.2 residual scale is folded into conv5.  Returns
    (wslab, bslab, slots) where slots[i] = (row_offset, K) per layer."""
    assert Gp == C, "packed slab layout assumes padded growths == channels"
    Ws, Bs, slots = [], [], []

    def add(w, b):
        off = sum(int(x.shape[0]) for x in Ws)
        slots.append((off, int(w.shape[0])))
        Ws.append(w)
        Bs.append(b)

    w, b = params["conv1"]                       # input channels 3 -> cin_pad
    add(jnp.pad(w, ((0, cin_pad - colors), (0, 0))), b)

    for rdb in params["trunk"]:
        for j in range(4):                       # RDB conv1..conv4 (out G->Gp)
            wj, bj = rdb[j]
            wj = _pad_dense_rows(wj, C, G, Gp, j)
            add(jnp.pad(wj, ((0, 0), (0, Gp - G))), jnp.pad(bj, (0, Gp - G)))
        w5, b5 = rdb[4]                          # conv5: fold 0.2 residual scale
        add(_pad_dense_rows(w5, C, G, Gp, 4) * 0.2, b5 * 0.2)

    for name in ("conv2", "up", "conv3"):
        w, b = params[name]
        add(w, b)

    w, b = params["conv4"]                       # output cols colors -> C (zeros)
    add(jnp.pad(w, ((0, 0), (0, C - colors))), jnp.pad(b, (0, C - colors)))

    wslab = jnp.concatenate(Ws, axis=0)          # (K_total, C) f32
    bslab = jnp.stack(Bs, axis=0)                # (n_layers, C) f32
    return wslab, bslab, tuple(slots)


# ---------------------------------------------------------------------------
# Forward pass (glue in JAX, compute in one Pallas kernel)
# ---------------------------------------------------------------------------
def disnet_forward(x_nchw, wslab, bslab, *, slots, args):
    N, colors, H, W = x_nchw.shape
    scale = args["scale"]
    C = args["channels"]
    depth = args["Module2_depth"]

    # check_image_size: reflect-pad H/W to a multiple of lcm(window_sizes)
    wsize = args["window_sizes"][0]
    for s in args["window_sizes"][1:]:
        wsize = wsize * s // math.gcd(wsize, s)
    mod_pad_h = (wsize - H % wsize) % wsize
    mod_pad_w = (wsize - W % wsize) % wsize
    x = jnp.pad(x_nchw, ((0, 0), (0, 0), (0, mod_pad_h), (0, mod_pad_w)),
                mode="reflect")
    Hp, Wp = H + mod_pad_h, W + mod_pad_w

    # NCHW -> NHWC -> [M, cin_pad] (pixel-major, channels on the lane axis)
    xf = jnp.transpose(x, (0, 2, 3, 1)).reshape(N * Hp * Wp, colors)
    xf = jnp.pad(xf, ((0, 0), (0, CIN_PAD - colors)))

    out = disnet_fused(xf, wslab, bslab, slots=slots, C=C, Gp=GROWTHS_PAD,
                       depth=depth)

    # Take real color channels; single 4x nearest upsample (the two x2 nearest
    # stages commute with the 1x1 convs) via reshape+broadcast (no repeats).
    out = out[:, :colors].reshape(N, Hp, 1, Wp, 1, colors)
    out = jnp.broadcast_to(out, (N, Hp, 4, Wp, 4, colors))
    out = out.reshape(N, 4 * Hp, 4 * Wp, colors).transpose(0, 3, 1, 2)
    return out[:, :, 0:H * scale, 0:W * scale]


# ---------------------------------------------------------------------------
# Pure f32 JAX reference (mirrors the PyTorch forward) for a tolerance check
# ---------------------------------------------------------------------------
def disnet_reference(x_nchw, params, args):
    N, colors, H, W = x_nchw.shape
    scale = args["scale"]

    def lr(v):
        return jnp.where(v > 0, v, 0.2 * v)

    wsize = args["window_sizes"][0]
    for s in args["window_sizes"][1:]:
        wsize = wsize * s // math.gcd(wsize, s)
    mod_pad_h = (wsize - H % wsize) % wsize
    mod_pad_w = (wsize - W % wsize) % wsize
    x = jnp.pad(x_nchw, ((0, 0), (0, 0), (0, mod_pad_h), (0, mod_pad_w)),
                mode="reflect")
    x = jnp.transpose(x, (0, 2, 3, 1))           # NHWC

    def conv(t, p):
        w, b = p
        return t @ w + b

    f0 = conv(x, params["conv1"])
    f = f0
    for rdb in params["trunk"]:
        (w1, b1), (w2, b2), (w3, b3), (w4, b4), (w5, b5) = rdb
        o1 = lr(f @ w1 + b1)
        o2 = lr(jnp.concatenate([f, o1], -1) @ w2 + b2)
        o3 = lr(jnp.concatenate([f, o1, o2], -1) @ w3 + b3)
        o4 = lr(jnp.concatenate([f, o1, o2, o3], -1) @ w4 + b4)
        o5 = jnp.concatenate([f, o1, o2, o3, o4], -1) @ w5 + b5
        f = o5 * 0.2 + f

    out = f0 + conv(f, params["conv2"])

    def up2(t):
        return jnp.repeat(jnp.repeat(t, 2, axis=1), 2, axis=2)

    out = lr(conv(up2(out), params["up"]))
    out = lr(conv(up2(out), params["up"]))
    out = lr(conv(out, params["conv3"]))
    out = conv(out, params["conv4"])
    out = jnp.transpose(out, (0, 3, 1, 2))
    return out[:, :, 0:H * scale, 0:W * scale]


# ---------------------------------------------------------------------------
if __name__ == "__main__":
    args = dict(
        scale=4,               # the net always upsamples 4x (two nearest x2 stages)
        colors=3,
        window_sizes=[4, 8],
        Module2_depth=2,
        channels=32,
        r_expand=2,            # unused by the forward pass
    )

    key = jax.random.PRNGKey(0)
    k_in, k_par = jax.random.split(key)
    x = jax.random.normal(k_in, (2, args["colors"], 16, 16), jnp.float32)
    params = init_params(k_par, args)

    wslab, bslab, slots = pack_params(params, C=args["channels"], G=GROWTHS,
                                      Gp=GROWTHS_PAD, colors=args["colors"],
                                      cin_pad=CIN_PAD)

    fwd = jax.jit(functools.partial(disnet_forward, slots=slots, args=args))
    y = jax.block_until_ready(fwd(x, wslab, bslab))

    assert y.shape == (2, args["colors"], 16 * args["scale"], 16 * args["scale"]), y.shape
    assert y.dtype == jnp.float32

    # bf16 matmul operands (f32 accumulation) deviate slightly from the pure
    # f32 reference, so use a loose max-normalized tolerance.
    y_ref = disnet_reference(x, params, args)
    err = float(jnp.max(jnp.abs(y - y_ref)) / (jnp.max(jnp.abs(y_ref)) + 1e-6))
    assert err < 0.1, f"max-normalized error vs f32 reference too large: {err}"

    print("KERNEL_OK")
</pallas_src>

<mosaic_0001>
module attributes {stable_mosaic.version = 11 : i64} {
  func.func @_disnet_fused_kernel(%arg0: i32, %arg1: memref<256x8xf32, #tpu.memory_space<vmem>>, %arg2: memref<1096x32xf32, #tpu.memory_space<vmem>>, %arg3: memref<15x32xf32, #tpu.memory_space<vmem>>, %arg4: memref<256x32xf32, #tpu.memory_space<vmem>>, %arg5: memref<256x160xbf16, #tpu.memory_space<vmem>>) attributes {dimension_semantics = [#tpu.dimension_semantics<parallel>], iteration_bounds = array<i64: 2>, scalar_prefetch = 0 : i64, scratch_operands = 1 : i64, tpu.core_type = #tpu.core_type<tc>, window_params = [{transform_indices = @transform_0, window_bounds = array<i64: 256, 8>}, {pipeline_mode = #tpu.pipeline_mode<synchronous>, transform_indices = @transform_1, window_bounds = array<i64: 1096, 32>}, {pipeline_mode = #tpu.pipeline_mode<synchronous>, transform_indices = @transform_2, window_bounds = array<i64: 15, 32>}, {transform_indices = @transform_3, window_bounds = array<i64: 256, 32>}]} {
    %c0 = arith.constant 0 : index
    %c0_0 = arith.constant 0 : index
    %0 = vector.load %arg1[%c0, %c0_0] : memref<256x8xf32, #tpu.memory_space<vmem>>, vector<256x8xf32>
    %1 = arith.truncf %0 : vector<256x8xf32> to vector<256x8xbf16>
    %c0_1 = arith.constant 0 : index
    %c0_2 = arith.constant 0 : index
    %2 = vector.load %arg2[%c0_1, %c0_2] : memref<1096x32xf32, #tpu.memory_space<vmem>>, vector<8x32xf32>
    %3 = arith.truncf %2 : vector<8x32xf32> to vector<8x32xbf16>
    %cst = arith.constant dense<0.000000e+00> : vector<256x32xf32>
    %4 = tpu.matmul %1, %3, %cst {dimension_numbers = #tpu.dot_dimension_numbers<[1], [0], [0], [1], [0, 0, 1, 1], [], []>} : vector<256x8xbf16>, vector<8x32xbf16>, vector<256x32xf32> -> vector<256x32xf32>
    %c0_3 = arith.constant 0 : index
    %c0_4 = arith.constant 0 : index
    %5 = vector.load %arg3[%c0_3, %c0_4] : memref<15x32xf32, #tpu.memory_space<vmem>>, vector<1x32xf32>
    %6 = vector.broadcast %5 : vector<1x32xf32> to vector<256x32xf32>
    %7 = arith.addf %4, %6 : vector<256x32xf32>
    %8 = arith.truncf %7 : vector<256x32xf32> to vector<256x32xbf16>
    %c0_5 = arith.constant 0 : index
    %c0_6 = arith.constant 0 : index
    %9 = vector.load %arg5[%c0_5, %c0_6] : memref<256x160xbf16, #tpu.memory_space<vmem>>, vector<256x32xbf16>
    tpu.vector_store %arg5[%c0_5, %c0_6], %8 {strides = array<i32>} : memref<256x160xbf16, #tpu.memory_space<vmem>>, vector<256x32xbf16>,
    %c0_7 = arith.constant 0 : index
    %c0_8 = arith.constant 0 : index
    %10 = vector.load %arg5[%c0_7, %c0_8] : memref<256x160xbf16, #tpu.memory_space<vmem>>, vector<256x32xbf16>
    %c8 = arith.constant 8 : index
    %c0_9 = arith.constant 0 : index
    %11 = vector.load %arg2[%c8, %c0_9] : memref<1096x32xf32, #tpu.memory_space<vmem>>, vector<32x32xf32>
    %12 = arith.truncf %11 : vector<32x32xf32> to vector<32x32xbf16>
    %cst_10 = arith.constant dense<0.000000e+00> : vector<256x32xf32>
    %13 = tpu.matmul %10, %12, %cst_10 {dimension_numbers = #tpu.dot_dimension_numbers<[1], [0], [0], [1], [0, 0, 1, 1], [], []>} : vector<256x32xbf16>, vector<32x32xbf16>, vector<256x32xf32> -> vector<256x32xf32>
    %c1 = arith.constant 1 : index
    %c0_11 = arith.constant 0 : index
    %14 = vector.load %arg3[%c1, %c0_11] : memref<15x32xf32, #tpu.memory_space<vmem>>, vector<1x32xf32>
    %15 = vector.broadcast %14 : vector<1x32xf32> to vector<256x32xf32>
    %16 = arith.addf %13, %15 : vector<256x32xf32>
    %cst_12 = arith.constant 2.000000e-01 : f32
    %17 = vector.broadcast %cst_12 : f32 to vector<256x32xf32>
    %18 = arith.mulf %17, %16 : vector<256x32xf32>
    %19 = arith.maximumf %16, %18 : vector<256x32xf32>
    %20 = arith.truncf %19 : vector<256x32xf32> to vector<256x32xbf16>
    %c0_13 = arith.constant 0 : index
    %c32 = arith.constant 32 : index
    %21 = vector.load %arg5[%c0_13, %c32] : memref<256x160xbf16, #tpu.memory_space<vmem>>, vector<256x32xbf16>
    tpu.vector_store %arg5[%c0_13, %c32], %20 {strides = array<i32>} : memref<256x160xbf16, #tpu.memory_space<vmem>>, vector<256x32xbf16>,
    %c0_14 = arith.constant 0 : index
    %c0_15 = arith.constant 0 : index
    %22 = vector.load %arg5[%c0_14, %c0_15] : memref<256x160xbf16, #tpu.memory_space<vmem>>, vector<256x64xbf16>
    %c40 = arith.constant 40 : index
    %c0_16 = arith.constant 0 : index
    %23 = vector.load %arg2[%c40, %c0_16] : memref<1096x32xf32, #tpu.memory_space<vmem>>, vector<64x32xf32>
    %24 = arith.truncf %23 : vector<64x32xf32> to vector<64x32xbf16>
    %cst_17 = arith.constant dense<0.000000e+00> : vector<256x32xf32>
    %25 = tpu.matmul %22, %24, %cst_17 {dimension_numbers = #tpu.dot_dimension_numbers<[1], [0], [0], [1], [0, 0, 1, 1], [], []>} : vector<256x64xbf16>, vector<64x32xbf16>, vector<256x32xf32> -> vector<256x32xf32>
    %c2 = arith.constant 2 : index
    %c0_18 = arith.constant 0 : index
    %26 = vector.load %arg3[%c2, %c0_18] : memref<15x32xf32, #tpu.memory_space<vmem>>, vector<1x32xf32>
    %27 = vector.broadcast %26 : vector<1x32xf32> to vector<256x32xf32>
    %28 = arith.addf %25, %27 : vector<256x32xf32>
    %cst_19 = arith.constant 2.000000e-01 : f32
    %29 = vector.broadcast %cst_19 : f32 to vector<256x32xf32>
    %30 = arith.mulf %29, %28 : vector<256x32xf32>
    %31 = arith.maximumf %28, %30 : vector<256x32xf32>
    %32 = arith.truncf %31 : vector<256x32xf32> to vector<256x32xbf16>
    %c0_20 = arith.constant 0 : index
    %c64 = arith.constant 64 : index
    %33 = vector.load %arg5[%c0_20, %c64] : memref<256x160xbf16, #tpu.memory_space<vmem>>, vector<256x32xbf16>
    tpu.vector_store %arg5[%c0_20, %c64], %32 {strides = array<i32>} : memref<256x160xbf16, #tpu.memory_space<vmem>>, vector<256x32xbf16>,
    %c0_21 = arith.constant 0 : index
    %c0_22 = arith.constant 0 : index
    %34 = vector.load %arg5[%c0_21, %c0_22] : memref<256x160xbf16, #tpu.memory_space<vmem>>, vector<256x96xbf16>
    %c104 = arith.constant 104 : index
    %c0_23 = arith.constant 0 : index
    %35 = vector.load %arg2[%c104, %c0_23] : memref<1096x32xf32, #tpu.memory_space<vmem>>, vector<96x32xf32>
    %36 = arith.truncf %35 : vector<96x32xf32> to vector<96x32xbf16>
    %cst_24 = arith.constant dense<0.000000e+00> : vector<256x32xf32>
    %37 = tpu.matmul %34, %36, %cst_24 {dimension_numbers = #tpu.dot_dimension_numbers<[1], [0], [0], [1], [0, 0, 1, 1], [], []>} : vector<256x96xbf16>, vector<96x32xbf16>, vector<256x32xf32> -> vector<256x32xf32>
    %c3 = arith.constant 3 : index
    %c0_25 = arith.constant 0 : index
    %38 = vector.load %arg3[%c3, %c0_25] : memref<15x32xf32, #tpu.memory_space<vmem>>, vector<1x32xf32>
    %39 = vector.broadcast %38 : vector<1x32xf32> to vector<256x32xf32>
    %40 = arith.addf %37, %39 : vector<256x32xf32>
    %cst_26 = arith.constant 2.000000e-01 : f32
    %41 = vector.broadcast %cst_26 : f32 to vector<256x32xf32>
    %42 = arith.mulf %41, %40 : vector<256x32xf32>
    %43 = arith.maximumf %40, %42 : vector<256x32xf32>
    %44 = arith.truncf %43 : vector<256x32xf32> to vector<256x32xbf16>
    %c0_27 = arith.constant 0 : index
    %c96 = arith.constant 96 : index
    %45 = vector.load %arg5[%c0_27, %c96] : memref<256x160xbf16, #tpu.memory_space<vmem>>, vector<256x32xbf16>
    tpu.vector_store %arg5[%c0_27, %c96], %44 {strides = array<i32>} : memref<256x160xbf16, #tpu.memory_space<vmem>>, vector<256x32xbf16>,
    %c0_28 = arith.constant 0 : index
    %c0_29 = arith.constant 0 : index
    %46 = vector.load %arg5[%c0_28, %c0_29] : memref<256x160xbf16, #tpu.memory_space<vmem>>, vector<256x128xbf16>
    %c200 = arith.constant 200 : index
    %c0_30 = arith.constant 0 : index
    %47 = vector.load %arg2[%c200, %c0_30] : memref<1096x32xf32, #tpu.memory_space<vmem>>, vector<128x32xf32>
    %48 = arith.truncf %47 : vector<128x32xf32> to vector<128x32xbf16>
    %cst_31 = arith.constant dense<0.000000e+00> : vector<256x32xf32>
    %49 = tpu.matmul %46, %48, %cst_31 {dimension_numbers = #tpu.dot_dimension_numbers<[1], [0], [0], [1], [0, 0, 1, 1], [], []>} : vector<256x128xbf16>, vector<128x32xbf16>, vector<256x32xf32> -> vector<256x32xf32>
    %c4 = arith.constant 4 : index
    %c0_32 = arith.constant 0 : index
    %50 = vector.load %arg3[%c4, %c0_32] : memref<15x32xf32, #tpu.memory_space<vmem>>, vector<1x32xf32>
    %51 = vector.broadcast %50 : vector<1x32xf32> to vector<256x32xf32>
    %52 = arith.addf %49, %51 : vector<256x32xf32>
    %cst_33 = arith.constant 2.000000e-01 : f32
    %53 = vector.broadcast %cst_33 : f32 to vector<256x32xf32>
    %54 = arith.mulf %53, %52 : vector<256x32xf32>
    %55 = arith.maximumf %52, %54 : vector<256x32xf32>
    %56 = arith.truncf %55 : vector<256x32xf32> to vector<256x32xbf16>
    %c0_34 = arith.constant 0 : index
    %c128 = arith.constant 128 : index
    %57 = vector.load %arg5[%c0_34, %c128] : memref<256x160xbf16, #tpu.memory_space<vmem>>, vector<256x32xbf16>
    tpu.vector_store %arg5[%c0_34, %c128], %56 {strides = array<i32>} : memref<256x160xbf16, #tpu.memory_space<vmem>>, vector<256x32xbf16>,
    %c0_35 = arith.constant 0 : index
    %c0_36 = arith.constant 0 : index
    %58 = vector.load %arg5[%c0_35, %c0_36] : memref<256x160xbf16, #tpu.memory_space<vmem>>, vector<256x160xbf16>
    %c328 = arith.constant 328 : index
    %c0_37 = arith.constant 0 : index
    %59 = vector.load %arg2[%c328, %c0_37] : memref<1096x32xf32, #tpu.memory_space<vmem>>, vector<160x32xf32>
    %60 = arith.truncf %59 : vector<160x32xf32> to vector<160x32xbf16>
    %cst_38 = arith.constant dense<0.000000e+00> : vector<256x32xf32>
    %61 = tpu.matmul %58, %60, %cst_38 {dimension_numbers = #tpu.dot_dimension_numbers<[1], [0], [0], [1], [0, 0, 1, 1], [], []>} : vector<256x160xbf16>, vector<160x32xbf16>, vector<256x32xf32> -> vector<256x32xf32>
    %c5 = arith.constant 5 : index
    %c0_39 = arith.constant 0 : index
    %62 = vector.load %arg3[%c5, %c0_39] : memref<15x32xf32, #tpu.memory_space<vmem>>, vector<1x32xf32>
    %63 = vector.broadcast %62 : vector<1x32xf32> to vector<256x32xf32>
    %64 = arith.addf %61, %63 : vector<256x32xf32>
    %65 = arith.addf %64, %7 : vector<256x32xf32>
    %66 = arith.truncf %65 : vector<256x32xf32> to vector<256x32xbf16>
    %c0_40 = arith.constant 0 : index
    %c0_41 = arith.constant 0 : index
    %67 = vector.load %arg5[%c0_40, %c0_41] : memref<256x160xbf16, #tpu.memory_space<vmem>>, vector<256x32xbf16>
    tpu.vector_store %arg5[%c0_40, %c0_41], %66 {strides = array<i32>} : memref<256x160xbf16, #tpu.memory_space<vmem>>, vector<256x32xbf16>,
    %c0_42 = arith.constant 0 : index
    %c0_43 = arith.constant 0 : index
    %68 = vector.load %arg5[%c0_42, %c0_43] : memref<256x160xbf16, #tpu.memory_space<vmem>>, vector<256x32xbf16>
    %c488 = arith.constant 488 : index
    %c0_44 = arith.constant 0 : index
    %69 = vector.load %arg2[%c488, %c0_44] : memref<1096x32xf32, #tpu.memory_space<vmem>>, vector<32x32xf32>
    %70 = arith.truncf %69 : vector<32x32xf32> to vector<32x32xbf16>
    %cst_45 = arith.constant dense<0.000000e+00> : vector<256x32xf32>
    %71 = tpu.matmul %68, %70, %cst_45 {dimension_numbers = #tpu.dot_dimension_numbers<[1], [0], [0], [1], [0, 0, 1, 1], [], []>} : vector<256x32xbf16>, vector<32x32xbf16>, vector<256x32xf32> -> vector<256x32xf32>
    %c6 = arith.constant 6 : index
    %c0_46 = arith.constant 0 : index
    %72 = vector.load %arg3[%c6, %c0_46] : memref<15x32xf32, #tpu.memory_space<vmem>>, vector<1x32xf32>
    %73 = vector.broadcast %72 : vector<1x32xf32> to vector<256x32xf32>
    %74 = arith.addf %71, %73 : vector<256x32xf32>
    %cst_47 = arith.constant 2.000000e-01 : f32
    %75 = vector.broadcast %cst_47 : f32 to vector<256x32xf32>
    %76 = arith.mulf %75, %74 : vector<256x32xf32>
    %77 = arith.maximumf %74, %76 : vector<256x32xf32>
    %78 = arith.truncf %77 : vector<256x32xf32> to vector<256x32xbf16>
    %c0_48 = arith.constant 0 : index
    %c32_49 = arith.constant 32 : index
    %79 = vector.load %arg5[%c0_48, %c32_49] : memref<256x160xbf16, #tpu.memory_space<vmem>>, vector<256x32xbf16>
    tpu.vector_store %arg5[%c0_48, %c32_49], %78 {strides = array<i32>} : memref<256x160xbf16, #tpu.memory_space<vmem>>, vector<256x32xbf16>,
    %c0_50 = arith.constant 0 : index
    %c0_51 = arith.constant 0 : index
    %80 = vector.load %arg5[%c0_50, %c0_51] : memref<256x160xbf16, #tpu.memory_space<vmem>>, vector<256x64xbf16>
    %c520 = arith.constant 520 : index
    %c0_52 = arith.constant 0 : index
    %81 = vector.load %arg2[%c520, %c0_52] : memref<1096x32xf32, #tpu.memory_space<vmem>>, vector<64x32xf32>
    %82 = arith.truncf %81 : vector<64x32xf32> to vector<64x32xbf16>
    %cst_53 = arith.constant dense<0.000000e+00> : vector<256x32xf32>
    %83 = tpu.matmul %80, %82, %cst_53 {dimension_numbers = #tpu.dot_dimension_numbers<[1], [0], [0], [1], [0, 0, 1, 1], [], []>} : vector<256x64xbf16>, vector<64x32xbf16>, vector<256x32xf32> -> vector<256x32xf32>
    %c7 = arith.constant 7 : index
    %c0_54 = arith.constant 0 : index
    %84 = vector.load %arg3[%c7, %c0_54] : memref<15x32xf32, #tpu.memory_space<vmem>>, vector<1x32xf32>
    %85 = vector.broadcast %84 : vector<1x32xf32> to vector<256x32xf32>
    %86 = arith.addf %83, %85 : vector<256x32xf32>
    %cst_55 = arith.constant 2.000000e-01 : f32
    %87 = vector.broadcast %cst_55 : f32 to vector<256x32xf32>
    %88 = arith.mulf %87, %86 : vector<256x32xf32>
    %89 = arith.maximumf %86, %88 : vector<256x32xf32>
    %90 = arith.truncf %89 : vector<256x32xf32> to vector<256x32xbf16>
    %c0_56 = arith.constant 0 : index
    %c64_57 = arith.constant 64 : index
    %91 = vector.load %arg5[%c0_56, %c64_57] : memref<256x160xbf16, #tpu.memory_space<vmem>>, vector<256x32xbf16>
    tpu.vector_store %arg5[%c0_56, %c64_57], %90 {strides = array<i32>} : memref<256x160xbf16, #tpu.memory_space<vmem>>, vector<256x32xbf16>,
    %c0_58 = arith.constant 0 : index
    %c0_59 = arith.constant 0 : index
    %92 = vector.load %arg5[%c0_58, %c0_59] : memref<256x160xbf16, #tpu.memory_space<vmem>>, vector<256x96xbf16>
    %c584 = arith.constant 584 : index
    %c0_60 = arith.constant 0 : index
    %93 = vector.load %arg2[%c584, %c0_60] : memref<1096x32xf32, #tpu.memory_space<vmem>>, vector<96x32xf32>
    %94 = arith.truncf %93 : vector<96x32xf32> to vector<96x32xbf16>
    %cst_61 = arith.constant dense<0.000000e+00> : vector<256x32xf32>
    %95 = tpu.matmul %92, %94, %cst_61 {dimension_numbers = #tpu.dot_dimension_numbers<[1], [0], [0], [1], [0, 0, 1, 1], [], []>} : vector<256x96xbf16>, vector<96x32xbf16>, vector<256x32xf32> -> vector<256x32xf32>
    %c8_62 = arith.constant 8 : index
    %c0_63 = arith.constant 0 : index
    %96 = vector.load %arg3[%c8_62, %c0_63] : memref<15x32xf32, #tpu.memory_space<vmem>>, vector<1x32xf32>
    %97 = vector.broadcast %96 : vector<1x32xf32> to vector<256x32xf32>
    %98 = arith.addf %95, %97 : vector<256x32xf32>
    %cst_64 = arith.constant 2.000000e-01 : f32
    %99 = vector.broadcast %cst_64 : f32 to vector<256x32xf32>
    %100 = arith.mulf %99, %98 : vector<256x32xf32>
    %101 = arith.maximumf %98, %100 : vector<256x32xf32>
    %102 = arith.truncf %101 : vector<256x32xf32> to vector<256x32xbf16>
    %c0_65 = arith.constant 0 : index
    %c96_66 = arith.constant 96 : index
    %103 = vector.load %arg5[%c0_65, %c96_66] : memref<256x160xbf16, #tpu.memory_space<vmem>>, vector<256x32xbf16>
    tpu.vector_store %arg5[%c0_65, %c96_66], %102 {strides = array<i32>} : memref<256x160xbf16, #tpu.memory_space<vmem>>, vector<256x32xbf16>,
    %c0_67 = arith.constant 0 : index
    %c0_68 = arith.constant 0 : index
    %104 = vector.load %arg5[%c0_67, %c0_68] : memref<256x160xbf16, #tpu.memory_space<vmem>>, vector<256x128xbf16>
    %c680 = arith.constant 680 : index
    %c0_69 = arith.constant 0 : index
    %105 = vector.load %arg2[%c680, %c0_69] : memref<1096x32xf32, #tpu.memory_space<vmem>>, vector<128x32xf32>
    %106 = arith.truncf %105 : vector<128x32xf32> to vector<128x32xbf16>
    %cst_70 = arith.constant dense<0.000000e+00> : vector<256x32xf32>
    %107 = tpu.matmul %104, %106, %cst_70 {dimension_numbers = #tpu.dot_dimension_numbers<[1], [0], [0], [1], [0, 0, 1, 1], [], []>} : vector<256x128xbf16>, vector<128x32xbf16>, vector<256x32xf32> -> vector<256x32xf32>
    %c9 = arith.constant 9 : index
    %c0_71 = arith.constant 0 : index
    %108 = vector.load %arg3[%c9, %c0_71] : memref<15x32xf32, #tpu.memory_space<vmem>>, vector<1x32xf32>
    %109 = vector.broadcast %108 : vector<1x32xf32> to vector<256x32xf32>
    %110 = arith.addf %107, %109 : vector<256x32xf32>
    %cst_72 = arith.constant 2.000000e-01 : f32
    %111 = vector.broadcast %cst_72 : f32 to vector<256x32xf32>
    %112 = arith.mulf %111, %110 : vector<256x32xf32>
    %113 = arith.maximumf %110, %112 : vector<256x32xf32>
    %114 = arith.truncf %113 : vector<256x32xf32> to vector<256x32xbf16>
    %c0_73 = arith.constant 0 : index
    %c128_74 = arith.constant 128 : index
    %115 = vector.load %arg5[%c0_73, %c128_74] : memref<256x160xbf16, #tpu.memory_space<vmem>>, vector<256x32xbf16>
    tpu.vector_store %arg5[%c0_73, %c128_74], %114 {strides = array<i32>} : memref<256x160xbf16, #tpu.memory_space<vmem>>, vector<256x32xbf16>,
    %c0_75 = arith.constant 0 : index
    %c0_76 = arith.constant 0 : index
    %116 = vector.load %arg5[%c0_75, %c0_76] : memref<256x160xbf16, #tpu.memory_space<vmem>>, vector<256x160xbf16>
    %c808 = arith.constant 808 : index
    %c0_77 = arith.constant 0 : index
    %117 = vector.load %arg2[%c808, %c0_77] : memref<1096x32xf32, #tpu.memory_space<vmem>>, vector<160x32xf32>
    %118 = arith.truncf %117 : vector<160x32xf32> to vector<160x32xbf16>
    %cst_78 = arith.constant dense<0.000000e+00> : vector<256x32xf32>
    %119 = tpu.matmul %116, %118, %cst_78 {dimension_numbers = #tpu.dot_dimension_numbers<[1], [0], [0], [1], [0, 0, 1, 1], [], []>} : vector<256x160xbf16>, vector<160x32xbf16>, vector<256x32xf32> -> vector<256x32xf32>
    %c10 = arith.constant 10 : index
    %c0_79 = arith.constant 0 : index
    %120 = vector.load %arg3[%c10, %c0_79] : memref<15x32xf32, #tpu.memory_space<vmem>>, vector<1x32xf32>
    %121 = vector.broadcast %120 : vector<1x32xf32> to vector<256x32xf32>
    %122 = arith.addf %119, %121 : vector<256x32xf32>
    %123 = arith.addf %122, %65 : vector<256x32xf32>
    %124 = arith.truncf %123 : vector<256x32xf32> to vector<256x32xbf16>
    %c968 = arith.constant 968 : index
    %c0_80 = arith.constant 0 : index
    %125 = vector.load %arg2[%c968, %c0_80] : memref<1096x32xf32, #tpu.memory_space<vmem>>, vector<32x32xf32>
    %126 = arith.truncf %125 : vector<32x32xf32> to vector<32x32xbf16>
    %cst_81 = arith.constant dense<0.000000e+00> : vector<256x32xf32>
    %127 = tpu.matmul %124, %126, %cst_81 {dimension_numbers = #tpu.dot_dimension_numbers<[1], [0], [0], [1], [0, 0, 1, 1], [], []>} : vector<256x32xbf16>, vector<32x32xbf16>, vector<256x32xf32> -> vector<256x32xf32>
    %c11 = arith.constant 11 : index
    %c0_82 = arith.constant 0 : index
    %128 = vector.load %arg3[%c11, %c0_82] : memref<15x32xf32, #tpu.memory_space<vmem>>, vector<1x32xf32>
    %129 = vector.broadcast %128 : vector<1x32xf32> to vector<256x32xf32>
    %130 = arith.addf %127, %129 : vector<256x32xf32>
    %131 = arith.addf %7, %130 : vector<256x32xf32>
    %c1000 = arith.constant 1000 : index
    %c0_83 = arith.constant 0 : index
    %132 = vector.load %arg2[%c1000, %c0_83] : memref<1096x32xf32, #tpu.memory_space<vmem>>, vector<32x32xf32>
    %133 = arith.truncf %132 : vector<32x32xf32> to vector<32x32xbf16>
    %c12 = arith.constant 12 : index
    %c0_84 = arith.constant 0 : index
    %134 = vector.load %arg3[%c12, %c0_84] : memref<15x32xf32, #tpu.memory_space<vmem>>, vector<1x32xf32>
    %135 = arith.truncf %131 : vector<256x32xf32> to vector<256x32xbf16>
    %cst_85 = arith.constant dense<0.000000e+00> : vector<256x32xf32>
    %136 = tpu.matmul %135, %133, %cst_85 {dimension_numbers = #tpu.dot_dimension_numbers<[1], [0], [0], [1], [0, 0, 1, 1], [], []>} : vector<256x32xbf16>, vector<32x32xbf16>, vector<256x32xf32> -> vector<256x32xf32>
    %137 = vector.broadcast %134 : vector<1x32xf32> to vector<256x32xf32>
    %138 = arith.addf %136, %137 : vector<256x32xf32>
    %cst_86 = arith.constant 2.000000e-01 : f32
    %139 = vector.broadcast %cst_86 : f32 to vector<256x32xf32>
    %140 = arith.mulf %139, %138 : vector<256x32xf32>
    %141 = arith.maximumf %138, %140 : vector<256x32xf32>
    %142 = arith.truncf %141 : vector<256x32xf32> to vector<256x32xbf16>
    %cst_87 = arith.constant dense<0.000000e+00> : vector<256x32xf32>
    %143 = tpu.matmul %142, %133, %cst_87 {dimension_numbers = #tpu.dot_dimension_numbers<[1], [0], [0], [1], [0, 0, 1, 1], [], []>} : vector<256x32xbf16>, vector<32x32xbf16>, vector<256x32xf32> -> vector<256x32xf32>
    %144 = vector.broadcast %134 : vector<1x32xf32> to vector<256x32xf32>
    %145 = arith.addf %143, %144 : vector<256x32xf32>
    %cst_88 = arith.constant 2.000000e-01 : f32
    %146 = vector.broadcast %cst_88 : f32 to vector<256x32xf32>
    %147 = arith.mulf %146, %145 : vector<256x32xf32>
    %148 = arith.maximumf %145, %147 : vector<256x32xf32>
    %149 = arith.truncf %148 : vector<256x32xf32> to vector<256x32xbf16>
    %c1032 = arith.constant 1032 : index
    %c0_89 = arith.constant 0 : index
    %150 = vector.load %arg2[%c1032, %c0_89] : memref<1096x32xf32, #tpu.memory_space<vmem>>, vector<32x32xf32>
    %151 = arith.truncf %150 : vector<32x32xf32> to vector<32x32xbf16>
    %cst_90 = arith.constant dense<0.000000e+00> : vector<256x32xf32>
    %152 = tpu.matmul %149, %151, %cst_90 {dimension_numbers = #tpu.dot_dimension_numbers<[1], [0], [0], [1], [0, 0, 1, 1], [], []>} : vector<256x32xbf16>, vector<32x32xbf16>, vector<256x32xf32> -> vector<256x32xf32>
    %c13 = arith.constant 13 : index
    %c0_91 = arith.constant 0 : index
    %153 = vector.load %arg3[%c13, %c0_91] : memref<15x32xf32, #tpu.memory_space<vmem>>, vector<1x32xf32>
    %154 = vector.broadcast %153 : vector<1x32xf32> to vector<256x32xf32>
    %155 = arith.addf %152, %154 : vector<256x32xf32>
    %cst_92 = arith.constant 2.000000e-01 : f32
    %156 = vector.broadcast %cst_92 : f32 to vector<256x32xf32>
    %157 = arith.mulf %156, %155 : vector<256x32xf32>
    %158 = arith.maximumf %155, %157 : vector<256x32xf32>
    %159 = arith.truncf %158 : vector<256x32xf32> to vector<256x32xbf16>
    %c1064 = arith.constant 1064 : index
    %c0_93 = arith.constant 0 : index
    %160 = vector.load %arg2[%c1064, %c0_93] : memref<1096x32xf32, #tpu.memory_space<vmem>>, vector<32x32xf32>
    %161 = arith.truncf %160 : vector<32x32xf32> to vector<32x32xbf16>
    %cst_94 = arith.constant dense<0.000000e+00> : vector<256x32xf32>
    %162 = tpu.matmul %159, %161, %cst_94 {dimension_numbers = #tpu.dot_dimension_numbers<[1], [0], [0], [1], [0, 0, 1, 1], [], []>} : vector<256x32xbf16>, vector<32x32xbf16>, vector<256x32xf32> -> vector<256x32xf32>
    %c14 = arith.constant 14 : index
    %c0_95 = arith.constant 0 : index
    %163 = vector.load %arg3[%c14, %c0_95] : memref<15x32xf32, #tpu.memory_space<vmem>>, vector<1x32xf32>
    %164 = vector.broadcast %163 : vector<1x32xf32> to vector<256x32xf32>
    %165 = arith.addf %162, %164 : vector<256x32xf32>
    %c0_96 = arith.constant 0 : index
    %c0_97 = arith.constant 0 : index
    %166 = vector.load %arg4[%c0_96, %c0_97] : memref<256x32xf32, #tpu.memory_space<vmem>>, vector<256x32xf32>
    tpu.vector_store %arg4[%c0_96, %c0_97], %165 {strides = array<i32>} : memref<256x32xf32, #tpu.memory_space<vmem>>, vector<256x32xf32>,
    return
  }
  func.func @transform_0(%arg0: i32) -> (i32, i32) {
    %c0_i32 = arith.constant 0 : i32
    %c0_i32_0 = arith.constant 0 : i32
    return %arg0, %c0_i32 : i32, i32
  }
  func.func @transform_1(%arg0: i32) -> (i32, i32) {
    %c0_i32 = arith.constant 0 : i32
    %c0_i32_0 = arith.constant 0 : i32
    %c0_i32_1 = arith.constant 0 : i32
    return %c0_i32, %c0_i32_0 : i32, i32
  }
  func.func @transform_2(%arg0: i32) -> (i32, i32) {
    %c0_i32 = arith.constant 0 : i32
    %c0_i32_0 = arith.constant 0 : i32
    %c0_i32_1 = arith.constant 0 : i32
    return %c0_i32, %c0_i32_0 : i32, i32
  }
  func.func @transform_3(%arg0: i32) -> (i32, i32) {
    %c0_i32 = arith.constant 0 : i32
    %c0_i32_0 = arith.constant 0 : i32
    return %arg0, %c0_i32 : i32, i32
  }
}

</mosaic_0001>

<llo_original>
// kernel: disnet_forward.1
$region0: #{disnet_forward.1}
  #allocation0 [shape = 'u32[]', space=smem, size = 0x4, offset = 0x4, fixed_abs, tag = 'smem constant byte address 0x4 - core index']
  #allocation1 [shape = 'u32[144,128]{1,0:T(1,128)}', space=vmem, size = 0x12000, scoped, tag = 'internal scratch']
  #allocation2 [shape = 'bf16[256,160]{1,0:T(8,128)(2,1)}', space=vmem, size = 0x20000, scoped, tag = 'scratch operand']
  %s0 = inlined_call_operand.vmem [shape: f32[512,8], index: 0, kind: input, shape index: {}]
  %s1 = inlined_call_operand.vmem [shape: f32[1096,32], index: 1, kind: input, shape index: {}]
  %s2 = inlined_call_operand.hbm [shape: f32[15,32], index: 2, kind: input, shape index: {}]
  %s3 = inlined_call_operand.vmem [shape: f32[512,32], index: 3, kind: output, shape index: {}]
  %s4 = sld [smem:[#allocation0]]
  $region49: #{disnet_forward.1} parent=0
    _
  %s6 = ssub.s32 1, %s4
  %s7 = scalar_select 0, %s6, %s4
  $region1: #{disnet_forward.1} parent=0
    #allocation3 [shape = 'u8[8192]{0}', space=vmem, size = 0x2000, scoped, tag = 'input window, operand 2, single buffered']
    #allocation4 [shape = 's32[2]{0}', space=sflag, size = 0x8, scoped, tag = 'scoped memory for disnet_forward.1']
    %8 = vsyncpa [#allocation4], 0
    loop: start=0, step=1, limit=4
    $region2: #{disnet_forward.1} parent=1 // loop_pre_header
      _
    $region3: #{disnet_forward.1} parent=1 // loop_header
      %s10 = sphi 0, %s14
      %p11 = scmp.ge.s32.totalorder %s10, 4
      %s20 = sphi 0, %s22
      %s23 = sphi 0, %s20
      %s24 = sphi 0, %s23
      %s40 = sphi 0, %s24
      %s44 = sphi 0, %s44
      %s46 = sphi 0, %s44
      %s47 = sphi 0, %s46
      %s61 = sphi 0, %s47
      %s65 = sphi 0, %s65
      %s67 = sphi 0, %s65
      %s68 = sphi 0, %s67
      %s82 = sphi 0, %s68
      %s88 = sphi 0, %s90
      %s91 = sphi 0, %s88
      %s92 = sphi 0, %s91
      %s108 = sphi 0, %s92
    $region4: #{disnet_forward.1} parent=1 // loop_header_branch
      %13 = sbr.rel (%p11) target = $region8
    $region5: #{disnet_forward.1} parent=1 // loop_body
      %s15 = ssub.s32 %s10, 1
      %s16 = ssub.s32 %s10, 2
      %s17 = sadd.s32 %s10, 1
      %s18 = ssub.s32 %s10, %s17
      %p19 = scmp.eq.s32.totalorder %s18, 0
      %s21 = sadd.s32 %s20, 1
      %s22 = scalar_select %p19, %s20, %s21
      %p25 = pneg %p19
      %p26 = scmp.eq.s32.totalorder %s10, 1
      %p27 = por %p25, %p26
      %p28 = scmp.ne.s32.totalorder %s20, %s23
      %p29 = scmp.eq.s32.totalorder %s10, 0
      %p30 = por %p28, %p29
      %p31 = scmp.ne.s32.totalorder %s20, %s23
      %p32 = scmp.eq.s32.totalorder %s15, 1
      %p33 = por %p31, %p32
      %p34 = scmp.ne.s32.totalorder %s23, %s24
      %p35 = scmp.eq.s32.totalorder %s15, 0
      %p36 = por %p34, %p35
      %p37 = scmp.ne.s32.totalorder %s23, %s24
      %p38 = scmp.eq.s32.totalorder %s16, 1
      %p39 = por %p37, %p38
      %p41 = scmp.ne.s32.totalorder %s24, %s40
      %p42 = scmp.eq.s32.totalorder %s16, 0
      %p43 = por %p41, %p42
      %s45 = sadd.s32 %s44, 1
      %p48 = scmp.eq.s32.totalorder %s10, 1
      %p49 = scmp.ne.s32.totalorder %s44, %s46
      %p50 = scmp.eq.s32.totalorder %s10, 0
      %p51 = por %p49, %p50
      %p52 = scmp.ne.s32.totalorder %s44, %s46
      %p53 = scmp.eq.s32.totalorder %s15, 1
      %p54 = por %p52, %p53
      %p55 = scmp.ne.s32.totalorder %s46, %s47
      %p56 = scmp.eq.s32.totalorder %s15, 0
      %p57 = por %p55, %p56
      %p58 = scmp.ne.s32.totalorder %s46, %s47
      %p59 = scmp.eq.s32.totalorder %s16, 1
      %p60 = por %p58, %p59
      %p62 = scmp.ne.s32.totalorder %s47, %s61
      %p63 = scmp.eq.s32.totalorder %s16, 0
      %p64 = por %p62, %p63
      %s66 = sadd.s32 %s65, 1
      %p69 = scmp.eq.s32.totalorder %s10, 1
      %p70 = scmp.ne.s32.totalorder %s65, %s67
      %p71 = scmp.eq.s32.totalorder %s10, 0
      %p72 = por %p70, %p71
      %p73 = scmp.ne.s32.totalorder %s65, %s67
      %p74 = scmp.eq.s32.totalorder %s15, 1
      %p75 = por %p73, %p74
      %p76 = scmp.ne.s32.totalorder %s67, %s68
      %p77 = scmp.eq.s32.totalorder %s15, 0
      %p78 = por %p76, %p77
      %p79 = scmp.ne.s32.totalorder %s67, %s68
      %p80 = scmp.eq.s32.totalorder %s16, 1
      %p81 = por %p79, %p80
      %p83 = scmp.ne.s32.totalorder %s68, %s82
      %p84 = scmp.eq.s32.totalorder %s16, 0
      %p85 = por %p83, %p84
      %s86 = ssub.s32 %s10, %s17
      %p87 = scmp.eq.s32.totalorder %s86, 0
      %s89 = sadd.s32 %s88, 1
      %s90 = scalar_select %p87, %s88, %s89
      %p93 = pneg %p87
      %p94 = scmp.eq.s32.totalorder %s10, 1
      %p95 = por %p93, %p94
      %p96 = scmp.ne.s32.totalorder %s88, %s91
      %p97 = scmp.eq.s32.totalorder %s10, 0
      %p98 = por %p96, %p97
      %p99 = scmp.ne.s32.totalorder %s88, %s91
      %p100 = scmp.eq.s32.totalorder %s15, 1
      %p101 = por %p99, %p100
      %p102 = scmp.ne.s32.totalorder %s91, %s92
      %p103 = scmp.eq.s32.totalorder %s15, 0
      %p104 = por %p102, %p103
      %p105 = scmp.ne.s32.totalorder %s91, %s92
      %p106 = scmp.eq.s32.totalorder %s16, 1
      %p107 = por %p105, %p106
      %p109 = scmp.ne.s32.totalorder %s92, %s108
      %p110 = scmp.eq.s32.totalorder %s16, 0
      %p111 = por %p109, %p110
      %p112 = scmp.le.s32.totalorder 1, %s10
      %p113 = scmp.lt.s32.totalorder %s10, 3
      %p114 = pnand %p112, %p113
      %p115 = pneg %p114
      // Predicated region
      $region9: #{disnet_forward.1} parent=5 // pred_check
        _
      $region10: #{disnet_forward.1} parent=5 // pred_check_branch
        %117 = sbr.rel (%p114) target = $region12
      $region11: #{disnet_forward.1} parent=5 // pred_region
        %s118 = ssub.s32 %s10, 1
        // Predicated region
        $region13: #{disnet_forward.1} parent=11 // pred_check
          %p119 = pneg %p57
        $region14: #{disnet_forward.1} parent=11 // pred_check_branch
          %121 = sbr.rel (%p119) target = $region16
        $region15: #{disnet_forward.1} parent=11 // pred_region
          _
        $region16: #{disnet_forward.1} parent=11 // pred_fallthru
          _
        // Predicated region
        $region17: #{disnet_forward.1} parent=11 // pred_check
          %p122 = pneg %p78
        $region18: #{disnet_forward.1} parent=11 // pred_check_branch
          %124 = sbr.rel (%p122) target = $region20
        $region19: #{disnet_forward.1} parent=11 // pred_region
          %s126 = ssub.s32 256, 256
          %127 = vsyncadd [#allocation4], %s126
          %s128 = sshll.u32 [#allocation3], 4
          %s129 = int_to_ptr.vmem [resolvable:$true] %s128
          %134 = dma.hbm_to_vmem [thread:$0]  %s2, 256, %s129, [#allocation4], 128, 128, 8
        $region20: #{disnet_forward.1} parent=11 // pred_fallthru
          _
      $region12: #{disnet_forward.1} parent=5 // pred_fallthru
        _
      %p135 = scmp.lt.s32.totalorder %s10, 2
      // Predicated region
      $region21: #{disnet_forward.1} parent=5 // pred_check
        %p136 = pneg %p135
      $region22: #{disnet_forward.1} parent=5 // pred_check_branch
        %138 = sbr.rel (%p136) target = $region24
      $region23: #{disnet_forward.1} parent=5 // pred_region
        // Predicated region
        $region25: #{disnet_forward.1} parent=23 // pred_check
          %p139 = pneg %p30
        $region26: #{disnet_forward.1} parent=23 // pred_check_branch
          %141 = sbr.rel (%p139) target = $region28
        $region27: #{disnet_forward.1} parent=23 // pred_region
          %s142 = smul.u32 32, %s10
          %p143 = scmp.lt.s32.totalorder %s142, 63
          %s144 = scalar_select %p143, %s142, 63
          %s145 = smul.addr %s144, 8
          %s146 = scalar_lea.vmem %s0, %s145
          %s147 = smul.u32 32, %s10
        $region28: #{disnet_forward.1} parent=23 // pred_fallthru
          _
      $region24: #{disnet_forward.1} parent=5 // pred_fallthru
        _
      %p148 = scmp.le.s32.totalorder 1, %s10
      %p149 = scmp.lt.s32.totalorder %s10, 3
      %p150 = pnand %p148, %p149
      %p151 = pneg %p150
      // Predicated region
      $region29: #{disnet_forward.1} parent=5 // pred_check
        _
      $region30: #{disnet_forward.1} parent=5 // pred_check_branch
        %153 = sbr.rel (%p150) target = $region32
      $region31: #{disnet_forward.1} parent=5 // pred_region
        %s154 = ssub.s32 %s10, 1
        // Predicated region
        $region33: #{disnet_forward.1} parent=31 // pred_check
          %p155 = pneg %p78
        $region34: #{disnet_forward.1} parent=31 // pred_check_branch
          %157 = sbr.rel (%p155) target = $region36
        $region35: #{disnet_forward.1} parent=31 // pred_region
          %158 = dma.done [#allocation4], 256
        $region36: #{disnet_forward.1} parent=31 // pred_fallthru
          _
        %s159 = smul.u32 32, %s15
        %p160 = scmp.lt.s32.totalorder %s159, 63
        %s161 = scalar_select %p160, %s159, 63
        %s162 = smul.addr %s161, 8
        %s163 = scalar_lea.vmem %s0, %s162
        %p164 = pneg %p36
        %p165 = pneg %p33
        %p166 = pneg %p57
        %p167 = pneg %p54
        %p168 = pneg %p78
        %p169 = pneg %p75
        %p170 = pneg %p104
        %p171 = pneg %p101
        %s172 = smul.u32 32, %s15
        %p173 = scmp.lt.s32.totalorder %s172, 63
        %s174 = scalar_select %p173, %s172, 63
        %s175 = smul.addr %s174, 8
        %s176 = scalar_lea.vmem %s3, %s175
        %s177 = smul.u32 32, %s15
        %p178 = scmp.lt.s32.totalorder %s177, 63
        %s179 = scalar_select %p178, %s177, 63
        %s180 = smul.addr %s179, 8
        %s181 = scalar_lea.vmem %s0, %s180
        %s182 = smul.u32 32, %s15
        %s183 = smul.u32 32, %s15
        %p184 = scmp.lt.s32.totalorder %s183, 63
        %s185 = scalar_select %p184, %s183, 63
        %s186 = smul.addr %s185, 8
        %s187 = scalar_lea.vmem %s3, %s186
        %s188 = smul.u32 32, %s15
        %v190 = vld [vmem:[%s181] sm:$0xff]
        %v191 = vld [vmem:[%s181 + $0x8] sm:$0xff]
        %v192 = vld [vmem:[%s181 + $0x10] sm:$0xff]
        %v193 = vld [vmem:[%s181 + $0x18] sm:$0xff]
        %v194 = vld [vmem:[%s181 + $0x20] sm:$0xff]
        %v195 = vld [vmem:[%s181 + $0x28] sm:$0xff]
        %v196 = vld [vmem:[%s181 + $0x30] sm:$0xff]
        %v197 = vld [vmem:[%s181 + $0x38] sm:$0xff]
        %v198 = vld [vmem:[%s181 + $0x40] sm:$0xff]
        %v199 = vld [vmem:[%s181 + $0x48] sm:$0xff]
        %v200 = vld [vmem:[%s181 + $0x50] sm:$0xff]
        %v201 = vld [vmem:[%s181 + $0x58] sm:$0xff]
        %v202 = vld [vmem:[%s181 + $0x60] sm:$0xff]
        %v203 = vld [vmem:[%s181 + $0x68] sm:$0xff]
        %v204 = vld [vmem:[%s181 + $0x70] sm:$0xff]
        %v205 = vld [vmem:[%s181 + $0x78] sm:$0xff]
        %v206 = vld [vmem:[%s181 + $0x80] sm:$0xff]
        %v207 = vld [vmem:[%s181 + $0x88] sm:$0xff]
        %v208 = vld [vmem:[%s181 + $0x90] sm:$0xff]
        %v209 = vld [vmem:[%s181 + $0x98] sm:$0xff]
        %v210 = vld [vmem:[%s181 + $0xa0] sm:$0xff]
        %v211 = vld [vmem:[%s181 + $0xa8] sm:$0xff]
        %v212 = vld [vmem:[%s181 + $0xb0] sm:$0xff]
        %v213 = vld [vmem:[%s181 + $0xb8] sm:$0xff]
        %v214 = vld [vmem:[%s181 + $0xc0] sm:$0xff]
        %v215 = vld [vmem:[%s181 + $0xc8] sm:$0xff]
        %v216 = vld [vmem:[%s181 + $0xd0] sm:$0xff]
        %v217 = vld [vmem:[%s181 + $0xd8] sm:$0xff]
        %v218 = vld [vmem:[%s181 + $0xe0] sm:$0xff]
        %v219 = vld [vmem:[%s181 + $0xe8] sm:$0xff]
        %v220 = vld [vmem:[%s181 + $0xf0] sm:$0xff]
        %v221 = vld [vmem:[%s181 + $0xf8] sm:$0xff]
        %v222 = vpack.c.bf16 %v191, %v190
        %v223 = vpack.c.bf16 %v193, %v192
        %v224 = vpack.c.bf16 %v195, %v194
        %v225 = vpack.c.bf16 %v197, %v196
        %v226 = vpack.c.bf16 %v199, %v198
        %v227 = vpack.c.bf16 %v201, %v200
        %v228 = vpack.c.bf16 %v203, %v202
        %v229 = vpack.c.bf16 %v205, %v204
        %v230 = vpack.c.bf16 %v207, %v206
        %v231 = vpack.c.bf16 %v209, %v208
        %v232 = vpack.c.bf16 %v211, %v210
        %v233 = vpack.c.bf16 %v213, %v212
        %v234 = vpack.c.bf16 %v215, %v214
        %v235 = vpack.c.bf16 %v217, %v216
        %v236 = vpack.c.bf16 %v219, %v218
        %v237 = vpack.c.bf16 %v221, %v220
        %v238 = vld [vmem:[%s1] sm:$0xff]
        %v239 = vpack.c.bf16 %v238, %v238
        %v240 = vld [vmem:[#allocation3] sm:$0x1]
        %v241 = vlaneseq
        %v242 = vshrl.u32 %v241, 7
        %v243 = vsub.s32 0, %v242
        %v244 = vrot.slane %v240, %v243
        %vm245 = vcmask 64512
        %v247 = vsel %vm245, %v222, 0
        %v250 = vsel %vm245, %v223, 0
        %v253 = vsel %vm245, %v224, 0
        %v256 = vsel %vm245, %v225, 0
        %v259 = vsel %vm245, %v226, 0
        %v262 = vsel %vm245, %v227, 0
        %v265 = vsel %vm245, %v228, 0
        %v268 = vsel %vm245, %v229, 0
        %v271 = vsel %vm245, %v230, 0
        %v274 = vsel %vm245, %v231, 0
        %v277 = vsel %vm245, %v232, 0
        %v280 = vsel %vm245, %v233, 0
        %v283 = vsel %vm245, %v234, 0
        %v286 = vsel %vm245, %v235, 0
        %v289 = vsel %vm245, %v236, 0
        %v292 = vsel %vm245, %v237, 0
        %vm294 = vcmask 1043456
        %v296 = vsel %vm294, %v239, 0
        %298 = vmatprep.subr.bf16.mxu0 0
        %299 = vmatpush1.bf16.msra.mxu0 0
        %300 = vmatprep.subr.bf16.mxu0 0
        %301 = vmatpush1.bf16.msra.mxu0 0
        %302 = vmatprep.subr.bf16.mxu0 0
        %303 = vmatpush1.bf16.msra.mxu0 0
        %304 = vmatprep.subr.bf16.mxu0 0
        %305 = vmatpush1.bf16.msra.mxu0 0
        %306 = vmatprep.subr.bf16.mxu0 0
        %307 = vmatpush1.bf16.msra.mxu0 0
        %308 = vmatprep.subr.bf16.mxu0 0
        %309 = vmatpush1.bf16.msra.mxu0 0
        %310 = vmatprep.subr.bf16.mxu0 0
        %311 = vmatpush1.bf16.msra.mxu0 0
        %312 = vmatprep.subr.bf16.mxu0 0
        %313 = vmatpush1.bf16.msra.mxu0 %v296
        %314 = vmatprep.subr.bf16.mxu0 0
        %315 = vmatpush2.bf16.msra.mxu0 0
        %316 = vmatprep.subr.bf16.mxu0 0
        %317 = vmatpush2.bf16.msra.mxu0 0
        %318 = vmatprep.subr.bf16.mxu0 0
        %319 = vmatpush2.bf16.msra.mxu0 0
        %320 = vmatprep.subr.bf16.mxu0 0
        %321 = vmatpush2.bf16.msra.mxu0 0
        %322 = vmatprep.subr.bf16.mxu0 0
        %323 = vmatpush2.bf16.msra.mxu0 0
        %324 = vmatprep.subr.bf16.mxu0 0
        %325 = vmatpush2.bf16.msra.mxu0 0
        %326 = vmatprep.subr.bf16.mxu0 0
        %327 = vmatpush2.bf16.msra.mxu0 0
        %328 = vmatprep.subr.bf16.mxu0 0
        %329 = vmatpush2.bf16.msra.mxu0 0
        %330 = vmatprep.mubr.bf16.mxu0 0
        %331 = vmatmul.mubr.bf16.gmra.mxu0 %v247
        %v332 = vpop.f32.mrf.mxu0
        %v333 = vadd.f32 %v244, %v332
        %v334 = vpop.f32.mrf.mxu0
        %v335 = vpop.f32.mrf.mxu0
        %v336 = vadd.f32 %v244, %v335
        %v337 = vpop.f32.mrf.mxu0
        %338 = vmatprep.mubr.bf16.mxu0 0
        %339 = vmatmul.mubr.bf16.gmra.mxu0 %v250
        %v340 = vpop.f32.mrf.mxu0
        %v341 = vadd.f32 %v244, %v340
        %v342 = vpop.f32.mrf.mxu0
        %v343 = vpop.f32.mrf.mxu0
        %v344 = vadd.f32 %v244, %v343
        %v345 = vpop.f32.mrf.mxu0
        %346 = vmatprep.mubr.bf16.mxu0 0
        %347 = vmatmul.mubr.bf16.gmra.mxu0 %v253
        %v348 = vpop.f32.mrf.mxu0
        %v349 = vadd.f32 %v244, %v348
        %v350 = vpop.f32.mrf.mxu0
        %v351 = vpop.f32.mrf.mxu0
        %v352 = vadd.f32 %v244, %v351
        %v353 = vpop.f32.mrf.mxu0
        %354 = vmatprep.mubr.bf16.mxu0 0
        %355 = vmatmul.mubr.bf16.gmra.mxu0 %v256
        %v356 = vpop.f32.mrf.mxu0
        %v357 = vadd.f32 %v244, %v356
        %v358 = vpop.f32.mrf.mxu0
        %v359 = vpop.f32.mrf.mxu0
        %v360 = vadd.f32 %v244, %v359
        %v361 = vpop.f32.mrf.mxu0
        %362 = vmatprep.mubr.bf16.mxu0 0
        %363 = vmatmul.mubr.bf16.gmra.mxu0 %v259
        %v364 = vpop.f32.mrf.mxu0
        %v365 = vadd.f32 %v244, %v364
        %v366 = vpop.f32.mrf.mxu0
        %v367 = vpop.f32.mrf.mxu0
        %v368 = vadd.f32 %v244, %v367
        %v369 = vpop.f32.mrf.mxu0
        %370 = vmatprep.mubr.bf16.mxu0 0
        %371 = vmatmul.mubr.bf16.gmra.mxu0 %v262
        %v372 = vpop.f32.mrf.mxu0
        %v373 = vadd.f32 %v244, %v372
        %v374 = vpop.f32.mrf.mxu0
        %v375 = vpop.f32.mrf.mxu0
        %v376 = vadd.f32 %v244, %v375
        %v377 = vpop.f32.mrf.mxu0
        %378 = vmatprep.mubr.bf16.mxu0 0
        %379 = vmatmul.mubr.bf16.gmra.mxu0 %v265
        %v380 = vpop.f32.mrf.mxu0
        %v381 = vadd.f32 %v244, %v380
        %v382 = vpop.f32.mrf.mxu0
        %v383 = vpop.f32.mrf.mxu0
        %v384 = vadd.f32 %v244, %v383
        %v385 = vpop.f32.mrf.mxu0
        %386 = vmatprep.mubr.bf16.mxu0 0
        %387 = vmatmul.mubr.bf16.gmra.mxu0 %v268
        %v388 = vpop.f32.mrf.mxu0
        %v389 = vadd.f32 %v244, %v388
        %v390 = vpop.f32.mrf.mxu0
        %v391 = vpop.f32.mrf.mxu0
        %v392 = vadd.f32 %v244, %v391
        %v393 = vpop.f32.mrf.mxu0
        %394 = vmatprep.mubr.bf16.mxu0 0
        %395 = vmatmul.mubr.bf16.gmra.mxu0 %v271
        %v396 = vpop.f32.mrf.mxu0
        %v397 = vadd.f32 %v244, %v396
        %v398 = vpop.f32.mrf.mxu0
        %v399 = vpop.f32.mrf.mxu0
        %v400 = vadd.f32 %v244, %v399
        %v401 = vpop.f32.mrf.mxu0
        %402 = vmatprep.mubr.bf16.mxu0 0
        %403 = vmatmul.mubr.bf16.gmra.mxu0 %v274
        %v404 = vpop.f32.mrf.mxu0
        %v405 = vadd.f32 %v244, %v404
        %v406 = vpop.f32.mrf.mxu0
        %v407 = vpop.f32.mrf.mxu0
        %v408 = vadd.f32 %v244, %v407
        %v409 = vpop.f32.mrf.mxu0
        %410 = vmatprep.mubr.bf16.mxu0 0
        %411 = vmatmul.mubr.bf16.gmra.mxu0 %v277
        %v412 = vpop.f32.mrf.mxu0
        %v413 = vadd.f32 %v244, %v412
        %v414 = vpop.f32.mrf.mxu0
        %v415 = vpop.f32.mrf.mxu0
        %v416 = vadd.f32 %v244, %v415
        %v417 = vpop.f32.mrf.mxu0
        %418 = vmatprep.mubr.bf16.mxu0 0
        %419 = vmatmul.mubr.bf16.gmra.mxu0 %v280
        %v420 = vpop.f32.mrf.mxu0
        %v421 = vadd.f32 %v244, %v420
        %v422 = vpop.f32.mrf.mxu0
        %v423 = vpop.f32.mrf.mxu0
        %v424 = vadd.f32 %v244, %v423
        %v425 = vpop.f32.mrf.mxu0
        %426 = vmatprep.mubr.bf16.mxu0 0
        %427 = vmatmul.mubr.bf16.gmra.mxu0 %v283
        %v428 = vpop.f32.mrf.mxu0
        %v429 = vadd.f32 %v244, %v428
        %v430 = vpop.f32.mrf.mxu0
        %v431 = vpop.f32.mrf.mxu0
        %v432 = vadd.f32 %v244, %v431
        %v433 = vpop.f32.mrf.mxu0
        %434 = vmatprep.mubr.bf16.mxu0 0
        %435 = vmatmul.mubr.bf16.gmra.mxu0 %v286
        %v436 = vpop.f32.mrf.mxu0
        %v437 = vadd.f32 %v244, %v436
        %v438 = vpop.f32.mrf.mxu0
        %v439 = vpop.f32.mrf.mxu0
        %v440 = vadd.f32 %v244, %v439
        %v441 = vpop.f32.mrf.mxu0
        %442 = vmatprep.mubr.bf16.mxu0 0
        %443 = vmatmul.mubr.bf16.gmra.mxu0 %v289
        %v444 = vpop.f32.mrf.mxu0
        %v445 = vadd.f32 %v244, %v444
        %v446 = vpop.f32.mrf.mxu0
        %v447 = vpop.f32.mrf.mxu0
        %v448 = vadd.f32 %v244, %v447
        %v449 = vpop.f32.mrf.mxu0
        %450 = vmatprep.mubr.bf16.mxu0 0
        %451 = vmatmul.mubr.bf16.gmra.mxu0 %v292
        %v452 = vpop.f32.mrf.mxu0
        %v453 = vadd.f32 %v244, %v452
        %v454 = vpop.f32.mrf.mxu0
        %v455 = vpop.f32.mrf.mxu0
        %v456 = vadd.f32 %v244, %v455
        %v457 = vpop.f32.mrf.mxu0
        %458 = vdwg.mxu0
        %v459 = vpack.c.bf16 %v336, %v333
        %v460 = vpack.c.bf16 %v344, %v341
        %v461 = vpack.c.bf16 %v352, %v349
        %v462 = vpack.c.bf16 %v360, %v357
        %v463 = vpack.c.bf16 %v368, %v365
        %v464 = vpack.c.bf16 %v376, %v373
        %v465 = vpack.c.bf16 %v384, %v381
        %v466 = vpack.c.bf16 %v392, %v389
        %v467 = vpack.c.bf16 %v400, %v397
        %v468 = vpack.c.bf16 %v408, %v405
        %v469 = vpack.c.bf16 %v416, %v413
        %v470 = vpack.c.bf16 %v424, %v421
        %v471 = vpack.c.bf16 %v432, %v429
        %v472 = vpack.c.bf16 %v440, %v437
        %v473 = vpack.c.bf16 %v448, %v445
        %v474 = vpack.c.bf16 %v456, %v453
        %v491 = vunpack.c.l.b16 %v459
        %v492 = vunpack.c.h.b16 %v459
        %v493 = vunpack.c.l.b16 %v460
        %v494 = vunpack.c.h.b16 %v460
        %v495 = vunpack.c.l.b16 %v461
        %v496 = vunpack.c.h.b16 %v461
        %v497 = vunpack.c.l.b16 %v462
        %v498 = vunpack.c.h.b16 %v462
        %v499 = vunpack.c.l.b16 %v463
        %v500 = vunpack.c.h.b16 %v463
        %v501 = vunpack.c.l.b16 %v464
        %v502 = vunpack.c.h.b16 %v464
        %v503 = vunpack.c.l.b16 %v465
        %v504 = vunpack.c.h.b16 %v465
        %v505 = vunpack.c.l.b16 %v466
        %v506 = vunpack.c.h.b16 %v466
        %v507 = vunpack.c.l.b16 %v467
        %v508 = vunpack.c.h.b16 %v467
        %v509 = vunpack.c.l.b16 %v468
        %v510 = vunpack.c.h.b16 %v468
        %v511 = vunpack.c.l.b16 %v469
        %v512 = vunpack.c.h.b16 %v469
        %v513 = vunpack.c.l.b16 %v470
        %v514 = vunpack.c.h.b16 %v470
        %v515 = vunpack.c.l.b16 %v471
        %v516 = vunpack.c.h.b16 %v471
        %v517 = vunpack.c.l.b16 %v472
        %v518 = vunpack.c.h.b16 %v472
        %v519 = vunpack.c.l.b16 %v473
        %v520 = vunpack.c.h.b16 %v473
        %v521 = vunpack.c.l.b16 %v474
        %v522 = vunpack.c.h.b16 %v474
        %v523 = vpack.c.b16 %v491, %v491
        %v524 = vpack.c.b16 %v492, %v492
        %v525 = vpack.c.b16 %v493, %v493
        %v526 = vpack.c.b16 %v494, %v494
        %v527 = vpack.c.b16 %v495, %v495
        %v528 = vpack.c.b16 %v496, %v496
        %v529 = vpack.c.b16 %v497, %v497
        %v530 = vpack.c.b16 %v498, %v498
        %v531 = vpack.c.b16 %v499, %v499
        %v532 = vpack.c.b16 %v500, %v500
        %v533 = vpack.c.b16 %v501, %v501
        %v534 = vpack.c.b16 %v502, %v502
        %v535 = vpack.c.b16 %v503, %v503
        %v536 = vpack.c.b16 %v504, %v504
        %v537 = vpack.c.b16 %v505, %v505
        %v538 = vpack.c.b16 %v506, %v506
        %v539 = vpack.c.b16 %v507, %v507
        %v540 = vpack.c.b16 %v508, %v508
        %v541 = vpack.c.b16 %v509, %v509
        %v542 = vpack.c.b16 %v510, %v510
        %v543 = vpack.c.b16 %v511, %v511
        %v544 = vpack.c.b16 %v512, %v512
        %v545 = vpack.c.b16 %v513, %v513
        %v546 = vpack.c.b16 %v514, %v514
        %v547 = vpack.c.b16 %v515, %v515
        %v548 = vpack.c.b16 %v516, %v516
        %v549 = vpack.c.b16 %v517, %v517
        %v550 = vpack.c.b16 %v518, %v518
        %v551 = vpack.c.b16 %v519, %v519
        %v552 = vpack.c.b16 %v520, %v520
        %v553 = vpack.c.b16 %v521, %v521
        %v554 = vpack.c.b16 %v522, %v522
        %vm587 = vcmask 257024
        %588 = vst.msk [vmem:[#allocation2] sm:$0xf] %vm587, %v523
        %589 = vst.msk [vmem:[#allocation2 + $0x8] sm:$0xf] %vm587, %v524
        %590 = vst.msk [vmem:[#allocation2 + $0x10] sm:$0xf] %vm587, %v525
        %591 = vst.msk [vmem:[#allocation2 + $0x18] sm:$0xf] %vm587, %v526
        %592 = vst.msk [vmem:[#allocation2 + $0x20] sm:$0xf] %vm587, %v527
        %593 = vst.msk [vmem:[#allocation2 + $0x28] sm:$0xf] %vm587, %v528
        %594 = vst.msk [vmem:[#allocation2 + $0x30] sm:$0xf] %vm587, %v529
        %595 = vst.msk [vmem:[#allocation2 + $0x38] sm:$0xf] %vm587, %v530
        %596 = vst.msk [vmem:[#allocation2 + $0x40] sm:$0xf] %vm587, %v531
        %597 = vst.msk [vmem:[#allocation2 + $0x48] sm:$0xf] %vm587, %v532
        %598 = vst.msk [vmem:[#allocation2 + $0x50] sm:$0xf] %vm587, %v533
        %599 = vst.msk [vmem:[#allocation2 + $0x58] sm:$0xf] %vm587, %v534
        %600 = vst.msk [vmem:[#allocation2 + $0x60] sm:$0xf] %vm587, %v535
        %601 = vst.msk [vmem:[#allocation2 + $0x68] sm:$0xf] %vm587, %v536
        %602 = vst.msk [vmem:[#allocation2 + $0x70] sm:$0xf] %vm587, %v537
        %603 = vst.msk [vmem:[#allocation2 + $0x78] sm:$0xf] %vm587, %v538
        %604 = vst.msk [vmem:[#allocation2 + $0x80] sm:$0xf] %vm587, %v539
        %605 = vst.msk [vmem:[#allocation2 + $0x88] sm:$0xf] %vm587, %v540
        %606 = vst.msk [vmem:[#allocation2 + $0x90] sm:$0xf] %vm587, %v541
        %607 = vst.msk [vmem:[#allocation2 + $0x98] sm:$0xf] %vm587, %v542
        %608 = vst.msk [vmem:[#allocation2 + $0xa0] sm:$0xf] %vm587, %v543
        %609 = vst.msk [vmem:[#allocation2 + $0xa8] sm:$0xf] %vm587, %v544
        %610 = vst.msk [vmem:[#allocation2 + $0xb0] sm:$0xf] %vm587, %v545
        %611 = vst.msk [vmem:[#allocation2 + $0xb8] sm:$0xf] %vm587, %v546
        %612 = vst.msk [vmem:[#allocation2 + $0xc0] sm:$0xf] %vm587, %v547
        %613 = vst.msk [vmem:[#allocation2 + $0xc8] sm:$0xf] %vm587, %v548
        %614 = vst.msk [vmem:[#allocation2 + $0xd0] sm:$0xf] %vm587, %v549
        %615 = vst.msk [vmem:[#allocation2 + $0xd8] sm:$0xf] %vm587, %v550
        %616 = vst.msk [vmem:[#allocation2 + $0xe0] sm:$0xf] %vm587, %v551
        %617 = vst.msk [vmem:[#allocation2 + $0xe8] sm:$0xf] %vm587, %v552
        %618 = vst.msk [vmem:[#allocation2 + $0xf0] sm:$0xf] %vm587, %v553
        %619 = vst.msk [vmem:[#allocation2 + $0xf8] sm:$0xf] %vm587, %v554
        %v620 = vld [vmem:[#allocation2] sm:$0xf]
        %v621 = vld [vmem:[#allocation2 + $0x8] sm:$0xf]
        %v622 = vld [vmem:[#allocation2 + $0x10] sm:$0xf]
        %v623 = vld [vmem:[#allocation2 + $0x18] sm:$0xf]
        %v624 = vld [vmem:[#allocation2 + $0x20] sm:$0xf]
        %v625 = vld [vmem:[#allocation2 + $0x28] sm:$0xf]
        %v626 = vld [vmem:[#allocation2 + $0x30] sm:$0xf]
        %v627 = vld [vmem:[#allocation2 + $0x38] sm:$0xf]
        %v628 = vld [vmem:[#allocation2 + $0x40] sm:$0xf]
        %v629 = vld [vmem:[#allocation2 + $0x48] sm:$0xf]
        %v630 = vld [vmem:[#allocation2 + $0x50] sm:$0xf]
        %v631 = vld [vmem:[#allocation2 + $0x58] sm:$0xf]
        %v632 = vld [vmem:[#allocation2 + $0x60] sm:$0xf]
        %v633 = vld [vmem:[#allocation2 + $0x68] sm:$0xf]
        %v634 = vld [vmem:[#allocation2 + $0x70] sm:$0xf]
        %v635 = vld [vmem:[#allocation2 + $0x78] sm:$0xf]
        %v636 = vld [vmem:[#allocation2 + $0x80] sm:$0xf]
        %v637 = vld [vmem:[#allocation2 + $0x88] sm:$0xf]
        %v638 = vld [vmem:[#allocation2 + $0x90] sm:$0xf]
        %v639 = vld [vmem:[#allocation2 + $0x98] sm:$0xf]
        %v640 = vld [vmem:[#allocation2 + $0xa0] sm:$0xf]
        %v641 = vld [vmem:[#allocation2 + $0xa8] sm:$0xf]
        %v642 = vld [vmem:[#allocation2 + $0xb0] sm:$0xf]
        %v643 = vld [vmem:[#allocation2 + $0xb8] sm:$0xf]
        %v644 = vld [vmem:[#allocation2 + $0xc0] sm:$0xf]
        %v645 = vld [vmem:[#allocation2 + $0xc8] sm:$0xf]
        %v646 = vld [vmem:[#allocation2 + $0xd0] sm:$0xf]
        %v647 = vld [vmem:[#allocation2 + $0xd8] sm:$0xf]
        %v648 = vld [vmem:[#allocation2 + $0xe0] sm:$0xf]
        %v649 = vld [vmem:[#allocation2 + $0xe8] sm:$0xf]
        %v650 = vld [vmem:[#allocation2 + $0xf0] sm:$0xf]
        %v651 = vld [vmem:[#allocation2 + $0xf8] sm:$0xf]
        %v652 = vld [vmem:[%s1 + $0x8] sm:$0xff]
        %v653 = vld [vmem:[%s1 + $0x10] sm:$0xff]
        %v654 = vld [vmem:[%s1 + $0x18] sm:$0xff]
        %v655 = vld [vmem:[%s1 + $0x20] sm:$0xff]
        %v656 = vpack.c.bf16 %v653, %v652
        %v657 = vpack.c.bf16 %v655, %v654
        %v658 = vld [vmem:[#allocation3 + $0x1] sm:$0x1]
        %v659 = vlaneseq
        %v660 = vshrl.u32 %v659, 7
        %v661 = vsub.s32 0, %v660
        %v662 = vrot.slane %v658, %v661
        %v695 = vunpack.c.l.b16 %v620
        %v696 = vunpack.c.l.b16 %v621
        %v697 = vunpack.c.l.b16 %v622
        %v698 = vunpack.c.l.b16 %v623
        %v699 = vunpack.c.l.b16 %v624
        %v700 = vunpack.c.l.b16 %v625
        %v701 = vunpack.c.l.b16 %v626
        %v702 = vunpack.c.l.b16 %v627
        %v703 = vunpack.c.l.b16 %v628
        %v704 = vunpack.c.l.b16 %v629
        %v705 = vunpack.c.l.b16 %v630
        %v706 = vunpack.c.l.b16 %v631
        %v707 = vunpack.c.l.b16 %v632
        %v708 = vunpack.c.l.b16 %v633
        %v709 = vunpack.c.l.b16 %v634
        %v710 = vunpack.c.l.b16 %v635
        %v711 = vunpack.c.l.b16 %v636
        %v712 = vunpack.c.l.b16 %v637
        %v713 = vunpack.c.l.b16 %v638
        %v714 = vunpack.c.l.b16 %v639
        %v715 = vunpack.c.l.b16 %v640
        %v716 = vunpack.c.l.b16 %v641
        %v717 = vunpack.c.l.b16 %v642
        %v718 = vunpack.c.l.b16 %v643
        %v719 = vunpack.c.l.b16 %v644
        %v720 = vunpack.c.l.b16 %v645
        %v721 = vunpack.c.l.b16 %v646
        %v722 = vunpack.c.l.b16 %v647
        %v723 = vunpack.c.l.b16 %v648
        %v724 = vunpack.c.l.b16 %v649
        %v725 = vunpack.c.l.b16 %v650
        %v726 = vunpack.c.l.b16 %v651
        %v727 = vpack.c.b16 %v696, %v695
        %v728 = vpack.c.b16 %v698, %v697
        %v729 = vpack.c.b16 %v700, %v699
        %v730 = vpack.c.b16 %v702, %v701
        %v731 = vpack.c.b16 %v704, %v703
        %v732 = vpack.c.b16 %v706, %v705
        %v733 = vpack.c.b16 %v708, %v707
        %v734 = vpack.c.b16 %v710, %v709
        %v735 = vpack.c.b16 %v712, %v711
        %v736 = vpack.c.b16 %v714, %v713
        %v737 = vpack.c.b16 %v716, %v715
        %v738 = vpack.c.b16 %v718, %v717
        %v739 = vpack.c.b16 %v720, %v719
        %v740 = vpack.c.b16 %v722, %v721
        %v741 = vpack.c.b16 %v724, %v723
        %v742 = vpack.c.b16 %v726, %v725
        %vm743 = vcmask 261120
        %v745 = vsel %vm743, %v727, 0
        %v748 = vsel %vm743, %v728, 0
        %v751 = vsel %vm743, %v729, 0
        %v754 = vsel %vm743, %v730, 0
        %v757 = vsel %vm743, %v731, 0
        %v760 = vsel %vm743, %v732, 0
        %v763 = vsel %vm743, %v733, 0
        %v766 = vsel %vm743, %v734, 0
        %v769 = vsel %vm743, %v735, 0
        %v772 = vsel %vm743, %v736, 0
        %v775 = vsel %vm743, %v737, 0
        %v778 = vsel %vm743, %v738, 0
        %v781 = vsel %vm743, %v739, 0
        %v784 = vsel %vm743, %v740, 0
        %v787 = vsel %vm743, %v741, 0
        %v790 = vsel %vm743, %v742, 0
        %792 = vmatprep.subr.bf16.mxu0 0
        %793 = vmatpush1.bf16.msra.mxu0 0
        %794 = vmatprep.subr.bf16.mxu0 0
        %795 = vmatpush1.bf16.msra.mxu0 0
        %796 = vmatprep.subr.bf16.mxu0 0
        %797 = vmatpush1.bf16.msra.mxu0 0
        %798 = vmatprep.subr.bf16.mxu0 0
        %799 = vmatpush1.bf16.msra.mxu0 0
        %800 = vmatprep.subr.bf16.mxu0 0
        %801 = vmatpush1.bf16.msra.mxu0 0
        %802 = vmatprep.subr.bf16.mxu0 0
        %803 = vmatpush1.bf16.msra.mxu0 0
        %804 = vmatprep.subr.bf16.mxu0 0
        %805 = vmatpush1.bf16.msra.mxu0 %v657
        %806 = vmatprep.subr.bf16.mxu0 0
        %807 = vmatpush1.bf16.msra.mxu0 %v656
        %808 = vmatprep.subr.bf16.mxu0 0
        %809 = vmatpush2.bf16.msra.mxu0 0
        %810 = vmatprep.subr.bf16.mxu0 0
        %811 = vmatpush2.bf16.msra.mxu0 0
        %812 = vmatprep.subr.bf16.mxu0 0
        %813 = vmatpush2.bf16.msra.mxu0 0
        %814 = vmatprep.subr.bf16.mxu0 0
        %815 = vmatpush2.bf16.msra.mxu0 0
        %816 = vmatprep.subr.bf16.mxu0 0
        %817 = vmatpush2.bf16.msra.mxu0 0
        %818 = vmatprep.subr.bf16.mxu0 0
        %819 = vmatpush2.bf16.msra.mxu0 0
        %820 = vmatprep.subr.bf16.mxu0 0
        %821 = vmatpush2.bf16.msra.mxu0 0
        %822 = vmatprep.subr.bf16.mxu0 0
        %823 = vmatpush2.bf16.msra.mxu0 0
        %824 = vmatprep.mubr.bf16.mxu0 0
        %825 = vmatmul.mubr.bf16.gmra.mxu0 %v745
        %v826 = vpop.f32.mrf.mxu0
        %v827 = vadd.f32 %v662, %v826
        %v828 = vpop.f32.mrf.mxu0
        %v829 = vpop.f32.mrf.mxu0
        %v830 = vadd.f32 %v662, %v829
        %v831 = vpop.f32.mrf.mxu0
        %832 = vmatprep.mubr.bf16.mxu0 0
        %833 = vmatmul.mubr.bf16.gmra.mxu0 %v748
        %v834 = vpop.f32.mrf.mxu0
        %v835 = vadd.f32 %v662, %v834
        %v836 = vpop.f32.mrf.mxu0
        %v837 = vpop.f32.mrf.mxu0
        %v838 = vadd.f32 %v662, %v837
        %v839 = vpop.f32.mrf.mxu0
        %840 = vmatprep.mubr.bf16.mxu0 0
        %841 = vmatmul.mubr.bf16.gmra.mxu0 %v751
        %v842 = vpop.f32.mrf.mxu0
        %v843 = vadd.f32 %v662, %v842
        %v844 = vpop.f32.mrf.mxu0
        %v845 = vpop.f32.mrf.mxu0
        %v846 = vadd.f32 %v662, %v845
        %v847 = vpop.f32.mrf.mxu0
        %848 = vmatprep.mubr.bf16.mxu0 0
        %849 = vmatmul.mubr.bf16.gmra.mxu0 %v754
        %v850 = vpop.f32.mrf.mxu0
        %v851 = vadd.f32 %v662, %v850
        %v852 = vpop.f32.mrf.mxu0
        %v853 = vpop.f32.mrf.mxu0
        %v854 = vadd.f32 %v662, %v853
        %v855 = vpop.f32.mrf.mxu0
        %856 = vmatprep.mubr.bf16.mxu0 0
        %857 = vmatmul.mubr.bf16.gmra.mxu0 %v757
        %v858 = vpop.f32.mrf.mxu0
        %v859 = vadd.f32 %v662, %v858
        %v860 = vpop.f32.mrf.mxu0
        %v861 = vpop.f32.mrf.mxu0
        %v862 = vadd.f32 %v662, %v861
        %v863 = vpop.f32.mrf.mxu0
        %864 = vmatprep.mubr.bf16.mxu0 0
        %865 = vmatmul.mubr.bf16.gmra.mxu0 %v760
        %v866 = vpop.f32.mrf.mxu0
        %v867 = vadd.f32 %v662, %v866
        %v868 = vpop.f32.mrf.mxu0
        %v869 = vpop.f32.mrf.mxu0
        %v870 = vadd.f32 %v662, %v869
        %v871 = vpop.f32.mrf.mxu0
        %872 = vmatprep.mubr.bf16.mxu0 0
        %873 = vmatmul.mubr.bf16.gmra.mxu0 %v763
        %v874 = vpop.f32.mrf.mxu0
        %v875 = vadd.f32 %v662, %v874
        %v876 = vpop.f32.mrf.mxu0
        %v877 = vpop.f32.mrf.mxu0
        %v878 = vadd.f32 %v662, %v877
        %v879 = vpop.f32.mrf.mxu0
        %880 = vmatprep.mubr.bf16.mxu0 0
        %881 = vmatmul.mubr.bf16.gmra.mxu0 %v766
        %v882 = vpop.f32.mrf.mxu0
        %v883 = vadd.f32 %v662, %v882
        %v884 = vpop.f32.mrf.mxu0
        %v885 = vpop.f32.mrf.mxu0
        %v886 = vadd.f32 %v662, %v885
        %v887 = vpop.f32.mrf.mxu0
        %888 = vmatprep.mubr.bf16.mxu0 0
        %889 = vmatmul.mubr.bf16.gmra.mxu0 %v769
        %v890 = vpop.f32.mrf.mxu0
        %v891 = vadd.f32 %v662, %v890
        %v892 = vpop.f32.mrf.mxu0
        %v893 = vpop.f32.mrf.mxu0
        %v894 = vadd.f32 %v662, %v893
        %v895 = vpop.f32.mrf.mxu0
        %896 = vmatprep.mubr.bf16.mxu0 0
        %897 = vmatmul.mubr.bf16.gmra.mxu0 %v772
        %v898 = vpop.f32.mrf.mxu0
        %v899 = vadd.f32 %v662, %v898
        %v900 = vpop.f32.mrf.mxu0
        %v901 = vpop.f32.mrf.mxu0
        %v902 = vadd.f32 %v662, %v901
        %v903 = vpop.f32.mrf.mxu0
        %904 = vmatprep.mubr.bf16.mxu0 0
        %905 = vmatmul.mubr.bf16.gmra.mxu0 %v775
        %v906 = vpop.f32.mrf.mxu0
        %v907 = vadd.f32 %v662, %v906
        %v908 = vpop.f32.mrf.mxu0
        %v909 = vpop.f32.mrf.mxu0
        %v910 = vadd.f32 %v662, %v909
        %v911 = vpop.f32.mrf.mxu0
        %912 = vmatprep.mubr.bf16.mxu0 0
        %913 = vmatmul.mubr.bf16.gmra.mxu0 %v778
        %v914 = vpop.f32.mrf.mxu0
        %v915 = vadd.f32 %v662, %v914
        %v916 = vpop.f32.mrf.mxu0
        %v917 = vpop.f32.mrf.mxu0
        %v918 = vadd.f32 %v662, %v917
        %v919 = vpop.f32.mrf.mxu0
        %920 = vmatprep.mubr.bf16.mxu0 0
        %921 = vmatmul.mubr.bf16.gmra.mxu0 %v781
        %v922 = vpop.f32.mrf.mxu0
        %v923 = vadd.f32 %v662, %v922
        %v924 = vpop.f32.mrf.mxu0
        %v925 = vpop.f32.mrf.mxu0
        %v926 = vadd.f32 %v662, %v925
        %v927 = vpop.f32.mrf.mxu0
        %928 = vmatprep.mubr.bf16.mxu0 0
        %929 = vmatmul.mubr.bf16.gmra.mxu0 %v784
        %v930 = vpop.f32.mrf.mxu0
        %v931 = vadd.f32 %v662, %v930
        %v932 = vpop.f32.mrf.mxu0
        %v933 = vpop.f32.mrf.mxu0
        %v934 = vadd.f32 %v662, %v933
        %v935 = vpop.f32.mrf.mxu0
        %936 = vmatprep.mubr.bf16.mxu0 0
        %937 = vmatmul.mubr.bf16.gmra.mxu0 %v787
        %v938 = vpop.f32.mrf.mxu0
        %v939 = vadd.f32 %v662, %v938
        %v940 = vpop.f32.mrf.mxu0
        %v941 = vpop.f32.mrf.mxu0
        %v942 = vadd.f32 %v662, %v941
        %v943 = vpop.f32.mrf.mxu0
        %944 = vmatprep.mubr.bf16.mxu0 0
        %945 = vmatmul.mubr.bf16.gmra.mxu0 %v790
        %v946 = vpop.f32.mrf.mxu0
        %v947 = vadd.f32 %v662, %v946
        %v948 = vpop.f32.mrf.mxu0
        %v949 = vpop.f32.mrf.mxu0
        %v950 = vadd.f32 %v662, %v949
        %v951 = vpop.f32.mrf.mxu0
        %952 = vdwg.mxu0
        %v953 = vmul.f32 %v827, 0.2
        %v954 = vmul.f32 %v830, 0.2
        %v955 = vmul.f32 %v835, 0.2
        %v956 = vmul.f32 %v838, 0.2
        %v957 = vmul.f32 %v843, 0.2
        %v958 = vmul.f32 %v846, 0.2
        %v959 = vmul.f32 %v851, 0.2
        %v960 = vmul.f32 %v854, 0.2
        %v961 = vmul.f32 %v859, 0.2
        %v962 = vmul.f32 %v862, 0.2
        %v963 = vmul.f32 %v867, 0.2
        %v964 = vmul.f32 %v870, 0.2
        %v965 = vmul.f32 %v875, 0.2
        %v966 = vmul.f32 %v878, 0.2
        %v967 = vmul.f32 %v883, 0.2
        %v968 = vmul.f32 %v886, 0.2
        %v969 = vmul.f32 %v891, 0.2
        %v970 = vmul.f32 %v894, 0.2
        %v971 = vmul.f32 %v899, 0.2
        %v972 = vmul.f32 %v902, 0.2
        %v973 = vmul.f32 %v907, 0.2
        %v974 = vmul.f32 %v910, 0.2
        %v975 = vmul.f32 %v915, 0.2
        %v976 = vmul.f32 %v918, 0.2
        %v977 = vmul.f32 %v923, 0.2
        %v978 = vmul.f32 %v926, 0.2
        %v979 = vmul.f32 %v931, 0.2
        %v980 = vmul.f32 %v934, 0.2
        %v981 = vmul.f32 %v939, 0.2
        %v982 = vmul.f32 %v942, 0.2
        %v983 = vmul.f32 %v947, 0.2
        %v984 = vmul.f32 %v950, 0.2
        %v985 = vmax.f32 %v827, %v953
        %v986 = vmax.f32 %v830, %v954
        %v987 = vmax.f32 %v835, %v955
        %v988 = vmax.f32 %v838, %v956
        %v989 = vmax.f32 %v843, %v957
        %v990 = vmax.f32 %v846, %v958
        %v991 = vmax.f32 %v851, %v959
        %v992 = vmax.f32 %v854, %v960
        %v993 = vmax.f32 %v859, %v961
        %v994 = vmax.f32 %v862, %v962
        %v995 = vmax.f32 %v867, %v963
        %v996 = vmax.f32 %v870, %v964
        %v997 = vmax.f32 %v875, %v965
        %v998 = vmax.f32 %v878, %v966
        %v999 = vmax.f32 %v883, %v967
        %v1000 = vmax.f32 %v886, %v968
        %v1001 = vmax.f32 %v891, %v969
        %v1002 = vmax.f32 %v894, %v970
        %v1003 = vmax.f32 %v899, %v971
        %v1004 = vmax.f32 %v902, %v972
        %v1005 = vmax.f32 %v907, %v973
        %v1006 = vmax.f32 %v910, %v974
        %v1007 = vmax.f32 %v915, %v975
        %v1008 = vmax.f32 %v918, %v976
        %v1009 = vmax.f32 %v923, %v977
        %v1010 = vmax.f32 %v926, %v978
        %v1011 = vmax.f32 %v931, %v979
        %v1012 = vmax.f32 %v934, %v980
        %v1013 = vmax.f32 %v939, %v981
        %v1014 = vmax.f32 %v942, %v982
        %v1015 = vmax.f32 %v947, %v983
        %v1016 = vmax.f32 %v950, %v984
        %v1017 = vpack.c.bf16 %v986, %v985
        %v1018 = vpack.c.bf16 %v988, %v987
        %v1019 = vpack.c.bf16 %v990, %v989
        %v1020 = vpack.c.bf16 %v992, %v991
        %v1021 = vpack.c.bf16 %v994, %v993
        %v1022 = vpack.c.bf16 %v996, %v995
        %v1023 = vpack.c.bf16 %v998, %v997
        %v1024 = vpack.c.bf16 %v1000, %v999
        %v1025 = vpack.c.bf16 %v1002, %v1001
        %v1026 = vpack.c.bf16 %v1004, %v1003
        %v1027 = vpack.c.bf16 %v1006, %v1005
        %v1028 = vpack.c.bf16 %v1008, %v1007
        %v1029 = vpack.c.bf16 %v1010, %v1009
        %v1030 = vpack.c.bf16 %v1012, %v1011
        %v1031 = vpack.c.bf16 %v1014, %v1013
        %v1032 = vpack.c.bf16 %v1016, %v1015
        %v1049 = vunpack.c.l.b16 %v1017
        %v1050 = vunpack.c.h.b16 %v1017
        %v1051 = vunpack.c.l.b16 %v1018
        %v1052 = vunpack.c.h.b16 %v1018
        %v1053 = vunpack.c.l.b16 %v1019
        %v1054 = vunpack.c.h.b16 %v1019
        %v1055 = vunpack.c.l.b16 %v1020
        %v1056 = vunpack.c.h.b16 %v1020
        %v1057 = vunpack.c.l.b16 %v1021
        %v1058 = vunpack.c.h.b16 %v1021
        %v1059 = vunpack.c.l.b16 %v1022
        %v1060 = vunpack.c.h.b16 %v1022
        %v1061 = vunpack.c.l.b16 %v1023
        %v1062 = vunpack.c.h.b16 %v1023
        %v1063 = vunpack.c.l.b16 %v1024
        %v1064 = vunpack.c.h.b16 %v1024
        %v1065 = vunpack.c.l.b16 %v1025
        %v1066 = vunpack.c.h.b16 %v1025
        %v1067 = vunpack.c.l.b16 %v1026
        %v1068 = vunpack.c.h.b16 %v1026
        %v1069 = vunpack.c.l.b16 %v1027
        %v1070 = vunpack.c.h.b16 %v1027
        %v1071 = vunpack.c.l.b16 %v1028
        %v1072 = vunpack.c.h.b16 %v1028
        %v1073 = vunpack.c.l.b16 %v1029
        %v1074 = vunpack.c.h.b16 %v1029
        %v1075 = vunpack.c.l.b16 %v1030
        %v1076 = vunpack.c.h.b16 %v1030
        %v1077 = vunpack.c.l.b16 %v1031
        %v1078 = vunpack.c.h.b16 %v1031
        %v1079 = vunpack.c.l.b16 %v1032
        %v1080 = vunpack.c.h.b16 %v1032
        %v1081 = vpack.c.b16 %v1049, %v1049
        %v1082 = vpack.c.b16 %v1050, %v1050
        %v1083 = vpack.c.b16 %v1051, %v1051
        %v1084 = vpack.c.b16 %v1052, %v1052
        %v1085 = vpack.c.b16 %v1053, %v1053
        %v1086 = vpack.c.b16 %v1054, %v1054
        %v1087 = vpack.c.b16 %v1055, %v1055
        %v1088 = vpack.c.b16 %v1056, %v1056
        %v1089 = vpack.c.b16 %v1057, %v1057
        %v1090 = vpack.c.b16 %v1058, %v1058
        %v1091 = vpack.c.b16 %v1059, %v1059
        %v1092 = vpack.c.b16 %v1060, %v1060
        %v1093 = vpack.c.b16 %v1061, %v1061
        %v1094 = vpack.c.b16 %v1062, %v1062
        %v1095 = vpack.c.b16 %v1063, %v1063
        %v1096 = vpack.c.b16 %v1064, %v1064
        %v1097 = vpack.c.b16 %v1065, %v1065
        %v1098 = vpack.c.b16 %v1066, %v1066
        %v1099 = vpack.c.b16 %v1067, %v1067
        %v1100 = vpack.c.b16 %v1068, %v1068
        %v1101 = vpack.c.b16 %v1069, %v1069
        %v1102 = vpack.c.b16 %v1070, %v1070
        %v1103 = vpack.c.b16 %v1071, %v1071
        %v1104 = vpack.c.b16 %v1072, %v1072
        %v1105 = vpack.c.b16 %v1073, %v1073
        %v1106 = vpack.c.b16 %v1074, %v1074
        %v1107 = vpack.c.b16 %v1075, %v1075
        %v1108 = vpack.c.b16 %v1076, %v1076
        %v1109 = vpack.c.b16 %v1077, %v1077
        %v1110 = vpack.c.b16 %v1078, %v1078
        %v1111 = vpack.c.b16 %v1079, %v1079
        %v1112 = vpack.c.b16 %v1080, %v1080
        %1113 = vrot.lane.b32.xlu0 %v1081, 32
        %v1114 = vpop.permute.xlu0 %1113
        %1115 = vrot.lane.b32.xlu0 %v1082, 32
        %v1116 = vpop.permute.xlu0 %1115
        %1117 = vrot.lane.b32.xlu0 %v1083, 32
        %v1118 = vpop.permute.xlu0 %1117
        %1119 = vrot.lane.b32.xlu0 %v1084, 32
        %v1120 = vpop.permute.xlu0 %1119
        %1121 = vrot.lane.b32.xlu0 %v1085, 32
        %v1122 = vpop.permute.xlu0 %1121
        %1123 = vrot.lane.b32.xlu0 %v1086, 32
        %v1124 = vpop.permute.xlu0 %1123
        %1125 = vrot.lane.b32.xlu0 %v1087, 32
        %v1126 = vpop.permute.xlu0 %1125
        %1127 = vrot.lane.b32.xlu0 %v1088, 32
        %v1128 = vpop.permute.xlu0 %1127
        %1129 = vrot.lane.b32.xlu0 %v1089, 32
        %v1130 = vpop.permute.xlu0 %1129
        %1131 = vrot.lane.b32.xlu0 %v1090, 32
        %v1132 = vpop.permute.xlu0 %1131
        %1133 = vrot.lane.b32.xlu0 %v1091, 32
        %v1134 = vpop.permute.xlu0 %1133
        %1135 = vrot.lane.b32.xlu0 %v1092, 32
        %v1136 = vpop.permute.xlu0 %1135
        %1137 = vrot.lane.b32.xlu0 %v1093, 32
        %v1138 = vpop.permute.xlu0 %1137
        %1139 = vrot.lane.b32.xlu0 %v1094, 32
        %v1140 = vpop.permute.xlu0 %1139
        %1141 = vrot.lane.b32.xlu0 %v1095, 32
        %v1142 = vpop.permute.xlu0 %1141
        %1143 = vrot.lane.b32.xlu0 %v1096, 32
        %v1144 = vpop.permute.xlu0 %1143
        %1145 = vrot.lane.b32.xlu0 %v1097, 32
        %v1146 = vpop.permute.xlu0 %1145
        %1147 = vrot.lane.b32.xlu0 %v1098, 32
        %v1148 = vpop.permute.xlu0 %1147
        %1149 = vrot.lane.b32.xlu0 %v1099, 32
        %v1150 = vpop.permute.xlu0 %1149
        %1151 = vrot.lane.b32.xlu0 %v1100, 32
        %v1152 = vpop.permute.xlu0 %1151
        %1153 = vrot.lane.b32.xlu0 %v1101, 32
        %v1154 = vpop.permute.xlu0 %1153
        %1155 = vrot.lane.b32.xlu0 %v1102, 32
        %v1156 = vpop.permute.xlu0 %1155
        %1157 = vrot.lane.b32.xlu0 %v1103, 32
        %v1158 = vpop.permute.xlu0 %1157
        %1159 = vrot.lane.b32.xlu0 %v1104, 32
        %v1160 = vpop.permute.xlu0 %1159
        %1161 = vrot.lane.b32.xlu0 %v1105, 32
        %v1162 = vpop.permute.xlu0 %1161
        %1163 = vrot.lane.b32.xlu0 %v1106, 32
        %v1164 = vpop.permute.xlu0 %1163
        %1165 = vrot.lane.b32.xlu0 %v1107, 32
        %v1166 = vpop.permute.xlu0 %1165
        %1167 = vrot.lane.b32.xlu0 %v1108, 32
        %v1168 = vpop.permute.xlu0 %1167
        %1169 = vrot.lane.b32.xlu0 %v1109, 32
        %v1170 = vpop.permute.xlu0 %1169
        %1171 = vrot.lane.b32.xlu0 %v1110, 32
        %v1172 = vpop.permute.xlu0 %1171
        %1173 = vrot.lane.b32.xlu0 %v1111, 32
        %v1174 = vpop.permute.xlu0 %1173
        %1175 = vrot.lane.b32.xlu0 %v1112, 32
        %v1176 = vpop.permute.xlu0 %1175
        %vm1209 = vcmask 519424
        %1210 = vst.msk [vmem:[#allocation2] sm:$0xf] %vm1209, %v1114
        %1211 = vst.msk [vmem:[#allocation2 + $0x8] sm:$0xf] %vm1209, %v1116
        %1212 = vst.msk [vmem:[#allocation2 + $0x10] sm:$0xf] %vm1209, %v1118
        %1213 = vst.msk [vmem:[#allocation2 + $0x18] sm:$0xf] %vm1209, %v1120
        %1214 = vst.msk [vmem:[#allocation2 + $0x20] sm:$0xf] %vm1209, %v1122
        %1215 = vst.msk [vmem:[#allocation2 + $0x28] sm:$0xf] %vm1209, %v1124
        %1216 = vst.msk [vmem:[#allocation2 + $0x30] sm:$0xf] %vm1209, %v1126
        %1217 = vst.msk [vmem:[#allocation2 + $0x38] sm:$0xf] %vm1209, %v1128
        %1218 = vst.msk [vmem:[#allocation2 + $0x40] sm:$0xf] %vm1209, %v1130
        %1219 = vst.msk [vmem:[#allocation2 + $0x48] sm:$0xf] %vm1209, %v1132
        %1220 = vst.msk [vmem:[#allocation2 + $0x50] sm:$0xf] %vm1209, %v1134
        %1221 = vst.msk [vmem:[#allocation2 + $0x58] sm:$0xf] %vm1209, %v1136
        %1222 = vst.msk [vmem:[#allocation2 + $0x60] sm:$0xf] %vm1209, %v1138
        %1223 = vst.msk [vmem:[#allocation2 + $0x68] sm:$0xf] %vm1209, %v1140
        %1224 = vst.msk [vmem:[#allocation2 + $0x70] sm:$0xf] %vm1209, %v1142
        %1225 = vst.msk [vmem:[#allocation2 + $0x78] sm:$0xf] %vm1209, %v1144
        %1226 = vst.msk [vmem:[#allocation2 + $0x80] sm:$0xf] %vm1209, %v1146
        %1227 = vst.msk [vmem:[#allocation2 + $0x88] sm:$0xf] %vm1209, %v1148
        %1228 = vst.msk [vmem:[#allocation2 + $0x90] sm:$0xf] %vm1209, %v1150
        %1229 = vst.msk [vmem:[#allocation2 + $0x98] sm:$0xf] %vm1209, %v1152
        %1230 = vst.msk [vmem:[#allocation2 + $0xa0] sm:$0xf] %vm1209, %v1154
        %1231 = vst.msk [vmem:[#allocation2 + $0xa8] sm:$0xf] %vm1209, %v1156
        %1232 = vst.msk [vmem:[#allocation2 + $0xb0] sm:$0xf] %vm1209, %v1158
        %1233 = vst.msk [vmem:[#allocation2 + $0xb8] sm:$0xf] %vm1209, %v1160
        %1234 = vst.msk [vmem:[#allocation2 + $0xc0] sm:$0xf] %vm1209, %v1162
        %1235 = vst.msk [vmem:[#allocation2 + $0xc8] sm:$0xf] %vm1209, %v1164
        %1236 = vst.msk [vmem:[#allocation2 + $0xd0] sm:$0xf] %vm1209, %v1166
        %1237 = vst.msk [vmem:[#allocation2 + $0xd8] sm:$0xf] %vm1209, %v1168
        %1238 = vst.msk [vmem:[#allocation2 + $0xe0] sm:$0xf] %vm1209, %v1170
        %1239 = vst.msk [vmem:[#allocation2 + $0xe8] sm:$0xf] %vm1209, %v1172
        %1240 = vst.msk [vmem:[#allocation2 + $0xf0] sm:$0xf] %vm1209, %v1174
        %1241 = vst.msk [vmem:[#allocation2 + $0xf8] sm:$0xf] %vm1209, %v1176
        %v1242 = vld [vmem:[#allocation2] sm:$0xf]
        %v1243 = vld [vmem:[#allocation2 + $0x8] sm:$0xf]
        %v1244 = vld [vmem:[#allocation2 + $0x10] sm:$0xf]
        %v1245 = vld [vmem:[#allocation2 + $0x18] sm:$0xf]
        %v1246 = vld [vmem:[#allocation2 + $0x20] sm:$0xf]
        %v1247 = vld [vmem:[#allocation2 + $0x28] sm:$0xf]
        %v1248 = vld [vmem:[#allocation2 + $0x30] sm:$0xf]
        %v1249 = vld [vmem:[#allocation2 + $0x38] sm:$0xf]
        %v1250 = vld [vmem:[#allocation2 + $0x40] sm:$0xf]
        %v1251 = vld [vmem:[#allocation2 + $0x48] sm:$0xf]
        %v1252 = vld [vmem:[#allocation2 + $0x50] sm:$0xf]
        %v1253 = vld [vmem:[#allocation2 + $0x58] sm:$0xf]
        %v1254 = vld [vmem:[#allocation2 + $0x60] sm:$0xf]
        %v1255 = vld [vmem:[#allocation2 + $0x68] sm:$0xf]
        %v1256 = vld [vmem:[#allocation2 + $0x70] sm:$0xf]
        %v1257 = vld [vmem:[#allocation2 + $0x78] sm:$0xf]
        %v1258 = vld [vmem:[#allocation2 + $0x80] sm:$0xf]
        %v1259 = vld [vmem:[#allocation2 + $0x88] sm:$0xf]
        %v1260 = vld [vmem:[#allocation2 + $0x90] sm:$0xf]
        %v1261 = vld [vmem:[#allocation2 + $0x98] sm:$0xf]
        %v1262 = vld [vmem:[#allocation2 + $0xa0] sm:$0xf]
        %v1263 = vld [vmem:[#allocation2 + $0xa8] sm:$0xf]
        %v1264 = vld [vmem:[#allocation2 + $0xb0] sm:$0xf]
        %v1265 = vld [vmem:[#allocation2 + $0xb8] sm:$0xf]
        %v1266 = vld [vmem:[#allocation2 + $0xc0] sm:$0xf]
        %v1267 = vld [vmem:[#allocation2 + $0xc8] sm:$0xf]
        %v1268 = vld [vmem:[#allocation2 + $0xd0] sm:$0xf]
        %v1269 = vld [vmem:[#allocation2 + $0xd8] sm:$0xf]
        %v1270 = vld [vmem:[#allocation2 + $0xe0] sm:$0xf]
        %v1271 = vld [vmem:[#allocation2 + $0xe8] sm:$0xf]
        %v1272 = vld [vmem:[#allocation2 + $0xf0] sm:$0xf]
        %v1273 = vld [vmem:[#allocation2 + $0xf8] sm:$0xf]
        %v1274 = vld [vmem:[%s1 + $0x28] sm:$0xff]
        %v1275 = vld [vmem:[%s1 + $0x30] sm:$0xff]
        %v1276 = vld [vmem:[%s1 + $0x38] sm:$0xff]
        %v1277 = vld [vmem:[%s1 + $0x40] sm:$0xff]
        %v1278 = vld [vmem:[%s1 + $0x48] sm:$0xff]
        %v1279 = vld [vmem:[%s1 + $0x50] sm:$0xff]
        %v1280 = vld [vmem:[%s1 + $0x58] sm:$0xff]
        %v1281 = vld [vmem:[%s1 + $0x60] sm:$0xff]
        %v1282 = vpack.c.bf16 %v1275, %v1274
        %v1283 = vpack.c.bf16 %v1277, %v1276
        %v1284 = vpack.c.bf16 %v1279, %v1278
        %v1285 = vpack.c.bf16 %v1281, %v1280
        %v1286 = vld [vmem:[#allocation3 + $0x2] sm:$0x1]
        %v1287 = vlaneseq
        %v1288 = vshrl.u32 %v1287, 7
        %v1289 = vsub.s32 0, %v1288
        %v1290 = vrot.slane %v1286, %v1289
        %v1323 = vunpack.c.l.b16 %v1242
        %v1324 = vunpack.c.l.b16 %v1243
        %v1325 = vunpack.c.l.b16 %v1244
        %v1326 = vunpack.c.l.b16 %v1245
        %v1327 = vunpack.c.l.b16 %v1246
        %v1328 = vunpack.c.l.b16 %v1247
        %v1329 = vunpack.c.l.b16 %v1248
        %v1330 = vunpack.c.l.b16 %v1249
        %v1331 = vunpack.c.l.b16 %v1250
        %v1332 = vunpack.c.l.b16 %v1251
        %v1333 = vunpack.c.l.b16 %v1252
        %v1334 = vunpack.c.l.b16 %v1253
        %v1335 = vunpack.c.l.b16 %v1254
        %v1336 = vunpack.c.l.b16 %v1255
        %v1337 = vunpack.c.l.b16 %v1256
        %v1338 = vunpack.c.l.b16 %v1257
        %v1339 = vunpack.c.l.b16 %v1258
        %v1340 = vunpack.c.l.b16 %v1259
        %v1341 = vunpack.c.l.b16 %v1260
        %v1342 = vunpack.c.l.b16 %v1261
        %v1343 = vunpack.c.l.b16 %v1262
        %v1344 = vunpack.c.l.b16 %v1263
        %v1345 = vunpack.c.l.b16 %v1264
        %v1346 = vunpack.c.l.b16 %v1265
        %v1347 = vunpack.c.l.b16 %v1266
        %v1348 = vunpack.c.l.b16 %v1267
        %v1349 = vunpack.c.l.b16 %v1268
        %v1350 = vunpack.c.l.b16 %v1269
        %v1351 = vunpack.c.l.b16 %v1270
        %v1352 = vunpack.c.l.b16 %v1271
        %v1353 = vunpack.c.l.b16 %v1272
        %v1354 = vunpack.c.l.b16 %v1273
        %v1355 = vpack.c.b16 %v1324, %v1323
        %v1356 = vpack.c.b16 %v1326, %v1325
        %v1357 = vpack.c.b16 %v1328, %v1327
        %v1358 = vpack.c.b16 %v1330, %v1329
        %v1359 = vpack.c.b16 %v1332, %v1331
        %v1360 = vpack.c.b16 %v1334, %v1333
        %v1361 = vpack.c.b16 %v1336, %v1335
        %v1362 = vpack.c.b16 %v1338, %v1337
        %v1363 = vpack.c.b16 %v1340, %v1339
        %v1364 = vpack.c.b16 %v1342, %v1341
        %v1365 = vpack.c.b16 %v1344, %v1343
        %v1366 = vpack.c.b16 %v1346, %v1345
        %v1367 = vpack.c.b16 %v1348, %v1347
        %v1368 = vpack.c.b16 %v1350, %v1349
        %v1369 = vpack.c.b16 %v1352, %v1351
        %v1370 = vpack.c.b16 %v1354, %v1353
        %vm1371 = vcmask 523264
        %v1373 = vsel %vm1371, %v1355, 0
        %v1376 = vsel %vm1371, %v1356, 0
        %v1379 = vsel %vm1371, %v1357, 0
        %v1382 = vsel %vm1371, %v1358, 0
        %v1385 = vsel %vm1371, %v1359, 0
        %v1388 = vsel %vm1371, %v1360, 0
        %v1391 = vsel %vm1371, %v1361, 0
        %v1394 = vsel %vm1371, %v1362, 0
        %v1397 = vsel %vm1371, %v1363, 0
        %v1400 = vsel %vm1371, %v1364, 0
        %v1403 = vsel %vm1371, %v1365, 0
        %v1406 = vsel %vm1371, %v1366, 0
        %v1409 = vsel %vm1371, %v1367, 0
        %v1412 = vsel %vm1371, %v1368, 0
        %v1415 = vsel %vm1371, %v1369, 0
        %v1418 = vsel %vm1371, %v1370, 0
        %1420 = vmatprep.subr.bf16.mxu0 0
        %1421 = vmatpush1.bf16.msra.mxu0 0
        %1422 = vmatprep.subr.bf16.mxu0 0
        %1423 = vmatpush1.bf16.msra.mxu0 0
        %1424 = vmatprep.subr.bf16.mxu0 0
        %1425 = vmatpush1.bf16.msra.mxu0 0
        %1426 = vmatprep.subr.bf16.mxu0 0
        %1427 = vmatpush1.bf16.msra.mxu0 0
        %1428 = vmatprep.subr.bf16.mxu0 0
        %1429 = vmatpush1.bf16.msra.mxu0 %v1285
        %1430 = vmatprep.subr.bf16.mxu0 0
        %1431 = vmatpush1.bf16.msra.mxu0 %v1284
        %1432 = vmatprep.subr.bf16.mxu0 0
        %1433 = vmatpush1.bf16.msra.mxu0 %v1283
        %1434 = vmatprep.subr.bf16.mxu0 0
        %1435 = vmatpush1.bf16.msra.mxu0 %v1282
        %1436 = vmatprep.subr.bf16.mxu0 0
        %1437 = vmatpush2.bf16.msra.mxu0 0
        %1438 = vmatprep.subr.bf16.mxu0 0
        %1439 = vmatpush2.bf16.msra.mxu0 0
        %1440 = vmatprep.subr.bf16.mxu0 0
        %1441 = vmatpush2.bf16.msra.mxu0 0
        %1442 = vmatprep.subr.bf16.mxu0 0
        %1443 = vmatpush2.bf16.msra.mxu0 0
        %1444 = vmatprep.subr.bf16.mxu0 0
        %1445 = vmatpush2.bf16.msra.mxu0 0
        %1446 = vmatprep.subr.bf16.mxu0 0
        %1447 = vmatpush2.bf16.msra.mxu0 0
        %1448 = vmatprep.subr.bf16.mxu0 0
        %1449 = vmatpush2.bf16.msra.mxu0 0
        %1450 = vmatprep.subr.bf16.mxu0 0
        %1451 = vmatpush2.bf16.msra.mxu0 0
        %1452 = vmatprep.mubr.bf16.mxu0 0
        %1453 = vmatmul.mubr.bf16.gmra.mxu0 %v1373
        %v1454 = vpop.f32.mrf.mxu0
        %v1455 = vadd.f32 %v1290, %v1454
        %v1456 = vpop.f32.mrf.mxu0
        %v1457 = vpop.f32.mrf.mxu0
        %v1458 = vadd.f32 %v1290, %v1457
        %v1459 = vpop.f32.mrf.mxu0
        %1460 = vmatprep.mubr.bf16.mxu0 0
        %1461 = vmatmul.mubr.bf16.gmra.mxu0 %v1376
        %v1462 = vpop.f32.mrf.mxu0
        %v1463 = vadd.f32 %v1290, %v1462
        %v1464 = vpop.f32.mrf.mxu0
        %v1465 = vpop.f32.mrf.mxu0
        %v1466 = vadd.f32 %v1290, %v1465
        %v1467 = vpop.f32.mrf.mxu0
        %1468 = vmatprep.mubr.bf16.mxu0 0
        %1469 = vmatmul.mubr.bf16.gmra.mxu0 %v1379
        %v1470 = vpop.f32.mrf.mxu0
        %v1471 = vadd.f32 %v1290, %v1470
        %v1472 = vpop.f32.mrf.mxu0
        %v1473 = vpop.f32.mrf.mxu0
        %v1474 = vadd.f32 %v1290, %v1473
        %v1475 = vpop.f32.mrf.mxu0
        %1476 = vmatprep.mubr.bf16.mxu0 0
        %1477 = vmatmul.mubr.bf16.gmra.mxu0 %v1382
        %v1478 = vpop.f32.mrf.mxu0
        %v1479 = vadd.f32 %v1290, %v1478
        %v1480 = vpop.f32.mrf.mxu0
        %v1481 = vpop.f32.mrf.mxu0
        %v1482 = vadd.f32 %v1290, %v1481
        %v1483 = vpop.f32.mrf.mxu0
        %1484 = vmatprep.mubr.bf16.mxu0 0
        %1485 = vmatmul.mubr.bf16.gmra.mxu0 %v1385
        %v1486 = vpop.f32.mrf.mxu0
        %v1487 = vadd.f32 %v1290, %v1486
        %v1488 = vpop.f32.mrf.mxu0
        %v1489 = vpop.f32.mrf.mxu0
        %v1490 = vadd.f32 %v1290, %v1489
        %v1491 = vpop.f32.mrf.mxu0
        %1492 = vmatprep.mubr.bf16.mxu0 0
        %1493 = vmatmul.mubr.bf16.gmra.mxu0 %v1388
        %v1494 = vpop.f32.mrf.mxu0
        %v1495 = vadd.f32 %v1290, %v1494
        %v1496 = vpop.f32.mrf.mxu0
        %v1497 = vpop.f32.mrf.mxu0
        %v1498 = vadd.f32 %v1290, %v1497
        %v1499 = vpop.f32.mrf.mxu0
        %1500 = vmatprep.mubr.bf16.mxu0 0
        %1501 = vmatmul.mubr.bf16.gmra.mxu0 %v1391
        %v1502 = vpop.f32.mrf.mxu0
        %v1503 = vadd.f32 %v1290, %v1502
        %v1504 = vpop.f32.mrf.mxu0
        %v1505 = vpop.f32.mrf.mxu0
        %v1506 = vadd.f32 %v1290, %v1505
        %v1507 = vpop.f32.mrf.mxu0
        %1508 = vmatprep.mubr.bf16.mxu0 0
        %1509 = vmatmul.mubr.bf16.gmra.mxu0 %v1394
        %v1510 = vpop.f32.mrf.mxu0
        %v1511 = vadd.f32 %v1290, %v1510
        %v1512 = vpop.f32.mrf.mxu0
        %v1513 = vpop.f32.mrf.mxu0
        %v1514 = vadd.f32 %v1290, %v1513
        %v1515 = vpop.f32.mrf.mxu0
        %1516 = vmatprep.mubr.bf16.mxu0 0
        %1517 = vmatmul.mubr.bf16.gmra.mxu0 %v1397
        %v1518 = vpop.f32.mrf.mxu0
        %v1519 = vadd.f32 %v1290, %v1518
        %v1520 = vpop.f32.mrf.mxu0
        %v1521 = vpop.f32.mrf.mxu0
        %v1522 = vadd.f32 %v1290, %v1521
        %v1523 = vpop.f32.mrf.mxu0
        %1524 = vmatprep.mubr.bf16.mxu0 0
        %1525 = vmatmul.mubr.bf16.gmra.mxu0 %v1400
        %v1526 = vpop.f32.mrf.mxu0
        %v1527 = vadd.f32 %v1290, %v1526
        %v1528 = vpop.f32.mrf.mxu0
        %v1529 = vpop.f32.mrf.mxu0
        %v1530 = vadd.f32 %v1290, %v1529
        %v1531 = vpop.f32.mrf.mxu0
        %1532 = vmatprep.mubr.bf16.mxu0 0
        %1533 = vmatmul.mubr.bf16.gmra.mxu0 %v1403
        %v1534 = vpop.f32.mrf.mxu0
        %v1535 = vadd.f32 %v1290, %v1534
        %v1536 = vpop.f32.mrf.mxu0
        %v1537 = vpop.f32.mrf.mxu0
        %v1538 = vadd.f32 %v1290, %v1537
        %v1539 = vpop.f32.mrf.mxu0
        %1540 = vmatprep.mubr.bf16.mxu0 0
        %1541 = vmatmul.mubr.bf16.gmra.mxu0 %v1406
        %v1542 = vpop.f32.mrf.mxu0
        %v1543 = vadd.f32 %v1290, %v1542
        %v1544 = vpop.f32.mrf.mxu0
        %v1545 = vpop.f32.mrf.mxu0
        %v1546 = vadd.f32 %v1290, %v1545
        %v1547 = vpop.f32.mrf.mxu0
        %1548 = vmatprep.mubr.bf16.mxu0 0
        %1549 = vmatmul.mubr.bf16.gmra.mxu0 %v1409
        %v1550 = vpop.f32.mrf.mxu0
        %v1551 = vadd.f32 %v1290, %v1550
        %v1552 = vpop.f32.mrf.mxu0
        %v1553 = vpop.f32.mrf.mxu0
        %v1554 = vadd.f32 %v1290, %v1553
        %v1555 = vpop.f32.mrf.mxu0
        %1556 = vmatprep.mubr.bf16.mxu0 0
        %1557 = vmatmul.mubr.bf16.gmra.mxu0 %v1412
        %v1558 = vpop.f32.mrf.mxu0
        %v1559 = vadd.f32 %v1290, %v1558
        %v1560 = vpop.f32.mrf.mxu0
        %v1561 = vpop.f32.mrf.mxu0
        %v1562 = vadd.f32 %v1290, %v1561
        %v1563 = vpop.f32.mrf.mxu0
        %1564 = vmatprep.mubr.bf16.mxu0 0
        %1565 = vmatmul.mubr.bf16.gmra.mxu0 %v1415
        %v1566 = vpop.f32.mrf.mxu0
        %v1567 = vadd.f32 %v1290, %v1566
        %v1568 = vpop.f32.mrf.mxu0
        %v1569 = vpop.f32.mrf.mxu0
        %v1570 = vadd.f32 %v1290, %v1569
        %v1571 = vpop.f32.mrf.mxu0
        %1572 = vmatprep.mubr.bf16.mxu0 0
        %1573 = vmatmul.mubr.bf16.gmra.mxu0 %v1418
        %v1574 = vpop.f32.mrf.mxu0
        %v1575 = vadd.f32 %v1290, %v1574
        %v1576 = vpop.f32.mrf.mxu0
        %v1577 = vpop.f32.mrf.mxu0
        %v1578 = vadd.f32 %v1290, %v1577
        %v1579 = vpop.f32.mrf.mxu0
        %1580 = vdwg.mxu0
        %v1581 = vmul.f32 %v1455, 0.2
        %v1582 = vmul.f32 %v1458, 0.2
        %v1583 = vmul.f32 %v1463, 0.2
        %v1584 = vmul.f32 %v1466, 0.2
        %v1585 = vmul.f32 %v1471, 0.2
        %v1586 = vmul.f32 %v1474, 0.2
        %v1587 = vmul.f32 %v1479, 0.2
        %v1588 = vmul.f32 %v1482, 0.2
        %v1589 = vmul.f32 %v1487, 0.2
        %v1590 = vmul.f32 %v1490, 0.2
        %v1591 = vmul.f32 %v1495, 0.2
        %v1592 = vmul.f32 %v1498, 0.2
        %v1593 = vmul.f32 %v1503, 0.2
        %v1594 = vmul.f32 %v1506, 0.2
        %v1595 = vmul.f32 %v1511, 0.2
        %v1596 = vmul.f32 %v1514, 0.2
        %v1597 = vmul.f32 %v1519, 0.2
        %v1598 = vmul.f32 %v1522, 0.2
        %v1599 = vmul.f32 %v1527, 0.2
        %v1600 = vmul.f32 %v1530, 0.2
        %v1601 = vmul.f32 %v1535, 0.2
        %v1602 = vmul.f32 %v1538, 0.2
        %v1603 = vmul.f32 %v1543, 0.2
        %v1604 = vmul.f32 %v1546, 0.2
        %v1605 = vmul.f32 %v1551, 0.2
        %v1606 = vmul.f32 %v1554, 0.2
        %v1607 = vmul.f32 %v1559, 0.2
        %v1608 = vmul.f32 %v1562, 0.2
        %v1609 = vmul.f32 %v1567, 0.2
        %v1610 = vmul.f32 %v1570, 0.2
        %v1611 = vmul.f32 %v1575, 0.2
        %v1612 = vmul.f32 %v1578, 0.2
        %v1613 = vmax.f32 %v1455, %v1581
        %v1614 = vmax.f32 %v1458, %v1582
        %v1615 = vmax.f32 %v1463, %v1583
        %v1616 = vmax.f32 %v1466, %v1584
        %v1617 = vmax.f32 %v1471, %v1585
        %v1618 = vmax.f32 %v1474, %v1586
        %v1619 = vmax.f32 %v1479, %v1587
        %v1620 = vmax.f32 %v1482, %v1588
        %v1621 = vmax.f32 %v1487, %v1589
        %v1622 = vmax.f32 %v1490, %v1590
        %v1623 = vmax.f32 %v1495, %v1591
        %v1624 = vmax.f32 %v1498, %v1592
        %v1625 = vmax.f32 %v1503, %v1593
        %v1626 = vmax.f32 %v1506, %v1594
        %v1627 = vmax.f32 %v1511, %v1595
        %v1628 = vmax.f32 %v1514, %v1596
        %v1629 = vmax.f32 %v1519, %v1597
        %v1630 = vmax.f32 %v1522, %v1598
        %v1631 = vmax.f32 %v1527, %v1599
        %v1632 = vmax.f32 %v1530, %v1600
        %v1633 = vmax.f32 %v1535, %v1601
        %v1634 = vmax.f32 %v1538, %v1602
        %v1635 = vmax.f32 %v1543, %v1603
        %v1636 = vmax.f32 %v1546, %v1604
        %v1637 = vmax.f32 %v1551, %v1605
        %v1638 = vmax.f32 %v1554, %v1606
        %v1639 = vmax.f32 %v1559, %v1607
        %v1640 = vmax.f32 %v1562, %v1608
        %v1641 = vmax.f32 %v1567, %v1609
        %v1642 = vmax.f32 %v1570, %v1610
        %v1643 = vmax.f32 %v1575, %v1611
        %v1644 = vmax.f32 %v1578, %v1612
        %v1645 = vpack.c.bf16 %v1614, %v1613
        %v1646 = vpack.c.bf16 %v1616, %v1615
        %v1647 = vpack.c.bf16 %v1618, %v1617
        %v1648 = vpack.c.bf16 %v1620, %v1619
        %v1649 = vpack.c.bf16 %v1622, %v1621
        %v1650 = vpack.c.bf16 %v1624, %v1623
        %v1651 = vpack.c.bf16 %v1626, %v1625
        %v1652 = vpack.c.bf16 %v1628, %v1627
        %v1653 = vpack.c.bf16 %v1630, %v1629
        %v1654 = vpack.c.bf16 %v1632, %v1631
        %v1655 = vpack.c.bf16 %v1634, %v1633
        %v1656 = vpack.c.bf16 %v1636, %v1635
        %v1657 = vpack.c.bf16 %v1638, %v1637
        %v1658 = vpack.c.bf16 %v1640, %v1639
        %v1659 = vpack.c.bf16 %v1642, %v1641
        %v1660 = vpack.c.bf16 %v1644, %v1643
        %v1677 = vunpack.c.l.b16 %v1645
        %v1678 = vunpack.c.h.b16 %v1645
        %v1679 = vunpack.c.l.b16 %v1646
        %v1680 = vunpack.c.h.b16 %v1646
        %v1681 = vunpack.c.l.b16 %v1647
        %v1682 = vunpack.c.h.b16 %v1647
        %v1683 = vunpack.c.l.b16 %v1648
        %v1684 = vunpack.c.h.b16 %v1648
        %v1685 = vunpack.c.l.b16 %v1649
        %v1686 = vunpack.c.h.b16 %v1649
        %v1687 = vunpack.c.l.b16 %v1650
        %v1688 = vunpack.c.h.b16 %v1650
        %v1689 = vunpack.c.l.b16 %v1651
        %v1690 = vunpack.c.h.b16 %v1651
        %v1691 = vunpack.c.l.b16 %v1652
        %v1692 = vunpack.c.h.b16 %v1652
        %v1693 = vunpack.c.l.b16 %v1653
        %v1694 = vunpack.c.h.b16 %v1653
        %v1695 = vunpack.c.l.b16 %v1654
        %v1696 = vunpack.c.h.b16 %v1654
        %v1697 = vunpack.c.l.b16 %v1655
        %v1698 = vunpack.c.h.b16 %v1655
        %v1699 = vunpack.c.l.b16 %v1656
        %v1700 = vunpack.c.h.b16 %v1656
        %v1701 = vunpack.c.l.b16 %v1657
        %v1702 = vunpack.c.h.b16 %v1657
        %v1703 = vunpack.c.l.b16 %v1658
        %v1704 = vunpack.c.h.b16 %v1658
        %v1705 = vunpack.c.l.b16 %v1659
        %v1706 = vunpack.c.h.b16 %v1659
        %v1707 = vunpack.c.l.b16 %v1660
        %v1708 = vunpack.c.h.b16 %v1660
        %v1709 = vpack.c.b16 %v1677, %v1677
        %v1710 = vpack.c.b16 %v1678, %v1678
        %v1711 = vpack.c.b16 %v1679, %v1679
        %v1712 = vpack.c.b16 %v1680, %v1680
        %v1713 = vpack.c.b16 %v1681, %v1681
        %v1714 = vpack.c.b16 %v1682, %v1682
        %v1715 = vpack.c.b16 %v1683, %v1683
        %v1716 = vpack.c.b16 %v1684, %v1684
        %v1717 = vpack.c.b16 %v1685, %v1685
        %v1718 = vpack.c.b16 %v1686, %v1686
        %v1719 = vpack.c.b16 %v1687, %v1687
        %v1720 = vpack.c.b16 %v1688, %v1688
        %v1721 = vpack.c.b16 %v1689, %v1689
        %v1722 = vpack.c.b16 %v1690, %v1690
        %v1723 = vpack.c.b16 %v1691, %v1691
        %v1724 = vpack.c.b16 %v1692, %v1692
        %v1725 = vpack.c.b16 %v1693, %v1693
        %v1726 = vpack.c.b16 %v1694, %v1694
        %v1727 = vpack.c.b16 %v1695, %v1695
        %v1728 = vpack.c.b16 %v1696, %v1696
        %v1729 = vpack.c.b16 %v1697, %v1697
        %v1730 = vpack.c.b16 %v1698, %v1698
        %v1731 = vpack.c.b16 %v1699, %v1699
        %v1732 = vpack.c.b16 %v1700, %v1700
        %v1733 = vpack.c.b16 %v1701, %v1701
        %v1734 = vpack.c.b16 %v1702, %v1702
        %v1735 = vpack.c.b16 %v1703, %v1703
        %v1736 = vpack.c.b16 %v1704, %v1704
        %v1737 = vpack.c.b16 %v1705, %v1705
        %v1738 = vpack.c.b16 %v1706, %v1706
        %v1739 = vpack.c.b16 %v1707, %v1707
        %v1740 = vpack.c.b16 %v1708, %v1708
        %1741 = vrot.lane.b32.xlu0 %v1709, 64
        %v1742 = vpop.permute.xlu0 %1741
        %1743 = vrot.lane.b32.xlu0 %v1710, 64
        %v1744 = vpop.permute.xlu0 %1743
        %1745 = vrot.lane.b32.xlu0 %v1711, 64
        %v1746 = vpop.permute.xlu0 %1745
        %1747 = vrot.lane.b32.xlu0 %v1712, 64
        %v1748 = vpop.permute.xlu0 %1747
        %1749 = vrot.lane.b32.xlu0 %v1713, 64
        %v1750 = vpop.permute.xlu0 %1749
        %1751 = vrot.lane.b32.xlu0 %v1714, 64
        %v1752 = vpop.permute.xlu0 %1751
        %1753 = vrot.lane.b32.xlu0 %v1715, 64
        %v1754 = vpop.permute.xlu0 %1753
        %1755 = vrot.lane.b32.xlu0 %v1716, 64
        %v1756 = vpop.permute.xlu0 %1755
        %1757 = vrot.lane.b32.xlu0 %v1717, 64
        %v1758 = vpop.permute.xlu0 %1757
        %1759 = vrot.lane.b32.xlu0 %v1718, 64
        %v1760 = vpop.permute.xlu0 %1759
        %1761 = vrot.lane.b32.xlu0 %v1719, 64
        %v1762 = vpop.permute.xlu0 %1761
        %1763 = vrot.lane.b32.xlu0 %v1720, 64
        %v1764 = vpop.permute.xlu0 %1763
        %1765 = vrot.lane.b32.xlu0 %v1721, 64
        %v1766 = vpop.permute.xlu0 %1765
        %1767 = vrot.lane.b32.xlu0 %v1722, 64
        %v1768 = vpop.permute.xlu0 %1767
        %1769 = vrot.lane.b32.xlu0 %v1723, 64
        %v1770 = vpop.permute.xlu0 %1769
        %1771 = vrot.lane.b32.xlu0 %v1724, 64
        %v1772 = vpop.permute.xlu0 %1771
        %1773 = vrot.lane.b32.xlu0 %v1725, 64
        %v1774 = vpop.permute.xlu0 %1773
        %1775 = vrot.lane.b32.xlu0 %v1726, 64
        %v1776 = vpop.permute.xlu0 %1775
        %1777 = vrot.lane.b32.xlu0 %v1727, 64
        %v1778 = vpop.permute.xlu0 %1777
        %1779 = vrot.lane.b32.xlu0 %v1728, 64
        %v1780 = vpop.permute.xlu0 %1779
        %1781 = vrot.lane.b32.xlu0 %v1729, 64
        %v1782 = vpop.permute.xlu0 %1781
        %1783 = vrot.lane.b32.xlu0 %v1730, 64
        %v1784 = vpop.permute.xlu0 %1783
        %1785 = vrot.lane.b32.xlu0 %v1731, 64
        %v1786 = vpop.permute.xlu0 %1785
        %1787 = vrot.lane.b32.xlu0 %v1732, 64
        %v1788 = vpop.permute.xlu0 %1787
        %1789 = vrot.lane.b32.xlu0 %v1733, 64
        %v1790 = vpop.permute.xlu0 %1789
        %1791 = vrot.lane.b32.xlu0 %v1734, 64
        %v1792 = vpop.permute.xlu0 %1791
        %1793 = vrot.lane.b32.xlu0 %v1735, 64
        %v1794 = vpop.permute.xlu0 %1793
        %1795 = vrot.lane.b32.xlu0 %v1736, 64
        %v1796 = vpop.permute.xlu0 %1795
        %1797 = vrot.lane.b32.xlu0 %v1737, 64
        %v1798 = vpop.permute.xlu0 %1797
        %1799 = vrot.lane.b32.xlu0 %v1738, 64
        %v1800 = vpop.permute.xlu0 %1799
        %1801 = vrot.lane.b32.xlu0 %v1739, 64
        %v1802 = vpop.permute.xlu0 %1801
        %1803 = vrot.lane.b32.xlu0 %v1740, 64
        %v1804 = vpop.permute.xlu0 %1803
        %vm1837 = vcmask 781824
        %1838 = vst.msk [vmem:[#allocation2] sm:$0xf] %vm1837, %v1742
        %1839 = vst.msk [vmem:[#allocation2 + $0x8] sm:$0xf] %vm1837, %v1744
        %1840 = vst.msk [vmem:[#allocation2 + $0x10] sm:$0xf] %vm1837, %v1746
        %1841 = vst.msk [vmem:[#allocation2 + $0x18] sm:$0xf] %vm1837, %v1748
        %1842 = vst.msk [vmem:[#allocation2 + $0x20] sm:$0xf] %vm1837, %v1750
        %1843 = vst.msk [vmem:[#allocation2 + $0x28] sm:$0xf] %vm1837, %v1752
        %1844 = vst.msk [vmem:[#allocation2 + $0x30] sm:$0xf] %vm1837, %v1754
        %1845 = vst.msk [vmem:[#allocation2 + $0x38] sm:$0xf] %vm1837, %v1756
        %1846 = vst.msk [vmem:[#allocation2 + $0x40] sm:$0xf] %vm1837, %v1758
        %1847 = vst.msk [vmem:[#allocation2 + $0x48] sm:$0xf] %vm1837, %v1760
        %1848 = vst.msk [vmem:[#allocation2 + $0x50] sm:$0xf] %vm1837, %v1762
        %1849 = vst.msk [vmem:[#allocation2 + $0x58] sm:$0xf] %vm1837, %v1764
        %1850 = vst.msk [vmem:[#allocation2 + $0x60] sm:$0xf] %vm1837, %v1766
        %1851 = vst.msk [vmem:[#allocation2 + $0x68] sm:$0xf] %vm1837, %v1768
        %1852 = vst.msk [vmem:[#allocation2 + $0x70] sm:$0xf] %vm1837, %v1770
        %1853 = vst.msk [vmem:[#allocation2 + $0x78] sm:$0xf] %vm1837, %v1772
        %1854 = vst.msk [vmem:[#allocation2 + $0x80] sm:$0xf] %vm1837, %v1774
        %1855 = vst.msk [vmem:[#allocation2 + $0x88] sm:$0xf] %vm1837, %v1776
        %1856 = vst.msk [vmem:[#allocation2 + $0x90] sm:$0xf] %vm1837, %v1778
        %1857 = vst.msk [vmem:[#allocation2 + $0x98] sm:$0xf] %vm1837, %v1780
        %1858 = vst.msk [vmem:[#allocation2 + $0xa0] sm:$0xf] %vm1837, %v1782
        %1859 = vst.msk [vmem:[#allocation2 + $0xa8] sm:$0xf] %vm1837, %v1784
        %1860 = vst.msk [vmem:[#allocation2 + $0xb0] sm:$0xf] %vm1837, %v1786
        %1861 = vst.msk [vmem:[#allocation2 + $0xb8] sm:$0xf] %vm1837, %v1788
        %1862 = vst.msk [vmem:[#allocation2 + $0xc0] sm:$0xf] %vm1837, %v1790
        %1863 = vst.msk [vmem:[#allocation2 + $0xc8] sm:$0xf] %vm1837, %v1792
        %1864 = vst.msk [vmem:[#allocation2 + $0xd0] sm:$0xf] %vm1837, %v1794
        %1865 = vst.msk [vmem:[#allocation2 + $0xd8] sm:$0xf] %vm1837, %v1796
        %1866 = vst.msk [vmem:[#allocation2 + $0xe0] sm:$0xf] %vm1837, %v1798
        %1867 = vst.msk [vmem:[#allocation2 + $0xe8] sm:$0xf] %vm1837, %v1800
        %1868 = vst.msk [vmem:[#allocation2 + $0xf0] sm:$0xf] %vm1837, %v1802
        %1869 = vst.msk [vmem:[#allocation2 + $0xf8] sm:$0xf] %vm1837, %v1804
        %v1870 = vld [vmem:[#allocation2] sm:$0xf]
        %v1871 = vld [vmem:[#allocation2 + $0x8] sm:$0xf]
        %v1872 = vld [vmem:[#allocation2 + $0x10] sm:$0xf]
        %v1873 = vld [vmem:[#allocation2 + $0x18] sm:$0xf]
        %v1874 = vld [vmem:[#allocation2 + $0x20] sm:$0xf]
        %v1875 = vld [vmem:[#allocation2 + $0x28] sm:$0xf]
        %v1876 = vld [vmem:[#allocation2 + $0x30] sm:$0xf]
        %v1877 = vld [vmem:[#allocation2 + $0x38] sm:$0xf]
        %v1878 = vld [vmem:[#allocation2 + $0x40] sm:$0xf]
        %v1879 = vld [vmem:[#allocation2 + $0x48] sm:$0xf]
        %v1880 = vld [vmem:[#allocation2 + $0x50] sm:$0xf]
        %v1881 = vld [vmem:[#allocation2 + $0x58] sm:$0xf]
        %v1882 = vld [vmem:[#allocation2 + $0x60] sm:$0xf]
        %v1883 = vld [vmem:[#allocation2 + $0x68] sm:$0xf]
        %v1884 = vld [vmem:[#allocation2 + $0x70] sm:$0xf]
        %v1885 = vld [vmem:[#allocation2 + $0x78] sm:$0xf]
        %v1886 = vld [vmem:[#allocation2 + $0x80] sm:$0xf]
        %v1887 = vld [vmem:[#allocation2 + $0x88] sm:$0xf]
        %v1888 = vld [vmem:[#allocation2 + $0x90] sm:$0xf]
        %v1889 = vld [vmem:[#allocation2 + $0x98] sm:$0xf]
        %v1890 = vld [vmem:[#allocation2 + $0xa0] sm:$0xf]
        %v1891 = vld [vmem:[#allocation2 + $0xa8] sm:$0xf]
        %v1892 = vld [vmem:[#allocation2 + $0xb0] sm:$0xf]
        %v1893 = vld [vmem:[#allocation2 + $0xb8] sm:$0xf]
        %v1894 = vld [vmem:[#allocation2 + $0xc0] sm:$0xf]
        %v1895 = vld [vmem:[#allocation2 + $0xc8] sm:$0xf]
        %v1896 = vld [vmem:[#allocation2 + $0xd0] sm:$0xf]
        %v1897 = vld [vmem:[#allocation2 + $0xd8] sm:$0xf]
        %v1898 = vld [vmem:[#allocation2 + $0xe0] sm:$0xf]
        %v1899 = vld [vmem:[#allocation2 + $0xe8] sm:$0xf]
        %v1900 = vld [vmem:[#allocation2 + $0xf0] sm:$0xf]
        %v1901 = vld [vmem:[#allocation2 + $0xf8] sm:$0xf]
        %v1902 = vld [vmem:[%s1 + $0x68] sm:$0xff]
        %v1903 = vld [vmem:[%s1 + $0x70] sm:$0xff]
        %v1904 = vld [vmem:[%s1 + $0x78] sm:$0xff]
        %v1905 = vld [vmem:[%s1 + $0x80] sm:$0xff]
        %v1906 = vld [vmem:[%s1 + $0x88] sm:$0xff]
        %v1907 = vld [vmem:[%s1 + $0x90] sm:$0xff]
        %v1908 = vld [vmem:[%s1 + $0x98] sm:$0xff]
        %v1909 = vld [vmem:[%s1 + $0xa0] sm:$0xff]
        %v1910 = vld [vmem:[%s1 + $0xa8] sm:$0xff]
        %v1911 = vld [vmem:[%s1 + $0xb0] sm:$0xff]
        %v1912 = vld [vmem:[%s1 + $0xb8] sm:$0xff]
        %v1913 = vld [vmem:[%s1 + $0xc0] sm:$0xff]
        %v1914 = vpack.c.bf16 %v1903, %v1902
        %v1915 = vpack.c.bf16 %v1905, %v1904
        %v1916 = vpack.c.bf16 %v1907, %v1906
        %v1917 = vpack.c.bf16 %v1909, %v1908
        %v1918 = vpack.c.bf16 %v1911, %v1910
        %v1919 = vpack.c.bf16 %v1913, %v1912
        %v1920 = vld [vmem:[#allocation3 + $0x3] sm:$0x1]
        %v1921 = vlaneseq
        %v1922 = vshrl.u32 %v1921, 7
        %v1923 = vsub.s32 0, %v1922
        %v1924 = vrot.slane %v1920, %v1923
        %v1957 = vunpack.c.l.b16 %v1870
        %v1958 = vunpack.c.l.b16 %v1871
        %v1959 = vunpack.c.l.b16 %v1872
        %v1960 = vunpack.c.l.b16 %v1873
        %v1961 = vunpack.c.l.b16 %v1874
        %v1962 = vunpack.c.l.b16 %v1875
        %v1963 = vunpack.c.l.b16 %v1876
        %v1964 = vunpack.c.l.b16 %v1877
        %v1965 = vunpack.c.l.b16 %v1878
        %v1966 = vunpack.c.l.b16 %v1879
        %v1967 = vunpack.c.l.b16 %v1880
        %v1968 = vunpack.c.l.b16 %v1881
        %v1969 = vunpack.c.l.b16 %v1882
        %v1970 = vunpack.c.l.b16 %v1883
        %v1971 = vunpack.c.l.b16 %v1884
        %v1972 = vunpack.c.l.b16 %v1885
        %v1973 = vunpack.c.l.b16 %v1886
        %v1974 = vunpack.c.l.b16 %v1887
        %v1975 = vunpack.c.l.b16 %v1888
        %v1976 = vunpack.c.l.b16 %v1889
        %v1977 = vunpack.c.l.b16 %v1890
        %v1978 = vunpack.c.l.b16 %v1891
        %v1979 = vunpack.c.l.b16 %v1892
        %v1980 = vunpack.c.l.b16 %v1893
        %v1981 = vunpack.c.l.b16 %v1894
        %v1982 = vunpack.c.l.b16 %v1895
        %v1983 = vunpack.c.l.b16 %v1896
        %v1984 = vunpack.c.l.b16 %v1897
        %v1985 = vunpack.c.l.b16 %v1898
        %v1986 = vunpack.c.l.b16 %v1899
        %v1987 = vunpack.c.l.b16 %v1900
        %v1988 = vunpack.c.l.b16 %v1901
        %v1989 = vpack.c.b16 %v1958, %v1957
        %v1990 = vpack.c.b16 %v1960, %v1959
        %v1991 = vpack.c.b16 %v1962, %v1961
        %v1992 = vpack.c.b16 %v1964, %v1963
        %v1993 = vpack.c.b16 %v1966, %v1965
        %v1994 = vpack.c.b16 %v1968, %v1967
        %v1995 = vpack.c.b16 %v1970, %v1969
        %v1996 = vpack.c.b16 %v1972, %v1971
        %v1997 = vpack.c.b16 %v1974, %v1973
        %v1998 = vpack.c.b16 %v1976, %v1975
        %v1999 = vpack.c.b16 %v1978, %v1977
        %v2000 = vpack.c.b16 %v1980, %v1979
        %v2001 = vpack.c.b16 %v1982, %v1981
        %v2002 = vpack.c.b16 %v1984, %v1983
        %v2003 = vpack.c.b16 %v1986, %v1985
        %v2004 = vpack.c.b16 %v1988, %v1987
        %vm2005 = vcmask 785408
        %v2007 = vsel %vm2005, %v1989, 0
        %v2010 = vsel %vm2005, %v1990, 0
        %v2013 = vsel %vm2005, %v1991, 0
        %v2016 = vsel %vm2005, %v1992, 0
        %v2019 = vsel %vm2005, %v1993, 0
        %v2022 = vsel %vm2005, %v1994, 0
        %v2025 = vsel %vm2005, %v1995, 0
        %v2028 = vsel %vm2005, %v1996, 0
        %v2031 = vsel %vm2005, %v1997, 0
        %v2034 = vsel %vm2005, %v1998, 0
        %v2037 = vsel %vm2005, %v1999, 0
        %v2040 = vsel %vm2005, %v2000, 0
        %v2043 = vsel %vm2005, %v2001, 0
        %v2046 = vsel %vm2005, %v2002, 0
        %v2049 = vsel %vm2005, %v2003, 0
        %v2052 = vsel %vm2005, %v2004, 0
        %2054 = vmatprep.subr.bf16.mxu0 0
        %2055 = vmatpush1.bf16.msra.mxu0 0
        %2056 = vmatprep.subr.bf16.mxu0 0
        %2057 = vmatpush1.bf16.msra.mxu0 0
        %2058 = vmatprep.subr.bf16.mxu0 0
        %2059 = vmatpush1.bf16.msra.mxu0 %v1919
        %2060 = vmatprep.subr.bf16.mxu0 0
        %2061 = vmatpush1.bf16.msra.mxu0 %v1918
        %2062 = vmatprep.subr.bf16.mxu0 0
        %2063 = vmatpush1.bf16.msra.mxu0 %v1917
        %2064 = vmatprep.subr.bf16.mxu0 0
        %2065 = vmatpush1.bf16.msra.mxu0 %v1916
        %2066 = vmatprep.subr.bf16.mxu0 0
        %2067 = vmatpush1.bf16.msra.mxu0 %v1915
        %2068 = vmatprep.subr.bf16.mxu0 0
        %2069 = vmatpush1.bf16.msra.mxu0 %v1914
        %2070 = vmatprep.subr.bf16.mxu0 0
        %2071 = vmatpush2.bf16.msra.mxu0 0
        %2072 = vmatprep.subr.bf16.mxu0 0
        %2073 = vmatpush2.bf16.msra.mxu0 0
        %2074 = vmatprep.subr.bf16.mxu0 0
        %2075 = vmatpush2.bf16.msra.mxu0 0
        %2076 = vmatprep.subr.bf16.mxu0 0
        %2077 = vmatpush2.bf16.msra.mxu0 0
        %2078 = vmatprep.subr.bf16.mxu0 0
        %2079 = vmatpush2.bf16.msra.mxu0 0
        %2080 = vmatprep.subr.bf16.mxu0 0
        %2081 = vmatpush2.bf16.msra.mxu0 0
        %2082 = vmatprep.subr.bf16.mxu0 0
        %2083 = vmatpush2.bf16.msra.mxu0 0
        %2084 = vmatprep.subr.bf16.mxu0 0
        %2085 = vmatpush2.bf16.msra.mxu0 0
        %2086 = vmatprep.mubr.bf16.mxu0 0
        %2087 = vmatmul.mubr.bf16.gmra.mxu0 %v2007
        %v2088 = vpop.f32.mrf.mxu0
        %v2089 = vadd.f32 %v1924, %v2088
        %v2090 = vpop.f32.mrf.mxu0
        %v2091 = vpop.f32.mrf.mxu0
        %v2092 = vadd.f32 %v1924, %v2091
        %v2093 = vpop.f32.mrf.mxu0
        %2094 = vmatprep.mubr.bf16.mxu0 0
        %2095 = vmatmul.mubr.bf16.gmra.mxu0 %v2010
        %v2096 = vpop.f32.mrf.mxu0
        %v2097 = vadd.f32 %v1924, %v2096
        %v2098 = vpop.f32.mrf.mxu0
        %v2099 = vpop.f32.mrf.mxu0
        %v2100 = vadd.f32 %v1924, %v2099
        %v2101 = vpop.f32.mrf.mxu0
        %2102 = vmatprep.mubr.bf16.mxu0 0
        %2103 = vmatmul.mubr.bf16.gmra.mxu0 %v2013
        %v2104 = vpop.f32.mrf.mxu0
        %v2105 = vadd.f32 %v1924, %v2104
        %v2106 = vpop.f32.mrf.mxu0
        %v2107 = vpop.f32.mrf.mxu0
        %v2108 = vadd.f32 %v1924, %v2107
        %v2109 = vpop.f32.mrf.mxu0
        %2110 = vmatprep.mubr.bf16.mxu0 0
        %2111 = vmatmul.mubr.bf16.gmra.mxu0 %v2016
        %v2112 = vpop.f32.mrf.mxu0
        %v2113 = vadd.f32 %v1924, %v2112
        %v2114 = vpop.f32.mrf.mxu0
        %v2115 = vpop.f32.mrf.mxu0
        %v2116 = vadd.f32 %v1924, %v2115
        %v2117 = vpop.f32.mrf.mxu0
        %2118 = vmatprep.mubr.bf16.mxu0 0
        %2119 = vmatmul.mubr.bf16.gmra.mxu0 %v2019
        %v2120 = vpop.f32.mrf.mxu0
        %v2121 = vadd.f32 %v1924, %v2120
        %v2122 = vpop.f32.mrf.mxu0
        %v2123 = vpop.f32.mrf.mxu0
        %v2124 = vadd.f32 %v1924, %v2123
        %v2125 = vpop.f32.mrf.mxu0
        %2126 = vmatprep.mubr.bf16.mxu0 0
        %2127 = vmatmul.mubr.bf16.gmra.mxu0 %v2022
        %v2128 = vpop.f32.mrf.mxu0
        %v2129 = vadd.f32 %v1924, %v2128
        %v2130 = vpop.f32.mrf.mxu0
        %v2131 = vpop.f32.mrf.mxu0
        %v2132 = vadd.f32 %v1924, %v2131
        %v2133 = vpop.f32.mrf.mxu0
        %2134 = vmatprep.mubr.bf16.mxu0 0
        %2135 = vmatmul.mubr.bf16.gmra.mxu0 %v2025
        %v2136 = vpop.f32.mrf.mxu0
        %v2137 = vadd.f32 %v1924, %v2136
        %v2138 = vpop.f32.mrf.mxu0
        %v2139 = vpop.f32.mrf.mxu0
        %v2140 = vadd.f32 %v1924, %v2139
        %v2141 = vpop.f32.mrf.mxu0
        %2142 = vmatprep.mubr.bf16.mxu0 0
        %2143 = vmatmul.mubr.bf16.gmra.mxu0 %v2028
        %v2144 = vpop.f32.mrf.mxu0
        %v2145 = vadd.f32 %v1924, %v2144
        %v2146 = vpop.f32.mrf.mxu0
        %v2147 = vpop.f32.mrf.mxu0
        %v2148 = vadd.f32 %v1924, %v2147
        %v2149 = vpop.f32.mrf.mxu0
        %2150 = vmatprep.mubr.bf16.mxu0 0
        %2151 = vmatmul.mubr.bf16.gmra.mxu0 %v2031
        %v2152 = vpop.f32.mrf.mxu0
        %v2153 = vadd.f32 %v1924, %v2152
        %v2154 = vpop.f32.mrf.mxu0
        %v2155 = vpop.f32.mrf.mxu0
        %v2156 = vadd.f32 %v1924, %v2155
        %v2157 = vpop.f32.mrf.mxu0
        %2158 = vmatprep.mubr.bf16.mxu0 0
        %2159 = vmatmul.mubr.bf16.gmra.mxu0 %v2034
        %v2160 = vpop.f32.mrf.mxu0
        %v2161 = vadd.f32 %v1924, %v2160
        %v2162 = vpop.f32.mrf.mxu0
        %v2163 = vpop.f32.mrf.mxu0
        %v2164 = vadd.f32 %v1924, %v2163
        %v2165 = vpop.f32.mrf.mxu0
        %2166 = vmatprep.mubr.bf16.mxu0 0
        %2167 = vmatmul.mubr.bf16.gmra.mxu0 %v2037
        %v2168 = vpop.f32.mrf.mxu0
        %v2169 = vadd.f32 %v1924, %v2168
        %v2170 = vpop.f32.mrf.mxu0
        %v2171 = vpop.f32.mrf.mxu0
        %v2172 = vadd.f32 %v1924, %v2171
        %v2173 = vpop.f32.mrf.mxu0
        %2174 = vmatprep.mubr.bf16.mxu0 0
        %2175 = vmatmul.mubr.bf16.gmra.mxu0 %v2040
        %v2176 = vpop.f32.mrf.mxu0
        %v2177 = vadd.f32 %v1924, %v2176
        %v2178 = vpop.f32.mrf.mxu0
        %v2179 = vpop.f32.mrf.mxu0
        %v2180 = vadd.f32 %v1924, %v2179
        %v2181 = vpop.f32.mrf.mxu0
        %2182 = vmatprep.mubr.bf16.mxu0 0
        %2183 = vmatmul.mubr.bf16.gmra.mxu0 %v2043
        %v2184 = vpop.f32.mrf.mxu0
        %v2185 = vadd.f32 %v1924, %v2184
        %v2186 = vpop.f32.mrf.mxu0
        %v2187 = vpop.f32.mrf.mxu0
        %v2188 = vadd.f32 %v1924, %v2187
        %v2189 = vpop.f32.mrf.mxu0
        %2190 = vmatprep.mubr.bf16.mxu0 0
        %2191 = vmatmul.mubr.bf16.gmra.mxu0 %v2046
        %v2192 = vpop.f32.mrf.mxu0
        %v2193 = vadd.f32 %v1924, %v2192
        %v2194 = vpop.f32.mrf.mxu0
        %v2195 = vpop.f32.mrf.mxu0
        %v2196 = vadd.f32 %v1924, %v2195
        %v2197 = vpop.f32.mrf.mxu0
        %2198 = vmatprep.mubr.bf16.mxu0 0
        %2199 = vmatmul.mubr.bf16.gmra.mxu0 %v2049
        %v2200 = vpop.f32.mrf.mxu0
        %v2201 = vadd.f32 %v1924, %v2200
        %v2202 = vpop.f32.mrf.mxu0
        %v2203 = vpop.f32.mrf.mxu0
        %v2204 = vadd.f32 %v1924, %v2203
        %v2205 = vpop.f32.mrf.mxu0
        %2206 = vmatprep.mubr.bf16.mxu0 0
        %2207 = vmatmul.mubr.bf16.gmra.mxu0 %v2052
        %v2208 = vpop.f32.mrf.mxu0
        %v2209 = vadd.f32 %v1924, %v2208
        %v2210 = vpop.f32.mrf.mxu0
        %v2211 = vpop.f32.mrf.mxu0
        %v2212 = vadd.f32 %v1924, %v2211
        %v2213 = vpop.f32.mrf.mxu0
        %2214 = vdwg.mxu0
        %v2215 = vmul.f32 %v2089, 0.2
        %v2216 = vmul.f32 %v2092, 0.2
        %v2217 = vmul.f32 %v2097, 0.2
        %v2218 = vmul.f32 %v2100, 0.2
        %v2219 = vmul.f32 %v2105, 0.2
        %v2220 = vmul.f32 %v2108, 0.2
        %v2221 = vmul.f32 %v2113, 0.2
        %v2222 = vmul.f32 %v2116, 0.2
        %v2223 = vmul.f32 %v2121, 0.2
        %v2224 = vmul.f32 %v2124, 0.2
        %v2225 = vmul.f32 %v2129, 0.2
        %v2226 = vmul.f32 %v2132, 0.2
        %v2227 = vmul.f32 %v2137, 0.2
        %v2228 = vmul.f32 %v2140, 0.2
        %v2229 = vmul.f32 %v2145, 0.2
        %v2230 = vmul.f32 %v2148, 0.2
        %v2231 = vmul.f32 %v2153, 0.2
        %v2232 = vmul.f32 %v2156, 0.2
        %v2233 = vmul.f32 %v2161, 0.2
        %v2234 = vmul.f32 %v2164, 0.2
        %v2235 = vmul.f32 %v2169, 0.2
        %v2236 = vmul.f32 %v2172, 0.2
        %v2237 = vmul.f32 %v2177, 0.2
        %v2238 = vmul.f32 %v2180, 0.2
        %v2239 = vmul.f32 %v2185, 0.2
        %v2240 = vmul.f32 %v2188, 0.2
        %v2241 = vmul.f32 %v2193, 0.2
        %v2242 = vmul.f32 %v2196, 0.2
        %v2243 = vmul.f32 %v2201, 0.2
        %v2244 = vmul.f32 %v2204, 0.2
        %v2245 = vmul.f32 %v2209, 0.2
        %v2246 = vmul.f32 %v2212, 0.2
        %v2247 = vmax.f32 %v2089, %v2215
        %v2248 = vmax.f32 %v2092, %v2216
        %v2249 = vmax.f32 %v2097, %v2217
        %v2250 = vmax.f32 %v2100, %v2218
        %v2251 = vmax.f32 %v2105, %v2219
        %v2252 = vmax.f32 %v2108, %v2220
        %v2253 = vmax.f32 %v2113, %v2221
        %v2254 = vmax.f32 %v2116, %v2222
        %v2255 = vmax.f32 %v2121, %v2223
        %v2256 = vmax.f32 %v2124, %v2224
        %v2257 = vmax.f32 %v2129, %v2225
        %v2258 = vmax.f32 %v2132, %v2226
        %v2259 = vmax.f32 %v2137, %v2227
        %v2260 = vmax.f32 %v2140, %v2228
        %v2261 = vmax.f32 %v2145, %v2229
        %v2262 = vmax.f32 %v2148, %v2230
        %v2263 = vmax.f32 %v2153, %v2231
        %v2264 = vmax.f32 %v2156, %v2232
        %v2265 = vmax.f32 %v2161, %v2233
        %v2266 = vmax.f32 %v2164, %v2234
        %v2267 = vmax.f32 %v2169, %v2235
        %v2268 = vmax.f32 %v2172, %v2236
        %v2269 = vmax.f32 %v2177, %v2237
        %v2270 = vmax.f32 %v2180, %v2238
        %v2271 = vmax.f32 %v2185, %v2239
        %v2272 = vmax.f32 %v2188, %v2240
        %v2273 = vmax.f32 %v2193, %v2241
        %v2274 = vmax.f32 %v2196, %v2242
        %v2275 = vmax.f32 %v2201, %v2243
        %v2276 = vmax.f32 %v2204, %v2244
        %v2277 = vmax.f32 %v2209, %v2245
        %v2278 = vmax.f32 %v2212, %v2246
        %v2279 = vpack.c.bf16 %v2248, %v2247
        %v2280 = vpack.c.bf16 %v2250, %v2249
        %v2281 = vpack.c.bf16 %v2252, %v2251
        %v2282 = vpack.c.bf16 %v2254, %v2253
        %v2283 = vpack.c.bf16 %v2256, %v2255
        %v2284 = vpack.c.bf16 %v2258, %v2257
        %v2285 = vpack.c.bf16 %v2260, %v2259
        %v2286 = vpack.c.bf16 %v2262, %v2261
        %v2287 = vpack.c.bf16 %v2264, %v2263
        %v2288 = vpack.c.bf16 %v2266, %v2265
        %v2289 = vpack.c.bf16 %v2268, %v2267
        %v2290 = vpack.c.bf16 %v2270, %v2269
        %v2291 = vpack.c.bf16 %v2272, %v2271
        %v2292 = vpack.c.bf16 %v2274, %v2273
        %v2293 = vpack.c.bf16 %v2276, %v2275
        %v2294 = vpack.c.bf16 %v2278, %v2277
        %v2311 = vunpack.c.l.b16 %v2279
        %v2312 = vunpack.c.h.b16 %v2279
        %v2313 = vunpack.c.l.b16 %v2280
        %v2314 = vunpack.c.h.b16 %v2280
        %v2315 = vunpack.c.l.b16 %v2281
        %v2316 = vunpack.c.h.b16 %v2281
        %v2317 = vunpack.c.l.b16 %v2282
        %v2318 = vunpack.c.h.b16 %v2282
        %v2319 = vunpack.c.l.b16 %v2283
        %v2320 = vunpack.c.h.b16 %v2283
        %v2321 = vunpack.c.l.b16 %v2284
        %v2322 = vunpack.c.h.b16 %v2284
        %v2323 = vunpack.c.l.b16 %v2285
        %v2324 = vunpack.c.h.b16 %v2285
        %v2325 = vunpack.c.l.b16 %v2286
        %v2326 = vunpack.c.h.b16 %v2286
        %v2327 = vunpack.c.l.b16 %v2287
        %v2328 = vunpack.c.h.b16 %v2287
        %v2329 = vunpack.c.l.b16 %v2288
        %v2330 = vunpack.c.h.b16 %v2288
        %v2331 = vunpack.c.l.b16 %v2289
        %v2332 = vunpack.c.h.b16 %v2289
        %v2333 = vunpack.c.l.b16 %v2290
        %v2334 = vunpack.c.h.b16 %v2290
        %v2335 = vunpack.c.l.b16 %v2291
        %v2336 = vunpack.c.h.b16 %v2291
        %v2337 = vunpack.c.l.b16 %v2292
        %v2338 = vunpack.c.h.b16 %v2292
        %v2339 = vunpack.c.l.b16 %v2293
        %v2340 = vunpack.c.h.b16 %v2293
        %v2341 = vunpack.c.l.b16 %v2294
        %v2342 = vunpack.c.h.b16 %v2294
        %v2343 = vpack.c.b16 %v2311, %v2311
        %v2344 = vpack.c.b16 %v2312, %v2312
        %v2345 = vpack.c.b16 %v2313, %v2313
        %v2346 = vpack.c.b16 %v2314, %v2314
        %v2347 = vpack.c.b16 %v2315, %v2315
        %v2348 = vpack.c.b16 %v2316, %v2316
        %v2349 = vpack.c.b16 %v2317, %v2317
        %v2350 = vpack.c.b16 %v2318, %v2318
        %v2351 = vpack.c.b16 %v2319, %v2319
        %v2352 = vpack.c.b16 %v2320, %v2320
        %v2353 = vpack.c.b16 %v2321, %v2321
        %v2354 = vpack.c.b16 %v2322, %v2322
        %v2355 = vpack.c.b16 %v2323, %v2323
        %v2356 = vpack.c.b16 %v2324, %v2324
        %v2357 = vpack.c.b16 %v2325, %v2325
        %v2358 = vpack.c.b16 %v2326, %v2326
        %v2359 = vpack.c.b16 %v2327, %v2327
        %v2360 = vpack.c.b16 %v2328, %v2328
        %v2361 = vpack.c.b16 %v2329, %v2329
        %v2362 = vpack.c.b16 %v2330, %v2330
        %v2363 = vpack.c.b16 %v2331, %v2331
        %v2364 = vpack.c.b16 %v2332, %v2332
        %v2365 = vpack.c.b16 %v2333, %v2333
        %v2366 = vpack.c.b16 %v2334, %v2334
        %v2367 = vpack.c.b16 %v2335, %v2335
        %v2368 = vpack.c.b16 %v2336, %v2336
        %v2369 = vpack.c.b16 %v2337, %v2337
        %v2370 = vpack.c.b16 %v2338, %v2338
        %v2371 = vpack.c.b16 %v2339, %v2339
        %v2372 = vpack.c.b16 %v2340, %v2340
        %v2373 = vpack.c.b16 %v2341, %v2341
        %v2374 = vpack.c.b16 %v2342, %v2342
        %2375 = vrot.lane.b32.xlu0 %v2343, 96
        %v2376 = vpop.permute.xlu0 %2375
        %2377 = vrot.lane.b32.xlu0 %v2344, 96
        %v2378 = vpop.permute.xlu0 %2377
        %2379 = vrot.lane.b32.xlu0 %v2345, 96
        %v2380 = vpop.permute.xlu0 %2379
        %2381 = vrot.lane.b32.xlu0 %v2346, 96
        %v2382 = vpop.permute.xlu0 %2381
        %2383 = vrot.lane.b32.xlu0 %v2347, 96
        %v2384 = vpop.permute.xlu0 %2383
        %2385 = vrot.lane.b32.xlu0 %v2348, 96
        %v2386 = vpop.permute.xlu0 %2385
        %2387 = vrot.lane.b32.xlu0 %v2349, 96
        %v2388 = vpop.permute.xlu0 %2387
        %2389 = vrot.lane.b32.xlu0 %v2350, 96
        %v2390 = vpop.permute.xlu0 %2389
        %2391 = vrot.lane.b32.xlu0 %v2351, 96
        %v2392 = vpop.permute.xlu0 %2391
        %2393 = vrot.lane.b32.xlu0 %v2352, 96
        %v2394 = vpop.permute.xlu0 %2393
        %2395 = vrot.lane.b32.xlu0 %v2353, 96
        %v2396 = vpop.permute.xlu0 %2395
        %2397 = vrot.lane.b32.xlu0 %v2354, 96
        %v2398 = vpop.permute.xlu0 %2397
        %2399 = vrot.lane.b32.xlu0 %v2355, 96
        %v2400 = vpop.permute.xlu0 %2399
        %2401 = vrot.lane.b32.xlu0 %v2356, 96
        %v2402 = vpop.permute.xlu0 %2401
        %2403 = vrot.lane.b32.xlu0 %v2357, 96
        %v2404 = vpop.permute.xlu0 %2403
        %2405 = vrot.lane.b32.xlu0 %v2358, 96
        %v2406 = vpop.permute.xlu0 %2405
        %2407 = vrot.lane.b32.xlu0 %v2359, 96
        %v2408 = vpop.permute.xlu0 %2407
        %2409 = vrot.lane.b32.xlu0 %v2360, 96
        %v2410 = vpop.permute.xlu0 %2409
        %2411 = vrot.lane.b32.xlu0 %v2361, 96
        %v2412 = vpop.permute.xlu0 %2411
        %2413 = vrot.lane.b32.xlu0 %v2362, 96
        %v2414 = vpop.permute.xlu0 %2413
        %2415 = vrot.lane.b32.xlu0 %v2363, 96
        %v2416 = vpop.permute.xlu0 %2415
        %2417 = vrot.lane.b32.xlu0 %v2364, 96
        %v2418 = vpop.permute.xlu0 %2417
        %2419 = vrot.lane.b32.xlu0 %v2365, 96
        %v2420 = vpop.permute.xlu0 %2419
        %2421 = vrot.lane.b32.xlu0 %v2366, 96
        %v2422 = vpop.permute.xlu0 %2421
        %2423 = vrot.lane.b32.xlu0 %v2367, 96
        %v2424 = vpop.permute.xlu0 %2423
        %2425 = vrot.lane.b32.xlu0 %v2368, 96
        %v2426 = vpop.permute.xlu0 %2425
        %2427 = vrot.lane.b32.xlu0 %v2369, 96
        %v2428 = vpop.permute.xlu0 %2427
        %2429 = vrot.lane.b32.xlu0 %v2370, 96
        %v2430 = vpop.permute.xlu0 %2429
        %2431 = vrot.lane.b32.xlu0 %v2371, 96
        %v2432 = vpop.permute.xlu0 %2431
        %2433 = vrot.lane.b32.xlu0 %v2372, 96
        %v2434 = vpop.permute.xlu0 %2433
        %2435 = vrot.lane.b32.xlu0 %v2373, 96
        %v2436 = vpop.permute.xlu0 %2435
        %2437 = vrot.lane.b32.xlu0 %v2374, 96
        %v2438 = vpop.permute.xlu0 %2437
        %vm2471 = vcmask 1044224
        %2472 = vst.msk [vmem:[#allocation2] sm:$0xf] %vm2471, %v2376
        %2473 = vst.msk [vmem:[#allocation2 + $0x8] sm:$0xf] %vm2471, %v2378
        %2474 = vst.msk [vmem:[#allocation2 + $0x10] sm:$0xf] %vm2471, %v2380
        %2475 = vst.msk [vmem:[#allocation2 + $0x18] sm:$0xf] %vm2471, %v2382
        %2476 = vst.msk [vmem:[#allocation2 + $0x20] sm:$0xf] %vm2471, %v2384
        %2477 = vst.msk [vmem:[#allocation2 + $0x28] sm:$0xf] %vm2471, %v2386
        %2478 = vst.msk [vmem:[#allocation2 + $0x30] sm:$0xf] %vm2471, %v2388
        %2479 = vst.msk [vmem:[#allocation2 + $0x38] sm:$0xf] %vm2471, %v2390
        %2480 = vst.msk [vmem:[#allocation2 + $0x40] sm:$0xf] %vm2471, %v2392
        %2481 = vst.msk [vmem:[#allocation2 + $0x48] sm:$0xf] %vm2471, %v2394
        %2482 = vst.msk [vmem:[#allocation2 + $0x50] sm:$0xf] %vm2471, %v2396
        %2483 = vst.msk [vmem:[#allocation2 + $0x58] sm:$0xf] %vm2471, %v2398
        %2484 = vst.msk [vmem:[#allocation2 + $0x60] sm:$0xf] %vm2471, %v2400
        %2485 = vst.msk [vmem:[#allocation2 + $0x68] sm:$0xf] %vm2471, %v2402
        %2486 = vst.msk [vmem:[#allocation2 + $0x70] sm:$0xf] %vm2471, %v2404
        %2487 = vst.msk [vmem:[#allocation2 + $0x78] sm:$0xf] %vm2471, %v2406
        %2488 = vst.msk [vmem:[#allocation2 + $0x80] sm:$0xf] %vm2471, %v2408
        %2489 = vst.msk [vmem:[#allocation2 + $0x88] sm:$0xf] %vm2471, %v2410
        %2490 = vst.msk [vmem:[#allocation2 + $0x90] sm:$0xf] %vm2471, %v2412
        %2491 = vst.msk [vmem:[#allocation2 + $0x98] sm:$0xf] %vm2471, %v2414
        %2492 = vst.msk [vmem:[#allocation2 + $0xa0] sm:$0xf] %vm2471, %v2416
        %2493 = vst.msk [vmem:[#allocation2 + $0xa8] sm:$0xf] %vm2471, %v2418
        %2494 = vst.msk [vmem:[#allocation2 + $0xb0] sm:$0xf] %vm2471, %v2420
        %2495 = vst.msk [vmem:[#allocation2 + $0xb8] sm:$0xf] %vm2471, %v2422
        %2496 = vst.msk [vmem:[#allocation2 + $0xc0] sm:$0xf] %vm2471, %v2424
        %2497 = vst.msk [vmem:[#allocation2 + $0xc8] sm:$0xf] %vm2471, %v2426
        %2498 = vst.msk [vmem:[#allocation2 + $0xd0] sm:$0xf] %vm2471, %v2428
        %2499 = vst.msk [vmem:[#allocation2 + $0xd8] sm:$0xf] %vm2471, %v2430
        %2500 = vst.msk [vmem:[#allocation2 + $0xe0] sm:$0xf] %vm2471, %v2432
        %2501 = vst.msk [vmem:[#allocation2 + $0xe8] sm:$0xf] %vm2471, %v2434
        %2502 = vst.msk [vmem:[#allocation2 + $0xf0] sm:$0xf] %vm2471, %v2436
        %2503 = vst.msk [vmem:[#allocation2 + $0xf8] sm:$0xf] %vm2471, %v2438
        %v2504 = vld [vmem:[#allocation2] sm:$0xf]
        %v2505 = vld [vmem:[#allocation2 + $0x8] sm:$0xf]
        %v2506 = vld [vmem:[#allocation2 + $0x10] sm:$0xf]
        %v2507 = vld [vmem:[#allocation2 + $0x18] sm:$0xf]
        %v2508 = vld [vmem:[#allocation2 + $0x20] sm:$0xf]
        %v2509 = vld [vmem:[#allocation2 + $0x28] sm:$0xf]
        %v2510 = vld [vmem:[#allocation2 + $0x30] sm:$0xf]
        %v2511 = vld [vmem:[#allocation2 + $0x38] sm:$0xf]
        %v2512 = vld [vmem:[#allocation2 + $0x40] sm:$0xf]
        %v2513 = vld [vmem:[#allocation2 + $0x48] sm:$0xf]
        %v2514 = vld [vmem:[#allocation2 + $0x50] sm:$0xf]
        %v2515 = vld [vmem:[#allocation2 + $0x58] sm:$0xf]
        %v2516 = vld [vmem:[#allocation2 + $0x60] sm:$0xf]
        %v2517 = vld [vmem:[#allocation2 + $0x68] sm:$0xf]
        %v2518 = vld [vmem:[#allocation2 + $0x70] sm:$0xf]
        %v2519 = vld [vmem:[#allocation2 + $0x78] sm:$0xf]
        %v2520 = vld [vmem:[#allocation2 + $0x80] sm:$0xf]
        %v2521 = vld [vmem:[#allocation2 + $0x88] sm:$0xf]
        %v2522 = vld [vmem:[#allocation2 + $0x90] sm:$0xf]
        %v2523 = vld [vmem:[#allocation2 + $0x98] sm:$0xf]
        %v2524 = vld [vmem:[#allocation2 + $0xa0] sm:$0xf]
        %v2525 = vld [vmem:[#allocation2 + $0xa8] sm:$0xf]
        %v2526 = vld [vmem:[#allocation2 + $0xb0] sm:$0xf]
        %v2527 = vld [vmem:[#allocation2 + $0xb8] sm:$0xf]
        %v2528 = vld [vmem:[#allocation2 + $0xc0] sm:$0xf]
        %v2529 = vld [vmem:[#allocation2 + $0xc8] sm:$0xf]
        %v2530 = vld [vmem:[#allocation2 + $0xd0] sm:$0xf]
        %v2531 = vld [vmem:[#allocation2 + $0xd8] sm:$0xf]
        %v2532 = vld [vmem:[#allocation2 + $0xe0] sm:$0xf]
        %v2533 = vld [vmem:[#allocation2 + $0xe8] sm:$0xf]
        %v2534 = vld [vmem:[#allocation2 + $0xf0] sm:$0xf]
        %v2535 = vld [vmem:[#allocation2 + $0xf8] sm:$0xf]
        %v2536 = vld [vmem:[%s1 + $0xc8] sm:$0xff]
        %v2537 = vld [vmem:[%s1 + $0xd0] sm:$0xff]
        %v2538 = vld [vmem:[%s1 + $0xd8] sm:$0xff]
        %v2539 = vld [vmem:[%s1 + $0xe0] sm:$0xff]
        %v2540 = vld [vmem:[%s1 + $0xe8] sm:$0xff]
        %v2541 = vld [vmem:[%s1 + $0xf0] sm:$0xff]
        %v2542 = vld [vmem:[%s1 + $0xf8] sm:$0xff]
        %v2543 = vld [vmem:[%s1 + $0x100] sm:$0xff]
        %v2544 = vld [vmem:[%s1 + $0x108] sm:$0xff]
        %v2545 = vld [vmem:[%s1 + $0x110] sm:$0xff]
        %v2546 = vld [vmem:[%s1 + $0x118] sm:$0xff]
        %v2547 = vld [vmem:[%s1 + $0x120] sm:$0xff]
        %v2548 = vld [vmem:[%s1 + $0x128] sm:$0xff]
        %v2549 = vld [vmem:[%s1 + $0x130] sm:$0xff]
        %v2550 = vld [vmem:[%s1 + $0x138] sm:$0xff]
        %v2551 = vld [vmem:[%s1 + $0x140] sm:$0xff]
        %v2552 = vpack.c.bf16 %v2537, %v2536
        %v2553 = vpack.c.bf16 %v2539, %v2538
        %v2554 = vpack.c.bf16 %v2541, %v2540
        %v2555 = vpack.c.bf16 %v2543, %v2542
        %v2556 = vpack.c.bf16 %v2545, %v2544
        %v2557 = vpack.c.bf16 %v2547, %v2546
        %v2558 = vpack.c.bf16 %v2549, %v2548
        %v2559 = vpack.c.bf16 %v2551, %v2550
        %v2560 = vld [vmem:[#allocation3 + $0x4] sm:$0x1]
        %v2561 = vlaneseq
        %v2562 = vshrl.u32 %v2561, 7
        %v2563 = vsub.s32 0, %v2562
        %v2564 = vrot.slane %v2560, %v2563
        %v2597 = vunpack.c.l.b16 %v2504
        %v2598 = vunpack.c.l.b16 %v2505
        %v2599 = vunpack.c.l.b16 %v2506
        %v2600 = vunpack.c.l.b16 %v2507
        %v2601 = vunpack.c.l.b16 %v2508
        %v2602 = vunpack.c.l.b16 %v2509
        %v2603 = vunpack.c.l.b16 %v2510
        %v2604 = vunpack.c.l.b16 %v2511
        %v2605 = vunpack.c.l.b16 %v2512
        %v2606 = vunpack.c.l.b16 %v2513
        %v2607 = vunpack.c.l.b16 %v2514
        %v2608 = vunpack.c.l.b16 %v2515
        %v2609 = vunpack.c.l.b16 %v2516
        %v2610 = vunpack.c.l.b16 %v2517
        %v2611 = vunpack.c.l.b16 %v2518
        %v2612 = vunpack.c.l.b16 %v2519
        %v2613 = vunpack.c.l.b16 %v2520
        %v2614 = vunpack.c.l.b16 %v2521
        %v2615 = vunpack.c.l.b16 %v2522
        %v2616 = vunpack.c.l.b16 %v2523
        %v2617 = vunpack.c.l.b16 %v2524
        %v2618 = vunpack.c.l.b16 %v2525
        %v2619 = vunpack.c.l.b16 %v2526
        %v2620 = vunpack.c.l.b16 %v2527
        %v2621 = vunpack.c.l.b16 %v2528
        %v2622 = vunpack.c.l.b16 %v2529
        %v2623 = vunpack.c.l.b16 %v2530
        %v2624 = vunpack.c.l.b16 %v2531
        %v2625 = vunpack.c.l.b16 %v2532
        %v2626 = vunpack.c.l.b16 %v2533
        %v2627 = vunpack.c.l.b16 %v2534
        %v2628 = vunpack.c.l.b16 %v2535
        %v2629 = vpack.c.b16 %v2598, %v2597
        %v2630 = vpack.c.b16 %v2600, %v2599
        %v2631 = vpack.c.b16 %v2602, %v2601
        %v2632 = vpack.c.b16 %v2604, %v2603
        %v2633 = vpack.c.b16 %v2606, %v2605
        %v2634 = vpack.c.b16 %v2608, %v2607
        %v2635 = vpack.c.b16 %v2610, %v2609
        %v2636 = vpack.c.b16 %v2612, %v2611
        %v2637 = vpack.c.b16 %v2614, %v2613
        %v2638 = vpack.c.b16 %v2616, %v2615
        %v2639 = vpack.c.b16 %v2618, %v2617
        %v2640 = vpack.c.b16 %v2620, %v2619
        %v2641 = vpack.c.b16 %v2622, %v2621
        %v2642 = vpack.c.b16 %v2624, %v2623
        %v2643 = vpack.c.b16 %v2626, %v2625
        %v2644 = vpack.c.b16 %v2628, %v2627
        %2661 = vmatprep.subr.bf16.mxu0 0
        %2662 = vmatpush1.bf16.msra.mxu0 %v2559
        %2663 = vmatprep.subr.bf16.mxu0 0
        %2664 = vmatpush1.bf16.msra.mxu0 %v2558
        %2665 = vmatprep.subr.bf16.mxu0 0
        %2666 = vmatpush1.bf16.msra.mxu0 %v2557
        %2667 = vmatprep.subr.bf16.mxu0 0
        %2668 = vmatpush1.bf16.msra.mxu0 %v2556
        %2669 = vmatprep.subr.bf16.mxu0 0
        %2670 = vmatpush1.bf16.msra.mxu0 %v2555
        %2671 = vmatprep.subr.bf16.mxu0 0
        %2672 = vmatpush1.bf16.msra.mxu0 %v2554
        %2673 = vmatprep.subr.bf16.mxu0 0
        %2674 = vmatpush1.bf16.msra.mxu0 %v2553
        %2675 = vmatprep.subr.bf16.mxu0 0
        %2676 = vmatpush1.bf16.msra.mxu0 %v2552
        %2677 = vmatprep.subr.bf16.mxu0 0
        %2678 = vmatpush2.bf16.msra.mxu0 0
        %2679 = vmatprep.subr.bf16.mxu0 0
        %2680 = vmatpush2.bf16.msra.mxu0 0
        %2681 = vmatprep.subr.bf16.mxu0 0
        %2682 = vmatpush2.bf16.msra.mxu0 0
        %2683 = vmatprep.subr.bf16.mxu0 0
        %2684 = vmatpush2.bf16.msra.mxu0 0
        %2685 = vmatprep.subr.bf16.mxu0 0
        %2686 = vmatpush2.bf16.msra.mxu0 0
        %2687 = vmatprep.subr.bf16.mxu0 0
        %2688 = vmatpush2.bf16.msra.mxu0 0
        %2689 = vmatprep.subr.bf16.mxu0 0
        %2690 = vmatpush2.bf16.msra.mxu0 0
        %2691 = vmatprep.subr.bf16.mxu0 0
        %2692 = vmatpush2.bf16.msra.mxu0 0
        %2693 = vmatprep.mubr.bf16.mxu0 0
        %2694 = vmatmul.mubr.bf16.gmra.mxu0 %v2629
        %v2695 = vpop.f32.mrf.mxu0
        %v2696 = vadd.f32 %v2564, %v2695
        %v2697 = vpop.f32.mrf.mxu0
        %v2698 = vpop.f32.mrf.mxu0
        %v2699 = vadd.f32 %v2564, %v2698
        %v2700 = vpop.f32.mrf.mxu0
        %2701 = vmatprep.mubr.bf16.mxu0 0
        %2702 = vmatmul.mubr.bf16.gmra.mxu0 %v2630
        %v2703 = vpop.f32.mrf.mxu0
        %v2704 = vadd.f32 %v2564, %v2703
        %v2705 = vpop.f32.mrf.mxu0
        %v2706 = vpop.f32.mrf.mxu0
        %v2707 = vadd.f32 %v2564, %v2706
        %v2708 = vpop.f32.mrf.mxu0
        %2709 = vmatprep.mubr.bf16.mxu0 0
        %2710 = vmatmul.mubr.bf16.gmra.mxu0 %v2631
        %v2711 = vpop.f32.mrf.mxu0
        %v2712 = vadd.f32 %v2564, %v2711
        %v2713 = vpop.f32.mrf.mxu0
        %v2714 = vpop.f32.mrf.mxu0
        %v2715 = vadd.f32 %v2564, %v2714
        %v2716 = vpop.f32.mrf.mxu0
        %2717 = vmatprep.mubr.bf16.mxu0 0
        %2718 = vmatmul.mubr.bf16.gmra.mxu0 %v2632
        %v2719 = vpop.f32.mrf.mxu0
        %v2720 = vadd.f32 %v2564, %v2719
        %v2721 = vpop.f32.mrf.mxu0
        %v2722 = vpop.f32.mrf.mxu0
        %v2723 = vadd.f32 %v2564, %v2722
        %v2724 = vpop.f32.mrf.mxu0
        %2725 = vmatprep.mubr.bf16.mxu0 0
        %2726 = vmatmul.mubr.bf16.gmra.mxu0 %v2633
        %v2727 = vpop.f32.mrf.mxu0
        %v2728 = vadd.f32 %v2564, %v2727
        %v2729 = vpop.f32.mrf.mxu0
        %v2730 = vpop.f32.mrf.mxu0
        %v2731 = vadd.f32 %v2564, %v2730
        %v2732 = vpop.f32.mrf.mxu0
        %2733 = vmatprep.mubr.bf16.mxu0 0
        %2734 = vmatmul.mubr.bf16.gmra.mxu0 %v2634
        %v2735 = vpop.f32.mrf.mxu0
        %v2736 = vadd.f32 %v2564, %v2735
        %v2737 = vpop.f32.mrf.mxu0
        %v2738 = vpop.f32.mrf.mxu0
        %v2739 = vadd.f32 %v2564, %v2738
        %v2740 = vpop.f32.mrf.mxu0
        %2741 = vmatprep.mubr.bf16.mxu0 0
        %2742 = vmatmul.mubr.bf16.gmra.mxu0 %v2635
        %v2743 = vpop.f32.mrf.mxu0
        %v2744 = vadd.f32 %v2564, %v2743
        %v2745 = vpop.f32.mrf.mxu0
        %v2746 = vpop.f32.mrf.mxu0
        %v2747 = vadd.f32 %v2564, %v2746
        %v2748 = vpop.f32.mrf.mxu0
        %2749 = vmatprep.mubr.bf16.mxu0 0
        %2750 = vmatmul.mubr.bf16.gmra.mxu0 %v2636
        %v2751 = vpop.f32.mrf.mxu0
        %v2752 = vadd.f32 %v2564, %v2751
        %v2753 = vpop.f32.mrf.mxu0
        %v2754 = vpop.f32.mrf.mxu0
        %v2755 = vadd.f32 %v2564, %v2754
        %v2756 = vpop.f32.mrf.mxu0
        %2757 = vmatprep.mubr.bf16.mxu0 0
        %2758 = vmatmul.mubr.bf16.gmra.mxu0 %v2637
        %v2759 = vpop.f32.mrf.mxu0
        %v2760 = vadd.f32 %v2564, %v2759
        %v2761 = vpop.f32.mrf.mxu0
        %v2762 = vpop.f32.mrf.mxu0
        %v2763 = vadd.f32 %v2564, %v2762
        %v2764 = vpop.f32.mrf.mxu0
        %2765 = vmatprep.mubr.bf16.mxu0 0
        %2766 = vmatmul.mubr.bf16.gmra.mxu0 %v2638
        %v2767 = vpop.f32.mrf.mxu0
        %v2768 = vadd.f32 %v2564, %v2767
        %v2769 = vpop.f32.mrf.mxu0
        %v2770 = vpop.f32.mrf.mxu0
        %v2771 = vadd.f32 %v2564, %v2770
        %v2772 = vpop.f32.mrf.mxu0
        %2773 = vmatprep.mubr.bf16.mxu0 0
        %2774 = vmatmul.mubr.bf16.gmra.mxu0 %v2639
        %v2775 = vpop.f32.mrf.mxu0
        %v2776 = vadd.f32 %v2564, %v2775
        %v2777 = vpop.f32.mrf.mxu0
        %v2778 = vpop.f32.mrf.mxu0
        %v2779 = vadd.f32 %v2564, %v2778
        %v2780 = vpop.f32.mrf.mxu0
        %2781 = vmatprep.mubr.bf16.mxu0 0
        %2782 = vmatmul.mubr.bf16.gmra.mxu0 %v2640
        %v2783 = vpop.f32.mrf.mxu0
        %v2784 = vadd.f32 %v2564, %v2783
        %v2785 = vpop.f32.mrf.mxu0
        %v2786 = vpop.f32.mrf.mxu0
        %v2787 = vadd.f32 %v2564, %v2786
        %v2788 = vpop.f32.mrf.mxu0
        %2789 = vmatprep.mubr.bf16.mxu0 0
        %2790 = vmatmul.mubr.bf16.gmra.mxu0 %v2641
        %v2791 = vpop.f32.mrf.mxu0
        %v2792 = vadd.f32 %v2564, %v2791
        %v2793 = vpop.f32.mrf.mxu0
        %v2794 = vpop.f32.mrf.mxu0
        %v2795 = vadd.f32 %v2564, %v2794
        %v2796 = vpop.f32.mrf.mxu0
        %2797 = vmatprep.mubr.bf16.mxu0 0
        %2798 = vmatmul.mubr.bf16.gmra.mxu0 %v2642
        %v2799 = vpop.f32.mrf.mxu0
        %v2800 = vadd.f32 %v2564, %v2799
        %v2801 = vpop.f32.mrf.mxu0
        %v2802 = vpop.f32.mrf.mxu0
        %v2803 = vadd.f32 %v2564, %v2802
        %v2804 = vpop.f32.mrf.mxu0
        %2805 = vmatprep.mubr.bf16.mxu0 0
        %2806 = vmatmul.mubr.bf16.gmra.mxu0 %v2643
        %v2807 = vpop.f32.mrf.mxu0
        %v2808 = vadd.f32 %v2564, %v2807
        %v2809 = vpop.f32.mrf.mxu0
        %v2810 = vpop.f32.mrf.mxu0
        %v2811 = vadd.f32 %v2564, %v2810
        %v2812 = vpop.f32.mrf.mxu0
        %2813 = vmatprep.mubr.bf16.mxu0 0
        %2814 = vmatmul.mubr.bf16.gmra.mxu0 %v2644
        %v2815 = vpop.f32.mrf.mxu0
        %v2816 = vadd.f32 %v2564, %v2815
        %v2817 = vpop.f32.mrf.mxu0
        %v2818 = vpop.f32.mrf.mxu0
        %v2819 = vadd.f32 %v2564, %v2818
        %v2820 = vpop.f32.mrf.mxu0
        %2821 = vdwg.mxu0
        %v2822 = vmul.f32 %v2696, 0.2
        %v2823 = vmul.f32 %v2699, 0.2
        %v2824 = vmul.f32 %v2704, 0.2
        %v2825 = vmul.f32 %v2707, 0.2
        %v2826 = vmul.f32 %v2712, 0.2
        %v2827 = vmul.f32 %v2715, 0.2
        %v2828 = vmul.f32 %v2720, 0.2
        %v2829 = vmul.f32 %v2723, 0.2
        %v2830 = vmul.f32 %v2728, 0.2
        %v2831 = vmul.f32 %v2731, 0.2
        %v2832 = vmul.f32 %v2736, 0.2
        %v2833 = vmul.f32 %v2739, 0.2
        %v2834 = vmul.f32 %v2744, 0.2
        %v2835 = vmul.f32 %v2747, 0.2
        %v2836 = vmul.f32 %v2752, 0.2
        %v2837 = vmul.f32 %v2755, 0.2
        %v2838 = vmul.f32 %v2760, 0.2
        %v2839 = vmul.f32 %v2763, 0.2
        %v2840 = vmul.f32 %v2768, 0.2
        %v2841 = vmul.f32 %v2771, 0.2
        %v2842 = vmul.f32 %v2776, 0.2
        %v2843 = vmul.f32 %v2779, 0.2
        %v2844 = vmul.f32 %v2784, 0.2
        %v2845 = vmul.f32 %v2787, 0.2
        %v2846 = vmul.f32 %v2792, 0.2
        %v2847 = vmul.f32 %v2795, 0.2
        %v2848 = vmul.f32 %v2800, 0.2
        %v2849 = vmul.f32 %v2803, 0.2
        %v2850 = vmul.f32 %v2808, 0.2
        %v2851 = vmul.f32 %v2811, 0.2
        %v2852 = vmul.f32 %v2816, 0.2
        %v2853 = vmul.f32 %v2819, 0.2
        %v2854 = vmax.f32 %v2696, %v2822
        %v2855 = vmax.f32 %v2699, %v2823
        %v2856 = vmax.f32 %v2704, %v2824
        %v2857 = vmax.f32 %v2707, %v2825
        %v2858 = vmax.f32 %v2712, %v2826
        %v2859 = vmax.f32 %v2715, %v2827
        %v2860 = vmax.f32 %v2720, %v2828
        %v2861 = vmax.f32 %v2723, %v2829
        %v2862 = vmax.f32 %v2728, %v2830
        %v2863 = vmax.f32 %v2731, %v2831
        %v2864 = vmax.f32 %v2736, %v2832
        %v2865 = vmax.f32 %v2739, %v2833
        %v2866 = vmax.f32 %v2744, %v2834
        %v2867 = vmax.f32 %v2747, %v2835
        %v2868 = vmax.f32 %v2752, %v2836
        %v2869 = vmax.f32 %v2755, %v2837
        %v2870 = vmax.f32 %v2760, %v2838
        %v2871 = vmax.f32 %v2763, %v2839
        %v2872 = vmax.f32 %v2768, %v2840
        %v2873 = vmax.f32 %v2771, %v2841
        %v2874 = vmax.f32 %v2776, %v2842
        %v2875 = vmax.f32 %v2779, %v2843
        %v2876 = vmax.f32 %v2784, %v2844
        %v2877 = vmax.f32 %v2787, %v2845
        %v2878 = vmax.f32 %v2792, %v2846
        %v2879 = vmax.f32 %v2795, %v2847
        %v2880 = vmax.f32 %v2800, %v2848
        %v2881 = vmax.f32 %v2803, %v2849
        %v2882 = vmax.f32 %v2808, %v2850
        %v2883 = vmax.f32 %v2811, %v2851
        %v2884 = vmax.f32 %v2816, %v2852
        %v2885 = vmax.f32 %v2819, %v2853
        %v2886 = vpack.c.bf16 %v2855, %v2854
        %v2887 = vpack.c.bf16 %v2857, %v2856
        %v2888 = vpack.c.bf16 %v2859, %v2858
        %v2889 = vpack.c.bf16 %v2861, %v2860
        %v2890 = vpack.c.bf16 %v2863, %v2862
        %v2891 = vpack.c.bf16 %v2865, %v2864
        %v2892 = vpack.c.bf16 %v2867, %v2866
        %v2893 = vpack.c.bf16 %v2869, %v2868
        %v2894 = vpack.c.bf16 %v2871, %v2870
        %v2895 = vpack.c.bf16 %v2873, %v2872
        %v2896 = vpack.c.bf16 %v2875, %v2874
        %v2897 = vpack.c.bf16 %v2877, %v2876
        %v2898 = vpack.c.bf16 %v2879, %v2878
        %v2899 = vpack.c.bf16 %v2881, %v2880
        %v2900 = vpack.c.bf16 %v2883, %v2882
        %v2901 = vpack.c.bf16 %v2885, %v2884
        %v2918 = vunpack.c.l.b16 %v2886
        %v2919 = vunpack.c.h.b16 %v2886
        %v2920 = vunpack.c.l.b16 %v2887
        %v2921 = vunpack.c.h.b16 %v2887
        %v2922 = vunpack.c.l.b16 %v2888
        %v2923 = vunpack.c.h.b16 %v2888
        %v2924 = vunpack.c.l.b16 %v2889
        %v2925 = vunpack.c.h.b16 %v2889
        %v2926 = vunpack.c.l.b16 %v2890
        %v2927 = vunpack.c.h.b16 %v2890
        %v2928 = vunpack.c.l.b16 %v2891
        %v2929 = vunpack.c.h.b16 %v2891
        %v2930 = vunpack.c.l.b16 %v2892
        %v2931 = vunpack.c.h.b16 %v2892
        %v2932 = vunpack.c.l.b16 %v2893
        %v2933 = vunpack.c.h.b16 %v2893
        %v2934 = vunpack.c.l.b16 %v2894
        %v2935 = vunpack.c.h.b16 %v2894
        %v2936 = vunpack.c.l.b16 %v2895
        %v2937 = vunpack.c.h.b16 %v2895
        %v2938 = vunpack.c.l.b16 %v2896
        %v2939 = vunpack.c.h.b16 %v2896
        %v2940 = vunpack.c.l.b16 %v2897
        %v2941 = vunpack.c.h.b16 %v2897
        %v2942 = vunpack.c.l.b16 %v2898
        %v2943 = vunpack.c.h.b16 %v2898
        %v2944 = vunpack.c.l.b16 %v2899
        %v2945 = vunpack.c.h.b16 %v2899
        %v2946 = vunpack.c.l.b16 %v2900
        %v2947 = vunpack.c.h.b16 %v2900
        %v2948 = vunpack.c.l.b16 %v2901
        %v2949 = vunpack.c.h.b16 %v2901
        %v2950 = vpack.c.b16 %v2918, %v2918
        %v2951 = vpack.c.b16 %v2919, %v2919
        %v2952 = vpack.c.b16 %v2920, %v2920
        %v2953 = vpack.c.b16 %v2921, %v2921
        %v2954 = vpack.c.b16 %v2922, %v2922
        %v2955 = vpack.c.b16 %v2923, %v2923
        %v2956 = vpack.c.b16 %v2924, %v2924
        %v2957 = vpack.c.b16 %v2925, %v2925
        %v2958 = vpack.c.b16 %v2926, %v2926
        %v2959 = vpack.c.b16 %v2927, %v2927
        %v2960 = vpack.c.b16 %v2928, %v2928
        %v2961 = vpack.c.b16 %v2929, %v2929
        %v2962 = vpack.c.b16 %v2930, %v2930
        %v2963 = vpack.c.b16 %v2931, %v2931
        %v2964 = vpack.c.b16 %v2932, %v2932
        %v2965 = vpack.c.b16 %v2933, %v2933
        %v2966 = vpack.c.b16 %v2934, %v2934
        %v2967 = vpack.c.b16 %v2935, %v2935
        %v2968 = vpack.c.b16 %v2936, %v2936
        %v2969 = vpack.c.b16 %v2937, %v2937
        %v2970 = vpack.c.b16 %v2938, %v2938
        %v2971 = vpack.c.b16 %v2939, %v2939
        %v2972 = vpack.c.b16 %v2940, %v2940
        %v2973 = vpack.c.b16 %v2941, %v2941
        %v2974 = vpack.c.b16 %v2942, %v2942
        %v2975 = vpack.c.b16 %v2943, %v2943
        %v2976 = vpack.c.b16 %v2944, %v2944
        %v2977 = vpack.c.b16 %v2945, %v2945
        %v2978 = vpack.c.b16 %v2946, %v2946
        %v2979 = vpack.c.b16 %v2947, %v2947
        %v2980 = vpack.c.b16 %v2948, %v2948
        %v2981 = vpack.c.b16 %v2949, %v2949
        %3014 = vst.msk [vmem:[#allocation2 + $0x4] sm:$0xf] %vm587, %v2950
        %3015 = vst.msk [vmem:[#allocation2 + $0xc] sm:$0xf] %vm587, %v2951
        %3016 = vst.msk [vmem:[#allocation2 + $0x14] sm:$0xf] %vm587, %v2952
        %3017 = vst.msk [vmem:[#allocation2 + $0x1c] sm:$0xf] %vm587, %v2953
        %3018 = vst.msk [vmem:[#allocation2 + $0x24] sm:$0xf] %vm587, %v2954
        %3019 = vst.msk [vmem:[#allocation2 + $0x2c] sm:$0xf] %vm587, %v2955
        %3020 = vst.msk [vmem:[#allocation2 + $0x34] sm:$0xf] %vm587, %v2956
        %3021 = vst.msk [vmem:[#allocation2 + $0x3c] sm:$0xf] %vm587, %v2957
        %3022 = vst.msk [vmem:[#allocation2 + $0x44] sm:$0xf] %vm587, %v2958
        %3023 = vst.msk [vmem:[#allocation2 + $0x4c] sm:$0xf] %vm587, %v2959
        %3024 = vst.msk [vmem:[#allocation2 + $0x54] sm:$0xf] %vm587, %v2960
        %3025 = vst.msk [vmem:[#allocation2 + $0x5c] sm:$0xf] %vm587, %v2961
        %3026 = vst.msk [vmem:[#allocation2 + $0x64] sm:$0xf] %vm587, %v2962
        %3027 = vst.msk [vmem:[#allocation2 + $0x6c] sm:$0xf] %vm587, %v2963
        %3028 = vst.msk [vmem:[#allocation2 + $0x74] sm:$0xf] %vm587, %v2964
        %3029 = vst.msk [vmem:[#allocation2 + $0x7c] sm:$0xf] %vm587, %v2965
        %3030 = vst.msk [vmem:[#allocation2 + $0x84] sm:$0xf] %vm587, %v2966
        %3031 = vst.msk [vmem:[#allocation2 + $0x8c] sm:$0xf] %vm587, %v2967
        %3032 = vst.msk [vmem:[#allocation2 + $0x94] sm:$0xf] %vm587, %v2968
        %3033 = vst.msk [vmem:[#allocation2 + $0x9c] sm:$0xf] %vm587, %v2969
        %3034 = vst.msk [vmem:[#allocation2 + $0xa4] sm:$0xf] %vm587, %v2970
        %3035 = vst.msk [vmem:[#allocation2 + $0xac] sm:$0xf] %vm587, %v2971
        %3036 = vst.msk [vmem:[#allocation2 + $0xb4] sm:$0xf] %vm587, %v2972
        %3037 = vst.msk [vmem:[#allocation2 + $0xbc] sm:$0xf] %vm587, %v2973
        %3038 = vst.msk [vmem:[#allocation2 + $0xc4] sm:$0xf] %vm587, %v2974
        %3039 = vst.msk [vmem:[#allocation2 + $0xcc] sm:$0xf] %vm587, %v2975
        %3040 = vst.msk [vmem:[#allocation2 + $0xd4] sm:$0xf] %vm587, %v2976
        %3041 = vst.msk [vmem:[#allocation2 + $0xdc] sm:$0xf] %vm587, %v2977
        %3042 = vst.msk [vmem:[#allocation2 + $0xe4] sm:$0xf] %vm587, %v2978
        %3043 = vst.msk [vmem:[#allocation2 + $0xec] sm:$0xf] %vm587, %v2979
        %3044 = vst.msk [vmem:[#allocation2 + $0xf4] sm:$0xf] %vm587, %v2980
        %3045 = vst.msk [vmem:[#allocation2 + $0xfc] sm:$0xf] %vm587, %v2981
        %v3046 = vld [vmem:[#allocation2] sm:$0xff]
        %v3047 = vld [vmem:[#allocation2 + $0x8] sm:$0xff]
        %v3048 = vld [vmem:[#allocation2 + $0x10] sm:$0xff]
        %v3049 = vld [vmem:[#allocation2 + $0x18] sm:$0xff]
        %v3050 = vld [vmem:[#allocation2 + $0x20] sm:$0xff]
        %v3051 = vld [vmem:[#allocation2 + $0x28] sm:$0xff]
        %v3052 = vld [vmem:[#allocation2 + $0x30] sm:$0xff]
        %v3053 = vld [vmem:[#allocation2 + $0x38] sm:$0xff]
        %v3054 = vld [vmem:[#allocation2 + $0x40] sm:$0xff]
        %v3055 = vld [vmem:[#allocation2 + $0x48] sm:$0xff]
        %v3056 = vld [vmem:[#allocation2 + $0x50] sm:$0xff]
        %v3057 = vld [vmem:[#allocation2 + $0x58] sm:$0xff]
        %v3058 = vld [vmem:[#allocation2 + $0x60] sm:$0xff]
        %v3059 = vld [vmem:[#allocation2 + $0x68] sm:$0xff]
        %v3060 = vld [vmem:[#allocation2 + $0x70] sm:$0xff]
        %v3061 = vld [vmem:[#allocation2 + $0x78] sm:$0xff]
        %v3062 = vld [vmem:[#allocation2 + $0x80] sm:$0xff]
        %v3063 = vld [vmem:[#allocation2 + $0x88] sm:$0xff]
        %v3064 = vld [vmem:[#allocation2 + $0x90] sm:$0xff]
        %v3065 = vld [vmem:[#allocation2 + $0x98] sm:$0xff]
        %v3066 = vld [vmem:[#allocation2 + $0xa0] sm:$0xff]
        %v3067 = vld [vmem:[#allocation2 + $0xa8] sm:$0xff]
        %v3068 = vld [vmem:[#allocation2 + $0xb0] sm:$0xff]
        %v3069 = vld [vmem:[#allocation2 + $0xb8] sm:$0xff]
        %v3070 = vld [vmem:[#allocation2 + $0xc0] sm:$0xff]
        %v3071 = vld [vmem:[#allocation2 + $0xc8] sm:$0xff]
        %v3072 = vld [vmem:[#allocation2 + $0xd0] sm:$0xff]
        %v3073 = vld [vmem:[#allocation2 + $0xd8] sm:$0xff]
        %v3074 = vld [vmem:[#allocation2 + $0xe0] sm:$0xff]
        %v3075 = vld [vmem:[#allocation2 + $0xe8] sm:$0xff]
        %v3076 = vld [vmem:[#allocation2 + $0xf0] sm:$0xff]
        %v3077 = vld [vmem:[#allocation2 + $0xf8] sm:$0xff]
        %v3078 = vld [vmem:[%s1 + $0x148] sm:$0xff]
        %v3079 = vld [vmem:[%s1 + $0x150] sm:$0xff]
        %v3080 = vld [vmem:[%s1 + $0x158] sm:$0xff]
        %v3081 = vld [vmem:[%s1 + $0x160] sm:$0xff]
        %v3082 = vld [vmem:[%s1 + $0x168] sm:$0xff]
        %v3083 = vld [vmem:[%s1 + $0x170] sm:$0xff]
        %v3084 = vld [vmem:[%s1 + $0x178] sm:$0xff]
        %v3085 = vld [vmem:[%s1 + $0x180] sm:$0xff]
        %v3086 = vld [vmem:[%s1 + $0x188] sm:$0xff]
        %v3087 = vld [vmem:[%s1 + $0x190] sm:$0xff]
        %v3088 = vld [vmem:[%s1 + $0x198] sm:$0xff]
        %v3089 = vld [vmem:[%s1 + $0x1a0] sm:$0xff]
        %v3090 = vld [vmem:[%s1 + $0x1a8] sm:$0xff]
        %v3091 = vld [vmem:[%s1 + $0x1b0] sm:$0xff]
        %v3092 = vld [vmem:[%s1 + $0x1b8] sm:$0xff]
        %v3093 = vld [vmem:[%s1 + $0x1c0] sm:$0xff]
        %v3094 = vld [vmem:[%s1 + $0x1c8] sm:$0xff]
        %v3095 = vld [vmem:[%s1 + $0x1d0] sm:$0xff]
        %v3096 = vld [vmem:[%s1 + $0x1d8] sm:$0xff]
        %v3097 = vld [vmem:[%s1 + $0x1e0] sm:$0xff]
        %v3098 = vpack.c.bf16 %v3079, %v3078
        %v3099 = vpack.c.bf16 %v3081, %v3080
        %v3100 = vpack.c.bf16 %v3083, %v3082
        %v3101 = vpack.c.bf16 %v3085, %v3084
        %v3102 = vpack.c.bf16 %v3087, %v3086
        %v3103 = vpack.c.bf16 %v3089, %v3088
        %v3104 = vpack.c.bf16 %v3091, %v3090
        %v3105 = vpack.c.bf16 %v3093, %v3092
        %v3106 = vpack.c.bf16 %v3095, %v3094
        %v3107 = vpack.c.bf16 %v3097, %v3096
        %v3108 = vld [vmem:[#allocation3 + $0x5] sm:$0x1]
        %v3109 = vlaneseq
        %v3110 = vshrl.u32 %v3109, 7
        %v3111 = vsub.s32 0, %v3110
        %v3112 = vrot.slane %v3108, %v3111
        %v3145 = vunpack.c.l.b16 %v3046
        %v3146 = vunpack.c.h.b16 %v3046
        %v3147 = vunpack.c.l.b16 %v3047
        %v3148 = vunpack.c.h.b16 %v3047
        %v3149 = vunpack.c.l.b16 %v3048
        %v3150 = vunpack.c.h.b16 %v3048
        %v3151 = vunpack.c.l.b16 %v3049
        %v3152 = vunpack.c.h.b16 %v3049
        %v3153 = vunpack.c.l.b16 %v3050
        %v3154 = vunpack.c.h.b16 %v3050
        %v3155 = vunpack.c.l.b16 %v3051
        %v3156 = vunpack.c.h.b16 %v3051
        %v3157 = vunpack.c.l.b16 %v3052
        %v3158 = vunpack.c.h.b16 %v3052
        %v3159 = vunpack.c.l.b16 %v3053
        %v3160 = vunpack.c.h.b16 %v3053
        %v3161 = vunpack.c.l.b16 %v3054
        %v3162 = vunpack.c.h.b16 %v3054
        %v3163 = vunpack.c.l.b16 %v3055
        %v3164 = vunpack.c.h.b16 %v3055
        %v3165 = vunpack.c.l.b16 %v3056
        %v3166 = vunpack.c.h.b16 %v3056
        %v3167 = vunpack.c.l.b16 %v3057
        %v3168 = vunpack.c.h.b16 %v3057
        %v3169 = vunpack.c.l.b16 %v3058
        %v3170 = vunpack.c.h.b16 %v3058
        %v3171 = vunpack.c.l.b16 %v3059
        %v3172 = vunpack.c.h.b16 %v3059
        %v3173 = vunpack.c.l.b16 %v3060
        %v3174 = vunpack.c.h.b16 %v3060
        %v3175 = vunpack.c.l.b16 %v3061
        %v3176 = vunpack.c.h.b16 %v3061
        %v3177 = vunpack.c.l.b16 %v3062
        %v3178 = vunpack.c.h.b16 %v3062
        %v3179 = vunpack.c.l.b16 %v3063
        %v3180 = vunpack.c.h.b16 %v3063
        %v3181 = vunpack.c.l.b16 %v3064
        %v3182 = vunpack.c.h.b16 %v3064
        %v3183 = vunpack.c.l.b16 %v3065
        %v3184 = vunpack.c.h.b16 %v3065
        %v3185 = vunpack.c.l.b16 %v3066
        %v3186 = vunpack.c.h.b16 %v3066
        %v3187 = vunpack.c.l.b16 %v3067
        %v3188 = vunpack.c.h.b16 %v3067
        %v3189 = vunpack.c.l.b16 %v3068
        %v3190 = vunpack.c.h.b16 %v3068
        %v3191 = vunpack.c.l.b16 %v3069
        %v3192 = vunpack.c.h.b16 %v3069
        %v3193 = vunpack.c.l.b16 %v3070
        %v3194 = vunpack.c.h.b16 %v3070
        %v3195 = vunpack.c.l.b16 %v3071
        %v3196 = vunpack.c.h.b16 %v3071
        %v3197 = vunpack.c.l.b16 %v3072
        %v3198 = vunpack.c.h.b16 %v3072
        %v3199 = vunpack.c.l.b16 %v3073
        %v3200 = vunpack.c.h.b16 %v3073
        %v3201 = vunpack.c.l.b16 %v3074
        %v3202 = vunpack.c.h.b16 %v3074
        %v3203 = vunpack.c.l.b16 %v3075
        %v3204 = vunpack.c.h.b16 %v3075
        %v3205 = vunpack.c.l.b16 %v3076
        %v3206 = vunpack.c.h.b16 %v3076
        %v3207 = vunpack.c.l.b16 %v3077
        %v3208 = vunpack.c.h.b16 %v3077
        %v3209 = vpack.c.b16 %v3147, %v3145
        %v3210 = vpack.c.b16 %v3148, %v3146
        %v3211 = vpack.c.b16 %v3151, %v3149
        %v3212 = vpack.c.b16 %v3152, %v3150
        %v3213 = vpack.c.b16 %v3155, %v3153
        %v3214 = vpack.c.b16 %v3156, %v3154
        %v3215 = vpack.c.b16 %v3159, %v3157
        %v3216 = vpack.c.b16 %v3160, %v3158
        %v3217 = vpack.c.b16 %v3163, %v3161
        %v3218 = vpack.c.b16 %v3164, %v3162
        %v3219 = vpack.c.b16 %v3167, %v3165
        %v3220 = vpack.c.b16 %v3168, %v3166
        %v3221 = vpack.c.b16 %v3171, %v3169
        %v3222 = vpack.c.b16 %v3172, %v3170
        %v3223 = vpack.c.b16 %v3175, %v3173
        %v3224 = vpack.c.b16 %v3176, %v3174
        %v3225 = vpack.c.b16 %v3179, %v3177
        %v3226 = vpack.c.b16 %v3180, %v3178
        %v3227 = vpack.c.b16 %v3183, %v3181
        %v3228 = vpack.c.b16 %v3184, %v3182
        %v3229 = vpack.c.b16 %v3187, %v3185
        %v3230 = vpack.c.b16 %v3188, %v3186
        %v3231 = vpack.c.b16 %v3191, %v3189
        %v3232 = vpack.c.b16 %v3192, %v3190
        %v3233 = vpack.c.b16 %v3195, %v3193
        %v3234 = vpack.c.b16 %v3196, %v3194
        %v3235 = vpack.c.b16 %v3199, %v3197
        %v3236 = vpack.c.b16 %v3200, %v3198
        %v3237 = vpack.c.b16 %v3203, %v3201
        %v3238 = vpack.c.b16 %v3204, %v3202
        %v3239 = vpack.c.b16 %v3207, %v3205
        %v3240 = vpack.c.b16 %v3208, %v3206
        %v3258 = vsel %vm743, %v3210, 0
        %v3261 = vsel %vm743, %v3212, 0
        %v3264 = vsel %vm743, %v3214, 0
        %v3267 = vsel %vm743, %v3216, 0
        %v3270 = vsel %vm743, %v3218, 0
        %v3273 = vsel %vm743, %v3220, 0
        %v3276 = vsel %vm743, %v3222, 0
        %v3279 = vsel %vm743, %v3224, 0
        %v3282 = vsel %vm743, %v3226, 0
        %v3285 = vsel %vm743, %v3228, 0
        %v3288 = vsel %vm743, %v3230, 0
        %v3291 = vsel %vm743, %v3232, 0
        %v3294 = vsel %vm743, %v3234, 0
        %v3297 = vsel %vm743, %v3236, 0
        %v3300 = vsel %vm743, %v3238, 0
        %v3303 = vsel %vm743, %v3240, 0
        %3305 = vmatprep.subr.bf16.mxu0 0
        %3306 = vmatpush1.bf16.msra.mxu0 %v3105
        %3307 = vmatprep.subr.bf16.mxu0 0
        %3308 = vmatpush1.bf16.msra.mxu0 %v3104
        %3309 = vmatprep.subr.bf16.mxu0 0
        %3310 = vmatpush1.bf16.msra.mxu0 %v3103
        %3311 = vmatprep.subr.bf16.mxu0 0
        %3312 = vmatpush1.bf16.msra.mxu0 %v3102
        %3313 = vmatprep.subr.bf16.mxu0 0
        %3314 = vmatpush1.bf16.msra.mxu0 %v3101
        %3315 = vmatprep.subr.bf16.mxu0 0
        %3316 = vmatpush1.bf16.msra.mxu0 %v3100
        %3317 = vmatprep.subr.bf16.mxu0 0
        %3318 = vmatpush1.bf16.msra.mxu0 %v3099
        %3319 = vmatprep.subr.bf16.mxu0 0
        %3320 = vmatpush1.bf16.msra.mxu0 %v3098
        %3321 = vmatprep.subr.bf16.mxu0 0
        %3322 = vmatpush2.bf16.msra.mxu0 0
        %3323 = vmatprep.subr.bf16.mxu0 0
        %3324 = vmatpush2.bf16.msra.mxu0 0
        %3325 = vmatprep.subr.bf16.mxu0 0
        %3326 = vmatpush2.bf16.msra.mxu0 0
        %3327 = vmatprep.subr.bf16.mxu0 0
        %3328 = vmatpush2.bf16.msra.mxu0 0
        %3329 = vmatprep.subr.bf16.mxu0 0
        %3330 = vmatpush2.bf16.msra.mxu0 0
        %3331 = vmatprep.subr.bf16.mxu0 0
        %3332 = vmatpush2.bf16.msra.mxu0 0
        %3333 = vmatprep.subr.bf16.mxu0 0
        %3334 = vmatpush2.bf16.msra.mxu0 %v3107
        %3335 = vmatprep.subr.bf16.mxu0 0
        %3336 = vmatpush2.bf16.msra.mxu0 %v3106
        %3337 = vmatprep.mubr.bf16.mxu0 %v3258
        %3338 = vmatmul.mubr.bf16.gmra.mxu0 %v3209
        %v3339 = vpop.f32.mrf.mxu0
        %v3340 = vadd.f32 %v3112, %v3339
        %v3341 = vpop.f32.mrf.mxu0
        %v3342 = vpop.f32.mrf.mxu0
        %v3343 = vadd.f32 %v3112, %v3342
        %v3344 = vpop.f32.mrf.mxu0
        %3345 = vmatprep.mubr.bf16.mxu0 %v3261
        %3346 = vmatmul.mubr.bf16.gmra.mxu0 %v3211
        %v3347 = vpop.f32.mrf.mxu0
        %v3348 = vadd.f32 %v3112, %v3347
        %v3349 = vpop.f32.mrf.mxu0
        %v3350 = vpop.f32.mrf.mxu0
        %v3351 = vadd.f32 %v3112, %v3350
        %v3352 = vpop.f32.mrf.mxu0
        %3353 = vmatprep.mubr.bf16.mxu0 %v3264
        %3354 = vmatmul.mubr.bf16.gmra.mxu0 %v3213
        %v3355 = vpop.f32.mrf.mxu0
        %v3356 = vadd.f32 %v3112, %v3355
        %v3357 = vpop.f32.mrf.mxu0
        %v3358 = vpop.f32.mrf.mxu0
        %v3359 = vadd.f32 %v3112, %v3358
        %v3360 = vpop.f32.mrf.mxu0
        %3361 = vmatprep.mubr.bf16.mxu0 %v3267
        %3362 = vmatmul.mubr.bf16.gmra.mxu0 %v3215
        %v3363 = vpop.f32.mrf.mxu0
        %v3364 = vadd.f32 %v3112, %v3363
        %v3365 = vpop.f32.mrf.mxu0
        %v3366 = vpop.f32.mrf.mxu0
        %v3367 = vadd.f32 %v3112, %v3366
        %v3368 = vpop.f32.mrf.mxu0
        %3369 = vmatprep.mubr.bf16.mxu0 %v3270
        %3370 = vmatmul.mubr.bf16.gmra.mxu0 %v3217
        %v3371 = vpop.f32.mrf.mxu0
        %v3372 = vadd.f32 %v3112, %v3371
        %v3373 = vpop.f32.mrf.mxu0
        %v3374 = vpop.f32.mrf.mxu0
        %v3375 = vadd.f32 %v3112, %v3374
        %v3376 = vpop.f32.mrf.mxu0
        %3377 = vmatprep.mubr.bf16.mxu0 %v3273
        %3378 = vmatmul.mubr.bf16.gmra.mxu0 %v3219
        %v3379 = vpop.f32.mrf.mxu0
        %v3380 = vadd.f32 %v3112, %v3379
        %v3381 = vpop.f32.mrf.mxu0
        %v3382 = vpop.f32.mrf.mxu0
        %v3383 = vadd.f32 %v3112, %v3382
        %v3384 = vpop.f32.mrf.mxu0
        %3385 = vmatprep.mubr.bf16.mxu0 %v3276
        %3386 = vmatmul.mubr.bf16.gmra.mxu0 %v3221
        %v3387 = vpop.f32.mrf.mxu0
        %v3388 = vadd.f32 %v3112, %v3387
        %v3389 = vpop.f32.mrf.mxu0
        %v3390 = vpop.f32.mrf.mxu0
        %v3391 = vadd.f32 %v3112, %v3390
        %v3392 = vpop.f32.mrf.mxu0
        %3393 = vmatprep.mubr.bf16.mxu0 %v3279
        %3394 = vmatmul.mubr.bf16.gmra.mxu0 %v3223
        %v3395 = vpop.f32.mrf.mxu0
        %v3396 = vadd.f32 %v3112, %v3395
        %v3397 = vpop.f32.mrf.mxu0
        %v3398 = vpop.f32.mrf.mxu0
        %v3399 = vadd.f32 %v3112, %v3398
        %v3400 = vpop.f32.mrf.mxu0
        %3401 = vmatprep.mubr.bf16.mxu0 %v3282
        %3402 = vmatmul.mubr.bf16.gmra.mxu0 %v3225
        %v3403 = vpop.f32.mrf.mxu0
        %v3404 = vadd.f32 %v3112, %v3403
        %v3405 = vpop.f32.mrf.mxu0
        %v3406 = vpop.f32.mrf.mxu0
        %v3407 = vadd.f32 %v3112, %v3406
        %v3408 = vpop.f32.mrf.mxu0
        %3409 = vmatprep.mubr.bf16.mxu0 %v3285
        %3410 = vmatmul.mubr.bf16.gmra.mxu0 %v3227
        %v3411 = vpop.f32.mrf.mxu0
        %v3412 = vadd.f32 %v3112, %v3411
        %v3413 = vpop.f32.mrf.mxu0
        %v3414 = vpop.f32.mrf.mxu0
        %v3415 = vadd.f32 %v3112, %v3414
        %v3416 = vpop.f32.mrf.mxu0
        %3417 = vmatprep.mubr.bf16.mxu0 %v3288
        %3418 = vmatmul.mubr.bf16.gmra.mxu0 %v3229
        %v3419 = vpop.f32.mrf.mxu0
        %v3420 = vadd.f32 %v3112, %v3419
        %v3421 = vpop.f32.mrf.mxu0
        %v3422 = vpop.f32.mrf.mxu0
        %v3423 = vadd.f32 %v3112, %v3422
        %v3424 = vpop.f32.mrf.mxu0
        %3425 = vmatprep.mubr.bf16.mxu0 %v3291
        %3426 = vmatmul.mubr.bf16.gmra.mxu0 %v3231
        %v3427 = vpop.f32.mrf.mxu0
        %v3428 = vadd.f32 %v3112, %v3427
        %v3429 = vpop.f32.mrf.mxu0
        %v3430 = vpop.f32.mrf.mxu0
        %v3431 = vadd.f32 %v3112, %v3430
        %v3432 = vpop.f32.mrf.mxu0
        %3433 = vmatprep.mubr.bf16.mxu0 %v3294
        %3434 = vmatmul.mubr.bf16.gmra.mxu0 %v3233
        %v3435 = vpop.f32.mrf.mxu0
        %v3436 = vadd.f32 %v3112, %v3435
        %v3437 = vpop.f32.mrf.mxu0
        %v3438 = vpop.f32.mrf.mxu0
        %v3439 = vadd.f32 %v3112, %v3438
        %v3440 = vpop.f32.mrf.mxu0
        %3441 = vmatprep.mubr.bf16.mxu0 %v3297
        %3442 = vmatmul.mubr.bf16.gmra.mxu0 %v3235
        %v3443 = vpop.f32.mrf.mxu0
        %v3444 = vadd.f32 %v3112, %v3443
        %v3445 = vpop.f32.mrf.mxu0
        %v3446 = vpop.f32.mrf.mxu0
        %v3447 = vadd.f32 %v3112, %v3446
        %v3448 = vpop.f32.mrf.mxu0
        %3449 = vmatprep.mubr.bf16.mxu0 %v3300
        %3450 = vmatmul.mubr.bf16.gmra.mxu0 %v3237
        %v3451 = vpop.f32.mrf.mxu0
        %v3452 = vadd.f32 %v3112, %v3451
        %v3453 = vpop.f32.mrf.mxu0
        %v3454 = vpop.f32.mrf.mxu0
        %v3455 = vadd.f32 %v3112, %v3454
        %v3456 = vpop.f32.mrf.mxu0
        %3457 = vmatprep.mubr.bf16.mxu0 %v3303
        %3458 = vmatmul.mubr.bf16.gmra.mxu0 %v3239
        %v3459 = vpop.f32.mrf.mxu0
        %v3460 = vadd.f32 %v3112, %v3459
        %v3461 = vpop.f32.mrf.mxu0
        %v3462 = vpop.f32.mrf.mxu0
        %v3463 = vadd.f32 %v3112, %v3462
        %v3464 = vpop.f32.mrf.mxu0
        %3465 = vdwg.mxu0
        %v3466 = vadd.f32 %v3340, %v333
        %v3467 = vadd.f32 %v3343, %v336
        %v3468 = vadd.f32 %v3348, %v341
        %v3469 = vadd.f32 %v3351, %v344
        %v3470 = vadd.f32 %v3356, %v349
        %v3471 = vadd.f32 %v3359, %v352
        %v3472 = vadd.f32 %v3364, %v357
        %v3473 = vadd.f32 %v3367, %v360
        %v3474 = vadd.f32 %v3372, %v365
        %v3475 = vadd.f32 %v3375, %v368
        %v3476 = vadd.f32 %v3380, %v373
        %v3477 = vadd.f32 %v3383, %v376
        %v3478 = vadd.f32 %v3388, %v381
        %v3479 = vadd.f32 %v3391, %v384
        %v3480 = vadd.f32 %v3396, %v389
        %v3481 = vadd.f32 %v3399, %v392
        %v3482 = vadd.f32 %v3404, %v397
        %v3483 = vadd.f32 %v3407, %v400
        %v3484 = vadd.f32 %v3412, %v405
        %v3485 = vadd.f32 %v3415, %v408
        %v3486 = vadd.f32 %v3420, %v413
        %v3487 = vadd.f32 %v3423, %v416
        %v3488 = vadd.f32 %v3428, %v421
        %v3489 = vadd.f32 %v3431, %v424
        %v3490 = vadd.f32 %v3436, %v429
        %v3491 = vadd.f32 %v3439, %v432
        %v3492 = vadd.f32 %v3444, %v437
        %v3493 = vadd.f32 %v3447, %v440
        %v3494 = vadd.f32 %v3452, %v445
        %v3495 = vadd.f32 %v3455, %v448
        %v3496 = vadd.f32 %v3460, %v453
        %v3497 = vadd.f32 %v3463, %v456
        %v3498 = vpack.c.bf16 %v3467, %v3466
        %v3499 = vpack.c.bf16 %v3469, %v3468
        %v3500 = vpack.c.bf16 %v3471, %v3470
        %v3501 = vpack.c.bf16 %v3473, %v3472
        %v3502 = vpack.c.bf16 %v3475, %v3474
        %v3503 = vpack.c.bf16 %v3477, %v3476
        %v3504 = vpack.c.bf16 %v3479, %v3478
        %v3505 = vpack.c.bf16 %v3481, %v3480
        %v3506 = vpack.c.bf16 %v3483, %v3482
        %v3507 = vpack.c.bf16 %v3485, %v3484
        %v3508 = vpack.c.bf16 %v3487, %v3486
        %v3509 = vpack.c.bf16 %v3489, %v3488
        %v3510 = vpack.c.bf16 %v3491, %v3490
        %v3511 = vpack.c.bf16 %v3493, %v3492
        %v3512 = vpack.c.bf16 %v3495, %v3494
        %v3513 = vpack.c.bf16 %v3497, %v3496
        %v3530 = vunpack.c.l.b16 %v3498
        %v3531 = vunpack.c.h.b16 %v3498
        %v3532 = vunpack.c.l.b16 %v3499
        %v3533 = vunpack.c.h.b16 %v3499
        %v3534 = vunpack.c.l.b16 %v3500
        %v3535 = vunpack.c.h.b16 %v3500
        %v3536 = vunpack.c.l.b16 %v3501
        %v3537 = vunpack.c.h.b16 %v3501
        %v3538 = vunpack.c.l.b16 %v3502
        %v3539 = vunpack.c.h.b16 %v3502
        %v3540 = vunpack.c.l.b16 %v3503
        %v3541 = vunpack.c.h.b16 %v3503
        %v3542 = vunpack.c.l.b16 %v3504
        %v3543 = vunpack.c.h.b16 %v3504
        %v3544 = vunpack.c.l.b16 %v3505
        %v3545 = vunpack.c.h.b16 %v3505
        %v3546 = vunpack.c.l.b16 %v3506
        %v3547 = vunpack.c.h.b16 %v3506
        %v3548 = vunpack.c.l.b16 %v3507
        %v3549 = vunpack.c.h.b16 %v3507
        %v3550 = vunpack.c.l.b16 %v3508
        %v3551 = vunpack.c.h.b16 %v3508
        %v3552 = vunpack.c.l.b16 %v3509
        %v3553 = vunpack.c.h.b16 %v3509
        %v3554 = vunpack.c.l.b16 %v3510
        %v3555 = vunpack.c.h.b16 %v3510
        %v3556 = vunpack.c.l.b16 %v3511
        %v3557 = vunpack.c.h.b16 %v3511
        %v3558 = vunpack.c.l.b16 %v3512
        %v3559 = vunpack.c.h.b16 %v3512
        %v3560 = vunpack.c.l.b16 %v3513
        %v3561 = vunpack.c.h.b16 %v3513
        %v3562 = vpack.c.b16 %v3530, %v3530
        %v3563 = vpack.c.b16 %v3531, %v3531
        %v3564 = vpack.c.b16 %v3532, %v3532
        %v3565 = vpack.c.b16 %v3533, %v3533
        %v3566 = vpack.c.b16 %v3534, %v3534
        %v3567 = vpack.c.b16 %v3535, %v3535
        %v3568 = vpack.c.b16 %v3536, %v3536
        %v3569 = vpack.c.b16 %v3537, %v3537
        %v3570 = vpack.c.b16 %v3538, %v3538
        %v3571 = vpack.c.b16 %v3539, %v3539
        %v3572 = vpack.c.b16 %v3540, %v3540
        %v3573 = vpack.c.b16 %v3541, %v3541
        %v3574 = vpack.c.b16 %v3542, %v3542
        %v3575 = vpack.c.b16 %v3543, %v3543
        %v3576 = vpack.c.b16 %v3544, %v3544
        %v3577 = vpack.c.b16 %v3545, %v3545
        %v3578 = vpack.c.b16 %v3546, %v3546
        %v3579 = vpack.c.b16 %v3547, %v3547
        %v3580 = vpack.c.b16 %v3548, %v3548
        %v3581 = vpack.c.b16 %v3549, %v3549
        %v3582 = vpack.c.b16 %v3550, %v3550
        %v3583 = vpack.c.b16 %v3551, %v3551
        %v3584 = vpack.c.b16 %v3552, %v3552
        %v3585 = vpack.c.b16 %v3553, %v3553
        %v3586 = vpack.c.b16 %v3554, %v3554
        %v3587 = vpack.c.b16 %v3555, %v3555
        %v3588 = vpack.c.b16 %v3556, %v3556
        %v3589 = vpack.c.b16 %v3557, %v3557
        %v3590 = vpack.c.b16 %v3558, %v3558
        %v3591 = vpack.c.b16 %v3559, %v3559
        %v3592 = vpack.c.b16 %v3560, %v3560
        %v3593 = vpack.c.b16 %v3561, %v3561
        %3626 = vst.msk [vmem:[#allocation2] sm:$0xf] %vm587, %v3562
        %3627 = vst.msk [vmem:[#allocation2 + $0x8] sm:$0xf] %vm587, %v3563
        %3628 = vst.msk [vmem:[#allocation2 + $0x10] sm:$0xf] %vm587, %v3564
        %3629 = vst.msk [vmem:[#allocation2 + $0x18] sm:$0xf] %vm587, %v3565
        %3630 = vst.msk [vmem:[#allocation2 + $0x20] sm:$0xf] %vm587, %v3566
        %3631 = vst.msk [vmem:[#allocation2 + $0x28] sm:$0xf] %vm587, %v3567
        %3632 = vst.msk [vmem:[#allocation2 + $0x30] sm:$0xf] %vm587, %v3568
        %3633 = vst.msk [vmem:[#allocation2 + $0x38] sm:$0xf] %vm587, %v3569
        %3634 = vst.msk [vmem:[#allocation2 + $0x40] sm:$0xf] %vm587, %v3570
        %3635 = vst.msk [vmem:[#allocation2 + $0x48] sm:$0xf] %vm587, %v3571
        %3636 = vst.msk [vmem:[#allocation2 + $0x50] sm:$0xf] %vm587, %v3572
        %3637 = vst.msk [vmem:[#allocation2 + $0x58] sm:$0xf] %vm587, %v3573
        %3638 = vst.msk [vmem:[#allocation2 + $0x60] sm:$0xf] %vm587, %v3574
        %3639 = vst.msk [vmem:[#allocation2 + $0x68] sm:$0xf] %vm587, %v3575
        %3640 = vst.msk [vmem:[#allocation2 + $0x70] sm:$0xf] %vm587, %v3576
        %3641 = vst.msk [vmem:[#allocation2 + $0x78] sm:$0xf] %vm587, %v3577
        %3642 = vst.msk [vmem:[#allocation2 + $0x80] sm:$0xf] %vm587, %v3578
        %3643 = vst.msk [vmem:[#allocation2 + $0x88] sm:$0xf] %vm587, %v3579
        %3644 = vst.msk [vmem:[#allocation2 + $0x90] sm:$0xf] %vm587, %v3580
        %3645 = vst.msk [vmem:[#allocation2 + $0x98] sm:$0xf] %vm587, %v3581
        %3646 = vst.msk [vmem:[#allocation2 + $0xa0] sm:$0xf] %vm587, %v3582
        %3647 = vst.msk [vmem:[#allocation2 + $0xa8] sm:$0xf] %vm587, %v3583
        %3648 = vst.msk [vmem:[#allocation2 + $0xb0] sm:$0xf] %vm587, %v3584
        %3649 = vst.msk [vmem:[#allocation2 + $0xb8] sm:$0xf] %vm587, %v3585
        %3650 = vst.msk [vmem:[#allocation2 + $0xc0] sm:$0xf] %vm587, %v3586
        %3651 = vst.msk [vmem:[#allocation2 + $0xc8] sm:$0xf] %vm587, %v3587
        %3652 = vst.msk [vmem:[#allocation2 + $0xd0] sm:$0xf] %vm587, %v3588
        %3653 = vst.msk [vmem:[#allocation2 + $0xd8] sm:$0xf] %vm587, %v3589
        %3654 = vst.msk [vmem:[#allocation2 + $0xe0] sm:$0xf] %vm587, %v3590
        %3655 = vst.msk [vmem:[#allocation2 + $0xe8] sm:$0xf] %vm587, %v3591
        %3656 = vst.msk [vmem:[#allocation2 + $0xf0] sm:$0xf] %vm587, %v3592
        %3657 = vst.msk [vmem:[#allocation2 + $0xf8] sm:$0xf] %vm587, %v3593
        %v3658 = vld [vmem:[#allocation2] sm:$0xf]
        %v3659 = vld [vmem:[#allocation2 + $0x8] sm:$0xf]
        %v3660 = vld [vmem:[#allocation2 + $0x10] sm:$0xf]
        %v3661 = vld [vmem:[#allocation2 + $0x18] sm:$0xf]
        %v3662 = vld [vmem:[#allocation2 + $0x20] sm:$0xf]
        %v3663 = vld [vmem:[#allocation2 + $0x28] sm:$0xf]
        %v3664 = vld [vmem:[#allocation2 + $0x30] sm:$0xf]
        %v3665 = vld [vmem:[#allocation2 + $0x38] sm:$0xf]
        %v3666 = vld [vmem:[#allocation2 + $0x40] sm:$0xf]
        %v3667 = vld [vmem:[#allocation2 + $0x48] sm:$0xf]
        %v3668 = vld [vmem:[#allocation2 + $0x50] sm:$0xf]
        %v3669 = vld [vmem:[#allocation2 + $0x58] sm:$0xf]
        %v3670 = vld [vmem:[#allocation2 + $0x60] sm:$0xf]
        %v3671 = vld [vmem:[#allocation2 + $0x68] sm:$0xf]
        %v3672 = vld [vmem:[#allocation2 + $0x70] sm:$0xf]
        %v3673 = vld [vmem:[#allocation2 + $0x78] sm:$0xf]
        %v3674 = vld [vmem:[#allocation2 + $0x80] sm:$0xf]
        %v3675 = vld [vmem:[#allocation2 + $0x88] sm:$0xf]
        %v3676 = vld [vmem:[#allocation2 + $0x90] sm:$0xf]
        %v3677 = vld [vmem:[#allocation2 + $0x98] sm:$0xf]
        %v3678 = vld [vmem:[#allocation2 + $0xa0] sm:$0xf]
        %v3679 = vld [vmem:[#allocation2 + $0xa8] sm:$0xf]
        %v3680 = vld [vmem:[#allocation2 + $0xb0] sm:$0xf]
        %v3681 = vld [vmem:[#allocation2 + $0xb8] sm:$0xf]
        %v3682 = vld [vmem:[#allocation2 + $0xc0] sm:$0xf]
        %v3683 = vld [vmem:[#allocation2 + $0xc8] sm:$0xf]
        %v3684 = vld [vmem:[#allocation2 + $0xd0] sm:$0xf]
        %v3685 = vld [vmem:[#allocation2 + $0xd8] sm:$0xf]
        %v3686 = vld [vmem:[#allocation2 + $0xe0] sm:$0xf]
        %v3687 = vld [vmem:[#allocation2 + $0xe8] sm:$0xf]
        %v3688 = vld [vmem:[#allocation2 + $0xf0] sm:$0xf]
        %v3689 = vld [vmem:[#allocation2 + $0xf8] sm:$0xf]
        %v3690 = vld [vmem:[%s1 + $0x1e8] sm:$0xff]
        %v3691 = vld [vmem:[%s1 + $0x1f0] sm:$0xff]
        %v3692 = vld [vmem:[%s1 + $0x1f8] sm:$0xff]
        %v3693 = vld [vmem:[%s1 + $0x200] sm:$0xff]
        %v3694 = vpack.c.bf16 %v3691, %v3690
        %v3695 = vpack.c.bf16 %v3693, %v3692
        %v3696 = vld [vmem:[#allocation3 + $0x6] sm:$0x1]
        %v3697 = vlaneseq
        %v3698 = vshrl.u32 %v3697, 7
        %v3699 = vsub.s32 0, %v3698
        %v3700 = vrot.slane %v3696, %v3699
        %v3733 = vunpack.c.l.b16 %v3658
        %v3734 = vunpack.c.l.b16 %v3659
        %v3735 = vunpack.c.l.b16 %v3660
        %v3736 = vunpack.c.l.b16 %v3661
        %v3737 = vunpack.c.l.b16 %v3662
        %v3738 = vunpack.c.l.b16 %v3663
        %v3739 = vunpack.c.l.b16 %v3664
        %v3740 = vunpack.c.l.b16 %v3665
        %v3741 = vunpack.c.l.b16 %v3666
        %v3742 = vunpack.c.l.b16 %v3667
        %v3743 = vunpack.c.l.b16 %v3668
        %v3744 = vunpack.c.l.b16 %v3669
        %v3745 = vunpack.c.l.b16 %v3670
        %v3746 = vunpack.c.l.b16 %v3671
        %v3747 = vunpack.c.l.b16 %v3672
        %v3748 = vunpack.c.l.b16 %v3673
        %v3749 = vunpack.c.l.b16 %v3674
        %v3750 = vunpack.c.l.b16 %v3675
        %v3751 = vunpack.c.l.b16 %v3676
        %v3752 = vunpack.c.l.b16 %v3677
        %v3753 = vunpack.c.l.b16 %v3678
        %v3754 = vunpack.c.l.b16 %v3679
        %v3755 = vunpack.c.l.b16 %v3680
        %v3756 = vunpack.c.l.b16 %v3681
        %v3757 = vunpack.c.l.b16 %v3682
        %v3758 = vunpack.c.l.b16 %v3683
        %v3759 = vunpack.c.l.b16 %v3684
        %v3760 = vunpack.c.l.b16 %v3685
        %v3761 = vunpack.c.l.b16 %v3686
        %v3762 = vunpack.c.l.b16 %v3687
        %v3763 = vunpack.c.l.b16 %v3688
        %v3764 = vunpack.c.l.b16 %v3689
        %v3765 = vpack.c.b16 %v3734, %v3733
        %v3766 = vpack.c.b16 %v3736, %v3735
        %v3767 = vpack.c.b16 %v3738, %v3737
        %v3768 = vpack.c.b16 %v3740, %v3739
        %v3769 = vpack.c.b16 %v3742, %v3741
        %v3770 = vpack.c.b16 %v3744, %v3743
        %v3771 = vpack.c.b16 %v3746, %v3745
        %v3772 = vpack.c.b16 %v3748, %v3747
        %v3773 = vpack.c.b16 %v3750, %v3749
        %v3774 = vpack.c.b16 %v3752, %v3751
        %v3775 = vpack.c.b16 %v3754, %v3753
        %v3776 = vpack.c.b16 %v3756, %v3755
        %v3777 = vpack.c.b16 %v3758, %v3757
        %v3778 = vpack.c.b16 %v3760, %v3759
        %v3779 = vpack.c.b16 %v3762, %v3761
        %v3780 = vpack.c.b16 %v3764, %v3763
        %v3782 = vsel %vm743, %v3765, 0
        %v3785 = vsel %vm743, %v3766, 0
        %v3788 = vsel %vm743, %v3767, 0
        %v3791 = vsel %vm743, %v3768, 0
        %v3794 = vsel %vm743, %v3769, 0
        %v3797 = vsel %vm743, %v3770, 0
        %v3800 = vsel %vm743, %v3771, 0
        %v3803 = vsel %vm743, %v3772, 0
        %v3806 = vsel %vm743, %v3773, 0
        %v3809 = vsel %vm743, %v3774, 0
        %v3812 = vsel %vm743, %v3775, 0
        %v3815 = vsel %vm743, %v3776, 0
        %v3818 = vsel %vm743, %v3777, 0
        %v3821 = vsel %vm743, %v3778, 0
        %v3824 = vsel %vm743, %v3779, 0
        %v3827 = vsel %vm743, %v3780, 0
        %3829 = vmatprep.subr.bf16.mxu0 0
        %3830 = vmatpush1.bf16.msra.mxu0 0
        %3831 = vmatprep.subr.bf16.mxu0 0
        %3832 = vmatpush1.bf16.msra.mxu0 0
        %3833 = vmatprep.subr.bf16.mxu0 0
        %3834 = vmatpush1.bf16.msra.mxu0 0
        %3835 = vmatprep.subr.bf16.mxu0 0
        %3836 = vmatpush1.bf16.msra.mxu0 0
        %3837 = vmatprep.subr.bf16.mxu0 0
        %3838 = vmatpush1.bf16.msra.mxu0 0
        %3839 = vmatprep.subr.bf16.mxu0 0
        %3840 = vmatpush1.bf16.msra.mxu0 0
        %3841 = vmatprep.subr.bf16.mxu0 0
        %3842 = vmatpush1.bf16.msra.mxu0 %v3695
        %3843 = vmatprep.subr.bf16.mxu0 0
        %3844 = vmatpush1.bf16.msra.mxu0 %v3694
        %3845 = vmatprep.subr.bf16.mxu0 0
        %3846 = vmatpush2.bf16.msra.mxu0 0
        %3847 = vmatprep.subr.bf16.mxu0 0
        %3848 = vmatpush2.bf16.msra.mxu0 0
        %3849 = vmatprep.subr.bf16.mxu0 0
        %3850 = vmatpush2.bf16.msra.mxu0 0
        %3851 = vmatprep.subr.bf16.mxu0 0
        %3852 = vmatpush2.bf16.msra.mxu0 0
        %3853 = vmatprep.subr.bf16.mxu0 0
        %3854 = vmatpush2.bf16.msra.mxu0 0
        %3855 = vmatprep.subr.bf16.mxu0 0
        %3856 = vmatpush2.bf16.msra.mxu0 0
        %3857 = vmatprep.subr.bf16.mxu0 0
        %3858 = vmatpush2.bf16.msra.mxu0 0
        %3859 = vmatprep.subr.bf16.mxu0 0
        %3860 = vmatpush2.bf16.msra.mxu0 0
        %3861 = vmatprep.mubr.bf16.mxu0 0
        %3862 = vmatmul.mubr.bf16.gmra.mxu0 %v3782
        %v3863 = vpop.f32.mrf.mxu0
        %v3864 = vadd.f32 %v3700, %v3863
        %v3865 = vpop.f32.mrf.mxu0
        %v3866 = vpop.f32.mrf.mxu0
        %v3867 = vadd.f32 %v3700, %v3866
        %v3868 = vpop.f32.mrf.mxu0
        %3869 = vmatprep.mubr.bf16.mxu0 0
        %3870 = vmatmul.mubr.bf16.gmra.mxu0 %v3785
        %v3871 = vpop.f32.mrf.mxu0
        %v3872 = vadd.f32 %v3700, %v3871
        %v3873 = vpop.f32.mrf.mxu0
        %v3874 = vpop.f32.mrf.mxu0
        %v3875 = vadd.f32 %v3700, %v3874
        %v3876 = vpop.f32.mrf.mxu0
        %3877 = vmatprep.mubr.bf16.mxu0 0
        %3878 = vmatmul.mubr.bf16.gmra.mxu0 %v3788
        %v3879 = vpop.f32.mrf.mxu0
        %v3880 = vadd.f32 %v3700, %v3879
        %v3881 = vpop.f32.mrf.mxu0
        %v3882 = vpop.f32.mrf.mxu0
        %v3883 = vadd.f32 %v3700, %v3882
        %v3884 = vpop.f32.mrf.mxu0
        %3885 = vmatprep.mubr.bf16.mxu0 0
        %3886 = vmatmul.mubr.bf16.gmra.mxu0 %v3791
        %v3887 = vpop.f32.mrf.mxu0
        %v3888 = vadd.f32 %v3700, %v3887
        %v3889 = vpop.f32.mrf.mxu0
        %v3890 = vpop.f32.mrf.mxu0
        %v3891 = vadd.f32 %v3700, %v3890
        %v3892 = vpop.f32.mrf.mxu0
        %3893 = vmatprep.mubr.bf16.mxu0 0
        %3894 = vmatmul.mubr.bf16.gmra.mxu0 %v3794
        %v3895 = vpop.f32.mrf.mxu0
        %v3896 = vadd.f32 %v3700, %v3895
        %v3897 = vpop.f32.mrf.mxu0
        %v3898 = vpop.f32.mrf.mxu0
        %v3899 = vadd.f32 %v3700, %v3898
        %v3900 = vpop.f32.mrf.mxu0
        %3901 = vmatprep.mubr.bf16.mxu0 0
        %3902 = vmatmul.mubr.bf16.gmra.mxu0 %v3797
        %v3903 = vpop.f32.mrf.mxu0
        %v3904 = vadd.f32 %v3700, %v3903
        %v3905 = vpop.f32.mrf.mxu0
        %v3906 = vpop.f32.mrf.mxu0
        %v3907 = vadd.f32 %v3700, %v3906
        %v3908 = vpop.f32.mrf.mxu0
        %3909 = vmatprep.mubr.bf16.mxu0 0
        %3910 = vmatmul.mubr.bf16.gmra.mxu0 %v3800
        %v3911 = vpop.f32.mrf.mxu0
        %v3912 = vadd.f32 %v3700, %v3911
        %v3913 = vpop.f32.mrf.mxu0
        %v3914 = vpop.f32.mrf.mxu0
        %v3915 = vadd.f32 %v3700, %v3914
        %v3916 = vpop.f32.mrf.mxu0
        %3917 = vmatprep.mubr.bf16.mxu0 0
        %3918 = vmatmul.mubr.bf16.gmra.mxu0 %v3803
        %v3919 = vpop.f32.mrf.mxu0
        %v3920 = vadd.f32 %v3700, %v3919
        %v3921 = vpop.f32.mrf.mxu0
        %v3922 = vpop.f32.mrf.mxu0
        %v3923 = vadd.f32 %v3700, %v3922
        %v3924 = vpop.f32.mrf.mxu0
        %3925 = vmatprep.mubr.bf16.mxu0 0
        %3926 = vmatmul.mubr.bf16.gmra.mxu0 %v3806
        %v3927 = vpop.f32.mrf.mxu0
        %v3928 = vadd.f32 %v3700, %v3927
        %v3929 = vpop.f32.mrf.mxu0
        %v3930 = vpop.f32.mrf.mxu0
        %v3931 = vadd.f32 %v3700, %v3930
        %v3932 = vpop.f32.mrf.mxu0
        %3933 = vmatprep.mubr.bf16.mxu0 0
        %3934 = vmatmul.mubr.bf16.gmra.mxu0 %v3809
        %v3935 = vpop.f32.mrf.mxu0
        %v3936 = vadd.f32 %v3700, %v3935
        %v3937 = vpop.f32.mrf.mxu0
        %v3938 = vpop.f32.mrf.mxu0
        %v3939 = vadd.f32 %v3700, %v3938
        %v3940 = vpop.f32.mrf.mxu0
        %3941 = vmatprep.mubr.bf16.mxu0 0
        %3942 = vmatmul.mubr.bf16.gmra.mxu0 %v3812
        %v3943 = vpop.f32.mrf.mxu0
        %v3944 = vadd.f32 %v3700, %v3943
        %v3945 = vpop.f32.mrf.mxu0
        %v3946 = vpop.f32.mrf.mxu0
        %v3947 = vadd.f32 %v3700, %v3946
        %v3948 = vpop.f32.mrf.mxu0
        %3949 = vmatprep.mubr.bf16.mxu0 0
        %3950 = vmatmul.mubr.bf16.gmra.mxu0 %v3815
        %v3951 = vpop.f32.mrf.mxu0
        %v3952 = vadd.f32 %v3700, %v3951
        %v3953 = vpop.f32.mrf.mxu0
        %v3954 = vpop.f32.mrf.mxu0
        %v3955 = vadd.f32 %v3700, %v3954
        %v3956 = vpop.f32.mrf.mxu0
        %3957 = vmatprep.mubr.bf16.mxu0 0
        %3958 = vmatmul.mubr.bf16.gmra.mxu0 %v3818
        %v3959 = vpop.f32.mrf.mxu0
        %v3960 = vadd.f32 %v3700, %v3959
        %v3961 = vpop.f32.mrf.mxu0
        %v3962 = vpop.f32.mrf.mxu0
        %v3963 = vadd.f32 %v3700, %v3962
        %v3964 = vpop.f32.mrf.mxu0
        %3965 = vmatprep.mubr.bf16.mxu0 0
        %3966 = vmatmul.mubr.bf16.gmra.mxu0 %v3821
        %v3967 = vpop.f32.mrf.mxu0
        %v3968 = vadd.f32 %v3700, %v3967
        %v3969 = vpop.f32.mrf.mxu0
        %v3970 = vpop.f32.mrf.mxu0
        %v3971 = vadd.f32 %v3700, %v3970
        %v3972 = vpop.f32.mrf.mxu0
        %3973 = vmatprep.mubr.bf16.mxu0 0
        %3974 = vmatmul.mubr.bf16.gmra.mxu0 %v3824
        %v3975 = vpop.f32.mrf.mxu0
        %v3976 = vadd.f32 %v3700, %v3975
        %v3977 = vpop.f32.mrf.mxu0
        %v3978 = vpop.f32.mrf.mxu0
        %v3979 = vadd.f32 %v3700, %v3978
        %v3980 = vpop.f32.mrf.mxu0
        %3981 = vmatprep.mubr.bf16.mxu0 0
        %3982 = vmatmul.mubr.bf16.gmra.mxu0 %v3827
        %v3983 = vpop.f32.mrf.mxu0
        %v3984 = vadd.f32 %v3700, %v3983
        %v3985 = vpop.f32.mrf.mxu0
        %v3986 = vpop.f32.mrf.mxu0
        %v3987 = vadd.f32 %v3700, %v3986
        %v3988 = vpop.f32.mrf.mxu0
        %3989 = vdwg.mxu0
        %v3990 = vmul.f32 %v3864, 0.2
        %v3991 = vmul.f32 %v3867, 0.2
        %v3992 = vmul.f32 %v3872, 0.2
        %v3993 = vmul.f32 %v3875, 0.2
        %v3994 = vmul.f32 %v3880, 0.2
        %v3995 = vmul.f32 %v3883, 0.2
        %v3996 = vmul.f32 %v3888, 0.2
        %v3997 = vmul.f32 %v3891, 0.2
        %v3998 = vmul.f32 %v3896, 0.2
        %v3999 = vmul.f32 %v3899, 0.2
        %v4000 = vmul.f32 %v3904, 0.2
        %v4001 = vmul.f32 %v3907, 0.2
        %v4002 = vmul.f32 %v3912, 0.2
        %v4003 = vmul.f32 %v3915, 0.2
        %v4004 = vmul.f32 %v3920, 0.2
        %v4005 = vmul.f32 %v3923, 0.2
        %v4006 = vmul.f32 %v3928, 0.2
        %v4007 = vmul.f32 %v3931, 0.2
        %v4008 = vmul.f32 %v3936, 0.2
        %v4009 = vmul.f32 %v3939, 0.2
        %v4010 = vmul.f32 %v3944, 0.2
        %v4011 = vmul.f32 %v3947, 0.2
        %v4012 = vmul.f32 %v3952, 0.2
        %v4013 = vmul.f32 %v3955, 0.2
        %v4014 = vmul.f32 %v3960, 0.2
        %v4015 = vmul.f32 %v3963, 0.2
        %v4016 = vmul.f32 %v3968, 0.2
        %v4017 = vmul.f32 %v3971, 0.2
        %v4018 = vmul.f32 %v3976, 0.2
        %v4019 = vmul.f32 %v3979, 0.2
        %v4020 = vmul.f32 %v3984, 0.2
        %v4021 = vmul.f32 %v3987, 0.2
        %v4022 = vmax.f32 %v3864, %v3990
        %v4023 = vmax.f32 %v3867, %v3991
        %v4024 = vmax.f32 %v3872, %v3992
        %v4025 = vmax.f32 %v3875, %v3993
        %v4026 = vmax.f32 %v3880, %v3994
        %v4027 = vmax.f32 %v3883, %v3995
        %v4028 = vmax.f32 %v3888, %v3996
        %v4029 = vmax.f32 %v3891, %v3997
        %v4030 = vmax.f32 %v3896, %v3998
        %v4031 = vmax.f32 %v3899, %v3999
        %v4032 = vmax.f32 %v3904, %v4000
        %v4033 = vmax.f32 %v3907, %v4001
        %v4034 = vmax.f32 %v3912, %v4002
        %v4035 = vmax.f32 %v3915, %v4003
        %v4036 = vmax.f32 %v3920, %v4004
        %v4037 = vmax.f32 %v3923, %v4005
        %v4038 = vmax.f32 %v3928, %v4006
        %v4039 = vmax.f32 %v3931, %v4007
        %v4040 = vmax.f32 %v3936, %v4008
        %v4041 = vmax.f32 %v3939, %v4009
        %v4042 = vmax.f32 %v3944, %v4010
        %v4043 = vmax.f32 %v3947, %v4011
        %v4044 = vmax.f32 %v3952, %v4012
        %v4045 = vmax.f32 %v3955, %v4013
        %v4046 = vmax.f32 %v3960, %v4014
        %v4047 = vmax.f32 %v3963, %v4015
        %v4048 = vmax.f32 %v3968, %v4016
        %v4049 = vmax.f32 %v3971, %v4017
        %v4050 = vmax.f32 %v3976, %v4018
        %v4051 = vmax.f32 %v3979, %v4019
        %v4052 = vmax.f32 %v3984, %v4020
        %v4053 = vmax.f32 %v3987, %v4021
        %v4054 = vpack.c.bf16 %v4023, %v4022
        %v4055 = vpack.c.bf16 %v4025, %v4024
        %v4056 = vpack.c.bf16 %v4027, %v4026
        %v4057 = vpack.c.bf16 %v4029, %v4028
        %v4058 = vpack.c.bf16 %v4031, %v4030
        %v4059 = vpack.c.bf16 %v4033, %v4032
        %v4060 = vpack.c.bf16 %v4035, %v4034
        %v4061 = vpack.c.bf16 %v4037, %v4036
        %v4062 = vpack.c.bf16 %v4039, %v4038
        %v4063 = vpack.c.bf16 %v4041, %v4040
        %v4064 = vpack.c.bf16 %v4043, %v4042
        %v4065 = vpack.c.bf16 %v4045, %v4044
        %v4066 = vpack.c.bf16 %v4047, %v4046
        %v4067 = vpack.c.bf16 %v4049, %v4048
        %v4068 = vpack.c.bf16 %v4051, %v4050
        %v4069 = vpack.c.bf16 %v4053, %v4052
        %v4086 = vunpack.c.l.b16 %v4054
        %v4087 = vunpack.c.h.b16 %v4054
        %v4088 = vunpack.c.l.b16 %v4055
        %v4089 = vunpack.c.h.b16 %v4055
        %v4090 = vunpack.c.l.b16 %v4056
        %v4091 = vunpack.c.h.b16 %v4056
        %v4092 = vunpack.c.l.b16 %v4057
        %v4093 = vunpack.c.h.b16 %v4057
        %v4094 = vunpack.c.l.b16 %v4058
        %v4095 = vunpack.c.h.b16 %v4058
        %v4096 = vunpack.c.l.b16 %v4059
        %v4097 = vunpack.c.h.b16 %v4059
        %v4098 = vunpack.c.l.b16 %v4060
        %v4099 = vunpack.c.h.b16 %v4060
        %v4100 = vunpack.c.l.b16 %v4061
        %v4101 = vunpack.c.h.b16 %v4061
        %v4102 = vunpack.c.l.b16 %v4062
        %v4103 = vunpack.c.h.b16 %v4062
        %v4104 = vunpack.c.l.b16 %v4063
        %v4105 = vunpack.c.h.b16 %v4063
        %v4106 = vunpack.c.l.b16 %v4064
        %v4107 = vunpack.c.h.b16 %v4064
        %v4108 = vunpack.c.l.b16 %v4065
        %v4109 = vunpack.c.h.b16 %v4065
        %v4110 = vunpack.c.l.b16 %v4066
        %v4111 = vunpack.c.h.b16 %v4066
        %v4112 = vunpack.c.l.b16 %v4067
        %v4113 = vunpack.c.h.b16 %v4067
        %v4114 = vunpack.c.l.b16 %v4068
        %v4115 = vunpack.c.h.b16 %v4068
        %v4116 = vunpack.c.l.b16 %v4069
        %v4117 = vunpack.c.h.b16 %v4069
        %v4118 = vpack.c.b16 %v4086, %v4086
        %v4119 = vpack.c.b16 %v4087, %v4087
        %v4120 = vpack.c.b16 %v4088, %v4088
        %v4121 = vpack.c.b16 %v4089, %v4089
        %v4122 = vpack.c.b16 %v4090, %v4090
        %v4123 = vpack.c.b16 %v4091, %v4091
        %v4124 = vpack.c.b16 %v4092, %v4092
        %v4125 = vpack.c.b16 %v4093, %v4093
        %v4126 = vpack.c.b16 %v4094, %v4094
        %v4127 = vpack.c.b16 %v4095, %v4095
        %v4128 = vpack.c.b16 %v4096, %v4096
        %v4129 = vpack.c.b16 %v4097, %v4097
        %v4130 = vpack.c.b16 %v4098, %v4098
        %v4131 = vpack.c.b16 %v4099, %v4099
        %v4132 = vpack.c.b16 %v4100, %v4100
        %v4133 = vpack.c.b16 %v4101, %v4101
        %v4134 = vpack.c.b16 %v4102, %v4102
        %v4135 = vpack.c.b16 %v4103, %v4103
        %v4136 = vpack.c.b16 %v4104, %v4104
        %v4137 = vpack.c.b16 %v4105, %v4105
        %v4138 = vpack.c.b16 %v4106, %v4106
        %v4139 = vpack.c.b16 %v4107, %v4107
        %v4140 = vpack.c.b16 %v4108, %v4108
        %v4141 = vpack.c.b16 %v4109, %v4109
        %v4142 = vpack.c.b16 %v4110, %v4110
        %v4143 = vpack.c.b16 %v4111, %v4111
        %v4144 = vpack.c.b16 %v4112, %v4112
        %v4145 = vpack.c.b16 %v4113, %v4113
        %v4146 = vpack.c.b16 %v4114, %v4114
        %v4147 = vpack.c.b16 %v4115, %v4115
        %v4148 = vpack.c.b16 %v4116, %v4116
        %v4149 = vpack.c.b16 %v4117, %v4117
        %4150 = vrot.lane.b32.xlu0 %v4118, 32
        %v4151 = vpop.permute.xlu0 %4150
        %4152 = vrot.lane.b32.xlu0 %v4119, 32
        %v4153 = vpop.permute.xlu0 %4152
        %4154 = vrot.lane.b32.xlu0 %v4120, 32
        %v4155 = vpop.permute.xlu0 %4154
        %4156 = vrot.lane.b32.xlu0 %v4121, 32
        %v4157 = vpop.permute.xlu0 %4156
        %4158 = vrot.lane.b32.xlu0 %v4122, 32
        %v4159 = vpop.permute.xlu0 %4158
        %4160 = vrot.lane.b32.xlu0 %v4123, 32
        %v4161 = vpop.permute.xlu0 %4160
        %4162 = vrot.lane.b32.xlu0 %v4124, 32
        %v4163 = vpop.permute.xlu0 %4162
        %4164 = vrot.lane.b32.xlu0 %v4125, 32
        %v4165 = vpop.permute.xlu0 %4164
        %4166 = vrot.lane.b32.xlu0 %v4126, 32
        %v4167 = vpop.permute.xlu0 %4166
        %4168 = vrot.lane.b32.xlu0 %v4127, 32
        %v4169 = vpop.permute.xlu0 %4168
        %4170 = vrot.lane.b32.xlu0 %v4128, 32
        %v4171 = vpop.permute.xlu0 %4170
        %4172 = vrot.lane.b32.xlu0 %v4129, 32
        %v4173 = vpop.permute.xlu0 %4172
        %4174 = vrot.lane.b32.xlu0 %v4130, 32
        %v4175 = vpop.permute.xlu0 %4174
        %4176 = vrot.lane.b32.xlu0 %v4131, 32
        %v4177 = vpop.permute.xlu0 %4176
        %4178 = vrot.lane.b32.xlu0 %v4132, 32
        %v4179 = vpop.permute.xlu0 %4178
        %4180 = vrot.lane.b32.xlu0 %v4133, 32
        %v4181 = vpop.permute.xlu0 %4180
        %4182 = vrot.lane.b32.xlu0 %v4134, 32
        %v4183 = vpop.permute.xlu0 %4182
        %4184 = vrot.lane.b32.xlu0 %v4135, 32
        %v4185 = vpop.permute.xlu0 %4184
        %4186 = vrot.lane.b32.xlu0 %v4136, 32
        %v4187 = vpop.permute.xlu0 %4186
        %4188 = vrot.lane.b32.xlu0 %v4137, 32
        %v4189 = vpop.permute.xlu0 %4188
        %4190 = vrot.lane.b32.xlu0 %v4138, 32
        %v4191 = vpop.permute.xlu0 %4190
        %4192 = vrot.lane.b32.xlu0 %v4139, 32
        %v4193 = vpop.permute.xlu0 %4192
        %4194 = vrot.lane.b32.xlu0 %v4140, 32
        %v4195 = vpop.permute.xlu0 %4194
        %4196 = vrot.lane.b32.xlu0 %v4141, 32
        %v4197 = vpop.permute.xlu0 %4196
        %4198 = vrot.lane.b32.xlu0 %v4142, 32
        %v4199 = vpop.permute.xlu0 %4198
        %4200 = vrot.lane.b32.xlu0 %v4143, 32
        %v4201 = vpop.permute.xlu0 %4200
        %4202 = vrot.lane.b32.xlu0 %v4144, 32
        %v4203 = vpop.permute.xlu0 %4202
        %4204 = vrot.lane.b32.xlu0 %v4145, 32
        %v4205 = vpop.permute.xlu0 %4204
        %4206 = vrot.lane.b32.xlu0 %v4146, 32
        %v4207 = vpop.permute.xlu0 %4206
        %4208 = vrot.lane.b32.xlu0 %v4147, 32
        %v4209 = vpop.permute.xlu0 %4208
        %4210 = vrot.lane.b32.xlu0 %v4148, 32
        %v4211 = vpop.permute.xlu0 %4210
        %4212 = vrot.lane.b32.xlu0 %v4149, 32
        %v4213 = vpop.permute.xlu0 %4212
        %4246 = vst.msk [vmem:[#allocation2] sm:$0xf] %vm1209, %v4151
        %4247 = vst.msk [vmem:[#allocation2 + $0x8] sm:$0xf] %vm1209, %v4153
        %4248 = vst.msk [vmem:[#allocation2 + $0x10] sm:$0xf] %vm1209, %v4155
        %4249 = vst.msk [vmem:[#allocation2 + $0x18] sm:$0xf] %vm1209, %v4157
        %4250 = vst.msk [vmem:[#allocation2 + $0x20] sm:$0xf] %vm1209, %v4159
        %4251 = vst.msk [vmem:[#allocation2 + $0x28] sm:$0xf] %vm1209, %v4161
        %4252 = vst.msk [vmem:[#allocation2 + $0x30] sm:$0xf] %vm1209, %v4163
        %4253 = vst.msk [vmem:[#allocation2 + $0x38] sm:$0xf] %vm1209, %v4165
        %4254 = vst.msk [vmem:[#allocation2 + $0x40] sm:$0xf] %vm1209, %v4167
        %4255 = vst.msk [vmem:[#allocation2 + $0x48] sm:$0xf] %vm1209, %v4169
        %4256 = vst.msk [vmem:[#allocation2 + $0x50] sm:$0xf] %vm1209, %v4171
        %4257 = vst.msk [vmem:[#allocation2 + $0x58] sm:$0xf] %vm1209, %v4173
        %4258 = vst.msk [vmem:[#allocation2 + $0x60] sm:$0xf] %vm1209, %v4175
        %4259 = vst.msk [vmem:[#allocation2 + $0x68] sm:$0xf] %vm1209, %v4177
        %4260 = vst.msk [vmem:[#allocation2 + $0x70] sm:$0xf] %vm1209, %v4179
        %4261 = vst.msk [vmem:[#allocation2 + $0x78] sm:$0xf] %vm1209, %v4181
        %4262 = vst.msk [vmem:[#allocation2 + $0x80] sm:$0xf] %vm1209, %v4183
        %4263 = vst.msk [vmem:[#allocation2 + $0x88] sm:$0xf] %vm1209, %v4185
        %4264 = vst.msk [vmem:[#allocation2 + $0x90] sm:$0xf] %vm1209, %v4187
        %4265 = vst.msk [vmem:[#allocation2 + $0x98] sm:$0xf] %vm1209, %v4189
        %4266 = vst.msk [vmem:[#allocation2 + $0xa0] sm:$0xf] %vm1209, %v4191
        %4267 = vst.msk [vmem:[#allocation2 + $0xa8] sm:$0xf] %vm1209, %v4193
        %4268 = vst.msk [vmem:[#allocation2 + $0xb0] sm:$0xf] %vm1209, %v4195
        %4269 = vst.msk [vmem:[#allocation2 + $0xb8] sm:$0xf] %vm1209, %v4197
        %4270 = vst.msk [vmem:[#allocation2 + $0xc0] sm:$0xf] %vm1209, %v4199
        %4271 = vst.msk [vmem:[#allocation2 + $0xc8] sm:$0xf] %vm1209, %v4201
        %4272 = vst.msk [vmem:[#allocation2 + $0xd0] sm:$0xf] %vm1209, %v4203
        %4273 = vst.msk [vmem:[#allocation2 + $0xd8] sm:$0xf] %vm1209, %v4205
        %4274 = vst.msk [vmem:[#allocation2 + $0xe0] sm:$0xf] %vm1209, %v4207
        %4275 = vst.msk [vmem:[#allocation2 + $0xe8] sm:$0xf] %vm1209, %v4209
        %4276 = vst.msk [vmem:[#allocation2 + $0xf0] sm:$0xf] %vm1209, %v4211
        %4277 = vst.msk [vmem:[#allocation2 + $0xf8] sm:$0xf] %vm1209, %v4213
        %v4278 = vld [vmem:[#allocation2] sm:$0xf]
        %v4279 = vld [vmem:[#allocation2 + $0x8] sm:$0xf]
        %v4280 = vld [vmem:[#allocation2 + $0x10] sm:$0xf]
        %v4281 = vld [vmem:[#allocation2 + $0x18] sm:$0xf]
        %v4282 = vld [vmem:[#allocation2 + $0x20] sm:$0xf]
        %v4283 = vld [vmem:[#allocation2 + $0x28] sm:$0xf]
        %v4284 = vld [vmem:[#allocation2 + $0x30] sm:$0xf]
        %v4285 = vld [vmem:[#allocation2 + $0x38] sm:$0xf]
        %v4286 = vld [vmem:[#allocation2 + $0x40] sm:$0xf]
        %v4287 = vld [vmem:[#allocation2 + $0x48] sm:$0xf]
        %v4288 = vld [vmem:[#allocation2 + $0x50] sm:$0xf]
        %v4289 = vld [vmem:[#allocation2 + $0x58] sm:$0xf]
        %v4290 = vld [vmem:[#allocation2 + $0x60] sm:$0xf]
        %v4291 = vld [vmem:[#allocation2 + $0x68] sm:$0xf]
        %v4292 = vld [vmem:[#allocation2 + $0x70] sm:$0xf]
        %v4293 = vld [vmem:[#allocation2 + $0x78] sm:$0xf]
        %v4294 = vld [vmem:[#allocation2 + $0x80] sm:$0xf]
        %v4295 = vld [vmem:[#allocation2 + $0x88] sm:$0xf]
        %v4296 = vld [vmem:[#allocation2 + $0x90] sm:$0xf]
        %v4297 = vld [vmem:[#allocation2 + $0x98] sm:$0xf]
        %v4298 = vld [vmem:[#allocation2 + $0xa0] sm:$0xf]
        %v4299 = vld [vmem:[#allocation2 + $0xa8] sm:$0xf]
        %v4300 = vld [vmem:[#allocation2 + $0xb0] sm:$0xf]
        %v4301 = vld [vmem:[#allocation2 + $0xb8] sm:$0xf]
        %v4302 = vld [vmem:[#allocation2 + $0xc0] sm:$0xf]
        %v4303 = vld [vmem:[#allocation2 + $0xc8] sm:$0xf]
        %v4304 = vld [vmem:[#allocation2 + $0xd0] sm:$0xf]
        %v4305 = vld [vmem:[#allocation2 + $0xd8] sm:$0xf]
        %v4306 = vld [vmem:[#allocation2 + $0xe0] sm:$0xf]
        %v4307 = vld [vmem:[#allocation2 + $0xe8] sm:$0xf]
        %v4308 = vld [vmem:[#allocation2 + $0xf0] sm:$0xf]
        %v4309 = vld [vmem:[#allocation2 + $0xf8] sm:$0xf]
        %v4310 = vld [vmem:[%s1 + $0x208] sm:$0xff]
        %v4311 = vld [vmem:[%s1 + $0x210] sm:$0xff]
        %v4312 = vld [vmem:[%s1 + $0x218] sm:$0xff]
        %v4313 = vld [vmem:[%s1 + $0x220] sm:$0xff]
        %v4314 = vld [vmem:[%s1 + $0x228] sm:$0xff]
        %v4315 = vld [vmem:[%s1 + $0x230] sm:$0xff]
        %v4316 = vld [vmem:[%s1 + $0x238] sm:$0xff]
        %v4317 = vld [vmem:[%s1 + $0x240] sm:$0xff]
        %v4318 = vpack.c.bf16 %v4311, %v4310
        %v4319 = vpack.c.bf16 %v4313, %v4312
        %v4320 = vpack.c.bf16 %v4315, %v4314
        %v4321 = vpack.c.bf16 %v4317, %v4316
        %v4322 = vld [vmem:[#allocation3 + $0x7] sm:$0x1]
        %v4323 = vlaneseq
        %v4324 = vshrl.u32 %v4323, 7
        %v4325 = vsub.s32 0, %v4324
        %v4326 = vrot.slane %v4322, %v4325
        %v4359 = vunpack.c.l.b16 %v4278
        %v4360 = vunpack.c.l.b16 %v4279
        %v4361 = vunpack.c.l.b16 %v4280
        %v4362 = vunpack.c.l.b16 %v4281
        %v4363 = vunpack.c.l.b16 %v4282
        %v4364 = vunpack.c.l.b16 %v4283
        %v4365 = vunpack.c.l.b16 %v4284
        %v4366 = vunpack.c.l.b16 %v4285
        %v4367 = vunpack.c.l.b16 %v4286
        %v4368 = vunpack.c.l.b16 %v4287
        %v4369 = vunpack.c.l.b16 %v4288
        %v4370 = vunpack.c.l.b16 %v4289
        %v4371 = vunpack.c.l.b16 %v4290
        %v4372 = vunpack.c.l.b16 %v4291
        %v4373 = vunpack.c.l.b16 %v4292
        %v4374 = vunpack.c.l.b16 %v4293
        %v4375 = vunpack.c.l.b16 %v4294
        %v4376 = vunpack.c.l.b16 %v4295
        %v4377 = vunpack.c.l.b16 %v4296
        %v4378 = vunpack.c.l.b16 %v4297
        %v4379 = vunpack.c.l.b16 %v4298
        %v4380 = vunpack.c.l.b16 %v4299
        %v4381 = vunpack.c.l.b16 %v4300
        %v4382 = vunpack.c.l.b16 %v4301
        %v4383 = vunpack.c.l.b16 %v4302
        %v4384 = vunpack.c.l.b16 %v4303
        %v4385 = vunpack.c.l.b16 %v4304
        %v4386 = vunpack.c.l.b16 %v4305
        %v4387 = vunpack.c.l.b16 %v4306
        %v4388 = vunpack.c.l.b16 %v4307
        %v4389 = vunpack.c.l.b16 %v4308
        %v4390 = vunpack.c.l.b16 %v4309
        %v4391 = vpack.c.b16 %v4360, %v4359
        %v4392 = vpack.c.b16 %v4362, %v4361
        %v4393 = vpack.c.b16 %v4364, %v4363
        %v4394 = vpack.c.b16 %v4366, %v4365
        %v4395 = vpack.c.b16 %v4368, %v4367
        %v4396 = vpack.c.b16 %v4370, %v4369
        %v4397 = vpack.c.b16 %v4372, %v4371
        %v4398 = vpack.c.b16 %v4374, %v4373
        %v4399 = vpack.c.b16 %v4376, %v4375
        %v4400 = vpack.c.b16 %v4378, %v4377
        %v4401 = vpack.c.b16 %v4380, %v4379
        %v4402 = vpack.c.b16 %v4382, %v4381
        %v4403 = vpack.c.b16 %v4384, %v4383
        %v4404 = vpack.c.b16 %v4386, %v4385
        %v4405 = vpack.c.b16 %v4388, %v4387
        %v4406 = vpack.c.b16 %v4390, %v4389
        %v4408 = vsel %vm1371, %v4391, 0
        %v4411 = vsel %vm1371, %v4392, 0
        %v4414 = vsel %vm1371, %v4393, 0
        %v4417 = vsel %vm1371, %v4394, 0
        %v4420 = vsel %vm1371, %v4395, 0
        %v4423 = vsel %vm1371, %v4396, 0
        %v4426 = vsel %vm1371, %v4397, 0
        %v4429 = vsel %vm1371, %v4398, 0
        %v4432 = vsel %vm1371, %v4399, 0
        %v4435 = vsel %vm1371, %v4400, 0
        %v4438 = vsel %vm1371, %v4401, 0
        %v4441 = vsel %vm1371, %v4402, 0
        %v4444 = vsel %vm1371, %v4403, 0
        %v4447 = vsel %vm1371, %v4404, 0
        %v4450 = vsel %vm1371, %v4405, 0
        %v4453 = vsel %vm1371, %v4406, 0
        %4455 = vmatprep.subr.bf16.mxu0 0
        %4456 = vmatpush1.bf16.msra.mxu0 0
        %4457 = vmatprep.subr.bf16.mxu0 0
        %4458 = vmatpush1.bf16.msra.mxu0 0
        %4459 = vmatprep.subr.bf16.mxu0 0
        %4460 = vmatpush1.bf16.msra.mxu0 0
        %4461 = vmatprep.subr.bf16.mxu0 0
        %4462 = vmatpush1.bf16.msra.mxu0 0
        %4463 = vmatprep.subr.bf16.mxu0 0
        %4464 = vmatpush1.bf16.msra.mxu0 %v4321
        %4465 = vmatprep.subr.bf16.mxu0 0
        %4466 = vmatpush1.bf16.msra.mxu0 %v4320
        %4467 = vmatprep.subr.bf16.mxu0 0
        %4468 = vmatpush1.bf16.msra.mxu0 %v4319
        %4469 = vmatprep.subr.bf16.mxu0 0
        %4470 = vmatpush1.bf16.msra.mxu0 %v4318
        %4471 = vmatprep.subr.bf16.mxu0 0
        %4472 = vmatpush2.bf16.msra.mxu0 0
        %4473 = vmatprep.subr.bf16.mxu0 0
        %4474 = vmatpush2.bf16.msra.mxu0 0
        %4475 = vmatprep.subr.bf16.mxu0 0
        %4476 = vmatpush2.bf16.msra.mxu0 0
        %4477 = vmatprep.subr.bf16.mxu0 0
        %4478 = vmatpush2.bf16.msra.mxu0 0
        %4479 = vmatprep.subr.bf16.mxu0 0
        %4480 = vmatpush2.bf16.msra.mxu0 0
        %4481 = vmatprep.subr.bf16.mxu0 0
        %4482 = vmatpush2.bf16.msra.mxu0 0
        %4483 = vmatprep.subr.bf16.mxu0 0
        %4484 = vmatpush2.bf16.msra.mxu0 0
        %4485 = vmatprep.subr.bf16.mxu0 0
        %4486 = vmatpush2.bf16.msra.mxu0 0
        %4487 = vmatprep.mubr.bf16.mxu0 0
        %4488 = vmatmul.mubr.bf16.gmra.mxu0 %v4408
        %v4489 = vpop.f32.mrf.mxu0
        %v4490 = vadd.f32 %v4326, %v4489
        %v4491 = vpop.f32.mrf.mxu0
        %v4492 = vpop.f32.mrf.mxu0
        %v4493 = vadd.f32 %v4326, %v4492
        %v4494 = vpop.f32.mrf.mxu0
        %4495 = vmatprep.mubr.bf16.mxu0 0
        %4496 = vmatmul.mubr.bf16.gmra.mxu0 %v4411
        %v4497 = vpop.f32.mrf.mxu0
        %v4498 = vadd.f32 %v4326, %v4497
        %v4499 = vpop.f32.mrf.mxu0
        %v4500 = vpop.f32.mrf.mxu0
        %v4501 = vadd.f32 %v4326, %v4500
        %v4502 = vpop.f32.mrf.mxu0
        %4503 = vmatprep.mubr.bf16.mxu0 0
        %4504 = vmatmul.mubr.bf16.gmra.mxu0 %v4414
        %v4505 = vpop.f32.mrf.mxu0
        %v4506 = vadd.f32 %v4326, %v4505
        %v4507 = vpop.f32.mrf.mxu0
        %v4508 = vpop.f32.mrf.mxu0
        %v4509 = vadd.f32 %v4326, %v4508
        %v4510 = vpop.f32.mrf.mxu0
        %4511 = vmatprep.mubr.bf16.mxu0 0
        %4512 = vmatmul.mubr.bf16.gmra.mxu0 %v4417
        %v4513 = vpop.f32.mrf.mxu0
        %v4514 = vadd.f32 %v4326, %v4513
        %v4515 = vpop.f32.mrf.mxu0
        %v4516 = vpop.f32.mrf.mxu0
        %v4517 = vadd.f32 %v4326, %v4516
        %v4518 = vpop.f32.mrf.mxu0
        %4519 = vmatprep.mubr.bf16.mxu0 0
        %4520 = vmatmul.mubr.bf16.gmra.mxu0 %v4420
        %v4521 = vpop.f32.mrf.mxu0
        %v4522 = vadd.f32 %v4326, %v4521
        %v4523 = vpop.f32.mrf.mxu0
        %v4524 = vpop.f32.mrf.mxu0
        %v4525 = vadd.f32 %v4326, %v4524
        %v4526 = vpop.f32.mrf.mxu0
        %4527 = vmatprep.mubr.bf16.mxu0 0
        %4528 = vmatmul.mubr.bf16.gmra.mxu0 %v4423
        %v4529 = vpop.f32.mrf.mxu0
        %v4530 = vadd.f32 %v4326, %v4529
        %v4531 = vpop.f32.mrf.mxu0
        %v4532 = vpop.f32.mrf.mxu0
        %v4533 = vadd.f32 %v4326, %v4532
        %v4534 = vpop.f32.mrf.mxu0
        %4535 = vmatprep.mubr.bf16.mxu0 0
        %4536 = vmatmul.mubr.bf16.gmra.mxu0 %v4426
        %v4537 = vpop.f32.mrf.mxu0
        %v4538 = vadd.f32 %v4326, %v4537
        %v4539 = vpop.f32.mrf.mxu0
        %v4540 = vpop.f32.mrf.mxu0
        %v4541 = vadd.f32 %v4326, %v4540
        %v4542 = vpop.f32.mrf.mxu0
        %4543 = vmatprep.mubr.bf16.mxu0 0
        %4544 = vmatmul.mubr.bf16.gmra.mxu0 %v4429
        %v4545 = vpop.f32.mrf.mxu0
        %v4546 = vadd.f32 %v4326, %v4545
        %v4547 = vpop.f32.mrf.mxu0
        %v4548 = vpop.f32.mrf.mxu0
        %v4549 = vadd.f32 %v4326, %v4548
        %v4550 = vpop.f32.mrf.mxu0
        %4551 = vmatprep.mubr.bf16.mxu0 0
        %4552 = vmatmul.mubr.bf16.gmra.mxu0 %v4432
        %v4553 = vpop.f32.mrf.mxu0
        %v4554 = vadd.f32 %v4326, %v4553
        %v4555 = vpop.f32.mrf.mxu0
        %v4556 = vpop.f32.mrf.mxu0
        %v4557 = vadd.f32 %v4326, %v4556
        %v4558 = vpop.f32.mrf.mxu0
        %4559 = vmatprep.mubr.bf16.mxu0 0
        %4560 = vmatmul.mubr.bf16.gmra.mxu0 %v4435
        %v4561 = vpop.f32.mrf.mxu0
        %v4562 = vadd.f32 %v4326, %v4561
        %v4563 = vpop.f32.mrf.mxu0
        %v4564 = vpop.f32.mrf.mxu0
        %v4565 = vadd.f32 %v4326, %v4564
        %v4566 = vpop.f32.mrf.mxu0
        %4567 = vmatprep.mubr.bf16.mxu0 0
        %4568 = vmatmul.mubr.bf16.gmra.mxu0 %v4438
        %v4569 = vpop.f32.mrf.mxu0
        %v4570 = vadd.f32 %v4326, %v4569
        %v4571 = vpop.f32.mrf.mxu0
        %v4572 = vpop.f32.mrf.mxu0
        %v4573 = vadd.f32 %v4326, %v4572
        %v4574 = vpop.f32.mrf.mxu0
        %4575 = vmatprep.mubr.bf16.mxu0 0
        %4576 = vmatmul.mubr.bf16.gmra.mxu0 %v4441
        %v4577 = vpop.f32.mrf.mxu0
        %v4578 = vadd.f32 %v4326, %v4577
        %v4579 = vpop.f32.mrf.mxu0
        %v4580 = vpop.f32.mrf.mxu0
        %v4581 = vadd.f32 %v4326, %v4580
        %v4582 = vpop.f32.mrf.mxu0
        %4583 = vmatprep.mubr.bf16.mxu0 0
        %4584 = vmatmul.mubr.bf16.gmra.mxu0 %v4444
        %v4585 = vpop.f32.mrf.mxu0
        %v4586 = vadd.f32 %v4326, %v4585
        %v4587 = vpop.f32.mrf.mxu0
        %v4588 = vpop.f32.mrf.mxu0
        %v4589 = vadd.f32 %v4326, %v4588
        %v4590 = vpop.f32.mrf.mxu0
        %4591 = vmatprep.mubr.bf16.mxu0 0
        %4592 = vmatmul.mubr.bf16.gmra.mxu0 %v4447
        %v4593 = vpop.f32.mrf.mxu0
        %v4594 = vadd.f32 %v4326, %v4593
        %v4595 = vpop.f32.mrf.mxu0
        %v4596 = vpop.f32.mrf.mxu0
        %v4597 = vadd.f32 %v4326, %v4596
        %v4598 = vpop.f32.mrf.mxu0
        %4599 = vmatprep.mubr.bf16.mxu0 0
        %4600 = vmatmul.mubr.bf16.gmra.mxu0 %v4450
        %v4601 = vpop.f32.mrf.mxu0
        %v4602 = vadd.f32 %v4326, %v4601
        %v4603 = vpop.f32.mrf.mxu0
        %v4604 = vpop.f32.mrf.mxu0
        %v4605 = vadd.f32 %v4326, %v4604
        %v4606 = vpop.f32.mrf.mxu0
        %4607 = vmatprep.mubr.bf16.mxu0 0
        %4608 = vmatmul.mubr.bf16.gmra.mxu0 %v4453
        %v4609 = vpop.f32.mrf.mxu0
        %v4610 = vadd.f32 %v4326, %v4609
        %v4611 = vpop.f32.mrf.mxu0
        %v4612 = vpop.f32.mrf.mxu0
        %v4613 = vadd.f32 %v4326, %v4612
        %v4614 = vpop.f32.mrf.mxu0
        %4615 = vdwg.mxu0
        %v4616 = vmul.f32 %v4490, 0.2
        %v4617 = vmul.f32 %v4493, 0.2
        %v4618 = vmul.f32 %v4498, 0.2
        %v4619 = vmul.f32 %v4501, 0.2
        %v4620 = vmul.f32 %v4506, 0.2
        %v4621 = vmul.f32 %v4509, 0.2
        %v4622 = vmul.f32 %v4514, 0.2
        %v4623 = vmul.f32 %v4517, 0.2
        %v4624 = vmul.f32 %v4522, 0.2
        %v4625 = vmul.f32 %v4525, 0.2
        %v4626 = vmul.f32 %v4530, 0.2
        %v4627 = vmul.f32 %v4533, 0.2
        %v4628 = vmul.f32 %v4538, 0.2
        %v4629 = vmul.f32 %v4541, 0.2
        %v4630 = vmul.f32 %v4546, 0.2
        %v4631 = vmul.f32 %v4549, 0.2
        %v4632 = vmul.f32 %v4554, 0.2
        %v4633 = vmul.f32 %v4557, 0.2
        %v4634 = vmul.f32 %v4562, 0.2
        %v4635 = vmul.f32 %v4565, 0.2
        %v4636 = vmul.f32 %v4570, 0.2
        %v4637 = vmul.f32 %v4573, 0.2
        %v4638 = vmul.f32 %v4578, 0.2
        %v4639 = vmul.f32 %v4581, 0.2
        %v4640 = vmul.f32 %v4586, 0.2
        %v4641 = vmul.f32 %v4589, 0.2
        %v4642 = vmul.f32 %v4594, 0.2
        %v4643 = vmul.f32 %v4597, 0.2
        %v4644 = vmul.f32 %v4602, 0.2
        %v4645 = vmul.f32 %v4605, 0.2
        %v4646 = vmul.f32 %v4610, 0.2
        %v4647 = vmul.f32 %v4613, 0.2
        %v4648 = vmax.f32 %v4490, %v4616
        %v4649 = vmax.f32 %v4493, %v4617
        %v4650 = vmax.f32 %v4498, %v4618
        %v4651 = vmax.f32 %v4501, %v4619
        %v4652 = vmax.f32 %v4506, %v4620
        %v4653 = vmax.f32 %v4509, %v4621
        %v4654 = vmax.f32 %v4514, %v4622
        %v4655 = vmax.f32 %v4517, %v4623
        %v4656 = vmax.f32 %v4522, %v4624
        %v4657 = vmax.f32 %v4525, %v4625
        %v4658 = vmax.f32 %v4530, %v4626
        %v4659 = vmax.f32 %v4533, %v4627
        %v4660 = vmax.f32 %v4538, %v4628
        %v4661 = vmax.f32 %v4541, %v4629
        %v4662 = vmax.f32 %v4546, %v4630
        %v4663 = vmax.f32 %v4549, %v4631
        %v4664 = vmax.f32 %v4554, %v4632
        %v4665 = vmax.f32 %v4557, %v4633
        %v4666 = vmax.f32 %v4562, %v4634
        %v4667 = vmax.f32 %v4565, %v4635
        %v4668 = vmax.f32 %v4570, %v4636
        %v4669 = vmax.f32 %v4573, %v4637
        %v4670 = vmax.f32 %v4578, %v4638
        %v4671 = vmax.f32 %v4581, %v4639
        %v4672 = vmax.f32 %v4586, %v4640
        %v4673 = vmax.f32 %v4589, %v4641
        %v4674 = vmax.f32 %v4594, %v4642
        %v4675 = vmax.f32 %v4597, %v4643
        %v4676 = vmax.f32 %v4602, %v4644
        %v4677 = vmax.f32 %v4605, %v4645
        %v4678 = vmax.f32 %v4610, %v4646
        %v4679 = vmax.f32 %v4613, %v4647
        %v4680 = vpack.c.bf16 %v4649, %v4648
        %v4681 = vpack.c.bf16 %v4651, %v4650
        %v4682 = vpack.c.bf16 %v4653, %v4652
        %v4683 = vpack.c.bf16 %v4655, %v4654
        %v4684 = vpack.c.bf16 %v4657, %v4656
        %v4685 = vpack.c.bf16 %v4659, %v4658
        %v4686 = vpack.c.bf16 %v4661, %v4660
        %v4687 = vpack.c.bf16 %v4663, %v4662
        %v4688 = vpack.c.bf16 %v4665, %v4664
        %v4689 = vpack.c.bf16 %v4667, %v4666
        %v4690 = vpack.c.bf16 %v4669, %v4668
        %v4691 = vpack.c.bf16 %v4671, %v4670
        %v4692 = vpack.c.bf16 %v4673, %v4672
        %v4693 = vpack.c.bf16 %v4675, %v4674
        %v4694 = vpack.c.bf16 %v4677, %v4676
        %v4695 = vpack.c.bf16 %v4679, %v4678
        %v4712 = vunpack.c.l.b16 %v4680
        %v4713 = vunpack.c.h.b16 %v4680
        %v4714 = vunpack.c.l.b16 %v4681
        %v4715 = vunpack.c.h.b16 %v4681
        %v4716 = vunpack.c.l.b16 %v4682
        %v4717 = vunpack.c.h.b16 %v4682
        %v4718 = vunpack.c.l.b16 %v4683
        %v4719 = vunpack.c.h.b16 %v4683
        %v4720 = vunpack.c.l.b16 %v4684
        %v4721 = vunpack.c.h.b16 %v4684
        %v4722 = vunpack.c.l.b16 %v4685
        %v4723 = vunpack.c.h.b16 %v4685
        %v4724 = vunpack.c.l.b16 %v4686
        %v4725 = vunpack.c.h.b16 %v4686
        %v4726 = vunpack.c.l.b16 %v4687
        %v4727 = vunpack.c.h.b16 %v4687
        %v4728 = vunpack.c.l.b16 %v4688
        %v4729 = vunpack.c.h.b16 %v4688
        %v4730 = vunpack.c.l.b16 %v4689
        %v4731 = vunpack.c.h.b16 %v4689
        %v4732 = vunpack.c.l.b16 %v4690
        %v4733 = vunpack.c.h.b16 %v4690
        %v4734 = vunpack.c.l.b16 %v4691
        %v4735 = vunpack.c.h.b16 %v4691
        %v4736 = vunpack.c.l.b16 %v4692
        %v4737 = vunpack.c.h.b16 %v4692
        %v4738 = vunpack.c.l.b16 %v4693
        %v4739 = vunpack.c.h.b16 %v4693
        %v4740 = vunpack.c.l.b16 %v4694
        %v4741 = vunpack.c.h.b16 %v4694
        %v4742 = vunpack.c.l.b16 %v4695
        %v4743 = vunpack.c.h.b16 %v4695
        %v4744 = vpack.c.b16 %v4712, %v4712
        %v4745 = vpack.c.b16 %v4713, %v4713
        %v4746 = vpack.c.b16 %v4714, %v4714
        %v4747 = vpack.c.b16 %v4715, %v4715
        %v4748 = vpack.c.b16 %v4716, %v4716
        %v4749 = vpack.c.b16 %v4717, %v4717
        %v4750 = vpack.c.b16 %v4718, %v4718
        %v4751 = vpack.c.b16 %v4719, %v4719
        %v4752 = vpack.c.b16 %v4720, %v4720
        %v4753 = vpack.c.b16 %v4721, %v4721
        %v4754 = vpack.c.b16 %v4722, %v4722
        %v4755 = vpack.c.b16 %v4723, %v4723
        %v4756 = vpack.c.b16 %v4724, %v4724
        %v4757 = vpack.c.b16 %v4725, %v4725
        %v4758 = vpack.c.b16 %v4726, %v4726
        %v4759 = vpack.c.b16 %v4727, %v4727
        %v4760 = vpack.c.b16 %v4728, %v4728
        %v4761 = vpack.c.b16 %v4729, %v4729
        %v4762 = vpack.c.b16 %v4730, %v4730
        %v4763 = vpack.c.b16 %v4731, %v4731
        %v4764 = vpack.c.b16 %v4732, %v4732
        %v4765 = vpack.c.b16 %v4733, %v4733
        %v4766 = vpack.c.b16 %v4734, %v4734
        %v4767 = vpack.c.b16 %v4735, %v4735
        %v4768 = vpack.c.b16 %v4736, %v4736
        %v4769 = vpack.c.b16 %v4737, %v4737
        %v4770 = vpack.c.b16 %v4738, %v4738
        %v4771 = vpack.c.b16 %v4739, %v4739
        %v4772 = vpack.c.b16 %v4740, %v4740
        %v4773 = vpack.c.b16 %v4741, %v4741
        %v4774 = vpack.c.b16 %v4742, %v4742
        %v4775 = vpack.c.b16 %v4743, %v4743
        %4776 = vrot.lane.b32.xlu0 %v4744, 64
        %v4777 = vpop.permute.xlu0 %4776
        %4778 = vrot.lane.b32.xlu0 %v4745, 64
        %v4779 = vpop.permute.xlu0 %4778
        %4780 = vrot.lane.b32.xlu0 %v4746, 64
        %v4781 = vpop.permute.xlu0 %4780
        %4782 = vrot.lane.b32.xlu0 %v4747, 64
        %v4783 = vpop.permute.xlu0 %4782
        %4784 = vrot.lane.b32.xlu0 %v4748, 64
        %v4785 = vpop.permute.xlu0 %4784
        %4786 = vrot.lane.b32.xlu0 %v4749, 64
        %v4787 = vpop.permute.xlu0 %4786
        %4788 = vrot.lane.b32.xlu0 %v4750, 64
        %v4789 = vpop.permute.xlu0 %4788
        %4790 = vrot.lane.b32.xlu0 %v4751, 64
        %v4791 = vpop.permute.xlu0 %4790
        %4792 = vrot.lane.b32.xlu0 %v4752, 64
        %v4793 = vpop.permute.xlu0 %4792
        %4794 = vrot.lane.b32.xlu0 %v4753, 64
        %v4795 = vpop.permute.xlu0 %4794
        %4796 = vrot.lane.b32.xlu0 %v4754, 64
        %v4797 = vpop.permute.xlu0 %4796
        %4798 = vrot.lane.b32.xlu0 %v4755, 64
        %v4799 = vpop.permute.xlu0 %4798
        %4800 = vrot.lane.b32.xlu0 %v4756, 64
        %v4801 = vpop.permute.xlu0 %4800
        %4802 = vrot.lane.b32.xlu0 %v4757, 64
        %v4803 = vpop.permute.xlu0 %4802
        %4804 = vrot.lane.b32.xlu0 %v4758, 64
        %v4805 = vpop.permute.xlu0 %4804
        %4806 = vrot.lane.b32.xlu0 %v4759, 64
        %v4807 = vpop.permute.xlu0 %4806
        %4808 = vrot.lane.b32.xlu0 %v4760, 64
        %v4809 = vpop.permute.xlu0 %4808
        %4810 = vrot.lane.b32.xlu0 %v4761, 64
        %v4811 = vpop.permute.xlu0 %4810
        %4812 = vrot.lane.b32.xlu0 %v4762, 64
        %v4813 = vpop.permute.xlu0 %4812
        %4814 = vrot.lane.b32.xlu0 %v4763, 64
        %v4815 = vpop.permute.xlu0 %4814
        %4816 = vrot.lane.b32.xlu0 %v4764, 64
        %v4817 = vpop.permute.xlu0 %4816
        %4818 = vrot.lane.b32.xlu0 %v4765, 64
        %v4819 = vpop.permute.xlu0 %4818
        %4820 = vrot.lane.b32.xlu0 %v4766, 64
        %v4821 = vpop.permute.xlu0 %4820
        %4822 = vrot.lane.b32.xlu0 %v4767, 64
        %v4823 = vpop.permute.xlu0 %4822
        %4824 = vrot.lane.b32.xlu0 %v4768, 64
        %v4825 = vpop.permute.xlu0 %4824
        %4826 = vrot.lane.b32.xlu0 %v4769, 64
        %v4827 = vpop.permute.xlu0 %4826
        %4828 = vrot.lane.b32.xlu0 %v4770, 64
        %v4829 = vpop.permute.xlu0 %4828
        %4830 = vrot.lane.b32.xlu0 %v4771, 64
        %v4831 = vpop.permute.xlu0 %4830
        %4832 = vrot.lane.b32.xlu0 %v4772, 64
        %v4833 = vpop.permute.xlu0 %4832
        %4834 = vrot.lane.b32.xlu0 %v4773, 64
        %v4835 = vpop.permute.xlu0 %4834
        %4836 = vrot.lane.b32.xlu0 %v4774, 64
        %v4837 = vpop.permute.xlu0 %4836
        %4838 = vrot.lane.b32.xlu0 %v4775, 64
        %v4839 = vpop.permute.xlu0 %4838
        %4872 = vst.msk [vmem:[#allocation2] sm:$0xf] %vm1837, %v4777
        %4873 = vst.msk [vmem:[#allocation2 + $0x8] sm:$0xf] %vm1837, %v4779
        %4874 = vst.msk [vmem:[#allocation2 + $0x10] sm:$0xf] %vm1837, %v4781
        %4875 = vst.msk [vmem:[#allocation2 + $0x18] sm:$0xf] %vm1837, %v4783
        %4876 = vst.msk [vmem:[#allocation2 + $0x20] sm:$0xf] %vm1837, %v4785
        %4877 = vst.msk [vmem:[#allocation2 + $0x28] sm:$0xf] %vm1837, %v4787
        %4878 = vst.msk [vmem:[#allocation2 + $0x30] sm:$0xf] %vm1837, %v4789
        %4879 = vst.msk [vmem:[#allocation2 + $0x38] sm:$0xf] %vm1837, %v4791
        %4880 = vst.msk [vmem:[#allocation2 + $0x40] sm:$0xf] %vm1837, %v4793
        %4881 = vst.msk [vmem:[#allocation2 + $0x48] sm:$0xf] %vm1837, %v4795
        %4882 = vst.msk [vmem:[#allocation2 + $0x50] sm:$0xf] %vm1837, %v4797
        %4883 = vst.msk [vmem:[#allocation2 + $0x58] sm:$0xf] %vm1837, %v4799
        %4884 = vst.msk [vmem:[#allocation2 + $0x60] sm:$0xf] %vm1837, %v4801
        %4885 = vst.msk [vmem:[#allocation2 + $0x68] sm:$0xf] %vm1837, %v4803
        %4886 = vst.msk [vmem:[#allocation2 + $0x70] sm:$0xf] %vm1837, %v4805
        %4887 = vst.msk [vmem:[#allocation2 + $0x78] sm:$0xf] %vm1837, %v4807
        %4888 = vst.msk [vmem:[#allocation2 + $0x80] sm:$0xf] %vm1837, %v4809
        %4889 = vst.msk [vmem:[#allocation2 + $0x88] sm:$0xf] %vm1837, %v4811
        %4890 = vst.msk [vmem:[#allocation2 + $0x90] sm:$0xf] %vm1837, %v4813
        %4891 = vst.msk [vmem:[#allocation2 + $0x98] sm:$0xf] %vm1837, %v4815
        %4892 = vst.msk [vmem:[#allocation2 + $0xa0] sm:$0xf] %vm1837, %v4817
        %4893 = vst.msk [vmem:[#allocation2 + $0xa8] sm:$0xf] %vm1837, %v4819
        %4894 = vst.msk [vmem:[#allocation2 + $0xb0] sm:$0xf] %vm1837, %v4821
        %4895 = vst.msk [vmem:[#allocation2 + $0xb8] sm:$0xf] %vm1837, %v4823
        %4896 = vst.msk [vmem:[#allocation2 + $0xc0] sm:$0xf] %vm1837, %v4825
        %4897 = vst.msk [vmem:[#allocation2 + $0xc8] sm:$0xf] %vm1837, %v4827
        %4898 = vst.msk [vmem:[#allocation2 + $0xd0] sm:$0xf] %vm1837, %v4829
        %4899 = vst.msk [vmem:[#allocation2 + $0xd8] sm:$0xf] %vm1837, %v4831
        %4900 = vst.msk [vmem:[#allocation2 + $0xe0] sm:$0xf] %vm1837, %v4833
        %4901 = vst.msk [vmem:[#allocation2 + $0xe8] sm:$0xf] %vm1837, %v4835
        %4902 = vst.msk [vmem:[#allocation2 + $0xf0] sm:$0xf] %vm1837, %v4837
        %4903 = vst.msk [vmem:[#allocation2 + $0xf8] sm:$0xf] %vm1837, %v4839
        %v4904 = vld [vmem:[#allocation2] sm:$0xf]
        %v4905 = vld [vmem:[#allocation2 + $0x8] sm:$0xf]
        %v4906 = vld [vmem:[#allocation2 + $0x10] sm:$0xf]
        %v4907 = vld [vmem:[#allocation2 + $0x18] sm:$0xf]
        %v4908 = vld [vmem:[#allocation2 + $0x20] sm:$0xf]
        %v4909 = vld [vmem:[#allocation2 + $0x28] sm:$0xf]
        %v4910 = vld [vmem:[#allocation2 + $0x30] sm:$0xf]
        %v4911 = vld [vmem:[#allocation2 + $0x38] sm:$0xf]
        %v4912 = vld [vmem:[#allocation2 + $0x40] sm:$0xf]
        %v4913 = vld [vmem:[#allocation2 + $0x48] sm:$0xf]
        %v4914 = vld [vmem:[#allocation2 + $0x50] sm:$0xf]
        %v4915 = vld [vmem:[#allocation2 + $0x58] sm:$0xf]
        %v4916 = vld [vmem:[#allocation2 + $0x60] sm:$0xf]
        %v4917 = vld [vmem:[#allocation2 + $0x68] sm:$0xf]
        %v4918 = vld [vmem:[#allocation2 + $0x70] sm:$0xf]
        %v4919 = vld [vmem:[#allocation2 + $0x78] sm:$0xf]
        %v4920 = vld [vmem:[#allocation2 + $0x80] sm:$0xf]
        %v4921 = vld [vmem:[#allocation2 + $0x88] sm:$0xf]
        %v4922 = vld [vmem:[#allocation2 + $0x90] sm:$0xf]
        %v4923 = vld [vmem:[#allocation2 + $0x98] sm:$0xf]
        %v4924 = vld [vmem:[#allocation2 + $0xa0] sm:$0xf]
        %v4925 = vld [vmem:[#allocation2 + $0xa8] sm:$0xf]
        %v4926 = vld [vmem:[#allocation2 + $0xb0] sm:$0xf]
        %v4927 = vld [vmem:[#allocation2 + $0xb8] sm:$0xf]
        %v4928 = vld [vmem:[#allocation2 + $0xc0] sm:$0xf]
        %v4929 = vld [vmem:[#allocation2 + $0xc8] sm:$0xf]
        %v4930 = vld [vmem:[#allocation2 + $0xd0] sm:$0xf]
        %v4931 = vld [vmem:[#allocation2 + $0xd8] sm:$0xf]
        %v4932 = vld [vmem:[#allocation2 + $0xe0] sm:$0xf]
        %v4933 = vld [vmem:[#allocation2 + $0xe8] sm:$0xf]
        %v4934 = vld [vmem:[#allocation2 + $0xf0] sm:$0xf]
        %v4935 = vld [vmem:[#allocation2 + $0xf8] sm:$0xf]
        %v4936 = vld [vmem:[%s1 + $0x248] sm:$0xff]
        %v4937 = vld [vmem:[%s1 + $0x250] sm:$0xff]
        %v4938 = vld [vmem:[%s1 + $0x258] sm:$0xff]
        %v4939 = vld [vmem:[%s1 + $0x260] sm:$0xff]
        %v4940 = vld [vmem:[%s1 + $0x268] sm:$0xff]
        %v4941 = vld [vmem:[%s1 + $0x270] sm:$0xff]
        %v4942 = vld [vmem:[%s1 + $0x278] sm:$0xff]
        %v4943 = vld [vmem:[%s1 + $0x280] sm:$0xff]
        %v4944 = vld [vmem:[%s1 + $0x288] sm:$0xff]
        %v4945 = vld [vmem:[%s1 + $0x290] sm:$0xff]
        %v4946 = vld [vmem:[%s1 + $0x298] sm:$0xff]
        %v4947 = vld [vmem:[%s1 + $0x2a0] sm:$0xff]
        %v4948 = vpack.c.bf16 %v4937, %v4936
        %v4949 = vpack.c.bf16 %v4939, %v4938
        %v4950 = vpack.c.bf16 %v4941, %v4940
        %v4951 = vpack.c.bf16 %v4943, %v4942
        %v4952 = vpack.c.bf16 %v4945, %v4944
        %v4953 = vpack.c.bf16 %v4947, %v4946
        %v4954 = vld [vmem:[#allocation3 + $0x8] sm:$0x1]
        %v4955 = vlaneseq
        %v4956 = vshrl.u32 %v4955, 7
        %v4957 = vsub.s32 0, %v4956
        %v4958 = vrot.slane %v4954, %v4957
        %v4991 = vunpack.c.l.b16 %v4904
        %v4992 = vunpack.c.l.b16 %v4905
        %v4993 = vunpack.c.l.b16 %v4906
        %v4994 = vunpack.c.l.b16 %v4907
        %v4995 = vunpack.c.l.b16 %v4908
        %v4996 = vunpack.c.l.b16 %v4909
        %v4997 = vunpack.c.l.b16 %v4910
        %v4998 = vunpack.c.l.b16 %v4911
        %v4999 = vunpack.c.l.b16 %v4912
        %v5000 = vunpack.c.l.b16 %v4913
        %v5001 = vunpack.c.l.b16 %v4914
        %v5002 = vunpack.c.l.b16 %v4915
        %v5003 = vunpack.c.l.b16 %v4916
        %v5004 = vunpack.c.l.b16 %v4917
        %v5005 = vunpack.c.l.b16 %v4918
        %v5006 = vunpack.c.l.b16 %v4919
        %v5007 = vunpack.c.l.b16 %v4920
        %v5008 = vunpack.c.l.b16 %v4921
        %v5009 = vunpack.c.l.b16 %v4922
        %v5010 = vunpack.c.l.b16 %v4923
        %v5011 = vunpack.c.l.b16 %v4924
        %v5012 = vunpack.c.l.b16 %v4925
        %v5013 = vunpack.c.l.b16 %v4926
        %v5014 = vunpack.c.l.b16 %v4927
        %v5015 = vunpack.c.l.b16 %v4928
        %v5016 = vunpack.c.l.b16 %v4929
        %v5017 = vunpack.c.l.b16 %v4930
        %v5018 = vunpack.c.l.b16 %v4931
        %v5019 = vunpack.c.l.b16 %v4932
        %v5020 = vunpack.c.l.b16 %v4933
        %v5021 = vunpack.c.l.b16 %v4934
        %v5022 = vunpack.c.l.b16 %v4935
        %v5023 = vpack.c.b16 %v4992, %v4991
        %v5024 = vpack.c.b16 %v4994, %v4993
        %v5025 = vpack.c.b16 %v4996, %v4995
        %v5026 = vpack.c.b16 %v4998, %v4997
        %v5027 = vpack.c.b16 %v5000, %v4999
        %v5028 = vpack.c.b16 %v5002, %v5001
        %v5029 = vpack.c.b16 %v5004, %v5003
        %v5030 = vpack.c.b16 %v5006, %v5005
        %v5031 = vpack.c.b16 %v5008, %v5007
        %v5032 = vpack.c.b16 %v5010, %v5009
        %v5033 = vpack.c.b16 %v5012, %v5011
        %v5034 = vpack.c.b16 %v5014, %v5013
        %v5035 = vpack.c.b16 %v5016, %v5015
        %v5036 = vpack.c.b16 %v5018, %v5017
        %v5037 = vpack.c.b16 %v5020, %v5019
        %v5038 = vpack.c.b16 %v5022, %v5021
        %v5040 = vsel %vm2005, %v5023, 0
        %v5043 = vsel %vm2005, %v5024, 0
        %v5046 = vsel %vm2005, %v5025, 0
        %v5049 = vsel %vm2005, %v5026, 0
        %v5052 = vsel %vm2005, %v5027, 0
        %v5055 = vsel %vm2005, %v5028, 0
        %v5058 = vsel %vm2005, %v5029, 0
        %v5061 = vsel %vm2005, %v5030, 0
        %v5064 = vsel %vm2005, %v5031, 0
        %v5067 = vsel %vm2005, %v5032, 0
        %v5070 = vsel %vm2005, %v5033, 0
        %v5073 = vsel %vm2005, %v5034, 0
        %v5076 = vsel %vm2005, %v5035, 0
        %v5079 = vsel %vm2005, %v5036, 0
        %v5082 = vsel %vm2005, %v5037, 0
        %v5085 = vsel %vm2005, %v5038, 0
        %5087 = vmatprep.subr.bf16.mxu0 0
        %5088 = vmatpush1.bf16.msra.mxu0 0
        %5089 = vmatprep.subr.bf16.mxu0 0
        %5090 = vmatpush1.bf16.msra.mxu0 0
        %5091 = vmatprep.subr.bf16.mxu0 0
        %5092 = vmatpush1.bf16.msra.mxu0 %v4953
        %5093 = vmatprep.subr.bf16.mxu0 0
        %5094 = vmatpush1.bf16.msra.mxu0 %v4952
        %5095 = vmatprep.subr.bf16.mxu0 0
        %5096 = vmatpush1.bf16.msra.mxu0 %v4951
        %5097 = vmatprep.subr.bf16.mxu0 0
        %5098 = vmatpush1.bf16.msra.mxu0 %v4950
        %5099 = vmatprep.subr.bf16.mxu0 0
        %5100 = vmatpush1.bf16.msra.mxu0 %v4949
        %5101 = vmatprep.subr.bf16.mxu0 0
        %5102 = vmatpush1.bf16.msra.mxu0 %v4948
        %5103 = vmatprep.subr.bf16.mxu0 0
        %5104 = vmatpush2.bf16.msra.mxu0 0
        %5105 = vmatprep.subr.bf16.mxu0 0
        %5106 = vmatpush2.bf16.msra.mxu0 0
        %5107 = vmatprep.subr.bf16.mxu0 0
        %5108 = vmatpush2.bf16.msra.mxu0 0
        %5109 = vmatprep.subr.bf16.mxu0 0
        %5110 = vmatpush2.bf16.msra.mxu0 0
        %5111 = vmatprep.subr.bf16.mxu0 0
        %5112 = vmatpush2.bf16.msra.mxu0 0
        %5113 = vmatprep.subr.bf16.mxu0 0
        %5114 = vmatpush2.bf16.msra.mxu0 0
        %5115 = vmatprep.subr.bf16.mxu0 0
        %5116 = vmatpush2.bf16.msra.mxu0 0
        %5117 = vmatprep.subr.bf16.mxu0 0
        %5118 = vmatpush2.bf16.msra.mxu0 0
        %5119 = vmatprep.mubr.bf16.mxu0 0
        %5120 = vmatmul.mubr.bf16.gmra.mxu0 %v5040
        %v5121 = vpop.f32.mrf.mxu0
        %v5122 = vadd.f32 %v4958, %v5121
        %v5123 = vpop.f32.mrf.mxu0
        %v5124 = vpop.f32.mrf.mxu0
        %v5125 = vadd.f32 %v4958, %v5124
        %v5126 = vpop.f32.mrf.mxu0
        %5127 = vmatprep.mubr.bf16.mxu0 0
        %5128 = vmatmul.mubr.bf16.gmra.mxu0 %v5043
        %v5129 = vpop.f32.mrf.mxu0
        %v5130 = vadd.f32 %v4958, %v5129
        %v5131 = vpop.f32.mrf.mxu0
        %v5132 = vpop.f32.mrf.mxu0
        %v5133 = vadd.f32 %v4958, %v5132
        %v5134 = vpop.f32.mrf.mxu0
        %5135 = vmatprep.mubr.bf16.mxu0 0
        %5136 = vmatmul.mubr.bf16.gmra.mxu0 %v5046
        %v5137 = vpop.f32.mrf.mxu0
        %v5138 = vadd.f32 %v4958, %v5137
        %v5139 = vpop.f32.mrf.mxu0
        %v5140 = vpop.f32.mrf.mxu0
        %v5141 = vadd.f32 %v4958, %v5140
        %v5142 = vpop.f32.mrf.mxu0
        %5143 = vmatprep.mubr.bf16.mxu0 0
        %5144 = vmatmul.mubr.bf16.gmra.mxu0 %v5049
        %v5145 = vpop.f32.mrf.mxu0
        %v5146 = vadd.f32 %v4958, %v5145
        %v5147 = vpop.f32.mrf.mxu0
        %v5148 = vpop.f32.mrf.mxu0
        %v5149 = vadd.f32 %v4958, %v5148
        %v5150 = vpop.f32.mrf.mxu0
        %5151 = vmatprep.mubr.bf16.mxu0 0
        %5152 = vmatmul.mubr.bf16.gmra.mxu0 %v5052
        %v5153 = vpop.f32.mrf.mxu0
        %v5154 = vadd.f32 %v4958, %v5153
        %v5155 = vpop.f32.mrf.mxu0
        %v5156 = vpop.f32.mrf.mxu0
        %v5157 = vadd.f32 %v4958, %v5156
        %v5158 = vpop.f32.mrf.mxu0
        %5159 = vmatprep.mubr.bf16.mxu0 0
        %5160 = vmatmul.mubr.bf16.gmra.mxu0 %v5055
        %v5161 = vpop.f32.mrf.mxu0
        %v5162 = vadd.f32 %v4958, %v5161
        %v5163 = vpop.f32.mrf.mxu0
        %v5164 = vpop.f32.mrf.mxu0
        %v5165 = vadd.f32 %v4958, %v5164
        %v5166 = vpop.f32.mrf.mxu0
        %5167 = vmatprep.mubr.bf16.mxu0 0
        %5168 = vmatmul.mubr.bf16.gmra.mxu0 %v5058
        %v5169 = vpop.f32.mrf.mxu0
        %v5170 = vadd.f32 %v4958, %v5169
        %v5171 = vpop.f32.mrf.mxu0
        %v5172 = vpop.f32.mrf.mxu0
        %v5173 = vadd.f32 %v4958, %v5172
        %v5174 = vpop.f32.mrf.mxu0
        %5175 = vmatprep.mubr.bf16.mxu0 0
        %5176 = vmatmul.mubr.bf16.gmra.mxu0 %v5061
        %v5177 = vpop.f32.mrf.mxu0
        %v5178 = vadd.f32 %v4958, %v5177
        %v5179 = vpop.f32.mrf.mxu0
        %v5180 = vpop.f32.mrf.mxu0
        %v5181 = vadd.f32 %v4958, %v5180
        %v5182 = vpop.f32.mrf.mxu0
        %5183 = vmatprep.mubr.bf16.mxu0 0
        %5184 = vmatmul.mubr.bf16.gmra.mxu0 %v5064
        %v5185 = vpop.f32.mrf.mxu0
        %v5186 = vadd.f32 %v4958, %v5185
        %v5187 = vpop.f32.mrf.mxu0
        %v5188 = vpop.f32.mrf.mxu0
        %v5189 = vadd.f32 %v4958, %v5188
        %v5190 = vpop.f32.mrf.mxu0
        %5191 = vmatprep.mubr.bf16.mxu0 0
        %5192 = vmatmul.mubr.bf16.gmra.mxu0 %v5067
        %v5193 = vpop.f32.mrf.mxu0
        %v5194 = vadd.f32 %v4958, %v5193
        %v5195 = vpop.f32.mrf.mxu0
        %v5196 = vpop.f32.mrf.mxu0
        %v5197 = vadd.f32 %v4958, %v5196
        %v5198 = vpop.f32.mrf.mxu0
        %5199 = vmatprep.mubr.bf16.mxu0 0
        %5200 = vmatmul.mubr.bf16.gmra.mxu0 %v5070
        %v5201 = vpop.f32.mrf.mxu0
        %v5202 = vadd.f32 %v4958, %v5201
        %v5203 = vpop.f32.mrf.mxu0
        %v5204 = vpop.f32.mrf.mxu0
        %v5205 = vadd.f32 %v4958, %v5204
        %v5206 = vpop.f32.mrf.mxu0
        %5207 = vmatprep.mubr.bf16.mxu0 0
        %5208 = vmatmul.mubr.bf16.gmra.mxu0 %v5073
        %v5209 = vpop.f32.mrf.mxu0
        %v5210 = vadd.f32 %v4958, %v5209
        %v5211 = vpop.f32.mrf.mxu0
        %v5212 = vpop.f32.mrf.mxu0
        %v5213 = vadd.f32 %v4958, %v5212
        %v5214 = vpop.f32.mrf.mxu0
        %5215 = vmatprep.mubr.bf16.mxu0 0
        %5216 = vmatmul.mubr.bf16.gmra.mxu0 %v5076
        %v5217 = vpop.f32.mrf.mxu0
        %v5218 = vadd.f32 %v4958, %v5217
        %v5219 = vpop.f32.mrf.mxu0
        %v5220 = vpop.f32.mrf.mxu0
        %v5221 = vadd.f32 %v4958, %v5220
        %v5222 = vpop.f32.mrf.mxu0
        %5223 = vmatprep.mubr.bf16.mxu0 0
        %5224 = vmatmul.mubr.bf16.gmra.mxu0 %v5079
        %v5225 = vpop.f32.mrf.mxu0
        %v5226 = vadd.f32 %v4958, %v5225
        %v5227 = vpop.f32.mrf.mxu0
        %v5228 = vpop.f32.mrf.mxu0
        %v5229 = vadd.f32 %v4958, %v5228
        %v5230 = vpop.f32.mrf.mxu0
        %5231 = vmatprep.mubr.bf16.mxu0 0
        %5232 = vmatmul.mubr.bf16.gmra.mxu0 %v5082
        %v5233 = vpop.f32.mrf.mxu0
        %v5234 = vadd.f32 %v4958, %v5233
        %v5235 = vpop.f32.mrf.mxu0
        %v5236 = vpop.f32.mrf.mxu0
        %v5237 = vadd.f32 %v4958, %v5236
        %v5238 = vpop.f32.mrf.mxu0
        %5239 = vmatprep.mubr.bf16.mxu0 0
        %5240 = vmatmul.mubr.bf16.gmra.mxu0 %v5085
        %v5241 = vpop.f32.mrf.mxu0
        %v5242 = vadd.f32 %v4958, %v5241
        %v5243 = vpop.f32.mrf.mxu0
        %v5244 = vpop.f32.mrf.mxu0
        %v5245 = vadd.f32 %v4958, %v5244
        %v5246 = vpop.f32.mrf.mxu0
        %5247 = vdwg.mxu0
        %v5248 = vmul.f32 %v5122, 0.2
        %v5249 = vmul.f32 %v5125, 0.2
        %v5250 = vmul.f32 %v5130, 0.2
        %v5251 = vmul.f32 %v5133, 0.2
        %v5252 = vmul.f32 %v5138, 0.2
        %v5253 = vmul.f32 %v5141, 0.2
        %v5254 = vmul.f32 %v5146, 0.2
        %v5255 = vmul.f32 %v5149, 0.2
        %v5256 = vmul.f32 %v5154, 0.2
        %v5257 = vmul.f32 %v5157, 0.2
        %v5258 = vmul.f32 %v5162, 0.2
        %v5259 = vmul.f32 %v5165, 0.2
        %v5260 = vmul.f32 %v5170, 0.2
        %v5261 = vmul.f32 %v5173, 0.2
        %v5262 = vmul.f32 %v5178, 0.2
        %v5263 = vmul.f32 %v5181, 0.2
        %v5264 = vmul.f32 %v5186, 0.2
        %v5265 = vmul.f32 %v5189, 0.2
        %v5266 = vmul.f32 %v5194, 0.2
        %v5267 = vmul.f32 %v5197, 0.2
        %v5268 = vmul.f32 %v5202, 0.2
        %v5269 = vmul.f32 %v5205, 0.2
        %v5270 = vmul.f32 %v5210, 0.2
        %v5271 = vmul.f32 %v5213, 0.2
        %v5272 = vmul.f32 %v5218, 0.2
        %v5273 = vmul.f32 %v5221, 0.2
        %v5274 = vmul.f32 %v5226, 0.2
        %v5275 = vmul.f32 %v5229, 0.2
        %v5276 = vmul.f32 %v5234, 0.2
        %v5277 = vmul.f32 %v5237, 0.2
        %v5278 = vmul.f32 %v5242, 0.2
        %v5279 = vmul.f32 %v5245, 0.2
        %v5280 = vmax.f32 %v5122, %v5248
        %v5281 = vmax.f32 %v5125, %v5249
        %v5282 = vmax.f32 %v5130, %v5250
        %v5283 = vmax.f32 %v5133, %v5251
        %v5284 = vmax.f32 %v5138, %v5252
        %v5285 = vmax.f32 %v5141, %v5253
        %v5286 = vmax.f32 %v5146, %v5254
        %v5287 = vmax.f32 %v5149, %v5255
        %v5288 = vmax.f32 %v5154, %v5256
        %v5289 = vmax.f32 %v5157, %v5257
        %v5290 = vmax.f32 %v5162, %v5258
        %v5291 = vmax.f32 %v5165, %v5259
        %v5292 = vmax.f32 %v5170, %v5260
        %v5293 = vmax.f32 %v5173, %v5261
        %v5294 = vmax.f32 %v5178, %v5262
        %v5295 = vmax.f32 %v5181, %v5263
        %v5296 = vmax.f32 %v5186, %v5264
        %v5297 = vmax.f32 %v5189, %v5265
        %v5298 = vmax.f32 %v5194, %v5266
        %v5299 = vmax.f32 %v5197, %v5267
        %v5300 = vmax.f32 %v5202, %v5268
        %v5301 = vmax.f32 %v5205, %v5269
        %v5302 = vmax.f32 %v5210, %v5270
        %v5303 = vmax.f32 %v5213, %v5271
        %v5304 = vmax.f32 %v5218, %v5272
        %v5305 = vmax.f32 %v5221, %v5273
        %v5306 = vmax.f32 %v5226, %v5274
        %v5307 = vmax.f32 %v5229, %v5275
        %v5308 = vmax.f32 %v5234, %v5276
        %v5309 = vmax.f32 %v5237, %v5277
        %v5310 = vmax.f32 %v5242, %v5278
        %v5311 = vmax.f32 %v5245, %v5279
        %v5312 = vpack.c.bf16 %v5281, %v5280
        %v5313 = vpack.c.bf16 %v5283, %v5282
        %v5314 = vpack.c.bf16 %v5285, %v5284
        %v5315 = vpack.c.bf16 %v5287, %v5286
        %v5316 = vpack.c.bf16 %v5289, %v5288
        %v5317 = vpack.c.bf16 %v5291, %v5290
        %v5318 = vpack.c.bf16 %v5293, %v5292
        %v5319 = vpack.c.bf16 %v5295, %v5294
        %v5320 = vpack.c.bf16 %v5297, %v5296
        %v5321 = vpack.c.bf16 %v5299, %v5298
        %v5322 = vpack.c.bf16 %v5301, %v5300
        %v5323 = vpack.c.bf16 %v5303, %v5302
        %v5324 = vpack.c.bf16 %v5305, %v5304
        %v5325 = vpack.c.bf16 %v5307, %v5306
        %v5326 = vpack.c.bf16 %v5309, %v5308
        %v5327 = vpack.c.bf16 %v5311, %v5310
        %v5344 = vunpack.c.l.b16 %v5312
        %v5345 = vunpack.c.h.b16 %v5312
        %v5346 = vunpack.c.l.b16 %v5313
        %v5347 = vunpack.c.h.b16 %v5313
        %v5348 = vunpack.c.l.b16 %v5314
        %v5349 = vunpack.c.h.b16 %v5314
        %v5350 = vunpack.c.l.b16 %v5315
        %v5351 = vunpack.c.h.b16 %v5315
        %v5352 = vunpack.c.l.b16 %v5316
        %v5353 = vunpack.c.h.b16 %v5316
        %v5354 = vunpack.c.l.b16 %v5317
        %v5355 = vunpack.c.h.b16 %v5317
        %v5356 = vunpack.c.l.b16 %v5318
        %v5357 = vunpack.c.h.b16 %v5318
        %v5358 = vunpack.c.l.b16 %v5319
        %v5359 = vunpack.c.h.b16 %v5319
        %v5360 = vunpack.c.l.b16 %v5320
        %v5361 = vunpack.c.h.b16 %v5320
        %v5362 = vunpack.c.l.b16 %v5321
        %v5363 = vunpack.c.h.b16 %v5321
        %v5364 = vunpack.c.l.b16 %v5322
        %v5365 = vunpack.c.h.b16 %v5322
        %v5366 = vunpack.c.l.b16 %v5323
        %v5367 = vunpack.c.h.b16 %v5323
        %v5368 = vunpack.c.l.b16 %v5324
        %v5369 = vunpack.c.h.b16 %v5324
        %v5370 = vunpack.c.l.b16 %v5325
        %v5371 = vunpack.c.h.b16 %v5325
        %v5372 = vunpack.c.l.b16 %v5326
        %v5373 = vunpack.c.h.b16 %v5326
        %v5374 = vunpack.c.l.b16 %v5327
        %v5375 = vunpack.c.h.b16 %v5327
        %v5376 = vpack.c.b16 %v5344, %v5344
        %v5377 = vpack.c.b16 %v5345, %v5345
        %v5378 = vpack.c.b16 %v5346, %v5346
        %v5379 = vpack.c.b16 %v5347, %v5347
        %v5380 = vpack.c.b16 %v5348, %v5348
        %v5381 = vpack.c.b16 %v5349, %v5349
        %v5382 = vpack.c.b16 %v5350, %v5350
        %v5383 = vpack.c.b16 %v5351, %v5351
        %v5384 = vpack.c.b16 %v5352, %v5352
        %v5385 = vpack.c.b16 %v5353, %v5353
        %v5386 = vpack.c.b16 %v5354, %v5354
        %v5387 = vpack.c.b16 %v5355, %v5355
        %v5388 = vpack.c.b16 %v5356, %v5356
        %v5389 = vpack.c.b16 %v5357, %v5357
        %v5390 = vpack.c.b16 %v5358, %v5358
        %v5391 = vpack.c.b16 %v5359, %v5359
        %v5392 = vpack.c.b16 %v5360, %v5360
        %v5393 = vpack.c.b16 %v5361, %v5361
        %v5394 = vpack.c.b16 %v5362, %v5362
        %v5395 = vpack.c.b16 %v5363, %v5363
        %v5396 = vpack.c.b16 %v5364, %v5364
        %v5397 = vpack.c.b16 %v5365, %v5365
        %v5398 = vpack.c.b16 %v5366, %v5366
        %v5399 = vpack.c.b16 %v5367, %v5367
        %v5400 = vpack.c.b16 %v5368, %v5368
        %v5401 = vpack.c.b16 %v5369, %v5369
        %v5402 = vpack.c.b16 %v5370, %v5370
        %v5403 = vpack.c.b16 %v5371, %v5371
        %v5404 = vpack.c.b16 %v5372, %v5372
        %v5405 = vpack.c.b16 %v5373, %v5373
        %v5406 = vpack.c.b16 %v5374, %v5374
        %v5407 = vpack.c.b16 %v5375, %v5375
        %5408 = vrot.lane.b32.xlu0 %v5376, 96
        %v5409 = vpop.permute.xlu0 %5408
        %5410 = vrot.lane.b32.xlu0 %v5377, 96
        %v5411 = vpop.permute.xlu0 %5410
        %5412 = vrot.lane.b32.xlu0 %v5378, 96
        %v5413 = vpop.permute.xlu0 %5412
        %5414 = vrot.lane.b32.xlu0 %v5379, 96
        %v5415 = vpop.permute.xlu0 %5414
        %5416 = vrot.lane.b32.xlu0 %v5380, 96
        %v5417 = vpop.permute.xlu0 %5416
        %5418 = vrot.lane.b32.xlu0 %v5381, 96
        %v5419 = vpop.permute.xlu0 %5418
        %5420 = vrot.lane.b32.xlu0 %v5382, 96
        %v5421 = vpop.permute.xlu0 %5420
        %5422 = vrot.lane.b32.xlu0 %v5383, 96
        %v5423 = vpop.permute.xlu0 %5422
        %5424 = vrot.lane.b32.xlu0 %v5384, 96
        %v5425 = vpop.permute.xlu0 %5424
        %5426 = vrot.lane.b32.xlu0 %v5385, 96
        %v5427 = vpop.permute.xlu0 %5426
        %5428 = vrot.lane.b32.xlu0 %v5386, 96
        %v5429 = vpop.permute.xlu0 %5428
        %5430 = vrot.lane.b32.xlu0 %v5387, 96
        %v5431 = vpop.permute.xlu0 %5430
        %5432 = vrot.lane.b32.xlu0 %v5388, 96
        %v5433 = vpop.permute.xlu0 %5432
        %5434 = vrot.lane.b32.xlu0 %v5389, 96
        %v5435 = vpop.permute.xlu0 %5434
        %5436 = vrot.lane.b32.xlu0 %v5390, 96
        %v5437 = vpop.permute.xlu0 %5436
        %5438 = vrot.lane.b32.xlu0 %v5391, 96
        %v5439 = vpop.permute.xlu0 %5438
        %5440 = vrot.lane.b32.xlu0 %v5392, 96
        %v5441 = vpop.permute.xlu0 %5440
        %5442 = vrot.lane.b32.xlu0 %v5393, 96
        %v5443 = vpop.permute.xlu0 %5442
        %5444 = vrot.lane.b32.xlu0 %v5394, 96
        %v5445 = vpop.permute.xlu0 %5444
        %5446 = vrot.lane.b32.xlu0 %v5395, 96
        %v5447 = vpop.permute.xlu0 %5446
        %5448 = vrot.lane.b32.xlu0 %v5396, 96
        %v5449 = vpop.permute.xlu0 %5448
        %5450 = vrot.lane.b32.xlu0 %v5397, 96
        %v5451 = vpop.permute.xlu0 %5450
        %5452 = vrot.lane.b32.xlu0 %v5398, 96
        %v5453 = vpop.permute.xlu0 %5452
        %5454 = vrot.lane.b32.xlu0 %v5399, 96
        %v5455 = vpop.permute.xlu0 %5454
        %5456 = vrot.lane.b32.xlu0 %v5400, 96
        %v5457 = vpop.permute.xlu0 %5456
        %5458 = vrot.lane.b32.xlu0 %v5401, 96
        %v5459 = vpop.permute.xlu0 %5458
        %5460 = vrot.lane.b32.xlu0 %v5402, 96
        %v5461 = vpop.permute.xlu0 %5460
        %5462 = vrot.lane.b32.xlu0 %v5403, 96
        %v5463 = vpop.permute.xlu0 %5462
        %5464 = vrot.lane.b32.xlu0 %v5404, 96
        %v5465 = vpop.permute.xlu0 %5464
        %5466 = vrot.lane.b32.xlu0 %v5405, 96
        %v5467 = vpop.permute.xlu0 %5466
        %5468 = vrot.lane.b32.xlu0 %v5406, 96
        %v5469 = vpop.permute.xlu0 %5468
        %5470 = vrot.lane.b32.xlu0 %v5407, 96
        %v5471 = vpop.permute.xlu0 %5470
        %5504 = vst.msk [vmem:[#allocation2] sm:$0xf] %vm2471, %v5409
        %5505 = vst.msk [vmem:[#allocation2 + $0x8] sm:$0xf] %vm2471, %v5411
        %5506 = vst.msk [vmem:[#allocation2 + $0x10] sm:$0xf] %vm2471, %v5413
        %5507 = vst.msk [vmem:[#allocation2 + $0x18] sm:$0xf] %vm2471, %v5415
        %5508 = vst.msk [vmem:[#allocation2 + $0x20] sm:$0xf] %vm2471, %v5417
        %5509 = vst.msk [vmem:[#allocation2 + $0x28] sm:$0xf] %vm2471, %v5419
        %5510 = vst.msk [vmem:[#allocation2 + $0x30] sm:$0xf] %vm2471, %v5421
        %5511 = vst.msk [vmem:[#allocation2 + $0x38] sm:$0xf] %vm2471, %v5423
        %5512 = vst.msk [vmem:[#allocation2 + $0x40] sm:$0xf] %vm2471, %v5425
        %5513 = vst.msk [vmem:[#allocation2 + $0x48] sm:$0xf] %vm2471, %v5427
        %5514 = vst.msk [vmem:[#allocation2 + $0x50] sm:$0xf] %vm2471, %v5429
        %5515 = vst.msk [vmem:[#allocation2 + $0x58] sm:$0xf] %vm2471, %v5431
        %5516 = vst.msk [vmem:[#allocation2 + $0x60] sm:$0xf] %vm2471, %v5433
        %5517 = vst.msk [vmem:[#allocation2 + $0x68] sm:$0xf] %vm2471, %v5435
        %5518 = vst.msk [vmem:[#allocation2 + $0x70] sm:$0xf] %vm2471, %v5437
        %5519 = vst.msk [vmem:[#allocation2 + $0x78] sm:$0xf] %vm2471, %v5439
        %5520 = vst.msk [vmem:[#allocation2 + $0x80] sm:$0xf] %vm2471, %v5441
        %5521 = vst.msk [vmem:[#allocation2 + $0x88] sm:$0xf] %vm2471, %v5443
        %5522 = vst.msk [vmem:[#allocation2 + $0x90] sm:$0xf] %vm2471, %v5445
        %5523 = vst.msk [vmem:[#allocation2 + $0x98] sm:$0xf] %vm2471, %v5447
        %5524 = vst.msk [vmem:[#allocation2 + $0xa0] sm:$0xf] %vm2471, %v5449
        %5525 = vst.msk [vmem:[#allocation2 + $0xa8] sm:$0xf] %vm2471, %v5451
        %5526 = vst.msk [vmem:[#allocation2 + $0xb0] sm:$0xf] %vm2471, %v5453
        %5527 = vst.msk [vmem:[#allocation2 + $0xb8] sm:$0xf] %vm2471, %v5455
        %5528 = vst.msk [vmem:[#allocation2 + $0xc0] sm:$0xf] %vm2471, %v5457
        %5529 = vst.msk [vmem:[#allocation2 + $0xc8] sm:$0xf] %vm2471, %v5459
        %5530 = vst.msk [vmem:[#allocation2 + $0xd0] sm:$0xf] %vm2471, %v5461
        %5531 = vst.msk [vmem:[#allocation2 + $0xd8] sm:$0xf] %vm2471, %v5463
        %5532 = vst.msk [vmem:[#allocation2 + $0xe0] sm:$0xf] %vm2471, %v5465
        %5533 = vst.msk [vmem:[#allocation2 + $0xe8] sm:$0xf] %vm2471, %v5467
        %5534 = vst.msk [vmem:[#allocation2 + $0xf0] sm:$0xf] %vm2471, %v5469
        %5535 = vst.msk [vmem:[#allocation2 + $0xf8] sm:$0xf] %vm2471, %v5471
        %v5536 = vld [vmem:[#allocation2] sm:$0xf]
        %v5537 = vld [vmem:[#allocation2 + $0x8] sm:$0xf]
        %v5538 = vld [vmem:[#allocation2 + $0x10] sm:$0xf]
        %v5539 = vld [vmem:[#allocation2 + $0x18] sm:$0xf]
        %v5540 = vld [vmem:[#allocation2 + $0x20] sm:$0xf]
        %v5541 = vld [vmem:[#allocation2 + $0x28] sm:$0xf]
        %v5542 = vld [vmem:[#allocation2 + $0x30] sm:$0xf]
        %v5543 = vld [vmem:[#allocation2 + $0x38] sm:$0xf]
        %v5544 = vld [vmem:[#allocation2 + $0x40] sm:$0xf]
        %v5545 = vld [vmem:[#allocation2 + $0x48] sm:$0xf]
        %v5546 = vld [vmem:[#allocation2 + $0x50] sm:$0xf]
        %v5547 = vld [vmem:[#allocation2 + $0x58] sm:$0xf]
        %v5548 = vld [vmem:[#allocation2 + $0x60] sm:$0xf]
        %v5549 = vld [vmem:[#allocation2 + $0x68] sm:$0xf]
        %v5550 = vld [vmem:[#allocation2 + $0x70] sm:$0xf]
        %v5551 = vld [vmem:[#allocation2 + $0x78] sm:$0xf]
        %v5552 = vld [vmem:[#allocation2 + $0x80] sm:$0xf]
        %v5553 = vld [vmem:[#allocation2 + $0x88] sm:$0xf]
        %v5554 = vld [vmem:[#allocation2 + $0x90] sm:$0xf]
        %v5555 = vld [vmem:[#allocation2 + $0x98] sm:$0xf]
        %v5556 = vld [vmem:[#allocation2 + $0xa0] sm:$0xf]
        %v5557 = vld [vmem:[#allocation2 + $0xa8] sm:$0xf]
        %v5558 = vld [vmem:[#allocation2 + $0xb0] sm:$0xf]
        %v5559 = vld [vmem:[#allocation2 + $0xb8] sm:$0xf]
        %v5560 = vld [vmem:[#allocation2 + $0xc0] sm:$0xf]
        %v5561 = vld [vmem:[#allocation2 + $0xc8] sm:$0xf]
        %v5562 = vld [vmem:[#allocation2 + $0xd0] sm:$0xf]
        %v5563 = vld [vmem:[#allocation2 + $0xd8] sm:$0xf]
        %v5564 = vld [vmem:[#allocation2 + $0xe0] sm:$0xf]
        %v5565 = vld [vmem:[#allocation2 + $0xe8] sm:$0xf]
        %v5566 = vld [vmem:[#allocation2 + $0xf0] sm:$0xf]
        %v5567 = vld [vmem:[#allocation2 + $0xf8] sm:$0xf]
        %v5568 = vld [vmem:[%s1 + $0x2a8] sm:$0xff]
        %v5569 = vld [vmem:[%s1 + $0x2b0] sm:$0xff]
        %v5570 = vld [vmem:[%s1 + $0x2b8] sm:$0xff]
        %v5571 = vld [vmem:[%s1 + $0x2c0] sm:$0xff]
        %v5572 = vld [vmem:[%s1 + $0x2c8] sm:$0xff]
        %v5573 = vld [vmem:[%s1 + $0x2d0] sm:$0xff]
        %v5574 = vld [vmem:[%s1 + $0x2d8] sm:$0xff]
        %v5575 = vld [vmem:[%s1 + $0x2e0] sm:$0xff]
        %v5576 = vld [vmem:[%s1 + $0x2e8] sm:$0xff]
        %v5577 = vld [vmem:[%s1 + $0x2f0] sm:$0xff]
        %v5578 = vld [vmem:[%s1 + $0x2f8] sm:$0xff]
        %v5579 = vld [vmem:[%s1 + $0x300] sm:$0xff]
        %v5580 = vld [vmem:[%s1 + $0x308] sm:$0xff]
        %v5581 = vld [vmem:[%s1 + $0x310] sm:$0xff]
        %v5582 = vld [vmem:[%s1 + $0x318] sm:$0xff]
        %v5583 = vld [vmem:[%s1 + $0x320] sm:$0xff]
        %v5584 = vpack.c.bf16 %v5569, %v5568
        %v5585 = vpack.c.bf16 %v5571, %v5570
        %v5586 = vpack.c.bf16 %v5573, %v5572
        %v5587 = vpack.c.bf16 %v5575, %v5574
        %v5588 = vpack.c.bf16 %v5577, %v5576
        %v5589 = vpack.c.bf16 %v5579, %v5578
        %v5590 = vpack.c.bf16 %v5581, %v5580
        %v5591 = vpack.c.bf16 %v5583, %v5582
        %v5592 = vld [vmem:[#allocation3 + $0x9] sm:$0x1]
        %v5593 = vlaneseq
        %v5594 = vshrl.u32 %v5593, 7
        %v5595 = vsub.s32 0, %v5594
        %v5596 = vrot.slane %v5592, %v5595
        %v5629 = vunpack.c.l.b16 %v5536
        %v5630 = vunpack.c.l.b16 %v5537
        %v5631 = vunpack.c.l.b16 %v5538
        %v5632 = vunpack.c.l.b16 %v5539
        %v5633 = vunpack.c.l.b16 %v5540
        %v5634 = vunpack.c.l.b16 %v5541
        %v5635 = vunpack.c.l.b16 %v5542
        %v5636 = vunpack.c.l.b16 %v5543
        %v5637 = vunpack.c.l.b16 %v5544
        %v5638 = vunpack.c.l.b16 %v5545
        %v5639 = vunpack.c.l.b16 %v5546
        %v5640 = vunpack.c.l.b16 %v5547
        %v5641 = vunpack.c.l.b16 %v5548
        %v5642 = vunpack.c.l.b16 %v5549
        %v5643 = vunpack.c.l.b16 %v5550
        %v5644 = vunpack.c.l.b16 %v5551
        %v5645 = vunpack.c.l.b16 %v5552
        %v5646 = vunpack.c.l.b16 %v5553
        %v5647 = vunpack.c.l.b16 %v5554
        %v5648 = vunpack.c.l.b16 %v5555
        %v5649 = vunpack.c.l.b16 %v5556
        %v5650 = vunpack.c.l.b16 %v5557
        %v5651 = vunpack.c.l.b16 %v5558
        %v5652 = vunpack.c.l.b16 %v5559
        %v5653 = vunpack.c.l.b16 %v5560
        %v5654 = vunpack.c.l.b16 %v5561
        %v5655 = vunpack.c.l.b16 %v5562
        %v5656 = vunpack.c.l.b16 %v5563
        %v5657 = vunpack.c.l.b16 %v5564
        %v5658 = vunpack.c.l.b16 %v5565
        %v5659 = vunpack.c.l.b16 %v5566
        %v5660 = vunpack.c.l.b16 %v5567
        %v5661 = vpack.c.b16 %v5630, %v5629
        %v5662 = vpack.c.b16 %v5632, %v5631
        %v5663 = vpack.c.b16 %v5634, %v5633
        %v5664 = vpack.c.b16 %v5636, %v5635
        %v5665 = vpack.c.b16 %v5638, %v5637
        %v5666 = vpack.c.b16 %v5640, %v5639
        %v5667 = vpack.c.b16 %v5642, %v5641
        %v5668 = vpack.c.b16 %v5644, %v5643
        %v5669 = vpack.c.b16 %v5646, %v5645
        %v5670 = vpack.c.b16 %v5648, %v5647
        %v5671 = vpack.c.b16 %v5650, %v5649
        %v5672 = vpack.c.b16 %v5652, %v5651
        %v5673 = vpack.c.b16 %v5654, %v5653
        %v5674 = vpack.c.b16 %v5656, %v5655
        %v5675 = vpack.c.b16 %v5658, %v5657
        %v5676 = vpack.c.b16 %v5660, %v5659
        %5693 = vmatprep.subr.bf16.mxu0 0
        %5694 = vmatpush1.bf16.msra.mxu0 %v5591
        %5695 = vmatprep.subr.bf16.mxu0 0
        %5696 = vmatpush1.bf16.msra.mxu0 %v5590
        %5697 = vmatprep.subr.bf16.mxu0 0
        %5698 = vmatpush1.bf16.msra.mxu0 %v5589
        %5699 = vmatprep.subr.bf16.mxu0 0
        %5700 = vmatpush1.bf16.msra.mxu0 %v5588
        %5701 = vmatprep.subr.bf16.mxu0 0
        %5702 = vmatpush1.bf16.msra.mxu0 %v5587
        %5703 = vmatprep.subr.bf16.mxu0 0
        %5704 = vmatpush1.bf16.msra.mxu0 %v5586
        %5705 = vmatprep.subr.bf16.mxu0 0
        %5706 = vmatpush1.bf16.msra.mxu0 %v5585
        %5707 = vmatprep.subr.bf16.mxu0 0
        %5708 = vmatpush1.bf16.msra.mxu0 %v5584
        %5709 = vmatprep.subr.bf16.mxu0 0
        %5710 = vmatpush2.bf16.msra.mxu0 0
        %5711 = vmatprep.subr.bf16.mxu0 0
        %5712 = vmatpush2.bf16.msra.mxu0 0
        %5713 = vmatprep.subr.bf16.mxu0 0
        %5714 = vmatpush2.bf16.msra.mxu0 0
        %5715 = vmatprep.subr.bf16.mxu0 0
        %5716 = vmatpush2.bf16.msra.mxu0 0
        %5717 = vmatprep.subr.bf16.mxu0 0
        %5718 = vmatpush2.bf16.msra.mxu0 0
        %5719 = vmatprep.subr.bf16.mxu0 0
        %5720 = vmatpush2.bf16.msra.mxu0 0
        %5721 = vmatprep.subr.bf16.mxu0 0
        %5722 = vmatpush2.bf16.msra.mxu0 0
        %5723 = vmatprep.subr.bf16.mxu0 0
        %5724 = vmatpush2.bf16.msra.mxu0 0
        %5725 = vmatprep.mubr.bf16.mxu0 0
        %5726 = vmatmul.mubr.bf16.gmra.mxu0 %v5661
        %v5727 = vpop.f32.mrf.mxu0
        %v5728 = vadd.f32 %v5596, %v5727
        %v5729 = vpop.f32.mrf.mxu0
        %v5730 = vpop.f32.mrf.mxu0
        %v5731 = vadd.f32 %v5596, %v5730
        %v5732 = vpop.f32.mrf.mxu0
        %5733 = vmatprep.mubr.bf16.mxu0 0
        %5734 = vmatmul.mubr.bf16.gmra.mxu0 %v5662
        %v5735 = vpop.f32.mrf.mxu0
        %v5736 = vadd.f32 %v5596, %v5735
        %v5737 = vpop.f32.mrf.mxu0
        %v5738 = vpop.f32.mrf.mxu0
        %v5739 = vadd.f32 %v5596, %v5738
        %v5740 = vpop.f32.mrf.mxu0
        %5741 = vmatprep.mubr.bf16.mxu0 0
        %5742 = vmatmul.mubr.bf16.gmra.mxu0 %v5663
        %v5743 = vpop.f32.mrf.mxu0
        %v5744 = vadd.f32 %v5596, %v5743
        %v5745 = vpop.f32.mrf.mxu0
        %v5746 = vpop.f32.mrf.mxu0
        %v5747 = vadd.f32 %v5596, %v5746
        %v5748 = vpop.f32.mrf.mxu0
        %5749 = vmatprep.mubr.bf16.mxu0 0
        %5750 = vmatmul.mubr.bf16.gmra.mxu0 %v5664
        %v5751 = vpop.f32.mrf.mxu0
        %v5752 = vadd.f32 %v5596, %v5751
        %v5753 = vpop.f32.mrf.mxu0
        %v5754 = vpop.f32.mrf.mxu0
        %v5755 = vadd.f32 %v5596, %v5754
        %v5756 = vpop.f32.mrf.mxu0
        %5757 = vmatprep.mubr.bf16.mxu0 0
        %5758 = vmatmul.mubr.bf16.gmra.mxu0 %v5665
        %v5759 = vpop.f32.mrf.mxu0
        %v5760 = vadd.f32 %v5596, %v5759
        %v5761 = vpop.f32.mrf.mxu0
        %v5762 = vpop.f32.mrf.mxu0
        %v5763 = vadd.f32 %v5596, %v5762
        %v5764 = vpop.f32.mrf.mxu0
        %5765 = vmatprep.mubr.bf16.mxu0 0
        %5766 = vmatmul.mubr.bf16.gmra.mxu0 %v5666
        %v5767 = vpop.f32.mrf.mxu0
        %v5768 = vadd.f32 %v5596, %v5767
        %v5769 = vpop.f32.mrf.mxu0
        %v5770 = vpop.f32.mrf.mxu0
        %v5771 = vadd.f32 %v5596, %v5770
        %v5772 = vpop.f32.mrf.mxu0
        %5773 = vmatprep.mubr.bf16.mxu0 0
        %5774 = vmatmul.mubr.bf16.gmra.mxu0 %v5667
        %v5775 = vpop.f32.mrf.mxu0
        %v5776 = vadd.f32 %v5596, %v5775
        %v5777 = vpop.f32.mrf.mxu0
        %v5778 = vpop.f32.mrf.mxu0
        %v5779 = vadd.f32 %v5596, %v5778
        %v5780 = vpop.f32.mrf.mxu0
        %5781 = vmatprep.mubr.bf16.mxu0 0
        %5782 = vmatmul.mubr.bf16.gmra.mxu0 %v5668
        %v5783 = vpop.f32.mrf.mxu0
        %v5784 = vadd.f32 %v5596, %v5783
        %v5785 = vpop.f32.mrf.mxu0
        %v5786 = vpop.f32.mrf.mxu0
        %v5787 = vadd.f32 %v5596, %v5786
        %v5788 = vpop.f32.mrf.mxu0
        %5789 = vmatprep.mubr.bf16.mxu0 0
        %5790 = vmatmul.mubr.bf16.gmra.mxu0 %v5669
        %v5791 = vpop.f32.mrf.mxu0
        %v5792 = vadd.f32 %v5596, %v5791
        %v5793 = vpop.f32.mrf.mxu0
        %v5794 = vpop.f32.mrf.mxu0
        %v5795 = vadd.f32 %v5596, %v5794
        %v5796 = vpop.f32.mrf.mxu0
        %5797 = vmatprep.mubr.bf16.mxu0 0
        %5798 = vmatmul.mubr.bf16.gmra.mxu0 %v5670
        %v5799 = vpop.f32.mrf.mxu0
        %v5800 = vadd.f32 %v5596, %v5799
        %v5801 = vpop.f32.mrf.mxu0
        %v5802 = vpop.f32.mrf.mxu0
        %v5803 = vadd.f32 %v5596, %v5802
        %v5804 = vpop.f32.mrf.mxu0
        %5805 = vmatprep.mubr.bf16.mxu0 0
        %5806 = vmatmul.mubr.bf16.gmra.mxu0 %v5671
        %v5807 = vpop.f32.mrf.mxu0
        %v5808 = vadd.f32 %v5596, %v5807
        %v5809 = vpop.f32.mrf.mxu0
        %v5810 = vpop.f32.mrf.mxu0
        %v5811 = vadd.f32 %v5596, %v5810
        %v5812 = vpop.f32.mrf.mxu0
        %5813 = vmatprep.mubr.bf16.mxu0 0
        %5814 = vmatmul.mubr.bf16.gmra.mxu0 %v5672
        %v5815 = vpop.f32.mrf.mxu0
        %v5816 = vadd.f32 %v5596, %v5815
        %v5817 = vpop.f32.mrf.mxu0
        %v5818 = vpop.f32.mrf.mxu0
        %v5819 = vadd.f32 %v5596, %v5818
        %v5820 = vpop.f32.mrf.mxu0
        %5821 = vmatprep.mubr.bf16.mxu0 0
        %5822 = vmatmul.mubr.bf16.gmra.mxu0 %v5673
        %v5823 = vpop.f32.mrf.mxu0
        %v5824 = vadd.f32 %v5596, %v5823
        %v5825 = vpop.f32.mrf.mxu0
        %v5826 = vpop.f32.mrf.mxu0
        %v5827 = vadd.f32 %v5596, %v5826
        %v5828 = vpop.f32.mrf.mxu0
        %5829 = vmatprep.mubr.bf16.mxu0 0
        %5830 = vmatmul.mubr.bf16.gmra.mxu0 %v5674
        %v5831 = vpop.f32.mrf.mxu0
        %v5832 = vadd.f32 %v5596, %v5831
        %v5833 = vpop.f32.mrf.mxu0
        %v5834 = vpop.f32.mrf.mxu0
        %v5835 = vadd.f32 %v5596, %v5834
        %v5836 = vpop.f32.mrf.mxu0
        %5837 = vmatprep.mubr.bf16.mxu0 0
        %5838 = vmatmul.mubr.bf16.gmra.mxu0 %v5675
        %v5839 = vpop.f32.mrf.mxu0
        %v5840 = vadd.f32 %v5596, %v5839
        %v5841 = vpop.f32.mrf.mxu0
        %v5842 = vpop.f32.mrf.mxu0
        %v5843 = vadd.f32 %v5596, %v5842
        %v5844 = vpop.f32.mrf.mxu0
        %5845 = vmatprep.mubr.bf16.mxu0 0
        %5846 = vmatmul.mubr.bf16.gmra.mxu0 %v5676
        %v5847 = vpop.f32.mrf.mxu0
        %v5848 = vadd.f32 %v5596, %v5847
        %v5849 = vpop.f32.mrf.mxu0
        %v5850 = vpop.f32.mrf.mxu0
        %v5851 = vadd.f32 %v5596, %v5850
        %v5852 = vpop.f32.mrf.mxu0
        %5853 = vdwg.mxu0
        %v5854 = vmul.f32 %v5728, 0.2
        %v5855 = vmul.f32 %v5731, 0.2
        %v5856 = vmul.f32 %v5736, 0.2
        %v5857 = vmul.f32 %v5739, 0.2
        %v5858 = vmul.f32 %v5744, 0.2
        %v5859 = vmul.f32 %v5747, 0.2
        %v5860 = vmul.f32 %v5752, 0.2
        %v5861 = vmul.f32 %v5755, 0.2
        %v5862 = vmul.f32 %v5760, 0.2
        %v5863 = vmul.f32 %v5763, 0.2
        %v5864 = vmul.f32 %v5768, 0.2
        %v5865 = vmul.f32 %v5771, 0.2
        %v5866 = vmul.f32 %v5776, 0.2
        %v5867 = vmul.f32 %v5779, 0.2
        %v5868 = vmul.f32 %v5784, 0.2
        %v5869 = vmul.f32 %v5787, 0.2
        %v5870 = vmul.f32 %v5792, 0.2
        %v5871 = vmul.f32 %v5795, 0.2
        %v5872 = vmul.f32 %v5800, 0.2
        %v5873 = vmul.f32 %v5803, 0.2
        %v5874 = vmul.f32 %v5808, 0.2
        %v5875 = vmul.f32 %v5811, 0.2
        %v5876 = vmul.f32 %v5816, 0.2
        %v5877 = vmul.f32 %v5819, 0.2
        %v5878 = vmul.f32 %v5824, 0.2
        %v5879 = vmul.f32 %v5827, 0.2
        %v5880 = vmul.f32 %v5832, 0.2
        %v5881 = vmul.f32 %v5835, 0.2
        %v5882 = vmul.f32 %v5840, 0.2
        %v5883 = vmul.f32 %v5843, 0.2
        %v5884 = vmul.f32 %v5848, 0.2
        %v5885 = vmul.f32 %v5851, 0.2
        %v5886 = vmax.f32 %v5728, %v5854
        %v5887 = vmax.f32 %v5731, %v5855
        %v5888 = vmax.f32 %v5736, %v5856
        %v5889 = vmax.f32 %v5739, %v5857
        %v5890 = vmax.f32 %v5744, %v5858
        %v5891 = vmax.f32 %v5747, %v5859
        %v5892 = vmax.f32 %v5752, %v5860
        %v5893 = vmax.f32 %v5755, %v5861
        %v5894 = vmax.f32 %v5760, %v5862
        %v5895 = vmax.f32 %v5763, %v5863
        %v5896 = vmax.f32 %v5768, %v5864
        %v5897 = vmax.f32 %v5771, %v5865
        %v5898 = vmax.f32 %v5776, %v5866
        %v5899 = vmax.f32 %v5779, %v5867
        %v5900 = vmax.f32 %v5784, %v5868
        %v5901 = vmax.f32 %v5787, %v5869
        %v5902 = vmax.f32 %v5792, %v5870
        %v5903 = vmax.f32 %v5795, %v5871
        %v5904 = vmax.f32 %v5800, %v5872
        %v5905 = vmax.f32 %v5803, %v5873
        %v5906 = vmax.f32 %v5808, %v5874
        %v5907 = vmax.f32 %v5811, %v5875
        %v5908 = vmax.f32 %v5816, %v5876
        %v5909 = vmax.f32 %v5819, %v5877
        %v5910 = vmax.f32 %v5824, %v5878
        %v5911 = vmax.f32 %v5827, %v5879
        %v5912 = vmax.f32 %v5832, %v5880
        %v5913 = vmax.f32 %v5835, %v5881
        %v5914 = vmax.f32 %v5840, %v5882
        %v5915 = vmax.f32 %v5843, %v5883
        %v5916 = vmax.f32 %v5848, %v5884
        %v5917 = vmax.f32 %v5851, %v5885
        %v5918 = vpack.c.bf16 %v5887, %v5886
        %v5919 = vpack.c.bf16 %v5889, %v5888
        %v5920 = vpack.c.bf16 %v5891, %v5890
        %v5921 = vpack.c.bf16 %v5893, %v5892
        %v5922 = vpack.c.bf16 %v5895, %v5894
        %v5923 = vpack.c.bf16 %v5897, %v5896
        %v5924 = vpack.c.bf16 %v5899, %v5898
        %v5925 = vpack.c.bf16 %v5901, %v5900
        %v5926 = vpack.c.bf16 %v5903, %v5902
        %v5927 = vpack.c.bf16 %v5905, %v5904
        %v5928 = vpack.c.bf16 %v5907, %v5906
        %v5929 = vpack.c.bf16 %v5909, %v5908
        %v5930 = vpack.c.bf16 %v5911, %v5910
        %v5931 = vpack.c.bf16 %v5913, %v5912
        %v5932 = vpack.c.bf16 %v5915, %v5914
        %v5933 = vpack.c.bf16 %v5917, %v5916
        %v5950 = vunpack.c.l.b16 %v5918
        %v5951 = vunpack.c.h.b16 %v5918
        %v5952 = vunpack.c.l.b16 %v5919
        %v5953 = vunpack.c.h.b16 %v5919
        %v5954 = vunpack.c.l.b16 %v5920
        %v5955 = vunpack.c.h.b16 %v5920
        %v5956 = vunpack.c.l.b16 %v5921
        %v5957 = vunpack.c.h.b16 %v5921
        %v5958 = vunpack.c.l.b16 %v5922
        %v5959 = vunpack.c.h.b16 %v5922
        %v5960 = vunpack.c.l.b16 %v5923
        %v5961 = vunpack.c.h.b16 %v5923
        %v5962 = vunpack.c.l.b16 %v5924
        %v5963 = vunpack.c.h.b16 %v5924
        %v5964 = vunpack.c.l.b16 %v5925
        %v5965 = vunpack.c.h.b16 %v5925
        %v5966 = vunpack.c.l.b16 %v5926
        %v5967 = vunpack.c.h.b16 %v5926
        %v5968 = vunpack.c.l.b16 %v5927
        %v5969 = vunpack.c.h.b16 %v5927
        %v5970 = vunpack.c.l.b16 %v5928
        %v5971 = vunpack.c.h.b16 %v5928
        %v5972 = vunpack.c.l.b16 %v5929
        %v5973 = vunpack.c.h.b16 %v5929
        %v5974 = vunpack.c.l.b16 %v5930
        %v5975 = vunpack.c.h.b16 %v5930
        %v5976 = vunpack.c.l.b16 %v5931
        %v5977 = vunpack.c.h.b16 %v5931
        %v5978 = vunpack.c.l.b16 %v5932
        %v5979 = vunpack.c.h.b16 %v5932
        %v5980 = vunpack.c.l.b16 %v5933
        %v5981 = vunpack.c.h.b16 %v5933
        %v5982 = vpack.c.b16 %v5950, %v5950
        %v5983 = vpack.c.b16 %v5951, %v5951
        %v5984 = vpack.c.b16 %v5952, %v5952
        %v5985 = vpack.c.b16 %v5953, %v5953
        %v5986 = vpack.c.b16 %v5954, %v5954
        %v5987 = vpack.c.b16 %v5955, %v5955
        %v5988 = vpack.c.b16 %v5956, %v5956
        %v5989 = vpack.c.b16 %v5957, %v5957
        %v5990 = vpack.c.b16 %v5958, %v5958
        %v5991 = vpack.c.b16 %v5959, %v5959
        %v5992 = vpack.c.b16 %v5960, %v5960
        %v5993 = vpack.c.b16 %v5961, %v5961
        %v5994 = vpack.c.b16 %v5962, %v5962
        %v5995 = vpack.c.b16 %v5963, %v5963
        %v5996 = vpack.c.b16 %v5964, %v5964
        %v5997 = vpack.c.b16 %v5965, %v5965
        %v5998 = vpack.c.b16 %v5966, %v5966
        %v5999 = vpack.c.b16 %v5967, %v5967
        %v6000 = vpack.c.b16 %v5968, %v5968
        %v6001 = vpack.c.b16 %v5969, %v5969
        %v6002 = vpack.c.b16 %v5970, %v5970
        %v6003 = vpack.c.b16 %v5971, %v5971
        %v6004 = vpack.c.b16 %v5972, %v5972
        %v6005 = vpack.c.b16 %v5973, %v5973
        %v6006 = vpack.c.b16 %v5974, %v5974
        %v6007 = vpack.c.b16 %v5975, %v5975
        %v6008 = vpack.c.b16 %v5976, %v5976
        %v6009 = vpack.c.b16 %v5977, %v5977
        %v6010 = vpack.c.b16 %v5978, %v5978
        %v6011 = vpack.c.b16 %v5979, %v5979
        %v6012 = vpack.c.b16 %v5980, %v5980
        %v6013 = vpack.c.b16 %v5981, %v5981
        %6046 = vst.msk [vmem:[#allocation2 + $0x4] sm:$0xf] %vm587, %v5982
        %6047 = vst.msk [vmem:[#allocation2 + $0xc] sm:$0xf] %vm587, %v5983
        %6048 = vst.msk [vmem:[#allocation2 + $0x14] sm:$0xf] %vm587, %v5984
        %6049 = vst.msk [vmem:[#allocation2 + $0x1c] sm:$0xf] %vm587, %v5985
        %6050 = vst.msk [vmem:[#allocation2 + $0x24] sm:$0xf] %vm587, %v5986
        %6051 = vst.msk [vmem:[#allocation2 + $0x2c] sm:$0xf] %vm587, %v5987
        %6052 = vst.msk [vmem:[#allocation2 + $0x34] sm:$0xf] %vm587, %v5988
        %6053 = vst.msk [vmem:[#allocation2 + $0x3c] sm:$0xf] %vm587, %v5989
        %6054 = vst.msk [vmem:[#allocation2 + $0x44] sm:$0xf] %vm587, %v5990
        %6055 = vst.msk [vmem:[#allocation2 + $0x4c] sm:$0xf] %vm587, %v5991
        %6056 = vst.msk [vmem:[#allocation2 + $0x54] sm:$0xf] %vm587, %v5992
        %6057 = vst.msk [vmem:[#allocation2 + $0x5c] sm:$0xf] %vm587, %v5993
        %6058 = vst.msk [vmem:[#allocation2 + $0x64] sm:$0xf] %vm587, %v5994
        %6059 = vst.msk [vmem:[#allocation2 + $0x6c] sm:$0xf] %vm587, %v5995
        %6060 = vst.msk [vmem:[#allocation2 + $0x74] sm:$0xf] %vm587, %v5996
        %6061 = vst.msk [vmem:[#allocation2 + $0x7c] sm:$0xf] %vm587, %v5997
        %6062 = vst.msk [vmem:[#allocation2 + $0x84] sm:$0xf] %vm587, %v5998
        %6063 = vst.msk [vmem:[#allocation2 + $0x8c] sm:$0xf] %vm587, %v5999
        %6064 = vst.msk [vmem:[#allocation2 + $0x94] sm:$0xf] %vm587, %v6000
        %6065 = vst.msk [vmem:[#allocation2 + $0x9c] sm:$0xf] %vm587, %v6001
        %6066 = vst.msk [vmem:[#allocation2 + $0xa4] sm:$0xf] %vm587, %v6002
        %6067 = vst.msk [vmem:[#allocation2 + $0xac] sm:$0xf] %vm587, %v6003
        %6068 = vst.msk [vmem:[#allocation2 + $0xb4] sm:$0xf] %vm587, %v6004
        %6069 = vst.msk [vmem:[#allocation2 + $0xbc] sm:$0xf] %vm587, %v6005
        %6070 = vst.msk [vmem:[#allocation2 + $0xc4] sm:$0xf] %vm587, %v6006
        %6071 = vst.msk [vmem:[#allocation2 + $0xcc] sm:$0xf] %vm587, %v6007
        %6072 = vst.msk [vmem:[#allocation2 + $0xd4] sm:$0xf] %vm587, %v6008
        %6073 = vst.msk [vmem:[#allocation2 + $0xdc] sm:$0xf] %vm587, %v6009
        %6074 = vst.msk [vmem:[#allocation2 + $0xe4] sm:$0xf] %vm587, %v6010
        %6075 = vst.msk [vmem:[#allocation2 + $0xec] sm:$0xf] %vm587, %v6011
        %6076 = vst.msk [vmem:[#allocation2 + $0xf4] sm:$0xf] %vm587, %v6012
        %6077 = vst.msk [vmem:[#allocation2 + $0xfc] sm:$0xf] %vm587, %v6013
        %v6078 = vld [vmem:[#allocation2] sm:$0xff]
        %v6079 = vld [vmem:[#allocation2 + $0x8] sm:$0xff]
        %v6080 = vld [vmem:[#allocation2 + $0x10] sm:$0xff]
        %v6081 = vld [vmem:[#allocation2 + $0x18] sm:$0xff]
        %v6082 = vld [vmem:[#allocation2 + $0x20] sm:$0xff]
        %v6083 = vld [vmem:[#allocation2 + $0x28] sm:$0xff]
        %v6084 = vld [vmem:[#allocation2 + $0x30] sm:$0xff]
        %v6085 = vld [vmem:[#allocation2 + $0x38] sm:$0xff]
        %v6086 = vld [vmem:[#allocation2 + $0x40] sm:$0xff]
        %v6087 = vld [vmem:[#allocation2 + $0x48] sm:$0xff]
        %v6088 = vld [vmem:[#allocation2 + $0x50] sm:$0xff]
        %v6089 = vld [vmem:[#allocation2 + $0x58] sm:$0xff]
        %v6090 = vld [vmem:[#allocation2 + $0x60] sm:$0xff]
        %v6091 = vld [vmem:[#allocation2 + $0x68] sm:$0xff]
        %v6092 = vld [vmem:[#allocation2 + $0x70] sm:$0xff]
        %v6093 = vld [vmem:[#allocation2 + $0x78] sm:$0xff]
        %v6094 = vld [vmem:[#allocation2 + $0x80] sm:$0xff]
        %v6095 = vld [vmem:[#allocation2 + $0x88] sm:$0xff]
        %v6096 = vld [vmem:[#allocation2 + $0x90] sm:$0xff]
        %v6097 = vld [vmem:[#allocation2 + $0x98] sm:$0xff]
        %v6098 = vld [vmem:[#allocation2 + $0xa0] sm:$0xff]
        %v6099 = vld [vmem:[#allocation2 + $0xa8] sm:$0xff]
        %v6100 = vld [vmem:[#allocation2 + $0xb0] sm:$0xff]
        %v6101 = vld [vmem:[#allocation2 + $0xb8] sm:$0xff]
        %v6102 = vld [vmem:[#allocation2 + $0xc0] sm:$0xff]
        %v6103 = vld [vmem:[#allocation2 + $0xc8] sm:$0xff]
        %v6104 = vld [vmem:[#allocation2 + $0xd0] sm:$0xff]
        %v6105 = vld [vmem:[#allocation2 + $0xd8] sm:$0xff]
        %v6106 = vld [vmem:[#allocation2 + $0xe0] sm:$0xff]
        %v6107 = vld [vmem:[#allocation2 + $0xe8] sm:$0xff]
        %v6108 = vld [vmem:[#allocation2 + $0xf0] sm:$0xff]
        %v6109 = vld [vmem:[#allocation2 + $0xf8] sm:$0xff]
        %v6110 = vld [vmem:[%s1 + $0x328] sm:$0xff]
        %v6111 = vld [vmem:[%s1 + $0x330] sm:$0xff]
        %v6112 = vld [vmem:[%s1 + $0x338] sm:$0xff]
        %v6113 = vld [vmem:[%s1 + $0x340] sm:$0xff]
        %v6114 = vld [vmem:[%s1 + $0x348] sm:$0xff]
        %v6115 = vld [vmem:[%s1 + $0x350] sm:$0xff]
        %v6116 = vld [vmem:[%s1 + $0x358] sm:$0xff]
        %v6117 = vld [vmem:[%s1 + $0x360] sm:$0xff]
        %v6118 = vld [vmem:[%s1 + $0x368] sm:$0xff]
        %v6119 = vld [vmem:[%s1 + $0x370] sm:$0xff]
        %v6120 = vld [vmem:[%s1 + $0x378] sm:$0xff]
        %v6121 = vld [vmem:[%s1 + $0x380] sm:$0xff]
        %v6122 = vld [vmem:[%s1 + $0x388] sm:$0xff]
        %v6123 = vld [vmem:[%s1 + $0x390] sm:$0xff]
        %v6124 = vld [vmem:[%s1 + $0x398] sm:$0xff]
        %v6125 = vld [vmem:[%s1 + $0x3a0] sm:$0xff]
        %v6126 = vld [vmem:[%s1 + $0x3a8] sm:$0xff]
        %v6127 = vld [vmem:[%s1 + $0x3b0] sm:$0xff]
        %v6128 = vld [vmem:[%s1 + $0x3b8] sm:$0xff]
        %v6129 = vld [vmem:[%s1 + $0x3c0] sm:$0xff]
        %v6130 = vpack.c.bf16 %v6111, %v6110
        %v6131 = vpack.c.bf16 %v6113, %v6112
        %v6132 = vpack.c.bf16 %v6115, %v6114
        %v6133 = vpack.c.bf16 %v6117, %v6116
        %v6134 = vpack.c.bf16 %v6119, %v6118
        %v6135 = vpack.c.bf16 %v6121, %v6120
        %v6136 = vpack.c.bf16 %v6123, %v6122
        %v6137 = vpack.c.bf16 %v6125, %v6124
        %v6138 = vpack.c.bf16 %v6127, %v6126
        %v6139 = vpack.c.bf16 %v6129, %v6128
        %v6140 = vld [vmem:[#allocation3 + $0xa] sm:$0x1]
        %v6141 = vlaneseq
        %v6142 = vshrl.u32 %v6141, 7
        %v6143 = vsub.s32 0, %v6142
        %v6144 = vrot.slane %v6140, %v6143
        %v6177 = vunpack.c.l.b16 %v6078
        %v6178 = vunpack.c.h.b16 %v6078
        %v6179 = vunpack.c.l.b16 %v6079
        %v6180 = vunpack.c.h.b16 %v6079
        %v6181 = vunpack.c.l.b16 %v6080
        %v6182 = vunpack.c.h.b16 %v6080
        %v6183 = vunpack.c.l.b16 %v6081
        %v6184 = vunpack.c.h.b16 %v6081
        %v6185 = vunpack.c.l.b16 %v6082
        %v6186 = vunpack.c.h.b16 %v6082
        %v6187 = vunpack.c.l.b16 %v6083
        %v6188 = vunpack.c.h.b16 %v6083
        %v6189 = vunpack.c.l.b16 %v6084
        %v6190 = vunpack.c.h.b16 %v6084
        %v6191 = vunpack.c.l.b16 %v6085
        %v6192 = vunpack.c.h.b16 %v6085
        %v6193 = vunpack.c.l.b16 %v6086
        %v6194 = vunpack.c.h.b16 %v6086
        %v6195 = vunpack.c.l.b16 %v6087
        %v6196 = vunpack.c.h.b16 %v6087
        %v6197 = vunpack.c.l.b16 %v6088
        %v6198 = vunpack.c.h.b16 %v6088
        %v6199 = vunpack.c.l.b16 %v6089
        %v6200 = vunpack.c.h.b16 %v6089
        %v6201 = vunpack.c.l.b16 %v6090
        %v6202 = vunpack.c.h.b16 %v6090
        %v6203 = vunpack.c.l.b16 %v6091
        %v6204 = vunpack.c.h.b16 %v6091
        %v6205 = vunpack.c.l.b16 %v6092
        %v6206 = vunpack.c.h.b16 %v6092
        %v6207 = vunpack.c.l.b16 %v6093
        %v6208 = vunpack.c.h.b16 %v6093
        %v6209 = vunpack.c.l.b16 %v6094
        %v6210 = vunpack.c.h.b16 %v6094
        %v6211 = vunpack.c.l.b16 %v6095
        %v6212 = vunpack.c.h.b16 %v6095
        %v6213 = vunpack.c.l.b16 %v6096
        %v6214 = vunpack.c.h.b16 %v6096
        %v6215 = vunpack.c.l.b16 %v6097
        %v6216 = vunpack.c.h.b16 %v6097
        %v6217 = vunpack.c.l.b16 %v6098
        %v6218 = vunpack.c.h.b16 %v6098
        %v6219 = vunpack.c.l.b16 %v6099
        %v6220 = vunpack.c.h.b16 %v6099
        %v6221 = vunpack.c.l.b16 %v6100
        %v6222 = vunpack.c.h.b16 %v6100
        %v6223 = vunpack.c.l.b16 %v6101
        %v6224 = vunpack.c.h.b16 %v6101
        %v6225 = vunpack.c.l.b16 %v6102
        %v6226 = vunpack.c.h.b16 %v6102
        %v6227 = vunpack.c.l.b16 %v6103
        %v6228 = vunpack.c.h.b16 %v6103
        %v6229 = vunpack.c.l.b16 %v6104
        %v6230 = vunpack.c.h.b16 %v6104
        %v6231 = vunpack.c.l.b16 %v6105
        %v6232 = vunpack.c.h.b16 %v6105
        %v6233 = vunpack.c.l.b16 %v6106
        %v6234 = vunpack.c.h.b16 %v6106
        %v6235 = vunpack.c.l.b16 %v6107
        %v6236 = vunpack.c.h.b16 %v6107
        %v6237 = vunpack.c.l.b16 %v6108
        %v6238 = vunpack.c.h.b16 %v6108
        %v6239 = vunpack.c.l.b16 %v6109
        %v6240 = vunpack.c.h.b16 %v6109
        %v6241 = vpack.c.b16 %v6179, %v6177
        %v6242 = vpack.c.b16 %v6180, %v6178
        %v6243 = vpack.c.b16 %v6183, %v6181
        %v6244 = vpack.c.b16 %v6184, %v6182
        %v6245 = vpack.c.b16 %v6187, %v6185
        %v6246 = vpack.c.b16 %v6188, %v6186
        %v6247 = vpack.c.b16 %v6191, %v6189
        %v6248 = vpack.c.b16 %v6192, %v6190
        %v6249 = vpack.c.b16 %v6195, %v6193
        %v6250 = vpack.c.b16 %v6196, %v6194
        %v6251 = vpack.c.b16 %v6199, %v6197
        %v6252 = vpack.c.b16 %v6200, %v6198
        %v6253 = vpack.c.b16 %v6203, %v6201
        %v6254 = vpack.c.b16 %v6204, %v6202
        %v6255 = vpack.c.b16 %v6207, %v6205
        %v6256 = vpack.c.b16 %v6208, %v6206
        %v6257 = vpack.c.b16 %v6211, %v6209
        %v6258 = vpack.c.b16 %v6212, %v6210
        %v6259 = vpack.c.b16 %v6215, %v6213
        %v6260 = vpack.c.b16 %v6216, %v6214
        %v6261 = vpack.c.b16 %v6219, %v6217
        %v6262 = vpack.c.b16 %v6220, %v6218
        %v6263 = vpack.c.b16 %v6223, %v6221
        %v6264 = vpack.c.b16 %v6224, %v6222
        %v6265 = vpack.c.b16 %v6227, %v6225
        %v6266 = vpack.c.b16 %v6228, %v6226
        %v6267 = vpack.c.b16 %v6231, %v6229
        %v6268 = vpack.c.b16 %v6232, %v6230
        %v6269 = vpack.c.b16 %v6235, %v6233
        %v6270 = vpack.c.b16 %v6236, %v6234
        %v6271 = vpack.c.b16 %v6239, %v6237
        %v6272 = vpack.c.b16 %v6240, %v6238
        %v6290 = vsel %vm743, %v6242, 0
        %v6293 = vsel %vm743, %v6244, 0
        %v6296 = vsel %vm743, %v6246, 0
        %v6299 = vsel %vm743, %v6248, 0
        %v6302 = vsel %vm743, %v6250, 0
        %v6305 = vsel %vm743, %v6252, 0
        %v6308 = vsel %vm743, %v6254, 0
        %v6311 = vsel %vm743, %v6256, 0
        %v6314 = vsel %vm743, %v6258, 0
        %v6317 = vsel %vm743, %v6260, 0
        %v6320 = vsel %vm743, %v6262, 0
        %v6323 = vsel %vm743, %v6264, 0
        %v6326 = vsel %vm743, %v6266, 0
        %v6329 = vsel %vm743, %v6268, 0
        %v6332 = vsel %vm743, %v6270, 0
        %v6335 = vsel %vm743, %v6272, 0
        %6337 = vmatprep.subr.bf16.mxu0 0
        %6338 = vmatpush1.bf16.msra.mxu0 %v6137
        %6339 = vmatprep.subr.bf16.mxu0 0
        %6340 = vmatpush1.bf16.msra.mxu0 %v6136
        %6341 = vmatprep.subr.bf16.mxu0 0
        %6342 = vmatpush1.bf16.msra.mxu0 %v6135
        %6343 = vmatprep.subr.bf16.mxu0 0
        %6344 = vmatpush1.bf16.msra.mxu0 %v6134
        %6345 = vmatprep.subr.bf16.mxu0 0
        %6346 = vmatpush1.bf16.msra.mxu0 %v6133
        %6347 = vmatprep.subr.bf16.mxu0 0
        %6348 = vmatpush1.bf16.msra.mxu0 %v6132
        %6349 = vmatprep.subr.bf16.mxu0 0
        %6350 = vmatpush1.bf16.msra.mxu0 %v6131
        %6351 = vmatprep.subr.bf16.mxu0 0
        %6352 = vmatpush1.bf16.msra.mxu0 %v6130
        %6353 = vmatprep.subr.bf16.mxu0 0
        %6354 = vmatpush2.bf16.msra.mxu0 0
        %6355 = vmatprep.subr.bf16.mxu0 0
        %6356 = vmatpush2.bf16.msra.mxu0 0
        %6357 = vmatprep.subr.bf16.mxu0 0
        %6358 = vmatpush2.bf16.msra.mxu0 0
        %6359 = vmatprep.subr.bf16.mxu0 0
        %6360 = vmatpush2.bf16.msra.mxu0 0
        %6361 = vmatprep.subr.bf16.mxu0 0
        %6362 = vmatpush2.bf16.msra.mxu0 0
        %6363 = vmatprep.subr.bf16.mxu0 0
        %6364 = vmatpush2.bf16.msra.mxu0 0
        %6365 = vmatprep.subr.bf16.mxu0 0
        %6366 = vmatpush2.bf16.msra.mxu0 %v6139
        %6367 = vmatprep.subr.bf16.mxu0 0
        %6368 = vmatpush2.bf16.msra.mxu0 %v6138
        %6369 = vmatprep.mubr.bf16.mxu0 %v6290
        %6370 = vmatmul.mubr.bf16.gmra.mxu0 %v6241
        %v6371 = vpop.f32.mrf.mxu0
        %v6372 = vadd.f32 %v6144, %v6371
        %v6373 = vpop.f32.mrf.mxu0
        %v6374 = vpop.f32.mrf.mxu0
        %v6375 = vadd.f32 %v6144, %v6374
        %v6376 = vpop.f32.mrf.mxu0
        %6377 = vmatprep.mubr.bf16.mxu0 %v6293
        %6378 = vmatmul.mubr.bf16.gmra.mxu0 %v6243
        %v6379 = vpop.f32.mrf.mxu0
        %v6380 = vadd.f32 %v6144, %v6379
        %v6381 = vpop.f32.mrf.mxu0
        %v6382 = vpop.f32.mrf.mxu0
        %v6383 = vadd.f32 %v6144, %v6382
        %v6384 = vpop.f32.mrf.mxu0
        %6385 = vmatprep.mubr.bf16.mxu0 %v6296
        %6386 = vmatmul.mubr.bf16.gmra.mxu0 %v6245
        %v6387 = vpop.f32.mrf.mxu0
        %v6388 = vadd.f32 %v6144, %v6387
        %v6389 = vpop.f32.mrf.mxu0
        %v6390 = vpop.f32.mrf.mxu0
        %v6391 = vadd.f32 %v6144, %v6390
        %v6392 = vpop.f32.mrf.mxu0
        %6393 = vmatprep.mubr.bf16.mxu0 %v6299
        %6394 = vmatmul.mubr.bf16.gmra.mxu0 %v6247
        %v6395 = vpop.f32.mrf.mxu0
        %v6396 = vadd.f32 %v6144, %v6395
        %v6397 = vpop.f32.mrf.mxu0
        %v6398 = vpop.f32.mrf.mxu0
        %v6399 = vadd.f32 %v6144, %v6398
        %v6400 = vpop.f32.mrf.mxu0
        %6401 = vmatprep.mubr.bf16.mxu0 %v6302
        %6402 = vmatmul.mubr.bf16.gmra.mxu0 %v6249
        %v6403 = vpop.f32.mrf.mxu0
        %v6404 = vadd.f32 %v6144, %v6403
        %v6405 = vpop.f32.mrf.mxu0
        %v6406 = vpop.f32.mrf.mxu0
        %v6407 = vadd.f32 %v6144, %v6406
        %v6408 = vpop.f32.mrf.mxu0
        %6409 = vmatprep.mubr.bf16.mxu0 %v6305
        %6410 = vmatmul.mubr.bf16.gmra.mxu0 %v6251
        %v6411 = vpop.f32.mrf.mxu0
        %v6412 = vadd.f32 %v6144, %v6411
        %v6413 = vpop.f32.mrf.mxu0
        %v6414 = vpop.f32.mrf.mxu0
        %v6415 = vadd.f32 %v6144, %v6414
        %v6416 = vpop.f32.mrf.mxu0
        %6417 = vmatprep.mubr.bf16.mxu0 %v6308
        %6418 = vmatmul.mubr.bf16.gmra.mxu0 %v6253
        %v6419 = vpop.f32.mrf.mxu0
        %v6420 = vadd.f32 %v6144, %v6419
        %v6421 = vpop.f32.mrf.mxu0
        %v6422 = vpop.f32.mrf.mxu0
        %v6423 = vadd.f32 %v6144, %v6422
        %v6424 = vpop.f32.mrf.mxu0
        %6425 = vmatprep.mubr.bf16.mxu0 %v6311
        %6426 = vmatmul.mubr.bf16.gmra.mxu0 %v6255
        %v6427 = vpop.f32.mrf.mxu0
        %v6428 = vadd.f32 %v6144, %v6427
        %v6429 = vpop.f32.mrf.mxu0
        %v6430 = vpop.f32.mrf.mxu0
        %v6431 = vadd.f32 %v6144, %v6430
        %v6432 = vpop.f32.mrf.mxu0
        %6433 = vmatprep.mubr.bf16.mxu0 %v6314
        %6434 = vmatmul.mubr.bf16.gmra.mxu0 %v6257
        %v6435 = vpop.f32.mrf.mxu0
        %v6436 = vadd.f32 %v6144, %v6435
        %v6437 = vpop.f32.mrf.mxu0
        %v6438 = vpop.f32.mrf.mxu0
        %v6439 = vadd.f32 %v6144, %v6438
        %v6440 = vpop.f32.mrf.mxu0
        %6441 = vmatprep.mubr.bf16.mxu0 %v6317
        %6442 = vmatmul.mubr.bf16.gmra.mxu0 %v6259
        %v6443 = vpop.f32.mrf.mxu0
        %v6444 = vadd.f32 %v6144, %v6443
        %v6445 = vpop.f32.mrf.mxu0
        %v6446 = vpop.f32.mrf.mxu0
        %v6447 = vadd.f32 %v6144, %v6446
        %v6448 = vpop.f32.mrf.mxu0
        %6449 = vmatprep.mubr.bf16.mxu0 %v6320
        %6450 = vmatmul.mubr.bf16.gmra.mxu0 %v6261
        %v6451 = vpop.f32.mrf.mxu0
        %v6452 = vadd.f32 %v6144, %v6451
        %v6453 = vpop.f32.mrf.mxu0
        %v6454 = vpop.f32.mrf.mxu0
        %v6455 = vadd.f32 %v6144, %v6454
        %v6456 = vpop.f32.mrf.mxu0
        %6457 = vmatprep.mubr.bf16.mxu0 %v6323
        %6458 = vmatmul.mubr.bf16.gmra.mxu0 %v6263
        %v6459 = vpop.f32.mrf.mxu0
        %v6460 = vadd.f32 %v6144, %v6459
        %v6461 = vpop.f32.mrf.mxu0
        %v6462 = vpop.f32.mrf.mxu0
        %v6463 = vadd.f32 %v6144, %v6462
        %v6464 = vpop.f32.mrf.mxu0
        %6465 = vmatprep.mubr.bf16.mxu0 %v6326
        %6466 = vmatmul.mubr.bf16.gmra.mxu0 %v6265
        %v6467 = vpop.f32.mrf.mxu0
        %v6468 = vadd.f32 %v6144, %v6467
        %v6469 = vpop.f32.mrf.mxu0
        %v6470 = vpop.f32.mrf.mxu0
        %v6471 = vadd.f32 %v6144, %v6470
        %v6472 = vpop.f32.mrf.mxu0
        %6473 = vmatprep.mubr.bf16.mxu0 %v6329
        %6474 = vmatmul.mubr.bf16.gmra.mxu0 %v6267
        %v6475 = vpop.f32.mrf.mxu0
        %v6476 = vadd.f32 %v6144, %v6475
        %v6477 = vpop.f32.mrf.mxu0
        %v6478 = vpop.f32.mrf.mxu0
        %v6479 = vadd.f32 %v6144, %v6478
        %v6480 = vpop.f32.mrf.mxu0
        %6481 = vmatprep.mubr.bf16.mxu0 %v6332
        %6482 = vmatmul.mubr.bf16.gmra.mxu0 %v6269
        %v6483 = vpop.f32.mrf.mxu0
        %v6484 = vadd.f32 %v6144, %v6483
        %v6485 = vpop.f32.mrf.mxu0
        %v6486 = vpop.f32.mrf.mxu0
        %v6487 = vadd.f32 %v6144, %v6486
        %v6488 = vpop.f32.mrf.mxu0
        %6489 = vmatprep.mubr.bf16.mxu0 %v6335
        %6490 = vmatmul.mubr.bf16.gmra.mxu0 %v6271
        %v6491 = vpop.f32.mrf.mxu0
        %v6492 = vadd.f32 %v6144, %v6491
        %v6493 = vpop.f32.mrf.mxu0
        %v6494 = vpop.f32.mrf.mxu0
        %v6495 = vadd.f32 %v6144, %v6494
        %v6496 = vpop.f32.mrf.mxu0
        %6497 = vdwg.mxu0
        %v6498 = vadd.f32 %v6372, %v3466
        %v6499 = vadd.f32 %v6375, %v3467
        %v6500 = vadd.f32 %v6380, %v3468
        %v6501 = vadd.f32 %v6383, %v3469
        %v6502 = vadd.f32 %v6388, %v3470
        %v6503 = vadd.f32 %v6391, %v3471
        %v6504 = vadd.f32 %v6396, %v3472
        %v6505 = vadd.f32 %v6399, %v3473
        %v6506 = vadd.f32 %v6404, %v3474
        %v6507 = vadd.f32 %v6407, %v3475
        %v6508 = vadd.f32 %v6412, %v3476
        %v6509 = vadd.f32 %v6415, %v3477
        %v6510 = vadd.f32 %v6420, %v3478
        %v6511 = vadd.f32 %v6423, %v3479
        %v6512 = vadd.f32 %v6428, %v3480
        %v6513 = vadd.f32 %v6431, %v3481
        %v6514 = vadd.f32 %v6436, %v3482
        %v6515 = vadd.f32 %v6439, %v3483
        %v6516 = vadd.f32 %v6444, %v3484
        %v6517 = vadd.f32 %v6447, %v3485
        %v6518 = vadd.f32 %v6452, %v3486
        %v6519 = vadd.f32 %v6455, %v3487
        %v6520 = vadd.f32 %v6460, %v3488
        %v6521 = vadd.f32 %v6463, %v3489
        %v6522 = vadd.f32 %v6468, %v3490
        %v6523 = vadd.f32 %v6471, %v3491
        %v6524 = vadd.f32 %v6476, %v3492
        %v6525 = vadd.f32 %v6479, %v3493
        %v6526 = vadd.f32 %v6484, %v3494
        %v6527 = vadd.f32 %v6487, %v3495
        %v6528 = vadd.f32 %v6492, %v3496
        %v6529 = vadd.f32 %v6495, %v3497
        %v6530 = vpack.c.bf16 %v6499, %v6498
        %v6531 = vpack.c.bf16 %v6501, %v6500
        %v6532 = vpack.c.bf16 %v6503, %v6502
        %v6533 = vpack.c.bf16 %v6505, %v6504
        %v6534 = vpack.c.bf16 %v6507, %v6506
        %v6535 = vpack.c.bf16 %v6509, %v6508
        %v6536 = vpack.c.bf16 %v6511, %v6510
        %v6537 = vpack.c.bf16 %v6513, %v6512
        %v6538 = vpack.c.bf16 %v6515, %v6514
        %v6539 = vpack.c.bf16 %v6517, %v6516
        %v6540 = vpack.c.bf16 %v6519, %v6518
        %v6541 = vpack.c.bf16 %v6521, %v6520
        %v6542 = vpack.c.bf16 %v6523, %v6522
        %v6543 = vpack.c.bf16 %v6525, %v6524
        %v6544 = vpack.c.bf16 %v6527, %v6526
        %v6545 = vpack.c.bf16 %v6529, %v6528
        %v6546 = vld [vmem:[%s1 + $0x3c8] sm:$0xff]
        %v6547 = vld [vmem:[%s1 + $0x3d0] sm:$0xff]
        %v6548 = vld [vmem:[%s1 + $0x3d8] sm:$0xff]
        %v6549 = vld [vmem:[%s1 + $0x3e0] sm:$0xff]
        %v6550 = vpack.c.bf16 %v6547, %v6546
        %v6551 = vpack.c.bf16 %v6549, %v6548
        %v6552 = vld [vmem:[#allocation3 + $0xb] sm:$0x1]
        %v6553 = vlaneseq
        %v6554 = vshrl.u32 %v6553, 7
        %v6555 = vsub.s32 0, %v6554
        %v6556 = vrot.slane %v6552, %v6555
        %v6558 = vsel %vm743, %v6530, 0
        %v6561 = vsel %vm743, %v6531, 0
        %v6564 = vsel %vm743, %v6532, 0
        %v6567 = vsel %vm743, %v6533, 0
        %v6570 = vsel %vm743, %v6534, 0
        %v6573 = vsel %vm743, %v6535, 0
        %v6576 = vsel %vm743, %v6536, 0
        %v6579 = vsel %vm743, %v6537, 0
        %v6582 = vsel %vm743, %v6538, 0
        %v6585 = vsel %vm743, %v6539, 0
        %v6588 = vsel %vm743, %v6540, 0
        %v6591 = vsel %vm743, %v6541, 0
        %v6594 = vsel %vm743, %v6542, 0
        %v6597 = vsel %vm743, %v6543, 0
        %v6600 = vsel %vm743, %v6544, 0
        %v6603 = vsel %vm743, %v6545, 0
        %6605 = vmatprep.subr.bf16.mxu0 0
        %6606 = vmatpush1.bf16.msra.mxu0 0
        %6607 = vmatprep.subr.bf16.mxu0 0
        %6608 = vmatpush1.bf16.msra.mxu0 0
        %6609 = vmatprep.subr.bf16.mxu0 0
        %6610 = vmatpush1.bf16.msra.mxu0 0
        %6611 = vmatprep.subr.bf16.mxu0 0
        %6612 = vmatpush1.bf16.msra.mxu0 0
        %6613 = vmatprep.subr.bf16.mxu0 0
        %6614 = vmatpush1.bf16.msra.mxu0 0
        %6615 = vmatprep.subr.bf16.mxu0 0
        %6616 = vmatpush1.bf16.msra.mxu0 0
        %6617 = vmatprep.subr.bf16.mxu0 0
        %6618 = vmatpush1.bf16.msra.mxu0 %v6551
        %6619 = vmatprep.subr.bf16.mxu0 0
        %6620 = vmatpush1.bf16.msra.mxu0 %v6550
        %6621 = vmatprep.subr.bf16.mxu0 0
        %6622 = vmatpush2.bf16.msra.mxu0 0
        %6623 = vmatprep.subr.bf16.mxu0 0
        %6624 = vmatpush2.bf16.msra.mxu0 0
        %6625 = vmatprep.subr.bf16.mxu0 0
        %6626 = vmatpush2.bf16.msra.mxu0 0
        %6627 = vmatprep.subr.bf16.mxu0 0
        %6628 = vmatpush2.bf16.msra.mxu0 0
        %6629 = vmatprep.subr.bf16.mxu0 0
        %6630 = vmatpush2.bf16.msra.mxu0 0
        %6631 = vmatprep.subr.bf16.mxu0 0
        %6632 = vmatpush2.bf16.msra.mxu0 0
        %6633 = vmatprep.subr.bf16.mxu0 0
        %6634 = vmatpush2.bf16.msra.mxu0 0
        %6635 = vmatprep.subr.bf16.mxu0 0
        %6636 = vmatpush2.bf16.msra.mxu0 0
        %6637 = vmatprep.mubr.bf16.mxu0 0
        %6638 = vmatmul.mubr.bf16.gmra.mxu0 %v6558
        %v6639 = vpop.f32.mrf.mxu0
        %v6640 = vadd.f32 %v6556, %v6639
        %v6641 = vpop.f32.mrf.mxu0
        %v6642 = vpop.f32.mrf.mxu0
        %v6643 = vadd.f32 %v6556, %v6642
        %v6644 = vpop.f32.mrf.mxu0
        %6645 = vmatprep.mubr.bf16.mxu0 0
        %6646 = vmatmul.mubr.bf16.gmra.mxu0 %v6561
        %v6647 = vpop.f32.mrf.mxu0
        %v6648 = vadd.f32 %v6556, %v6647
        %v6649 = vpop.f32.mrf.mxu0
        %v6650 = vpop.f32.mrf.mxu0
        %v6651 = vadd.f32 %v6556, %v6650
        %v6652 = vpop.f32.mrf.mxu0
        %6653 = vmatprep.mubr.bf16.mxu0 0
        %6654 = vmatmul.mubr.bf16.gmra.mxu0 %v6564
        %v6655 = vpop.f32.mrf.mxu0
        %v6656 = vadd.f32 %v6556, %v6655
        %v6657 = vpop.f32.mrf.mxu0
        %v6658 = vpop.f32.mrf.mxu0
        %v6659 = vadd.f32 %v6556, %v6658
        %v6660 = vpop.f32.mrf.mxu0
        %6661 = vmatprep.mubr.bf16.mxu0 0
        %6662 = vmatmul.mubr.bf16.gmra.mxu0 %v6567
        %v6663 = vpop.f32.mrf.mxu0
        %v6664 = vadd.f32 %v6556, %v6663
        %v6665 = vpop.f32.mrf.mxu0
        %v6666 = vpop.f32.mrf.mxu0
        %v6667 = vadd.f32 %v6556, %v6666
        %v6668 = vpop.f32.mrf.mxu0
        %6669 = vmatprep.mubr.bf16.mxu0 0
        %6670 = vmatmul.mubr.bf16.gmra.mxu0 %v6570
        %v6671 = vpop.f32.mrf.mxu0
        %v6672 = vadd.f32 %v6556, %v6671
        %v6673 = vpop.f32.mrf.mxu0
        %v6674 = vpop.f32.mrf.mxu0
        %v6675 = vadd.f32 %v6556, %v6674
        %v6676 = vpop.f32.mrf.mxu0
        %6677 = vmatprep.mubr.bf16.mxu0 0
        %6678 = vmatmul.mubr.bf16.gmra.mxu0 %v6573
        %v6679 = vpop.f32.mrf.mxu0
        %v6680 = vadd.f32 %v6556, %v6679
        %v6681 = vpop.f32.mrf.mxu0
        %v6682 = vpop.f32.mrf.mxu0
        %v6683 = vadd.f32 %v6556, %v6682
        %v6684 = vpop.f32.mrf.mxu0
        %6685 = vmatprep.mubr.bf16.mxu0 0
        %6686 = vmatmul.mubr.bf16.gmra.mxu0 %v6576
        %v6687 = vpop.f32.mrf.mxu0
        %v6688 = vadd.f32 %v6556, %v6687
        %v6689 = vpop.f32.mrf.mxu0
        %v6690 = vpop.f32.mrf.mxu0
        %v6691 = vadd.f32 %v6556, %v6690
        %v6692 = vpop.f32.mrf.mxu0
        %6693 = vmatprep.mubr.bf16.mxu0 0
        %6694 = vmatmul.mubr.bf16.gmra.mxu0 %v6579
        %v6695 = vpop.f32.mrf.mxu0
        %v6696 = vadd.f32 %v6556, %v6695
        %v6697 = vpop.f32.mrf.mxu0
        %v6698 = vpop.f32.mrf.mxu0
        %v6699 = vadd.f32 %v6556, %v6698
        %v6700 = vpop.f32.mrf.mxu0
        %6701 = vmatprep.mubr.bf16.mxu0 0
        %6702 = vmatmul.mubr.bf16.gmra.mxu0 %v6582
        %v6703 = vpop.f32.mrf.mxu0
        %v6704 = vadd.f32 %v6556, %v6703
        %v6705 = vpop.f32.mrf.mxu0
        %v6706 = vpop.f32.mrf.mxu0
        %v6707 = vadd.f32 %v6556, %v6706
        %v6708 = vpop.f32.mrf.mxu0
        %6709 = vmatprep.mubr.bf16.mxu0 0
        %6710 = vmatmul.mubr.bf16.gmra.mxu0 %v6585
        %v6711 = vpop.f32.mrf.mxu0
        %v6712 = vadd.f32 %v6556, %v6711
        %v6713 = vpop.f32.mrf.mxu0
        %v6714 = vpop.f32.mrf.mxu0
        %v6715 = vadd.f32 %v6556, %v6714
        %v6716 = vpop.f32.mrf.mxu0
        %6717 = vmatprep.mubr.bf16.mxu0 0
        %6718 = vmatmul.mubr.bf16.gmra.mxu0 %v6588
        %v6719 = vpop.f32.mrf.mxu0
        %v6720 = vadd.f32 %v6556, %v6719
        %v6721 = vpop.f32.mrf.mxu0
        %v6722 = vpop.f32.mrf.mxu0
        %v6723 = vadd.f32 %v6556, %v6722
        %v6724 = vpop.f32.mrf.mxu0
        %6725 = vmatprep.mubr.bf16.mxu0 0
        %6726 = vmatmul.mubr.bf16.gmra.mxu0 %v6591
        %v6727 = vpop.f32.mrf.mxu0
        %v6728 = vadd.f32 %v6556, %v6727
        %v6729 = vpop.f32.mrf.mxu0
        %v6730 = vpop.f32.mrf.mxu0
        %v6731 = vadd.f32 %v6556, %v6730
        %v6732 = vpop.f32.mrf.mxu0
        %6733 = vmatprep.mubr.bf16.mxu0 0
        %6734 = vmatmul.mubr.bf16.gmra.mxu0 %v6594
        %v6735 = vpop.f32.mrf.mxu0
        %v6736 = vadd.f32 %v6556, %v6735
        %v6737 = vpop.f32.mrf.mxu0
        %v6738 = vpop.f32.mrf.mxu0
        %v6739 = vadd.f32 %v6556, %v6738
        %v6740 = vpop.f32.mrf.mxu0
        %6741 = vmatprep.mubr.bf16.mxu0 0
        %6742 = vmatmul.mubr.bf16.gmra.mxu0 %v6597
        %v6743 = vpop.f32.mrf.mxu0
        %v6744 = vadd.f32 %v6556, %v6743
        %v6745 = vpop.f32.mrf.mxu0
        %v6746 = vpop.f32.mrf.mxu0
        %v6747 = vadd.f32 %v6556, %v6746
        %v6748 = vpop.f32.mrf.mxu0
        %6749 = vmatprep.mubr.bf16.mxu0 0
        %6750 = vmatmul.mubr.bf16.gmra.mxu0 %v6600
        %v6751 = vpop.f32.mrf.mxu0
        %v6752 = vadd.f32 %v6556, %v6751
        %v6753 = vpop.f32.mrf.mxu0
        %v6754 = vpop.f32.mrf.mxu0
        %v6755 = vadd.f32 %v6556, %v6754
        %v6756 = vpop.f32.mrf.mxu0
        %6757 = vmatprep.mubr.bf16.mxu0 0
        %6758 = vmatmul.mubr.bf16.gmra.mxu0 %v6603
        %v6759 = vpop.f32.mrf.mxu0
        %v6760 = vadd.f32 %v6556, %v6759
        %v6761 = vpop.f32.mrf.mxu0
        %v6762 = vpop.f32.mrf.mxu0
        %v6763 = vadd.f32 %v6556, %v6762
        %v6764 = vpop.f32.mrf.mxu0
        %6765 = vdwg.mxu0
        %v6766 = vadd.f32 %v333, %v6640
        %v6767 = vadd.f32 %v336, %v6643
        %v6768 = vadd.f32 %v341, %v6648
        %v6769 = vadd.f32 %v344, %v6651
        %v6770 = vadd.f32 %v349, %v6656
        %v6771 = vadd.f32 %v352, %v6659
        %v6772 = vadd.f32 %v357, %v6664
        %v6773 = vadd.f32 %v360, %v6667
        %v6774 = vadd.f32 %v365, %v6672
        %v6775 = vadd.f32 %v368, %v6675
        %v6776 = vadd.f32 %v373, %v6680
        %v6777 = vadd.f32 %v376, %v6683
        %v6778 = vadd.f32 %v381, %v6688
        %v6779 = vadd.f32 %v384, %v6691
        %v6780 = vadd.f32 %v389, %v6696
        %v6781 = vadd.f32 %v392, %v6699
        %v6782 = vadd.f32 %v397, %v6704
        %v6783 = vadd.f32 %v400, %v6707
        %v6784 = vadd.f32 %v405, %v6712
        %v6785 = vadd.f32 %v408, %v6715
        %v6786 = vadd.f32 %v413, %v6720
        %v6787 = vadd.f32 %v416, %v6723
        %v6788 = vadd.f32 %v421, %v6728
        %v6789 = vadd.f32 %v424, %v6731
        %v6790 = vadd.f32 %v429, %v6736
        %v6791 = vadd.f32 %v432, %v6739
        %v6792 = vadd.f32 %v437, %v6744
        %v6793 = vadd.f32 %v440, %v6747
        %v6794 = vadd.f32 %v445, %v6752
        %v6795 = vadd.f32 %v448, %v6755
        %v6796 = vadd.f32 %v453, %v6760
        %v6797 = vadd.f32 %v456, %v6763
        %v6798 = vld [vmem:[%s1 + $0x3e8] sm:$0xff]
        %v6799 = vld [vmem:[%s1 + $0x3f0] sm:$0xff]
        %v6800 = vld [vmem:[%s1 + $0x3f8] sm:$0xff]
        %v6801 = vld [vmem:[%s1 + $0x400] sm:$0xff]
        %v6802 = vpack.c.bf16 %v6799, %v6798
        %v6803 = vpack.c.bf16 %v6801, %v6800
        %v6804 = vld [vmem:[#allocation3 + $0xc] sm:$0x1]
        %v6805 = vpack.c.bf16 %v6767, %v6766
        %v6806 = vpack.c.bf16 %v6769, %v6768
        %v6807 = vpack.c.bf16 %v6771, %v6770
        %v6808 = vpack.c.bf16 %v6773, %v6772
        %v6809 = vpack.c.bf16 %v6775, %v6774
        %v6810 = vpack.c.bf16 %v6777, %v6776
        %v6811 = vpack.c.bf16 %v6779, %v6778
        %v6812 = vpack.c.bf16 %v6781, %v6780
        %v6813 = vpack.c.bf16 %v6783, %v6782
        %v6814 = vpack.c.bf16 %v6785, %v6784
        %v6815 = vpack.c.bf16 %v6787, %v6786
        %v6816 = vpack.c.bf16 %v6789, %v6788
        %v6817 = vpack.c.bf16 %v6791, %v6790
        %v6818 = vpack.c.bf16 %v6793, %v6792
        %v6819 = vpack.c.bf16 %v6795, %v6794
        %v6820 = vpack.c.bf16 %v6797, %v6796
        %v6821 = vlaneseq
        %v6822 = vshrl.u32 %v6821, 7
        %v6823 = vsub.s32 0, %v6822
        %v6824 = vrot.slane %v6804, %v6823
        %v6826 = vsel %vm743, %v6805, 0
        %v6829 = vsel %vm743, %v6806, 0
        %v6832 = vsel %vm743, %v6807, 0
        %v6835 = vsel %vm743, %v6808, 0
        %v6838 = vsel %vm743, %v6809, 0
        %v6841 = vsel %vm743, %v6810, 0
        %v6844 = vsel %vm743, %v6811, 0
        %v6847 = vsel %vm743, %v6812, 0
        %v6850 = vsel %vm743, %v6813, 0
        %v6853 = vsel %vm743, %v6814, 0
        %v6856 = vsel %vm743, %v6815, 0
        %v6859 = vsel %vm743, %v6816, 0
        %v6862 = vsel %vm743, %v6817, 0
        %v6865 = vsel %vm743, %v6818, 0
        %v6868 = vsel %vm743, %v6819, 0
        %v6871 = vsel %vm743, %v6820, 0
        %6873 = vmatprep.subr.bf16.mxu0 0
        %6874 = vmatpush1.bf16.msra.mxu0 0
        %6875 = vmatprep.subr.bf16.mxu0 0
        %6876 = vmatpush1.bf16.msra.mxu0 0
        %6877 = vmatprep.subr.bf16.mxu0 0
        %6878 = vmatpush1.bf16.msra.mxu0 0
        %6879 = vmatprep.subr.bf16.mxu0 0
        %6880 = vmatpush1.bf16.msra.mxu0 0
        %6881 = vmatprep.subr.bf16.mxu0 0
        %6882 = vmatpush1.bf16.msra.mxu0 0
        %6883 = vmatprep.subr.bf16.mxu0 0
        %6884 = vmatpush1.bf16.msra.mxu0 0
        %6885 = vmatprep.subr.bf16.mxu0 0
        %6886 = vmatpush1.bf16.msra.mxu0 %v6803
        %6887 = vmatprep.subr.bf16.mxu0 0
        %6888 = vmatpush1.bf16.msra.mxu0 %v6802
        %6889 = vmatprep.subr.bf16.mxu0 0
        %6890 = vmatpush2.bf16.msra.mxu0 0
        %6891 = vmatprep.subr.bf16.mxu0 0
        %6892 = vmatpush2.bf16.msra.mxu0 0
        %6893 = vmatprep.subr.bf16.mxu0 0
        %6894 = vmatpush2.bf16.msra.mxu0 0
        %6895 = vmatprep.subr.bf16.mxu0 0
        %6896 = vmatpush2.bf16.msra.mxu0 0
        %6897 = vmatprep.subr.bf16.mxu0 0
        %6898 = vmatpush2.bf16.msra.mxu0 0
        %6899 = vmatprep.subr.bf16.mxu0 0
        %6900 = vmatpush2.bf16.msra.mxu0 0
        %6901 = vmatprep.subr.bf16.mxu0 0
        %6902 = vmatpush2.bf16.msra.mxu0 0
        %6903 = vmatprep.subr.bf16.mxu0 0
        %6904 = vmatpush2.bf16.msra.mxu0 0
        %6905 = vmatprep.mubr.bf16.mxu0 0
        %6906 = vmatmul.mubr.bf16.gmra.mxu0 %v6826
        %v6907 = vpop.f32.mrf.mxu0
        %v6908 = vadd.f32 %v6824, %v6907
        %v6909 = vpop.f32.mrf.mxu0
        %v6910 = vpop.f32.mrf.mxu0
        %v6911 = vadd.f32 %v6824, %v6910
        %v6912 = vpop.f32.mrf.mxu0
        %6913 = vmatprep.mubr.bf16.mxu0 0
        %6914 = vmatmul.mubr.bf16.gmra.mxu0 %v6829
        %v6915 = vpop.f32.mrf.mxu0
        %v6916 = vadd.f32 %v6824, %v6915
        %v6917 = vpop.f32.mrf.mxu0
        %v6918 = vpop.f32.mrf.mxu0
        %v6919 = vadd.f32 %v6824, %v6918
        %v6920 = vpop.f32.mrf.mxu0
        %6921 = vmatprep.mubr.bf16.mxu0 0
        %6922 = vmatmul.mubr.bf16.gmra.mxu0 %v6832
        %v6923 = vpop.f32.mrf.mxu0
        %v6924 = vadd.f32 %v6824, %v6923
        %v6925 = vpop.f32.mrf.mxu0
        %v6926 = vpop.f32.mrf.mxu0
        %v6927 = vadd.f32 %v6824, %v6926
        %v6928 = vpop.f32.mrf.mxu0
        %6929 = vmatprep.mubr.bf16.mxu0 0
        %6930 = vmatmul.mubr.bf16.gmra.mxu0 %v6835
        %v6931 = vpop.f32.mrf.mxu0
        %v6932 = vadd.f32 %v6824, %v6931
        %v6933 = vpop.f32.mrf.mxu0
        %v6934 = vpop.f32.mrf.mxu0
        %v6935 = vadd.f32 %v6824, %v6934
        %v6936 = vpop.f32.mrf.mxu0
        %6937 = vmatprep.mubr.bf16.mxu0 0
        %6938 = vmatmul.mubr.bf16.gmra.mxu0 %v6838
        %v6939 = vpop.f32.mrf.mxu0
        %v6940 = vadd.f32 %v6824, %v6939
        %v6941 = vpop.f32.mrf.mxu0
        %v6942 = vpop.f32.mrf.mxu0
        %v6943 = vadd.f32 %v6824, %v6942
        %v6944 = vpop.f32.mrf.mxu0
        %6945 = vmatprep.mubr.bf16.mxu0 0
        %6946 = vmatmul.mubr.bf16.gmra.mxu0 %v6841
        %v6947 = vpop.f32.mrf.mxu0
        %v6948 = vadd.f32 %v6824, %v6947
        %v6949 = vpop.f32.mrf.mxu0
        %v6950 = vpop.f32.mrf.mxu0
        %v6951 = vadd.f32 %v6824, %v6950
        %v6952 = vpop.f32.mrf.mxu0
        %6953 = vmatprep.mubr.bf16.mxu0 0
        %6954 = vmatmul.mubr.bf16.gmra.mxu0 %v6844
        %v6955 = vpop.f32.mrf.mxu0
        %v6956 = vadd.f32 %v6824, %v6955
        %v6957 = vpop.f32.mrf.mxu0
        %v6958 = vpop.f32.mrf.mxu0
        %v6959 = vadd.f32 %v6824, %v6958
        %v6960 = vpop.f32.mrf.mxu0
        %6961 = vmatprep.mubr.bf16.mxu0 0
        %6962 = vmatmul.mubr.bf16.gmra.mxu0 %v6847
        %v6963 = vpop.f32.mrf.mxu0
        %v6964 = vadd.f32 %v6824, %v6963
        %v6965 = vpop.f32.mrf.mxu0
        %v6966 = vpop.f32.mrf.mxu0
        %v6967 = vadd.f32 %v6824, %v6966
        %v6968 = vpop.f32.mrf.mxu0
        %6969 = vmatprep.mubr.bf16.mxu0 0
        %6970 = vmatmul.mubr.bf16.gmra.mxu0 %v6850
        %v6971 = vpop.f32.mrf.mxu0
        %v6972 = vadd.f32 %v6824, %v6971
        %v6973 = vpop.f32.mrf.mxu0
        %v6974 = vpop.f32.mrf.mxu0
        %v6975 = vadd.f32 %v6824, %v6974
        %v6976 = vpop.f32.mrf.mxu0
        %6977 = vmatprep.mubr.bf16.mxu0 0
        %6978 = vmatmul.mubr.bf16.gmra.mxu0 %v6853
        %v6979 = vpop.f32.mrf.mxu0
        %v6980 = vadd.f32 %v6824, %v6979
        %v6981 = vpop.f32.mrf.mxu0
        %v6982 = vpop.f32.mrf.mxu0
        %v6983 = vadd.f32 %v6824, %v6982
        %v6984 = vpop.f32.mrf.mxu0
        %6985 = vmatprep.mubr.bf16.mxu0 0
        %6986 = vmatmul.mubr.bf16.gmra.mxu0 %v6856
        %v6987 = vpop.f32.mrf.mxu0
        %v6988 = vadd.f32 %v6824, %v6987
        %v6989 = vpop.f32.mrf.mxu0
        %v6990 = vpop.f32.mrf.mxu0
        %v6991 = vadd.f32 %v6824, %v6990
        %v6992 = vpop.f32.mrf.mxu0
        %6993 = vmatprep.mubr.bf16.mxu0 0
        %6994 = vmatmul.mubr.bf16.gmra.mxu0 %v6859
        %v6995 = vpop.f32.mrf.mxu0
        %v6996 = vadd.f32 %v6824, %v6995
        %v6997 = vpop.f32.mrf.mxu0
        %v6998 = vpop.f32.mrf.mxu0
        %v6999 = vadd.f32 %v6824, %v6998
        %v7000 = vpop.f32.mrf.mxu0
        %7001 = vmatprep.mubr.bf16.mxu0 0
        %7002 = vmatmul.mubr.bf16.gmra.mxu0 %v6862
        %v7003 = vpop.f32.mrf.mxu0
        %v7004 = vadd.f32 %v6824, %v7003
        %v7005 = vpop.f32.mrf.mxu0
        %v7006 = vpop.f32.mrf.mxu0
        %v7007 = vadd.f32 %v6824, %v7006
        %v7008 = vpop.f32.mrf.mxu0
        %7009 = vmatprep.mubr.bf16.mxu0 0
        %7010 = vmatmul.mubr.bf16.gmra.mxu0 %v6865
        %v7011 = vpop.f32.mrf.mxu0
        %v7012 = vadd.f32 %v6824, %v7011
        %v7013 = vpop.f32.mrf.mxu0
        %v7014 = vpop.f32.mrf.mxu0
        %v7015 = vadd.f32 %v6824, %v7014
        %v7016 = vpop.f32.mrf.mxu0
        %7017 = vmatprep.mubr.bf16.mxu0 0
        %7018 = vmatmul.mubr.bf16.gmra.mxu0 %v6868
        %v7019 = vpop.f32.mrf.mxu0
        %v7020 = vadd.f32 %v6824, %v7019
        %v7021 = vpop.f32.mrf.mxu0
        %v7022 = vpop.f32.mrf.mxu0
        %v7023 = vadd.f32 %v6824, %v7022
        %v7024 = vpop.f32.mrf.mxu0
        %7025 = vmatprep.mubr.bf16.mxu0 0
        %7026 = vmatmul.mubr.bf16.gmra.mxu0 %v6871
        %v7027 = vpop.f32.mrf.mxu0
        %v7028 = vadd.f32 %v6824, %v7027
        %v7029 = vpop.f32.mrf.mxu0
        %v7030 = vpop.f32.mrf.mxu0
        %v7031 = vadd.f32 %v6824, %v7030
        %v7032 = vpop.f32.mrf.mxu0
        %7033 = vdwg.mxu0
        %v7034 = vmul.f32 %v6908, 0.2
        %v7035 = vmul.f32 %v6911, 0.2
        %v7036 = vmul.f32 %v6916, 0.2
        %v7037 = vmul.f32 %v6919, 0.2
        %v7038 = vmul.f32 %v6924, 0.2
        %v7039 = vmul.f32 %v6927, 0.2
        %v7040 = vmul.f32 %v6932, 0.2
        %v7041 = vmul.f32 %v6935, 0.2
        %v7042 = vmul.f32 %v6940, 0.2
        %v7043 = vmul.f32 %v6943, 0.2
        %v7044 = vmul.f32 %v6948, 0.2
        %v7045 = vmul.f32 %v6951, 0.2
        %v7046 = vmul.f32 %v6956, 0.2
        %v7047 = vmul.f32 %v6959, 0.2
        %v7048 = vmul.f32 %v6964, 0.2
        %v7049 = vmul.f32 %v6967, 0.2
        %v7050 = vmul.f32 %v6972, 0.2
        %v7051 = vmul.f32 %v6975, 0.2
        %v7052 = vmul.f32 %v6980, 0.2
        %v7053 = vmul.f32 %v6983, 0.2
        %v7054 = vmul.f32 %v6988, 0.2
        %v7055 = vmul.f32 %v6991, 0.2
        %v7056 = vmul.f32 %v6996, 0.2
        %v7057 = vmul.f32 %v6999, 0.2
        %v7058 = vmul.f32 %v7004, 0.2
        %v7059 = vmul.f32 %v7007, 0.2
        %v7060 = vmul.f32 %v7012, 0.2
        %v7061 = vmul.f32 %v7015, 0.2
        %v7062 = vmul.f32 %v7020, 0.2
        %v7063 = vmul.f32 %v7023, 0.2
        %v7064 = vmul.f32 %v7028, 0.2
        %v7065 = vmul.f32 %v7031, 0.2
        %v7066 = vmax.f32 %v6908, %v7034
        %v7067 = vmax.f32 %v6911, %v7035
        %v7068 = vmax.f32 %v6916, %v7036
        %v7069 = vmax.f32 %v6919, %v7037
        %v7070 = vmax.f32 %v6924, %v7038
        %v7071 = vmax.f32 %v6927, %v7039
        %v7072 = vmax.f32 %v6932, %v7040
        %v7073 = vmax.f32 %v6935, %v7041
        %v7074 = vmax.f32 %v6940, %v7042
        %v7075 = vmax.f32 %v6943, %v7043
        %v7076 = vmax.f32 %v6948, %v7044
        %v7077 = vmax.f32 %v6951, %v7045
        %v7078 = vmax.f32 %v6956, %v7046
        %v7079 = vmax.f32 %v6959, %v7047
        %v7080 = vmax.f32 %v6964, %v7048
        %v7081 = vmax.f32 %v6967, %v7049
        %v7082 = vmax.f32 %v6972, %v7050
        %v7083 = vmax.f32 %v6975, %v7051
        %v7084 = vmax.f32 %v6980, %v7052
        %v7085 = vmax.f32 %v6983, %v7053
        %v7086 = vmax.f32 %v6988, %v7054
        %v7087 = vmax.f32 %v6991, %v7055
        %v7088 = vmax.f32 %v6996, %v7056
        %v7089 = vmax.f32 %v6999, %v7057
        %v7090 = vmax.f32 %v7004, %v7058
        %v7091 = vmax.f32 %v7007, %v7059
        %v7092 = vmax.f32 %v7012, %v7060
        %v7093 = vmax.f32 %v7015, %v7061
        %v7094 = vmax.f32 %v7020, %v7062
        %v7095 = vmax.f32 %v7023, %v7063
        %v7096 = vmax.f32 %v7028, %v7064
        %v7097 = vmax.f32 %v7031, %v7065
        %v7098 = vpack.c.bf16 %v7067, %v7066
        %v7099 = vpack.c.bf16 %v7069, %v7068
        %v7100 = vpack.c.bf16 %v7071, %v7070
        %v7101 = vpack.c.bf16 %v7073, %v7072
        %v7102 = vpack.c.bf16 %v7075, %v7074
        %v7103 = vpack.c.bf16 %v7077, %v7076
        %v7104 = vpack.c.bf16 %v7079, %v7078
        %v7105 = vpack.c.bf16 %v7081, %v7080
        %v7106 = vpack.c.bf16 %v7083, %v7082
        %v7107 = vpack.c.bf16 %v7085, %v7084
        %v7108 = vpack.c.bf16 %v7087, %v7086
        %v7109 = vpack.c.bf16 %v7089, %v7088
        %v7110 = vpack.c.bf16 %v7091, %v7090
        %v7111 = vpack.c.bf16 %v7093, %v7092
        %v7112 = vpack.c.bf16 %v7095, %v7094
        %v7113 = vpack.c.bf16 %v7097, %v7096
        %v7115 = vsel %vm743, %v7098, 0
        %v7118 = vsel %vm743, %v7099, 0
        %v7121 = vsel %vm743, %v7100, 0
        %v7124 = vsel %vm743, %v7101, 0
        %v7127 = vsel %vm743, %v7102, 0
        %v7130 = vsel %vm743, %v7103, 0
        %v7133 = vsel %vm743, %v7104, 0
        %v7136 = vsel %vm743, %v7105, 0
        %v7139 = vsel %vm743, %v7106, 0
        %v7142 = vsel %vm743, %v7107, 0
        %v7145 = vsel %vm743, %v7108, 0
        %v7148 = vsel %vm743, %v7109, 0
        %v7151 = vsel %vm743, %v7110, 0
        %v7154 = vsel %vm743, %v7111, 0
        %v7157 = vsel %vm743, %v7112, 0
        %v7160 = vsel %vm743, %v7113, 0
        %7162 = vmatprep.subr.bf16.mxu0 0
        %7163 = vmatpush1.bf16.msra.mxu0 0
        %7164 = vmatprep.subr.bf16.mxu0 0
        %7165 = vmatpush1.bf16.msra.mxu0 0
        %7166 = vmatprep.subr.bf16.mxu0 0
        %7167 = vmatpush1.bf16.msra.mxu0 0
        %7168 = vmatprep.subr.bf16.mxu0 0
        %7169 = vmatpush1.bf16.msra.mxu0 0
        %7170 = vmatprep.subr.bf16.mxu0 0
        %7171 = vmatpush1.bf16.msra.mxu0 0
        %7172 = vmatprep.subr.bf16.mxu0 0
        %7173 = vmatpush1.bf16.msra.mxu0 0
        %7174 = vmatprep.subr.bf16.mxu0 0
        %7175 = vmatpush1.bf16.msra.mxu0 %v6803
        %7176 = vmatprep.subr.bf16.mxu0 0
        %7177 = vmatpush1.bf16.msra.mxu0 %v6802
        %7178 = vmatprep.subr.bf16.mxu0 0
        %7179 = vmatpush2.bf16.msra.mxu0 0
        %7180 = vmatprep.subr.bf16.mxu0 0
        %7181 = vmatpush2.bf16.msra.mxu0 0
        %7182 = vmatprep.subr.bf16.mxu0 0
        %7183 = vmatpush2.bf16.msra.mxu0 0
        %7184 = vmatprep.subr.bf16.mxu0 0
        %7185 = vmatpush2.bf16.msra.mxu0 0
        %7186 = vmatprep.subr.bf16.mxu0 0
        %7187 = vmatpush2.bf16.msra.mxu0 0
        %7188 = vmatprep.subr.bf16.mxu0 0
        %7189 = vmatpush2.bf16.msra.mxu0 0
        %7190 = vmatprep.subr.bf16.mxu0 0
        %7191 = vmatpush2.bf16.msra.mxu0 0
        %7192 = vmatprep.subr.bf16.mxu0 0
        %7193 = vmatpush2.bf16.msra.mxu0 0
        %7194 = vmatprep.mubr.bf16.mxu0 0
        %7195 = vmatmul.mubr.bf16.gmra.mxu0 %v7115
        %v7196 = vpop.f32.mrf.mxu0
        %v7197 = vadd.f32 %v6824, %v7196
        %v7198 = vpop.f32.mrf.mxu0
        %v7199 = vpop.f32.mrf.mxu0
        %v7200 = vadd.f32 %v6824, %v7199
        %v7201 = vpop.f32.mrf.mxu0
        %7202 = vmatprep.mubr.bf16.mxu0 0
        %7203 = vmatmul.mubr.bf16.gmra.mxu0 %v7118
        %v7204 = vpop.f32.mrf.mxu0
        %v7205 = vadd.f32 %v6824, %v7204
        %v7206 = vpop.f32.mrf.mxu0
        %v7207 = vpop.f32.mrf.mxu0
        %v7208 = vadd.f32 %v6824, %v7207
        %v7209 = vpop.f32.mrf.mxu0
        %7210 = vmatprep.mubr.bf16.mxu0 0
        %7211 = vmatmul.mubr.bf16.gmra.mxu0 %v7121
        %v7212 = vpop.f32.mrf.mxu0
        %v7213 = vadd.f32 %v6824, %v7212
        %v7214 = vpop.f32.mrf.mxu0
        %v7215 = vpop.f32.mrf.mxu0
        %v7216 = vadd.f32 %v6824, %v7215
        %v7217 = vpop.f32.mrf.mxu0
        %7218 = vmatprep.mubr.bf16.mxu0 0
        %7219 = vmatmul.mubr.bf16.gmra.mxu0 %v7124
        %v7220 = vpop.f32.mrf.mxu0
        %v7221 = vadd.f32 %v6824, %v7220
        %v7222 = vpop.f32.mrf.mxu0
        %v7223 = vpop.f32.mrf.mxu0
        %v7224 = vadd.f32 %v6824, %v7223
        %v7225 = vpop.f32.mrf.mxu0
        %7226 = vmatprep.mubr.bf16.mxu0 0
        %7227 = vmatmul.mubr.bf16.gmra.mxu0 %v7127
        %v7228 = vpop.f32.mrf.mxu0
        %v7229 = vadd.f32 %v6824, %v7228
        %v7230 = vpop.f32.mrf.mxu0
        %v7231 = vpop.f32.mrf.mxu0
        %v7232 = vadd.f32 %v6824, %v7231
        %v7233 = vpop.f32.mrf.mxu0
        %7234 = vmatprep.mubr.bf16.mxu0 0
        %7235 = vmatmul.mubr.bf16.gmra.mxu0 %v7130
        %v7236 = vpop.f32.mrf.mxu0
        %v7237 = vadd.f32 %v6824, %v7236
        %v7238 = vpop.f32.mrf.mxu0
        %v7239 = vpop.f32.mrf.mxu0
        %v7240 = vadd.f32 %v6824, %v7239
        %v7241 = vpop.f32.mrf.mxu0
        %7242 = vmatprep.mubr.bf16.mxu0 0
        %7243 = vmatmul.mubr.bf16.gmra.mxu0 %v7133
        %v7244 = vpop.f32.mrf.mxu0
        %v7245 = vadd.f32 %v6824, %v7244
        %v7246 = vpop.f32.mrf.mxu0
        %v7247 = vpop.f32.mrf.mxu0
        %v7248 = vadd.f32 %v6824, %v7247
        %v7249 = vpop.f32.mrf.mxu0
        %7250 = vmatprep.mubr.bf16.mxu0 0
        %7251 = vmatmul.mubr.bf16.gmra.mxu0 %v7136
        %v7252 = vpop.f32.mrf.mxu0
        %v7253 = vadd.f32 %v6824, %v7252
        %v7254 = vpop.f32.mrf.mxu0
        %v7255 = vpop.f32.mrf.mxu0
        %v7256 = vadd.f32 %v6824, %v7255
        %v7257 = vpop.f32.mrf.mxu0
        %7258 = vmatprep.mubr.bf16.mxu0 0
        %7259 = vmatmul.mubr.bf16.gmra.mxu0 %v7139
        %v7260 = vpop.f32.mrf.mxu0
        %v7261 = vadd.f32 %v6824, %v7260
        %v7262 = vpop.f32.mrf.mxu0
        %v7263 = vpop.f32.mrf.mxu0
        %v7264 = vadd.f32 %v6824, %v7263
        %v7265 = vpop.f32.mrf.mxu0
        %7266 = vmatprep.mubr.bf16.mxu0 0
        %7267 = vmatmul.mubr.bf16.gmra.mxu0 %v7142
        %v7268 = vpop.f32.mrf.mxu0
        %v7269 = vadd.f32 %v6824, %v7268
        %v7270 = vpop.f32.mrf.mxu0
        %v7271 = vpop.f32.mrf.mxu0
        %v7272 = vadd.f32 %v6824, %v7271
        %v7273 = vpop.f32.mrf.mxu0
        %7274 = vmatprep.mubr.bf16.mxu0 0
        %7275 = vmatmul.mubr.bf16.gmra.mxu0 %v7145
        %v7276 = vpop.f32.mrf.mxu0
        %v7277 = vadd.f32 %v6824, %v7276
        %v7278 = vpop.f32.mrf.mxu0
        %v7279 = vpop.f32.mrf.mxu0
        %v7280 = vadd.f32 %v6824, %v7279
        %v7281 = vpop.f32.mrf.mxu0
        %7282 = vmatprep.mubr.bf16.mxu0 0
        %7283 = vmatmul.mubr.bf16.gmra.mxu0 %v7148
        %v7284 = vpop.f32.mrf.mxu0
        %v7285 = vadd.f32 %v6824, %v7284
        %v7286 = vpop.f32.mrf.mxu0
        %v7287 = vpop.f32.mrf.mxu0
        %v7288 = vadd.f32 %v6824, %v7287
        %v7289 = vpop.f32.mrf.mxu0
        %7290 = vmatprep.mubr.bf16.mxu0 0
        %7291 = vmatmul.mubr.bf16.gmra.mxu0 %v7151
        %v7292 = vpop.f32.mrf.mxu0
        %v7293 = vadd.f32 %v6824, %v7292
        %v7294 = vpop.f32.mrf.mxu0
        %v7295 = vpop.f32.mrf.mxu0
        %v7296 = vadd.f32 %v6824, %v7295
        %v7297 = vpop.f32.mrf.mxu0
        %7298 = vmatprep.mubr.bf16.mxu0 0
        %7299 = vmatmul.mubr.bf16.gmra.mxu0 %v7154
        %v7300 = vpop.f32.mrf.mxu0
        %v7301 = vadd.f32 %v6824, %v7300
        %v7302 = vpop.f32.mrf.mxu0
        %v7303 = vpop.f32.mrf.mxu0
        %v7304 = vadd.f32 %v6824, %v7303
        %v7305 = vpop.f32.mrf.mxu0
        %7306 = vmatprep.mubr.bf16.mxu0 0
        %7307 = vmatmul.mubr.bf16.gmra.mxu0 %v7157
        %v7308 = vpop.f32.mrf.mxu0
        %v7309 = vadd.f32 %v6824, %v7308
        %v7310 = vpop.f32.mrf.mxu0
        %v7311 = vpop.f32.mrf.mxu0
        %v7312 = vadd.f32 %v6824, %v7311
        %v7313 = vpop.f32.mrf.mxu0
        %7314 = vmatprep.mubr.bf16.mxu0 0
        %7315 = vmatmul.mubr.bf16.gmra.mxu0 %v7160
        %v7316 = vpop.f32.mrf.mxu0
        %v7317 = vadd.f32 %v6824, %v7316
        %v7318 = vpop.f32.mrf.mxu0
        %v7319 = vpop.f32.mrf.mxu0
        %v7320 = vadd.f32 %v6824, %v7319
        %v7321 = vpop.f32.mrf.mxu0
        %7322 = vdwg.mxu0
        %v7323 = vmul.f32 %v7197, 0.2
        %v7324 = vmul.f32 %v7200, 0.2
        %v7325 = vmul.f32 %v7205, 0.2
        %v7326 = vmul.f32 %v7208, 0.2
        %v7327 = vmul.f32 %v7213, 0.2
        %v7328 = vmul.f32 %v7216, 0.2
        %v7329 = vmul.f32 %v7221, 0.2
        %v7330 = vmul.f32 %v7224, 0.2
        %v7331 = vmul.f32 %v7229, 0.2
        %v7332 = vmul.f32 %v7232, 0.2
        %v7333 = vmul.f32 %v7237, 0.2
        %v7334 = vmul.f32 %v7240, 0.2
        %v7335 = vmul.f32 %v7245, 0.2
        %v7336 = vmul.f32 %v7248, 0.2
        %v7337 = vmul.f32 %v7253, 0.2
        %v7338 = vmul.f32 %v7256, 0.2
        %v7339 = vmul.f32 %v7261, 0.2
        %v7340 = vmul.f32 %v7264, 0.2
        %v7341 = vmul.f32 %v7269, 0.2
        %v7342 = vmul.f32 %v7272, 0.2
        %v7343 = vmul.f32 %v7277, 0.2
        %v7344 = vmul.f32 %v7280, 0.2
        %v7345 = vmul.f32 %v7285, 0.2
        %v7346 = vmul.f32 %v7288, 0.2
        %v7347 = vmul.f32 %v7293, 0.2
        %v7348 = vmul.f32 %v7296, 0.2
        %v7349 = vmul.f32 %v7301, 0.2
        %v7350 = vmul.f32 %v7304, 0.2
        %v7351 = vmul.f32 %v7309, 0.2
        %v7352 = vmul.f32 %v7312, 0.2
        %v7353 = vmul.f32 %v7317, 0.2
        %v7354 = vmul.f32 %v7320, 0.2
        %v7355 = vmax.f32 %v7197, %v7323
        %v7356 = vmax.f32 %v7200, %v7324
        %v7357 = vmax.f32 %v7205, %v7325
        %v7358 = vmax.f32 %v7208, %v7326
        %v7359 = vmax.f32 %v7213, %v7327
        %v7360 = vmax.f32 %v7216, %v7328
        %v7361 = vmax.f32 %v7221, %v7329
        %v7362 = vmax.f32 %v7224, %v7330
        %v7363 = vmax.f32 %v7229, %v7331
        %v7364 = vmax.f32 %v7232, %v7332
        %v7365 = vmax.f32 %v7237, %v7333
        %v7366 = vmax.f32 %v7240, %v7334
        %v7367 = vmax.f32 %v7245, %v7335
        %v7368 = vmax.f32 %v7248, %v7336
        %v7369 = vmax.f32 %v7253, %v7337
        %v7370 = vmax.f32 %v7256, %v7338
        %v7371 = vmax.f32 %v7261, %v7339
        %v7372 = vmax.f32 %v7264, %v7340
        %v7373 = vmax.f32 %v7269, %v7341
        %v7374 = vmax.f32 %v7272, %v7342
        %v7375 = vmax.f32 %v7277, %v7343
        %v7376 = vmax.f32 %v7280, %v7344
        %v7377 = vmax.f32 %v7285, %v7345
        %v7378 = vmax.f32 %v7288, %v7346
        %v7379 = vmax.f32 %v7293, %v7347
        %v7380 = vmax.f32 %v7296, %v7348
        %v7381 = vmax.f32 %v7301, %v7349
        %v7382 = vmax.f32 %v7304, %v7350
        %v7383 = vmax.f32 %v7309, %v7351
        %v7384 = vmax.f32 %v7312, %v7352
        %v7385 = vmax.f32 %v7317, %v7353
        %v7386 = vmax.f32 %v7320, %v7354
        %v7387 = vpack.c.bf16 %v7356, %v7355
        %v7388 = vpack.c.bf16 %v7358, %v7357
        %v7389 = vpack.c.bf16 %v7360, %v7359
        %v7390 = vpack.c.bf16 %v7362, %v7361
        %v7391 = vpack.c.bf16 %v7364, %v7363
        %v7392 = vpack.c.bf16 %v7366, %v7365
        %v7393 = vpack.c.bf16 %v7368, %v7367
        %v7394 = vpack.c.bf16 %v7370, %v7369
        %v7395 = vpack.c.bf16 %v7372, %v7371
        %v7396 = vpack.c.bf16 %v7374, %v7373
        %v7397 = vpack.c.bf16 %v7376, %v7375
        %v7398 = vpack.c.bf16 %v7378, %v7377
        %v7399 = vpack.c.bf16 %v7380, %v7379
        %v7400 = vpack.c.bf16 %v7382, %v7381
        %v7401 = vpack.c.bf16 %v7384, %v7383
        %v7402 = vpack.c.bf16 %v7386, %v7385
        %v7403 = vld [vmem:[%s1 + $0x408] sm:$0xff]
        %v7404 = vld [vmem:[%s1 + $0x410] sm:$0xff]
        %v7405 = vld [vmem:[%s1 + $0x418] sm:$0xff]
        %v7406 = vld [vmem:[%s1 + $0x420] sm:$0xff]
        %v7407 = vpack.c.bf16 %v7404, %v7403
        %v7408 = vpack.c.bf16 %v7406, %v7405
        %v7409 = vld [vmem:[#allocation3 + $0xd] sm:$0x1]
        %v7410 = vlaneseq
        %v7411 = vshrl.u32 %v7410, 7
        %v7412 = vsub.s32 0, %v7411
        %v7413 = vrot.slane %v7409, %v7412
        %v7415 = vsel %vm743, %v7387, 0
        %v7418 = vsel %vm743, %v7388, 0
        %v7421 = vsel %vm743, %v7389, 0
        %v7424 = vsel %vm743, %v7390, 0
        %v7427 = vsel %vm743, %v7391, 0
        %v7430 = vsel %vm743, %v7392, 0
        %v7433 = vsel %vm743, %v7393, 0
        %v7436 = vsel %vm743, %v7394, 0
        %v7439 = vsel %vm743, %v7395, 0
        %v7442 = vsel %vm743, %v7396, 0
        %v7445 = vsel %vm743, %v7397, 0
        %v7448 = vsel %vm743, %v7398, 0
        %v7451 = vsel %vm743, %v7399, 0
        %v7454 = vsel %vm743, %v7400, 0
        %v7457 = vsel %vm743, %v7401, 0
        %v7460 = vsel %vm743, %v7402, 0
        %7462 = vmatprep.subr.bf16.mxu0 0
        %7463 = vmatpush1.bf16.msra.mxu0 0
        %7464 = vmatprep.subr.bf16.mxu0 0
        %7465 = vmatpush1.bf16.msra.mxu0 0
        %7466 = vmatprep.subr.bf16.mxu0 0
        %7467 = vmatpush1.bf16.msra.mxu0 0
        %7468 = vmatprep.subr.bf16.mxu0 0
        %7469 = vmatpush1.bf16.msra.mxu0 0
        %7470 = vmatprep.subr.bf16.mxu0 0
        %7471 = vmatpush1.bf16.msra.mxu0 0
        %7472 = vmatprep.subr.bf16.mxu0 0
        %7473 = vmatpush1.bf16.msra.mxu0 0
        %7474 = vmatprep.subr.bf16.mxu0 0
        %7475 = vmatpush1.bf16.msra.mxu0 %v7408
        %7476 = vmatprep.subr.bf16.mxu0 0
        %7477 = vmatpush1.bf16.msra.mxu0 %v7407
        %7478 = vmatprep.subr.bf16.mxu0 0
        %7479 = vmatpush2.bf16.msra.mxu0 0
        %7480 = vmatprep.subr.bf16.mxu0 0
        %7481 = vmatpush2.bf16.msra.mxu0 0
        %7482 = vmatprep.subr.bf16.mxu0 0
        %7483 = vmatpush2.bf16.msra.mxu0 0
        %7484 = vmatprep.subr.bf16.mxu0 0
        %7485 = vmatpush2.bf16.msra.mxu0 0
        %7486 = vmatprep.subr.bf16.mxu0 0
        %7487 = vmatpush2.bf16.msra.mxu0 0
        %7488 = vmatprep.subr.bf16.mxu0 0
        %7489 = vmatpush2.bf16.msra.mxu0 0
        %7490 = vmatprep.subr.bf16.mxu0 0
        %7491 = vmatpush2.bf16.msra.mxu0 0
        %7492 = vmatprep.subr.bf16.mxu0 0
        %7493 = vmatpush2.bf16.msra.mxu0 0
        %7494 = vmatprep.mubr.bf16.mxu0 0
        %7495 = vmatmul.mubr.bf16.gmra.mxu0 %v7415
        %v7496 = vpop.f32.mrf.mxu0
        %v7497 = vadd.f32 %v7413, %v7496
        %v7498 = vpop.f32.mrf.mxu0
        %v7499 = vpop.f32.mrf.mxu0
        %v7500 = vadd.f32 %v7413, %v7499
        %v7501 = vpop.f32.mrf.mxu0
        %7502 = vmatprep.mubr.bf16.mxu0 0
        %7503 = vmatmul.mubr.bf16.gmra.mxu0 %v7418
        %v7504 = vpop.f32.mrf.mxu0
        %v7505 = vadd.f32 %v7413, %v7504
        %v7506 = vpop.f32.mrf.mxu0
        %v7507 = vpop.f32.mrf.mxu0
        %v7508 = vadd.f32 %v7413, %v7507
        %v7509 = vpop.f32.mrf.mxu0
        %7510 = vmatprep.mubr.bf16.mxu0 0
        %7511 = vmatmul.mubr.bf16.gmra.mxu0 %v7421
        %v7512 = vpop.f32.mrf.mxu0
        %v7513 = vadd.f32 %v7413, %v7512
        %v7514 = vpop.f32.mrf.mxu0
        %v7515 = vpop.f32.mrf.mxu0
        %v7516 = vadd.f32 %v7413, %v7515
        %v7517 = vpop.f32.mrf.mxu0
        %7518 = vmatprep.mubr.bf16.mxu0 0
        %7519 = vmatmul.mubr.bf16.gmra.mxu0 %v7424
        %v7520 = vpop.f32.mrf.mxu0
        %v7521 = vadd.f32 %v7413, %v7520
        %v7522 = vpop.f32.mrf.mxu0
        %v7523 = vpop.f32.mrf.mxu0
        %v7524 = vadd.f32 %v7413, %v7523
        %v7525 = vpop.f32.mrf.mxu0
        %7526 = vmatprep.mubr.bf16.mxu0 0
        %7527 = vmatmul.mubr.bf16.gmra.mxu0 %v7427
        %v7528 = vpop.f32.mrf.mxu0
        %v7529 = vadd.f32 %v7413, %v7528
        %v7530 = vpop.f32.mrf.mxu0
        %v7531 = vpop.f32.mrf.mxu0
        %v7532 = vadd.f32 %v7413, %v7531
        %v7533 = vpop.f32.mrf.mxu0
        %7534 = vmatprep.mubr.bf16.mxu0 0
        %7535 = vmatmul.mubr.bf16.gmra.mxu0 %v7430
        %v7536 = vpop.f32.mrf.mxu0
        %v7537 = vadd.f32 %v7413, %v7536
        %v7538 = vpop.f32.mrf.mxu0
        %v7539 = vpop.f32.mrf.mxu0
        %v7540 = vadd.f32 %v7413, %v7539
        %v7541 = vpop.f32.mrf.mxu0
        %7542 = vmatprep.mubr.bf16.mxu0 0
        %7543 = vmatmul.mubr.bf16.gmra.mxu0 %v7433
        %v7544 = vpop.f32.mrf.mxu0
        %v7545 = vadd.f32 %v7413, %v7544
        %v7546 = vpop.f32.mrf.mxu0
        %v7547 = vpop.f32.mrf.mxu0
        %v7548 = vadd.f32 %v7413, %v7547
        %v7549 = vpop.f32.mrf.mxu0
        %7550 = vmatprep.mubr.bf16.mxu0 0
        %7551 = vmatmul.mubr.bf16.gmra.mxu0 %v7436
        %v7552 = vpop.f32.mrf.mxu0
        %v7553 = vadd.f32 %v7413, %v7552
        %v7554 = vpop.f32.mrf.mxu0
        %v7555 = vpop.f32.mrf.mxu0
        %v7556 = vadd.f32 %v7413, %v7555
        %v7557 = vpop.f32.mrf.mxu0
        %7558 = vmatprep.mubr.bf16.mxu0 0
        %7559 = vmatmul.mubr.bf16.gmra.mxu0 %v7439
        %v7560 = vpop.f32.mrf.mxu0
        %v7561 = vadd.f32 %v7413, %v7560
        %v7562 = vpop.f32.mrf.mxu0
        %v7563 = vpop.f32.mrf.mxu0
        %v7564 = vadd.f32 %v7413, %v7563
        %v7565 = vpop.f32.mrf.mxu0
        %7566 = vmatprep.mubr.bf16.mxu0 0
        %7567 = vmatmul.mubr.bf16.gmra.mxu0 %v7442
        %v7568 = vpop.f32.mrf.mxu0
        %v7569 = vadd.f32 %v7413, %v7568
        %v7570 = vpop.f32.mrf.mxu0
        %v7571 = vpop.f32.mrf.mxu0
        %v7572 = vadd.f32 %v7413, %v7571
        %v7573 = vpop.f32.mrf.mxu0
        %7574 = vmatprep.mubr.bf16.mxu0 0
        %7575 = vmatmul.mubr.bf16.gmra.mxu0 %v7445
        %v7576 = vpop.f32.mrf.mxu0
        %v7577 = vadd.f32 %v7413, %v7576
        %v7578 = vpop.f32.mrf.mxu0
        %v7579 = vpop.f32.mrf.mxu0
        %v7580 = vadd.f32 %v7413, %v7579
        %v7581 = vpop.f32.mrf.mxu0
        %7582 = vmatprep.mubr.bf16.mxu0 0
        %7583 = vmatmul.mubr.bf16.gmra.mxu0 %v7448
        %v7584 = vpop.f32.mrf.mxu0
        %v7585 = vadd.f32 %v7413, %v7584
        %v7586 = vpop.f32.mrf.mxu0
        %v7587 = vpop.f32.mrf.mxu0
        %v7588 = vadd.f32 %v7413, %v7587
        %v7589 = vpop.f32.mrf.mxu0
        %7590 = vmatprep.mubr.bf16.mxu0 0
        %7591 = vmatmul.mubr.bf16.gmra.mxu0 %v7451
        %v7592 = vpop.f32.mrf.mxu0
        %v7593 = vadd.f32 %v7413, %v7592
        %v7594 = vpop.f32.mrf.mxu0
        %v7595 = vpop.f32.mrf.mxu0
        %v7596 = vadd.f32 %v7413, %v7595
        %v7597 = vpop.f32.mrf.mxu0
        %7598 = vmatprep.mubr.bf16.mxu0 0
        %7599 = vmatmul.mubr.bf16.gmra.mxu0 %v7454
        %v7600 = vpop.f32.mrf.mxu0
        %v7601 = vadd.f32 %v7413, %v7600
        %v7602 = vpop.f32.mrf.mxu0
        %v7603 = vpop.f32.mrf.mxu0
        %v7604 = vadd.f32 %v7413, %v7603
        %v7605 = vpop.f32.mrf.mxu0
        %7606 = vmatprep.mubr.bf16.mxu0 0
        %7607 = vmatmul.mubr.bf16.gmra.mxu0 %v7457
        %v7608 = vpop.f32.mrf.mxu0
        %v7609 = vadd.f32 %v7413, %v7608
        %v7610 = vpop.f32.mrf.mxu0
        %v7611 = vpop.f32.mrf.mxu0
        %v7612 = vadd.f32 %v7413, %v7611
        %v7613 = vpop.f32.mrf.mxu0
        %7614 = vmatprep.mubr.bf16.mxu0 0
        %7615 = vmatmul.mubr.bf16.gmra.mxu0 %v7460
        %v7616 = vpop.f32.mrf.mxu0
        %v7617 = vadd.f32 %v7413, %v7616
        %v7618 = vpop.f32.mrf.mxu0
        %v7619 = vpop.f32.mrf.mxu0
        %v7620 = vadd.f32 %v7413, %v7619
        %v7621 = vpop.f32.mrf.mxu0
        %7622 = vdwg.mxu0
        %v7623 = vmul.f32 %v7497, 0.2
        %v7624 = vmul.f32 %v7500, 0.2
        %v7625 = vmul.f32 %v7505, 0.2
        %v7626 = vmul.f32 %v7508, 0.2
        %v7627 = vmul.f32 %v7513, 0.2
        %v7628 = vmul.f32 %v7516, 0.2
        %v7629 = vmul.f32 %v7521, 0.2
        %v7630 = vmul.f32 %v7524, 0.2
        %v7631 = vmul.f32 %v7529, 0.2
        %v7632 = vmul.f32 %v7532, 0.2
        %v7633 = vmul.f32 %v7537, 0.2
        %v7634 = vmul.f32 %v7540, 0.2
        %v7635 = vmul.f32 %v7545, 0.2
        %v7636 = vmul.f32 %v7548, 0.2
        %v7637 = vmul.f32 %v7553, 0.2
        %v7638 = vmul.f32 %v7556, 0.2
        %v7639 = vmul.f32 %v7561, 0.2
        %v7640 = vmul.f32 %v7564, 0.2
        %v7641 = vmul.f32 %v7569, 0.2
        %v7642 = vmul.f32 %v7572, 0.2
        %v7643 = vmul.f32 %v7577, 0.2
        %v7644 = vmul.f32 %v7580, 0.2
        %v7645 = vmul.f32 %v7585, 0.2
        %v7646 = vmul.f32 %v7588, 0.2
        %v7647 = vmul.f32 %v7593, 0.2
        %v7648 = vmul.f32 %v7596, 0.2
        %v7649 = vmul.f32 %v7601, 0.2
        %v7650 = vmul.f32 %v7604, 0.2
        %v7651 = vmul.f32 %v7609, 0.2
        %v7652 = vmul.f32 %v7612, 0.2
        %v7653 = vmul.f32 %v7617, 0.2
        %v7654 = vmul.f32 %v7620, 0.2
        %v7655 = vmax.f32 %v7497, %v7623
        %v7656 = vmax.f32 %v7500, %v7624
        %v7657 = vmax.f32 %v7505, %v7625
        %v7658 = vmax.f32 %v7508, %v7626
        %v7659 = vmax.f32 %v7513, %v7627
        %v7660 = vmax.f32 %v7516, %v7628
        %v7661 = vmax.f32 %v7521, %v7629
        %v7662 = vmax.f32 %v7524, %v7630
        %v7663 = vmax.f32 %v7529, %v7631
        %v7664 = vmax.f32 %v7532, %v7632
        %v7665 = vmax.f32 %v7537, %v7633
        %v7666 = vmax.f32 %v7540, %v7634
        %v7667 = vmax.f32 %v7545, %v7635
        %v7668 = vmax.f32 %v7548, %v7636
        %v7669 = vmax.f32 %v7553, %v7637
        %v7670 = vmax.f32 %v7556, %v7638
        %v7671 = vmax.f32 %v7561, %v7639
        %v7672 = vmax.f32 %v7564, %v7640
        %v7673 = vmax.f32 %v7569, %v7641
        %v7674 = vmax.f32 %v7572, %v7642
        %v7675 = vmax.f32 %v7577, %v7643
        %v7676 = vmax.f32 %v7580, %v7644
        %v7677 = vmax.f32 %v7585, %v7645
        %v7678 = vmax.f32 %v7588, %v7646
        %v7679 = vmax.f32 %v7593, %v7647
        %v7680 = vmax.f32 %v7596, %v7648
        %v7681 = vmax.f32 %v7601, %v7649
        %v7682 = vmax.f32 %v7604, %v7650
        %v7683 = vmax.f32 %v7609, %v7651
        %v7684 = vmax.f32 %v7612, %v7652
        %v7685 = vmax.f32 %v7617, %v7653
        %v7686 = vmax.f32 %v7620, %v7654
        %v7687 = vpack.c.bf16 %v7656, %v7655
        %v7688 = vpack.c.bf16 %v7658, %v7657
        %v7689 = vpack.c.bf16 %v7660, %v7659
        %v7690 = vpack.c.bf16 %v7662, %v7661
        %v7691 = vpack.c.bf16 %v7664, %v7663
        %v7692 = vpack.c.bf16 %v7666, %v7665
        %v7693 = vpack.c.bf16 %v7668, %v7667
        %v7694 = vpack.c.bf16 %v7670, %v7669
        %v7695 = vpack.c.bf16 %v7672, %v7671
        %v7696 = vpack.c.bf16 %v7674, %v7673
        %v7697 = vpack.c.bf16 %v7676, %v7675
        %v7698 = vpack.c.bf16 %v7678, %v7677
        %v7699 = vpack.c.bf16 %v7680, %v7679
        %v7700 = vpack.c.bf16 %v7682, %v7681
        %v7701 = vpack.c.bf16 %v7684, %v7683
        %v7702 = vpack.c.bf16 %v7686, %v7685
        %v7703 = vld [vmem:[%s1 + $0x428] sm:$0xff]
        %v7704 = vld [vmem:[%s1 + $0x430] sm:$0xff]
        %v7705 = vld [vmem:[%s1 + $0x438] sm:$0xff]
        %v7706 = vld [vmem:[%s1 + $0x440] sm:$0xff]
        %v7707 = vpack.c.bf16 %v7704, %v7703
        %v7708 = vpack.c.bf16 %v7706, %v7705
        %v7709 = vld [vmem:[#allocation3 + $0xe] sm:$0x1]
        %v7710 = vlaneseq
        %v7711 = vshrl.u32 %v7710, 7
        %v7712 = vsub.s32 0, %v7711
        %v7713 = vrot.slane %v7709, %v7712
        %v7715 = vsel %vm743, %v7687, 0
        %v7718 = vsel %vm743, %v7688, 0
        %v7721 = vsel %vm743, %v7689, 0
        %v7724 = vsel %vm743, %v7690, 0
        %v7727 = vsel %vm743, %v7691, 0
        %v7730 = vsel %vm743, %v7692, 0
        %v7733 = vsel %vm743, %v7693, 0
        %v7736 = vsel %vm743, %v7694, 0
        %v7739 = vsel %vm743, %v7695, 0
        %v7742 = vsel %vm743, %v7696, 0
        %v7745 = vsel %vm743, %v7697, 0
        %v7748 = vsel %vm743, %v7698, 0
        %v7751 = vsel %vm743, %v7699, 0
        %v7754 = vsel %vm743, %v7700, 0
        %v7757 = vsel %vm743, %v7701, 0
        %v7760 = vsel %vm743, %v7702, 0
        %7762 = vmatprep.subr.bf16.mxu0 0
        %7763 = vmatpush1.bf16.msra.mxu0 0
        %7764 = vmatprep.subr.bf16.mxu0 0
        %7765 = vmatpush1.bf16.msra.mxu0 0
        %7766 = vmatprep.subr.bf16.mxu0 0
        %7767 = vmatpush1.bf16.msra.mxu0 0
        %7768 = vmatprep.subr.bf16.mxu0 0
        %7769 = vmatpush1.bf16.msra.mxu0 0
        %7770 = vmatprep.subr.bf16.mxu0 0
        %7771 = vmatpush1.bf16.msra.mxu0 0
        %7772 = vmatprep.subr.bf16.mxu0 0
        %7773 = vmatpush1.bf16.msra.mxu0 0
        %7774 = vmatprep.subr.bf16.mxu0 0
        %7775 = vmatpush1.bf16.msra.mxu0 %v7708
        %7776 = vmatprep.subr.bf16.mxu0 0
        %7777 = vmatpush1.bf16.msra.mxu0 %v7707
        %7778 = vmatprep.subr.bf16.mxu0 0
        %7779 = vmatpush2.bf16.msra.mxu0 0
        %7780 = vmatprep.subr.bf16.mxu0 0
        %7781 = vmatpush2.bf16.msra.mxu0 0
        %7782 = vmatprep.subr.bf16.mxu0 0
        %7783 = vmatpush2.bf16.msra.mxu0 0
        %7784 = vmatprep.subr.bf16.mxu0 0
        %7785 = vmatpush2.bf16.msra.mxu0 0
        %7786 = vmatprep.subr.bf16.mxu0 0
        %7787 = vmatpush2.bf16.msra.mxu0 0
        %7788 = vmatprep.subr.bf16.mxu0 0
        %7789 = vmatpush2.bf16.msra.mxu0 0
        %7790 = vmatprep.subr.bf16.mxu0 0
        %7791 = vmatpush2.bf16.msra.mxu0 0
        %7792 = vmatprep.subr.bf16.mxu0 0
        %7793 = vmatpush2.bf16.msra.mxu0 0
        %7794 = vmatprep.mubr.bf16.mxu0 0
        %7795 = vmatmul.mubr.bf16.gmra.mxu0 %v7715
        %v7796 = vpop.f32.mrf.mxu0
        %v7797 = vadd.f32 %v7713, %v7796
        %v7798 = vpop.f32.mrf.mxu0
        %v7799 = vpop.f32.mrf.mxu0
        %v7800 = vadd.f32 %v7713, %v7799
        %v7801 = vpop.f32.mrf.mxu0
        %7802 = vmatprep.mubr.bf16.mxu0 0
        %7803 = vmatmul.mubr.bf16.gmra.mxu0 %v7718
        %v7804 = vpop.f32.mrf.mxu0
        %v7805 = vadd.f32 %v7713, %v7804
        %v7806 = vpop.f32.mrf.mxu0
        %v7807 = vpop.f32.mrf.mxu0
        %v7808 = vadd.f32 %v7713, %v7807
        %v7809 = vpop.f32.mrf.mxu0
        %7810 = vmatprep.mubr.bf16.mxu0 0
        %7811 = vmatmul.mubr.bf16.gmra.mxu0 %v7721
        %v7812 = vpop.f32.mrf.mxu0
        %v7813 = vadd.f32 %v7713, %v7812
        %v7814 = vpop.f32.mrf.mxu0
        %v7815 = vpop.f32.mrf.mxu0
        %v7816 = vadd.f32 %v7713, %v7815
        %v7817 = vpop.f32.mrf.mxu0
        %7818 = vmatprep.mubr.bf16.mxu0 0
        %7819 = vmatmul.mubr.bf16.gmra.mxu0 %v7724
        %v7820 = vpop.f32.mrf.mxu0
        %v7821 = vadd.f32 %v7713, %v7820
        %v7822 = vpop.f32.mrf.mxu0
        %v7823 = vpop.f32.mrf.mxu0
        %v7824 = vadd.f32 %v7713, %v7823
        %v7825 = vpop.f32.mrf.mxu0
        %7826 = vmatprep.mubr.bf16.mxu0 0
        %7827 = vmatmul.mubr.bf16.gmra.mxu0 %v7727
        %v7828 = vpop.f32.mrf.mxu0
        %v7829 = vadd.f32 %v7713, %v7828
        %v7830 = vpop.f32.mrf.mxu0
        %v7831 = vpop.f32.mrf.mxu0
        %v7832 = vadd.f32 %v7713, %v7831
        %v7833 = vpop.f32.mrf.mxu0
        %7834 = vmatprep.mubr.bf16.mxu0 0
        %7835 = vmatmul.mubr.bf16.gmra.mxu0 %v7730
        %v7836 = vpop.f32.mrf.mxu0
        %v7837 = vadd.f32 %v7713, %v7836
        %v7838 = vpop.f32.mrf.mxu0
        %v7839 = vpop.f32.mrf.mxu0
        %v7840 = vadd.f32 %v7713, %v7839
        %v7841 = vpop.f32.mrf.mxu0
        %7842 = vmatprep.mubr.bf16.mxu0 0
        %7843 = vmatmul.mubr.bf16.gmra.mxu0 %v7733
        %v7844 = vpop.f32.mrf.mxu0
        %v7845 = vadd.f32 %v7713, %v7844
        %v7846 = vpop.f32.mrf.mxu0
        %v7847 = vpop.f32.mrf.mxu0
        %v7848 = vadd.f32 %v7713, %v7847
        %v7849 = vpop.f32.mrf.mxu0
        %7850 = vmatprep.mubr.bf16.mxu0 0
        %7851 = vmatmul.mubr.bf16.gmra.mxu0 %v7736
        %v7852 = vpop.f32.mrf.mxu0
        %v7853 = vadd.f32 %v7713, %v7852
        %v7854 = vpop.f32.mrf.mxu0
        %v7855 = vpop.f32.mrf.mxu0
        %v7856 = vadd.f32 %v7713, %v7855
        %v7857 = vpop.f32.mrf.mxu0
        %7858 = vmatprep.mubr.bf16.mxu0 0
        %7859 = vmatmul.mubr.bf16.gmra.mxu0 %v7739
        %v7860 = vpop.f32.mrf.mxu0
        %v7861 = vadd.f32 %v7713, %v7860
        %v7862 = vpop.f32.mrf.mxu0
        %v7863 = vpop.f32.mrf.mxu0
        %v7864 = vadd.f32 %v7713, %v7863
        %v7865 = vpop.f32.mrf.mxu0
        %7866 = vmatprep.mubr.bf16.mxu0 0
        %7867 = vmatmul.mubr.bf16.gmra.mxu0 %v7742
        %v7868 = vpop.f32.mrf.mxu0
        %v7869 = vadd.f32 %v7713, %v7868
        %v7870 = vpop.f32.mrf.mxu0
        %v7871 = vpop.f32.mrf.mxu0
        %v7872 = vadd.f32 %v7713, %v7871
        %v7873 = vpop.f32.mrf.mxu0
        %7874 = vmatprep.mubr.bf16.mxu0 0
        %7875 = vmatmul.mubr.bf16.gmra.mxu0 %v7745
        %v7876 = vpop.f32.mrf.mxu0
        %v7877 = vadd.f32 %v7713, %v7876
        %v7878 = vpop.f32.mrf.mxu0
        %v7879 = vpop.f32.mrf.mxu0
        %v7880 = vadd.f32 %v7713, %v7879
        %v7881 = vpop.f32.mrf.mxu0
        %7882 = vmatprep.mubr.bf16.mxu0 0
        %7883 = vmatmul.mubr.bf16.gmra.mxu0 %v7748
        %v7884 = vpop.f32.mrf.mxu0
        %v7885 = vadd.f32 %v7713, %v7884
        %v7886 = vpop.f32.mrf.mxu0
        %v7887 = vpop.f32.mrf.mxu0
        %v7888 = vadd.f32 %v7713, %v7887
        %v7889 = vpop.f32.mrf.mxu0
        %7890 = vmatprep.mubr.bf16.mxu0 0
        %7891 = vmatmul.mubr.bf16.gmra.mxu0 %v7751
        %v7892 = vpop.f32.mrf.mxu0
        %v7893 = vadd.f32 %v7713, %v7892
        %v7894 = vpop.f32.mrf.mxu0
        %v7895 = vpop.f32.mrf.mxu0
        %v7896 = vadd.f32 %v7713, %v7895
        %v7897 = vpop.f32.mrf.mxu0
        %7898 = vmatprep.mubr.bf16.mxu0 0
        %7899 = vmatmul.mubr.bf16.gmra.mxu0 %v7754
        %v7900 = vpop.f32.mrf.mxu0
        %v7901 = vadd.f32 %v7713, %v7900
        %v7902 = vpop.f32.mrf.mxu0
        %v7903 = vpop.f32.mrf.mxu0
        %v7904 = vadd.f32 %v7713, %v7903
        %v7905 = vpop.f32.mrf.mxu0
        %7906 = vmatprep.mubr.bf16.mxu0 0
        %7907 = vmatmul.mubr.bf16.gmra.mxu0 %v7757
        %v7908 = vpop.f32.mrf.mxu0
        %v7909 = vadd.f32 %v7713, %v7908
        %v7910 = vpop.f32.mrf.mxu0
        %v7911 = vpop.f32.mrf.mxu0
        %v7912 = vadd.f32 %v7713, %v7911
        %v7913 = vpop.f32.mrf.mxu0
        %7914 = vmatprep.mubr.bf16.mxu0 0
        %7915 = vmatmul.mubr.bf16.gmra.mxu0 %v7760
        %v7916 = vpop.f32.mrf.mxu0
        %v7917 = vadd.f32 %v7713, %v7916
        %v7918 = vpop.f32.mrf.mxu0
        %v7919 = vpop.f32.mrf.mxu0
        %v7920 = vadd.f32 %v7713, %v7919
        %v7921 = vpop.f32.mrf.mxu0
        %7922 = vdwg.mxu0
        %7923 = vst.msk [vmem:[%s187] sm:$0xff] %vm743, %v7797
        %7924 = vst.msk [vmem:[%s187 + $0x8] sm:$0xff] %vm743, %v7800
        %7925 = vst.msk [vmem:[%s187 + $0x10] sm:$0xff] %vm743, %v7805
        %7926 = vst.msk [vmem:[%s187 + $0x18] sm:$0xff] %vm743, %v7808
        %7927 = vst.msk [vmem:[%s187 + $0x20] sm:$0xff] %vm743, %v7813
        %7928 = vst.msk [vmem:[%s187 + $0x28] sm:$0xff] %vm743, %v7816
        %7929 = vst.msk [vmem:[%s187 + $0x30] sm:$0xff] %vm743, %v7821
        %7930 = vst.msk [vmem:[%s187 + $0x38] sm:$0xff] %vm743, %v7824
        %7931 = vst.msk [vmem:[%s187 + $0x40] sm:$0xff] %vm743, %v7829
        %7932 = vst.msk [vmem:[%s187 + $0x48] sm:$0xff] %vm743, %v7832
        %7933 = vst.msk [vmem:[%s187 + $0x50] sm:$0xff] %vm743, %v7837
        %7934 = vst.msk [vmem:[%s187 + $0x58] sm:$0xff] %vm743, %v7840
        %7935 = vst.msk [vmem:[%s187 + $0x60] sm:$0xff] %vm743, %v7845
        %7936 = vst.msk [vmem:[%s187 + $0x68] sm:$0xff] %vm743, %v7848
        %7937 = vst.msk [vmem:[%s187 + $0x70] sm:$0xff] %vm743, %v7853
        %7938 = vst.msk [vmem:[%s187 + $0x78] sm:$0xff] %vm743, %v7856
        %7939 = vst.msk [vmem:[%s187 + $0x80] sm:$0xff] %vm743, %v7861
        %7940 = vst.msk [vmem:[%s187 + $0x88] sm:$0xff] %vm743, %v7864
        %7941 = vst.msk [vmem:[%s187 + $0x90] sm:$0xff] %vm743, %v7869
        %7942 = vst.msk [vmem:[%s187 + $0x98] sm:$0xff] %vm743, %v7872
        %7943 = vst.msk [vmem:[%s187 + $0xa0] sm:$0xff] %vm743, %v7877
        %7944 = vst.msk [vmem:[%s187 + $0xa8] sm:$0xff] %vm743, %v7880
        %7945 = vst.msk [vmem:[%s187 + $0xb0] sm:$0xff] %vm743, %v7885
        %7946 = vst.msk [vmem:[%s187 + $0xb8] sm:$0xff] %vm743, %v7888
        %7947 = vst.msk [vmem:[%s187 + $0xc0] sm:$0xff] %vm743, %v7893
        %7948 = vst.msk [vmem:[%s187 + $0xc8] sm:$0xff] %vm743, %v7896
        %7949 = vst.msk [vmem:[%s187 + $0xd0] sm:$0xff] %vm743, %v7901
        %7950 = vst.msk [vmem:[%s187 + $0xd8] sm:$0xff] %vm743, %v7904
        %7951 = vst.msk [vmem:[%s187 + $0xe0] sm:$0xff] %vm743, %v7909
        %7952 = vst.msk [vmem:[%s187 + $0xe8] sm:$0xff] %vm743, %v7912
        %7953 = vst.msk [vmem:[%s187 + $0xf0] sm:$0xff] %vm743, %v7917
        %7954 = vst.msk [vmem:[%s187 + $0xf8] sm:$0xff] %vm743, %v7920
        %s7955 = smul.u32 32, %s15
        %p7956 = scmp.lt.s32.totalorder %s7955, 63
        %s7957 = scalar_select %p7956, %s7955, 63
        %s7958 = smul.addr %s7957, 8
        %s7959 = scalar_lea.vmem %s3, %s7958
        // Predicated region
        $region37: #{disnet_forward.1} parent=31 // pred_check
          %p7960 = pneg %p101
        $region38: #{disnet_forward.1} parent=31 // pred_check_branch
          %7962 = sbr.rel (%p7960) target = $region40
        $region39: #{disnet_forward.1} parent=31 // pred_region
          %s7963 = smul.u32 32, %s15
        $region40: #{disnet_forward.1} parent=31 // pred_fallthru
          _
      $region32: #{disnet_forward.1} parent=5 // pred_fallthru
        _
      %p7964 = scmp.le.s32.totalorder 2, %s10
      // Predicated region
      $region41: #{disnet_forward.1} parent=5 // pred_check
        %p7965 = pneg %p7964
      $region42: #{disnet_forward.1} parent=5 // pred_check_branch
        %7967 = sbr.rel (%p7965) target = $region44
      $region43: #{disnet_forward.1} parent=5 // pred_region
        %s7968 = ssub.s32 %s10, 2
        // Predicated region
        $region45: #{disnet_forward.1} parent=43 // pred_check
          %p7969 = pneg %p107
        $region46: #{disnet_forward.1} parent=43 // pred_check_branch
          %7971 = sbr.rel (%p7969) target = $region48
        $region47: #{disnet_forward.1} parent=43 // pred_region
          %s7972 = smul.u32 32, %s16
          %p7973 = scmp.lt.s32.totalorder %s7972, 63
          %s7974 = scalar_select %p7973, %s7972, 63
          %s7975 = smul.addr %s7974, 8
          %s7976 = scalar_lea.vmem %s3, %s7975
        $region48: #{disnet_forward.1} parent=43 // pred_fallthru
          _
      $region44: #{disnet_forward.1} parent=5 // pred_fallthru
        _
    $region6: #{disnet_forward.1} parent=1 // loop_footer
      %s14 = sadd.s32 1, %s10
    $region7: #{disnet_forward.1} parent=1 // loop_footer_branch
      %9 = sbr.rel target = $region3
    $region8: #{disnet_forward.1} parent=1 // loop_exit
      _
    %7977 = vsyncpa [#allocation4], 1
    %s7978 = scalar_lea.sflag [#allocation4], 1
    %7979 = vsyncpa %s7978, 1

</llo_original>
